<compile_context>
chip_gen: v6e
topology: v6e:2x2x1
jax: 0.10.0
libtpu: 0.0.40
codegen_flags: <defaults>
</compile_context>

<pallas_src>
import functools

import numpy as np

import jax
import jax.numpy as jnp
from jax.experimental import pallas as pl
from jax.experimental.pallas import tpu as pltpu


# (kind, C_in, C_out, kernel, stride, padding, activation) per layer.
_LAYERS = (
    ("conv",   3,  8, 8, 2, 1, "relu"),
    ("conv",   8, 16, 4, 2, 1, "relu"),
    ("conv",  16, 32, 4, 2, 1, "relu"),
    ("convT", 32, 16, 4, 2, 1, "relu"),
    ("convT", 16,  8, 4, 2, 1, "relu"),
    ("convT",  8,  3, 8, 2, 1, "tanh"),
)

_LANE = 128


def _round_up(x, m):
    return (x + m - 1) // m * m


def _out_size(kind, n, k, s, p):
    if kind == "conv":
        return (n + 2 * p - k) // s + 1
    return (n - 1) * s - 2 * p + k            # ConvTranspose2d


def _sel_matrix(kind, k, s, p, n_in, n_out):
    """sel[t, o, i] = 1 iff input index i feeds output index o via kernel tap t."""
    sel = np.zeros((k, n_out, n_in), np.float32)
    for t in range(k):
        for o in range(n_out):
            if kind == "conv":
                i = s * o - p + t
            else:
                num = o + p - t
                if num % s != 0:
                    continue
                i = num // s
            if 0 <= i < n_in:
                sel[t, o, i] = 1.0
    return sel


def _layer_constants(kind, weight, bias, k, s, p, h_in, w_in, cin, cout, btile):
    """Fold one (transposed) conv layer into matmul form.

    Returns:
      L    : (k, B*Ho, B*Hi) bf16 - per-tap 0/1 row selection, block-diagonal
             over the batch tile (exact in bf16).
      G    : (k*in_lanes, out_lanes) bf16 - per-tap W/channel mixing matrices
             zero-padded to 128-lane slots and stacked along K.
      brow : (1, out_lanes) f32 - bias broadcast row (zero in padding lanes).
    """
    h_out = _out_size(kind, h_in, k, s, p)
    w_out = _out_size(kind, w_in, k, s, p)
    in_lanes = _round_up(w_in * cin, _LANE)
    out_lanes = _round_up(w_out * cout, _LANE)

    # H axis: per-tap row selection, block-diagonal over the batch tile.
    sel_h = _sel_matrix(kind, k, s, p, h_in, h_out)                 # (k, Ho, Hi)
    l_bd = np.einsum("ab,tij->taibj", np.eye(btile, dtype=np.float32), sel_h)
    l_bd = l_bd.reshape(k, btile * h_out, btile * h_in)
    L = jnp.asarray(l_bd, jnp.bfloat16)

    # W-axis band pattern: M[v, wi, wo] = 1 iff column wi feeds wo via tap v.
    m = np.transpose(_sel_matrix(kind, k, s, p, w_in, w_out), (0, 2, 1))
    if kind == "conv":        # PyTorch Conv2d weight: (Cout, Cin, kh, kw)
        wt = jnp.transpose(weight, (2, 3, 1, 0))                    # (kh,kw,Cin,Cout)
    else:                     # PyTorch ConvTranspose2d weight: (Cin, Cout, kh, kw)
        wt = jnp.transpose(weight, (2, 3, 0, 1))
    if wt.shape[2] < cin:     # zero-pad input channels (layer 0: 3 -> 4)
        wt = jnp.pad(wt, ((0, 0), (0, 0), (0, cin - wt.shape[2]), (0, 0)))

    # G[u, wi*Cin+ci, wo*Cout+co] = sum_v M[v, wi, wo] * wt[u, v, ci, co]
    g = jnp.einsum("vwx,uvio->uwixo", m, wt).reshape(k, w_in * cin, w_out * cout)
    g = jnp.pad(g, ((0, 0), (0, in_lanes - w_in * cin),
                    (0, out_lanes - w_out * cout)))
    G = g.reshape(k * in_lanes, out_lanes).astype(jnp.bfloat16)

    brow = jnp.pad(jnp.tile(bias, (w_out,)), (0, out_lanes - w_out * cout))
    brow = brow.reshape(1, out_lanes).astype(jnp.float32)
    return (L, G, brow), h_out, w_out, in_lanes, out_lanes


# ----------------------------------------------------------------------------
# The fused Pallas kernel: one batch tile per grid step, all 6 layers.
# ----------------------------------------------------------------------------
def _fused_kernel(*refs, layer_meta):
    x_ref, o_ref = refs[0], refs[-1]
    cref = refs[1:-1]
    a = x_ref[...]                                   # (B*Hi, 128) bf16 slab
    out = None
    idx = 0
    for k, act in layer_meta:                        # statically unrolled (6 layers)
        l_ref, g_ref, b_ref = cref[idx], cref[idx + 1], cref[idx + 2]
        idx += 3
        # Stage 1: per-tap H selection (0/1 matmul, exact in bf16), k taps.
        rows = [
            jnp.dot(l_ref[u], a, preferred_element_type=jnp.float32)
            .astype(jnp.bfloat16)
            for u in range(k)
        ]
        # Stage 2: fold all k taps into ONE MXU matmul (K = k*128 streams).
        stacked = jnp.concatenate(rows, axis=1) if k > 1 else rows[0]
        acc = jnp.dot(stacked, g_ref[...], preferred_element_type=jnp.float32)
        acc = acc + b_ref[...]                       # f32 bias / activation (VPU)
        out = jnp.maximum(acc, 0.0) if act == "relu" else jnp.tanh(acc)
        a = out.astype(jnp.bfloat16)                 # bf16 only at dot inputs
    o_ref[...] = out                                 # f32, lane-dense (B*Hf, 128)


def autoencoder8_forward(params, x, *, b_tile=4):
    n, cin, h_in, w_in = x.shape
    assert cin == _LAYERS[0][1]
    b_tile = max(1, min(b_tile, n))
    n_pad = _round_up(n, b_tile)
    cin_eff = _round_up(cin, 4)                      # lane-dense input: 3 -> 4
    in_lanes0 = _round_up(w_in * cin_eff, _LANE)

    # Boundary layout change only: NCHW -> channel-last 2-D slab (N*H, W*C),
    # zero-padded channels/lanes/batch, cast to bf16 (dot operand dtype).
    xc = jnp.transpose(x, (0, 2, 3, 1))
    xc = jnp.pad(xc, ((0, n_pad - n), (0, 0), (0, 0), (0, cin_eff - cin)))
    a2d = xc.reshape(n_pad * h_in, w_in * cin_eff)
    a2d = jnp.pad(a2d, ((0, 0), (0, in_lanes0 - w_in * cin_eff)))
    a2d = a2d.astype(jnp.bfloat16)

    consts, layer_meta = [], []
    h_cur, w_cur, c_cur = h_in, w_in, cin_eff
    total_macs = 0
    out_lanes = in_lanes0
    for li, (kind, _cin, cout, k, s, p, act) in enumerate(_LAYERS):
        (L, G, brow), h_out, w_out, in_lanes, out_lanes = _layer_constants(
            kind, params[f"w{li}"], params[f"b{li}"], k, s, p,
            h_cur, w_cur, c_cur, cout, b_tile)
        consts += [L, G, brow]
        layer_meta.append((k, act))
        total_macs += (k * (b_tile * h_out) * (b_tile * h_cur) * in_lanes
                       + (b_tile * h_out) * (k * in_lanes) * out_lanes)
        h_cur, w_cur, c_cur = h_out, w_out, cout
    hf, wf, cf = h_cur, w_cur, c_cur
    out_lanes_f = out_lanes

    num_steps = n_pad // b_tile
    # v7x: with batch=8, b_tile=4 -> num_steps=2, one step per TensorCore.

    in_specs = [pl.BlockSpec((b_tile * h_in, in_lanes0), lambda i: (i, 0))]
    for c in consts:
        nd = c.ndim
        in_specs.append(pl.BlockSpec(c.shape, lambda i, _nd=nd: (0,) * _nd))
    out_specs = pl.BlockSpec((b_tile * hf, out_lanes_f), lambda i: (i, 0))

    flops = int(2 * num_steps * total_macs)
    transcendentals = int(num_steps * b_tile * hf * out_lanes_f)
    bytes_accessed = int(
        2 * a2d.size
        + sum(int(c.size) * c.dtype.itemsize for c in consts)
        + 4 * n_pad * hf * out_lanes_f)

    out2d = pl.pallas_call(
        functools.partial(_fused_kernel, layer_meta=tuple(layer_meta)),
        out_shape=jax.ShapeDtypeStruct((n_pad * hf, out_lanes_f), jnp.float32),
        grid=(num_steps,),
        in_specs=in_specs,
        out_specs=out_specs,
        compiler_params=pltpu.CompilerParams(dimension_semantics=("parallel",)),
        cost_estimate=pl.CostEstimate(
            flops=flops, transcendentals=transcendentals,
            bytes_accessed=bytes_accessed),
    )(a2d, *consts)

    # Boundary layout change only: (N_pad*Hf, 128) -> slice lanes/batch -> NCHW.
    out = out2d.reshape(n_pad, hf, out_lanes_f)[:n, :, :wf * cf]
    out = out.reshape(n, hf, wf, cf)
    return jnp.transpose(out, (0, 3, 1, 2))


# ----------------------------------------------------------------------------
# Parameters (PyTorch-like uniform init) and a pure-JAX reference for checking.
# ----------------------------------------------------------------------------
def init_params(key):
    p = {}
    keys = jax.random.split(key, 2 * len(_LAYERS))
    for li, (kind, cin, cout, k, _s, _pad, _act) in enumerate(_LAYERS):
        if kind == "conv":
            shape = (cout, cin, k, k)
            fan_in = cin * k * k
        else:
            shape = (cin, cout, k, k)
            fan_in = cout * k * k
        bound = 1.0 / float(np.sqrt(fan_in))
        p[f"w{li}"] = jax.random.uniform(keys[2 * li], shape, jnp.float32,
                                         -bound, bound)
        p[f"b{li}"] = jax.random.uniform(keys[2 * li + 1], (cout,), jnp.float32,
                                         -bound, bound)
    return p


def _ref_forward(params, x):
    out = x
    for li, (kind, cin, cout, k, s, p, act) in enumerate(_LAYERS):
        w = params[f"w{li}"]
        b = params[f"b{li}"]
        if kind == "conv":
            out = jax.lax.conv_general_dilated(
                out, w, window_strides=(s, s), padding=[(p, p), (p, p)],
                dimension_numbers=("NCHW", "OIHW", "NCHW"),
                precision=jax.lax.Precision.HIGHEST)
        else:
            wf = jnp.flip(w, (2, 3)).transpose(1, 0, 2, 3)   # (Cout, Cin, k, k)
            q = k - 1 - p
            out = jax.lax.conv_general_dilated(
                out, wf, window_strides=(1, 1), padding=[(q, q), (q, q)],
                lhs_dilation=(s, s),
                dimension_numbers=("NCHW", "OIHW", "NCHW"),
                precision=jax.lax.Precision.HIGHEST)
        out = out + b[None, :, None, None]
        out = jnp.maximum(out, 0.0) if act == "relu" else jnp.tanh(out)
    return out


if __name__ == "__main__":
    key = jax.random.PRNGKey(0)
    pkey, xkey = jax.random.split(key)
    params = init_params(pkey)

    # Small input consistent with the module: NCHW, 3 input channels.
    # batch=8 with b_tile=4 -> grid of 2 (even, good for v7x megacore).
    x = jax.random.normal(xkey, (8, 3, 32, 32), jnp.float32)

    fwd = jax.jit(autoencoder8_forward)
    y = fwd(params, x)
    jax.block_until_ready(y)

    # Shape sanity: 32 -> 14 -> 7 -> 3 (encoder) -> 6 -> 12 -> 28 (decoder).
    assert y.shape == (8, 3, 28, 28), y.shape
    assert y.dtype == jnp.float32

    # Numerical sanity vs. a pure-JAX (lax.conv) f32 reference of the module.
    # bf16 dot operands with f32 accumulation -> a few e-3 absolute error.
    y_ref = jax.jit(_ref_forward)(params, x)
    err = float(jnp.max(jnp.abs(y - y_ref)))
    assert err < 3e-2, f"max abs error vs reference: {err}"

    print("KERNEL_OK")
</pallas_src>

<mosaic_0001>
module attributes {stable_mosaic.version = 11 : i64} {
  func.func @_fused_kernel(%arg0: i32, %arg1: memref<128x128xbf16, #tpu.memory_space<vmem>>, %arg2: memref<8x56x128xbf16, #tpu.memory_space<vmem>>, %arg3: memref<1024x128xbf16, #tpu.memory_space<vmem>>, %arg4: memref<1x128xf32, #tpu.memory_space<vmem>>, %arg5: memref<4x28x56xbf16, #tpu.memory_space<vmem>>, %arg6: memref<512x128xbf16, #tpu.memory_space<vmem>>, %arg7: memref<1x128xf32, #tpu.memory_space<vmem>>, %arg8: memref<4x12x28xbf16, #tpu.memory_space<vmem>>, %arg9: memref<512x128xbf16, #tpu.memory_space<vmem>>, %arg10: memref<1x128xf32, #tpu.memory_space<vmem>>, %arg11: memref<4x24x12xbf16, #tpu.memory_space<vmem>>, %arg12: memref<512x128xbf16, #tpu.memory_space<vmem>>, %arg13: memref<1x128xf32, #tpu.memory_space<vmem>>, %arg14: memref<4x48x24xbf16, #tpu.memory_space<vmem>>, %arg15: memref<512x128xbf16, #tpu.memory_space<vmem>>, %arg16: memref<1x128xf32, #tpu.memory_space<vmem>>, %arg17: memref<8x112x48xbf16, #tpu.memory_space<vmem>>, %arg18: memref<1024x128xbf16, #tpu.memory_space<vmem>>, %arg19: memref<1x128xf32, #tpu.memory_space<vmem>>, %arg20: memref<112x128xf32, #tpu.memory_space<vmem>>) attributes {dimension_semantics = [#tpu.dimension_semantics<parallel>], iteration_bounds = array<i64: 2>, scalar_prefetch = 0 : i64, scratch_operands = 0 : i64, tpu.core_type = #tpu.core_type<tc>, window_params = [{transform_indices = @transform_0, window_bounds = array<i64: 128, 128>}, {pipeline_mode = #tpu.pipeline_mode<synchronous>, transform_indices = @transform_1, window_bounds = array<i64: 8, 56, 128>}, {pipeline_mode = #tpu.pipeline_mode<synchronous>, transform_indices = @transform_2, window_bounds = array<i64: 1024, 128>}, {pipeline_mode = #tpu.pipeline_mode<synchronous>, transform_indices = @transform_3, window_bounds = array<i64: 1, 128>}, {pipeline_mode = #tpu.pipeline_mode<synchronous>, transform_indices = @transform_4, window_bounds = array<i64: 4, 28, 56>}, {pipeline_mode = #tpu.pipeline_mode<synchronous>, transform_indices = @transform_5, window_bounds = array<i64: 512, 128>}, {pipeline_mode = #tpu.pipeline_mode<synchronous>, transform_indices = @transform_6, window_bounds = array<i64: 1, 128>}, {pipeline_mode = #tpu.pipeline_mode<synchronous>, transform_indices = @transform_7, window_bounds = array<i64: 4, 12, 28>}, {pipeline_mode = #tpu.pipeline_mode<synchronous>, transform_indices = @transform_8, window_bounds = array<i64: 512, 128>}, {pipeline_mode = #tpu.pipeline_mode<synchronous>, transform_indices = @transform_9, window_bounds = array<i64: 1, 128>}, {pipeline_mode = #tpu.pipeline_mode<synchronous>, transform_indices = @transform_10, window_bounds = array<i64: 4, 24, 12>}, {pipeline_mode = #tpu.pipeline_mode<synchronous>, transform_indices = @transform_11, window_bounds = array<i64: 512, 128>}, {pipeline_mode = #tpu.pipeline_mode<synchronous>, transform_indices = @transform_12, window_bounds = array<i64: 1, 128>}, {pipeline_mode = #tpu.pipeline_mode<synchronous>, transform_indices = @transform_13, window_bounds = array<i64: 4, 48, 24>}, {pipeline_mode = #tpu.pipeline_mode<synchronous>, transform_indices = @transform_14, window_bounds = array<i64: 512, 128>}, {pipeline_mode = #tpu.pipeline_mode<synchronous>, transform_indices = @transform_15, window_bounds = array<i64: 1, 128>}, {pipeline_mode = #tpu.pipeline_mode<synchronous>, transform_indices = @transform_16, window_bounds = array<i64: 8, 112, 48>}, {pipeline_mode = #tpu.pipeline_mode<synchronous>, transform_indices = @transform_17, window_bounds = array<i64: 1024, 128>}, {pipeline_mode = #tpu.pipeline_mode<synchronous>, transform_indices = @transform_18, window_bounds = array<i64: 1, 128>}, {transform_indices = @transform_19, window_bounds = array<i64: 112, 128>}]} {
    %c0 = arith.constant 0 : index
    %c0_0 = arith.constant 0 : index
    %0 = vector.load %arg1[%c0, %c0_0] : memref<128x128xbf16, #tpu.memory_space<vmem>>, vector<128x128xbf16>
    %c0_1 = arith.constant 0 : index
    %c0_2 = arith.constant 0 : index
    %c0_3 = arith.constant 0 : index
    %1 = vector.load %arg2[%c0_1, %c0_2, %c0_3] : memref<8x56x128xbf16, #tpu.memory_space<vmem>>, vector<1x56x128xbf16>
    %2 = vector.shape_cast %1 : vector<1x56x128xbf16> to vector<56x128xbf16>
    %cst = arith.constant dense<0.000000e+00> : vector<56x128xf32>
    %3 = tpu.matmul %2, %0, %cst {dimension_numbers = #tpu.dot_dimension_numbers<[1], [0], [0], [1], [0, 0, 1, 1], [], []>} : vector<56x128xbf16>, vector<128x128xbf16>, vector<56x128xf32> -> vector<56x128xf32>
    %4 = arith.truncf %3 : vector<56x128xf32> to vector<56x128xbf16>
    %c1 = arith.constant 1 : index
    %c0_4 = arith.constant 0 : index
    %c0_5 = arith.constant 0 : index
    %5 = vector.load %arg2[%c1, %c0_4, %c0_5] : memref<8x56x128xbf16, #tpu.memory_space<vmem>>, vector<1x56x128xbf16>
    %6 = vector.shape_cast %5 : vector<1x56x128xbf16> to vector<56x128xbf16>
    %cst_6 = arith.constant dense<0.000000e+00> : vector<56x128xf32>
    %7 = tpu.matmul %6, %0, %cst_6 {dimension_numbers = #tpu.dot_dimension_numbers<[1], [0], [0], [1], [0, 0, 1, 1], [], []>} : vector<56x128xbf16>, vector<128x128xbf16>, vector<56x128xf32> -> vector<56x128xf32>
    %8 = arith.truncf %7 : vector<56x128xf32> to vector<56x128xbf16>
    %c2 = arith.constant 2 : index
    %c0_7 = arith.constant 0 : index
    %c0_8 = arith.constant 0 : index
    %9 = vector.load %arg2[%c2, %c0_7, %c0_8] : memref<8x56x128xbf16, #tpu.memory_space<vmem>>, vector<1x56x128xbf16>
    %10 = vector.shape_cast %9 : vector<1x56x128xbf16> to vector<56x128xbf16>
    %cst_9 = arith.constant dense<0.000000e+00> : vector<56x128xf32>
    %11 = tpu.matmul %10, %0, %cst_9 {dimension_numbers = #tpu.dot_dimension_numbers<[1], [0], [0], [1], [0, 0, 1, 1], [], []>} : vector<56x128xbf16>, vector<128x128xbf16>, vector<56x128xf32> -> vector<56x128xf32>
    %12 = arith.truncf %11 : vector<56x128xf32> to vector<56x128xbf16>
    %c3 = arith.constant 3 : index
    %c0_10 = arith.constant 0 : index
    %c0_11 = arith.constant 0 : index
    %13 = vector.load %arg2[%c3, %c0_10, %c0_11] : memref<8x56x128xbf16, #tpu.memory_space<vmem>>, vector<1x56x128xbf16>
    %14 = vector.shape_cast %13 : vector<1x56x128xbf16> to vector<56x128xbf16>
    %cst_12 = arith.constant dense<0.000000e+00> : vector<56x128xf32>
    %15 = tpu.matmul %14, %0, %cst_12 {dimension_numbers = #tpu.dot_dimension_numbers<[1], [0], [0], [1], [0, 0, 1, 1], [], []>} : vector<56x128xbf16>, vector<128x128xbf16>, vector<56x128xf32> -> vector<56x128xf32>
    %16 = arith.truncf %15 : vector<56x128xf32> to vector<56x128xbf16>
    %c4 = arith.constant 4 : index
    %c0_13 = arith.constant 0 : index
    %c0_14 = arith.constant 0 : index
    %17 = vector.load %arg2[%c4, %c0_13, %c0_14] : memref<8x56x128xbf16, #tpu.memory_space<vmem>>, vector<1x56x128xbf16>
    %18 = vector.shape_cast %17 : vector<1x56x128xbf16> to vector<56x128xbf16>
    %cst_15 = arith.constant dense<0.000000e+00> : vector<56x128xf32>
    %19 = tpu.matmul %18, %0, %cst_15 {dimension_numbers = #tpu.dot_dimension_numbers<[1], [0], [0], [1], [0, 0, 1, 1], [], []>} : vector<56x128xbf16>, vector<128x128xbf16>, vector<56x128xf32> -> vector<56x128xf32>
    %20 = arith.truncf %19 : vector<56x128xf32> to vector<56x128xbf16>
    %c5 = arith.constant 5 : index
    %c0_16 = arith.constant 0 : index
    %c0_17 = arith.constant 0 : index
    %21 = vector.load %arg2[%c5, %c0_16, %c0_17] : memref<8x56x128xbf16, #tpu.memory_space<vmem>>, vector<1x56x128xbf16>
    %22 = vector.shape_cast %21 : vector<1x56x128xbf16> to vector<56x128xbf16>
    %cst_18 = arith.constant dense<0.000000e+00> : vector<56x128xf32>
    %23 = tpu.matmul %22, %0, %cst_18 {dimension_numbers = #tpu.dot_dimension_numbers<[1], [0], [0], [1], [0, 0, 1, 1], [], []>} : vector<56x128xbf16>, vector<128x128xbf16>, vector<56x128xf32> -> vector<56x128xf32>
    %24 = arith.truncf %23 : vector<56x128xf32> to vector<56x128xbf16>
    %c6 = arith.constant 6 : index
    %c0_19 = arith.constant 0 : index
    %c0_20 = arith.constant 0 : index
    %25 = vector.load %arg2[%c6, %c0_19, %c0_20] : memref<8x56x128xbf16, #tpu.memory_space<vmem>>, vector<1x56x128xbf16>
    %26 = vector.shape_cast %25 : vector<1x56x128xbf16> to vector<56x128xbf16>
    %cst_21 = arith.constant dense<0.000000e+00> : vector<56x128xf32>
    %27 = tpu.matmul %26, %0, %cst_21 {dimension_numbers = #tpu.dot_dimension_numbers<[1], [0], [0], [1], [0, 0, 1, 1], [], []>} : vector<56x128xbf16>, vector<128x128xbf16>, vector<56x128xf32> -> vector<56x128xf32>
    %28 = arith.truncf %27 : vector<56x128xf32> to vector<56x128xbf16>
    %c7 = arith.constant 7 : index
    %c0_22 = arith.constant 0 : index
    %c0_23 = arith.constant 0 : index
    %29 = vector.load %arg2[%c7, %c0_22, %c0_23] : memref<8x56x128xbf16, #tpu.memory_space<vmem>>, vector<1x56x128xbf16>
    %30 = vector.shape_cast %29 : vector<1x56x128xbf16> to vector<56x128xbf16>
    %cst_24 = arith.constant dense<0.000000e+00> : vector<56x128xf32>
    %31 = tpu.matmul %30, %0, %cst_24 {dimension_numbers = #tpu.dot_dimension_numbers<[1], [0], [0], [1], [0, 0, 1, 1], [], []>} : vector<56x128xbf16>, vector<128x128xbf16>, vector<56x128xf32> -> vector<56x128xf32>
    %32 = arith.truncf %31 : vector<56x128xf32> to vector<56x128xbf16>
    %33 = tpu.concatenate %4, %8, %12, %16, %20, %24, %28, %32 in 1 : vector<56x128xbf16>, vector<56x128xbf16>, vector<56x128xbf16>, vector<56x128xbf16>, vector<56x128xbf16>, vector<56x128xbf16>, vector<56x128xbf16>, vector<56x128xbf16> -> vector<56x1024xbf16>
    %c0_25 = arith.constant 0 : index
    %c0_26 = arith.constant 0 : index
    %34 = vector.load %arg3[%c0_25, %c0_26] : memref<1024x128xbf16, #tpu.memory_space<vmem>>, vector<1024x128xbf16>
    %cst_27 = arith.constant dense<0.000000e+00> : vector<56x128xf32>
    %35 = tpu.matmul %33, %34, %cst_27 {dimension_numbers = #tpu.dot_dimension_numbers<[1], [0], [0], [1], [0, 0, 1, 1], [], []>} : vector<56x1024xbf16>, vector<1024x128xbf16>, vector<56x128xf32> -> vector<56x128xf32>
    %c0_28 = arith.constant 0 : index
    %c0_29 = arith.constant 0 : index
    %36 = vector.load %arg4[%c0_28, %c0_29] : memref<1x128xf32, #tpu.memory_space<vmem>>, vector<1x128xf32>
    %37 = vector.broadcast %36 : vector<1x128xf32> to vector<56x128xf32>
    %38 = arith.addf %35, %37 : vector<56x128xf32>
    %cst_30 = arith.constant 0.000000e+00 : f32
    %39 = vector.broadcast %cst_30 : f32 to vector<56x128xf32>
    %40 = arith.maximumf %38, %39 : vector<56x128xf32>
    %41 = arith.truncf %40 : vector<56x128xf32> to vector<56x128xbf16>
    %c0_31 = arith.constant 0 : index
    %c0_32 = arith.constant 0 : index
    %c0_33 = arith.constant 0 : index
    %42 = vector.load %arg5[%c0_31, %c0_32, %c0_33] : memref<4x28x56xbf16, #tpu.memory_space<vmem>>, vector<1x28x56xbf16>
    %43 = vector.shape_cast %42 : vector<1x28x56xbf16> to vector<28x56xbf16>
    %cst_34 = arith.constant dense<0.000000e+00> : vector<28x128xf32>
    %44 = tpu.matmul %43, %41, %cst_34 {dimension_numbers = #tpu.dot_dimension_numbers<[1], [0], [0], [1], [0, 0, 1, 1], [], []>} : vector<28x56xbf16>, vector<56x128xbf16>, vector<28x128xf32> -> vector<28x128xf32>
    %45 = arith.truncf %44 : vector<28x128xf32> to vector<28x128xbf16>
    %c1_35 = arith.constant 1 : index
    %c0_36 = arith.constant 0 : index
    %c0_37 = arith.constant 0 : index
    %46 = vector.load %arg5[%c1_35, %c0_36, %c0_37] : memref<4x28x56xbf16, #tpu.memory_space<vmem>>, vector<1x28x56xbf16>
    %47 = vector.shape_cast %46 : vector<1x28x56xbf16> to vector<28x56xbf16>
    %cst_38 = arith.constant dense<0.000000e+00> : vector<28x128xf32>
    %48 = tpu.matmul %47, %41, %cst_38 {dimension_numbers = #tpu.dot_dimension_numbers<[1], [0], [0], [1], [0, 0, 1, 1], [], []>} : vector<28x56xbf16>, vector<56x128xbf16>, vector<28x128xf32> -> vector<28x128xf32>
    %49 = arith.truncf %48 : vector<28x128xf32> to vector<28x128xbf16>
    %c2_39 = arith.constant 2 : index
    %c0_40 = arith.constant 0 : index
    %c0_41 = arith.constant 0 : index
    %50 = vector.load %arg5[%c2_39, %c0_40, %c0_41] : memref<4x28x56xbf16, #tpu.memory_space<vmem>>, vector<1x28x56xbf16>
    %51 = vector.shape_cast %50 : vector<1x28x56xbf16> to vector<28x56xbf16>
    %cst_42 = arith.constant dense<0.000000e+00> : vector<28x128xf32>
    %52 = tpu.matmul %51, %41, %cst_42 {dimension_numbers = #tpu.dot_dimension_numbers<[1], [0], [0], [1], [0, 0, 1, 1], [], []>} : vector<28x56xbf16>, vector<56x128xbf16>, vector<28x128xf32> -> vector<28x128xf32>
    %53 = arith.truncf %52 : vector<28x128xf32> to vector<28x128xbf16>
    %c3_43 = arith.constant 3 : index
    %c0_44 = arith.constant 0 : index
    %c0_45 = arith.constant 0 : index
    %54 = vector.load %arg5[%c3_43, %c0_44, %c0_45] : memref<4x28x56xbf16, #tpu.memory_space<vmem>>, vector<1x28x56xbf16>
    %55 = vector.shape_cast %54 : vector<1x28x56xbf16> to vector<28x56xbf16>
    %cst_46 = arith.constant dense<0.000000e+00> : vector<28x128xf32>
    %56 = tpu.matmul %55, %41, %cst_46 {dimension_numbers = #tpu.dot_dimension_numbers<[1], [0], [0], [1], [0, 0, 1, 1], [], []>} : vector<28x56xbf16>, vector<56x128xbf16>, vector<28x128xf32> -> vector<28x128xf32>
    %57 = arith.truncf %56 : vector<28x128xf32> to vector<28x128xbf16>
    %58 = tpu.concatenate %45, %49, %53, %57 in 1 : vector<28x128xbf16>, vector<28x128xbf16>, vector<28x128xbf16>, vector<28x128xbf16> -> vector<28x512xbf16>
    %c0_47 = arith.constant 0 : index
    %c0_48 = arith.constant 0 : index
    %59 = vector.load %arg6[%c0_47, %c0_48] : memref<512x128xbf16, #tpu.memory_space<vmem>>, vector<512x128xbf16>
    %cst_49 = arith.constant dense<0.000000e+00> : vector<28x128xf32>
    %60 = tpu.matmul %58, %59, %cst_49 {dimension_numbers = #tpu.dot_dimension_numbers<[1], [0], [0], [1], [0, 0, 1, 1], [], []>} : vector<28x512xbf16>, vector<512x128xbf16>, vector<28x128xf32> -> vector<28x128xf32>
    %c0_50 = arith.constant 0 : index
    %c0_51 = arith.constant 0 : index
    %61 = vector.load %arg7[%c0_50, %c0_51] : memref<1x128xf32, #tpu.memory_space<vmem>>, vector<1x128xf32>
    %62 = vector.broadcast %61 : vector<1x128xf32> to vector<28x128xf32>
    %63 = arith.addf %60, %62 : vector<28x128xf32>
    %cst_52 = arith.constant 0.000000e+00 : f32
    %64 = vector.broadcast %cst_52 : f32 to vector<28x128xf32>
    %65 = arith.maximumf %63, %64 : vector<28x128xf32>
    %66 = arith.truncf %65 : vector<28x128xf32> to vector<28x128xbf16>
    %c0_53 = arith.constant 0 : index
    %c0_54 = arith.constant 0 : index
    %c0_55 = arith.constant 0 : index
    %67 = vector.load %arg8[%c0_53, %c0_54, %c0_55] : memref<4x12x28xbf16, #tpu.memory_space<vmem>>, vector<1x12x28xbf16>
    %68 = vector.shape_cast %67 : vector<1x12x28xbf16> to vector<12x28xbf16>
    %cst_56 = arith.constant dense<0.000000e+00> : vector<12x128xf32>
    %69 = tpu.matmul %68, %66, %cst_56 {dimension_numbers = #tpu.dot_dimension_numbers<[1], [0], [0], [1], [0, 0, 1, 1], [], []>} : vector<12x28xbf16>, vector<28x128xbf16>, vector<12x128xf32> -> vector<12x128xf32>
    %70 = arith.truncf %69 : vector<12x128xf32> to vector<12x128xbf16>
    %c1_57 = arith.constant 1 : index
    %c0_58 = arith.constant 0 : index
    %c0_59 = arith.constant 0 : index
    %71 = vector.load %arg8[%c1_57, %c0_58, %c0_59] : memref<4x12x28xbf16, #tpu.memory_space<vmem>>, vector<1x12x28xbf16>
    %72 = vector.shape_cast %71 : vector<1x12x28xbf16> to vector<12x28xbf16>
    %cst_60 = arith.constant dense<0.000000e+00> : vector<12x128xf32>
    %73 = tpu.matmul %72, %66, %cst_60 {dimension_numbers = #tpu.dot_dimension_numbers<[1], [0], [0], [1], [0, 0, 1, 1], [], []>} : vector<12x28xbf16>, vector<28x128xbf16>, vector<12x128xf32> -> vector<12x128xf32>
    %74 = arith.truncf %73 : vector<12x128xf32> to vector<12x128xbf16>
    %c2_61 = arith.constant 2 : index
    %c0_62 = arith.constant 0 : index
    %c0_63 = arith.constant 0 : index
    %75 = vector.load %arg8[%c2_61, %c0_62, %c0_63] : memref<4x12x28xbf16, #tpu.memory_space<vmem>>, vector<1x12x28xbf16>
    %76 = vector.shape_cast %75 : vector<1x12x28xbf16> to vector<12x28xbf16>
    %cst_64 = arith.constant dense<0.000000e+00> : vector<12x128xf32>
    %77 = tpu.matmul %76, %66, %cst_64 {dimension_numbers = #tpu.dot_dimension_numbers<[1], [0], [0], [1], [0, 0, 1, 1], [], []>} : vector<12x28xbf16>, vector<28x128xbf16>, vector<12x128xf32> -> vector<12x128xf32>
    %78 = arith.truncf %77 : vector<12x128xf32> to vector<12x128xbf16>
    %c3_65 = arith.constant 3 : index
    %c0_66 = arith.constant 0 : index
    %c0_67 = arith.constant 0 : index
    %79 = vector.load %arg8[%c3_65, %c0_66, %c0_67] : memref<4x12x28xbf16, #tpu.memory_space<vmem>>, vector<1x12x28xbf16>
    %80 = vector.shape_cast %79 : vector<1x12x28xbf16> to vector<12x28xbf16>
    %cst_68 = arith.constant dense<0.000000e+00> : vector<12x128xf32>
    %81 = tpu.matmul %80, %66, %cst_68 {dimension_numbers = #tpu.dot_dimension_numbers<[1], [0], [0], [1], [0, 0, 1, 1], [], []>} : vector<12x28xbf16>, vector<28x128xbf16>, vector<12x128xf32> -> vector<12x128xf32>
    %82 = arith.truncf %81 : vector<12x128xf32> to vector<12x128xbf16>
    %83 = tpu.concatenate %70, %74, %78, %82 in 1 : vector<12x128xbf16>, vector<12x128xbf16>, vector<12x128xbf16>, vector<12x128xbf16> -> vector<12x512xbf16>
    %c0_69 = arith.constant 0 : index
    %c0_70 = arith.constant 0 : index
    %84 = vector.load %arg9[%c0_69, %c0_70] : memref<512x128xbf16, #tpu.memory_space<vmem>>, vector<512x128xbf16>
    %cst_71 = arith.constant dense<0.000000e+00> : vector<12x128xf32>
    %85 = tpu.matmul %83, %84, %cst_71 {dimension_numbers = #tpu.dot_dimension_numbers<[1], [0], [0], [1], [0, 0, 1, 1], [], []>} : vector<12x512xbf16>, vector<512x128xbf16>, vector<12x128xf32> -> vector<12x128xf32>
    %c0_72 = arith.constant 0 : index
    %c0_73 = arith.constant 0 : index
    %86 = vector.load %arg10[%c0_72, %c0_73] : memref<1x128xf32, #tpu.memory_space<vmem>>, vector<1x128xf32>
    %87 = vector.broadcast %86 : vector<1x128xf32> to vector<12x128xf32>
    %88 = arith.addf %85, %87 : vector<12x128xf32>
    %cst_74 = arith.constant 0.000000e+00 : f32
    %89 = vector.broadcast %cst_74 : f32 to vector<12x128xf32>
    %90 = arith.maximumf %88, %89 : vector<12x128xf32>
    %91 = arith.truncf %90 : vector<12x128xf32> to vector<12x128xbf16>
    %c0_75 = arith.constant 0 : index
    %c0_76 = arith.constant 0 : index
    %c0_77 = arith.constant 0 : index
    %92 = vector.load %arg11[%c0_75, %c0_76, %c0_77] : memref<4x24x12xbf16, #tpu.memory_space<vmem>>, vector<1x24x12xbf16>
    %93 = vector.shape_cast %92 : vector<1x24x12xbf16> to vector<24x12xbf16>
    %cst_78 = arith.constant dense<0.000000e+00> : vector<24x128xf32>
    %94 = tpu.matmul %93, %91, %cst_78 {dimension_numbers = #tpu.dot_dimension_numbers<[1], [0], [0], [1], [0, 0, 1, 1], [], []>} : vector<24x12xbf16>, vector<12x128xbf16>, vector<24x128xf32> -> vector<24x128xf32>
    %95 = arith.truncf %94 : vector<24x128xf32> to vector<24x128xbf16>
    %c1_79 = arith.constant 1 : index
    %c0_80 = arith.constant 0 : index
    %c0_81 = arith.constant 0 : index
    %96 = vector.load %arg11[%c1_79, %c0_80, %c0_81] : memref<4x24x12xbf16, #tpu.memory_space<vmem>>, vector<1x24x12xbf16>
    %97 = vector.shape_cast %96 : vector<1x24x12xbf16> to vector<24x12xbf16>
    %cst_82 = arith.constant dense<0.000000e+00> : vector<24x128xf32>
    %98 = tpu.matmul %97, %91, %cst_82 {dimension_numbers = #tpu.dot_dimension_numbers<[1], [0], [0], [1], [0, 0, 1, 1], [], []>} : vector<24x12xbf16>, vector<12x128xbf16>, vector<24x128xf32> -> vector<24x128xf32>
    %99 = arith.truncf %98 : vector<24x128xf32> to vector<24x128xbf16>
    %c2_83 = arith.constant 2 : index
    %c0_84 = arith.constant 0 : index
    %c0_85 = arith.constant 0 : index
    %100 = vector.load %arg11[%c2_83, %c0_84, %c0_85] : memref<4x24x12xbf16, #tpu.memory_space<vmem>>, vector<1x24x12xbf16>
    %101 = vector.shape_cast %100 : vector<1x24x12xbf16> to vector<24x12xbf16>
    %cst_86 = arith.constant dense<0.000000e+00> : vector<24x128xf32>
    %102 = tpu.matmul %101, %91, %cst_86 {dimension_numbers = #tpu.dot_dimension_numbers<[1], [0], [0], [1], [0, 0, 1, 1], [], []>} : vector<24x12xbf16>, vector<12x128xbf16>, vector<24x128xf32> -> vector<24x128xf32>
    %103 = arith.truncf %102 : vector<24x128xf32> to vector<24x128xbf16>
    %c3_87 = arith.constant 3 : index
    %c0_88 = arith.constant 0 : index
    %c0_89 = arith.constant 0 : index
    %104 = vector.load %arg11[%c3_87, %c0_88, %c0_89] : memref<4x24x12xbf16, #tpu.memory_space<vmem>>, vector<1x24x12xbf16>
    %105 = vector.shape_cast %104 : vector<1x24x12xbf16> to vector<24x12xbf16>
    %cst_90 = arith.constant dense<0.000000e+00> : vector<24x128xf32>
    %106 = tpu.matmul %105, %91, %cst_90 {dimension_numbers = #tpu.dot_dimension_numbers<[1], [0], [0], [1], [0, 0, 1, 1], [], []>} : vector<24x12xbf16>, vector<12x128xbf16>, vector<24x128xf32> -> vector<24x128xf32>
    %107 = arith.truncf %106 : vector<24x128xf32> to vector<24x128xbf16>
    %108 = tpu.concatenate %95, %99, %103, %107 in 1 : vector<24x128xbf16>, vector<24x128xbf16>, vector<24x128xbf16>, vector<24x128xbf16> -> vector<24x512xbf16>
    %c0_91 = arith.constant 0 : index
    %c0_92 = arith.constant 0 : index
    %109 = vector.load %arg12[%c0_91, %c0_92] : memref<512x128xbf16, #tpu.memory_space<vmem>>, vector<512x128xbf16>
    %cst_93 = arith.constant dense<0.000000e+00> : vector<24x128xf32>
    %110 = tpu.matmul %108, %109, %cst_93 {dimension_numbers = #tpu.dot_dimension_numbers<[1], [0], [0], [1], [0, 0, 1, 1], [], []>} : vector<24x512xbf16>, vector<512x128xbf16>, vector<24x128xf32> -> vector<24x128xf32>
    %c0_94 = arith.constant 0 : index
    %c0_95 = arith.constant 0 : index
    %111 = vector.load %arg13[%c0_94, %c0_95] : memref<1x128xf32, #tpu.memory_space<vmem>>, vector<1x128xf32>
    %112 = vector.broadcast %111 : vector<1x128xf32> to vector<24x128xf32>
    %113 = arith.addf %110, %112 : vector<24x128xf32>
    %cst_96 = arith.constant 0.000000e+00 : f32
    %114 = vector.broadcast %cst_96 : f32 to vector<24x128xf32>
    %115 = arith.maximumf %113, %114 : vector<24x128xf32>
    %116 = arith.truncf %115 : vector<24x128xf32> to vector<24x128xbf16>
    %c0_97 = arith.constant 0 : index
    %c0_98 = arith.constant 0 : index
    %c0_99 = arith.constant 0 : index
    %117 = vector.load %arg14[%c0_97, %c0_98, %c0_99] : memref<4x48x24xbf16, #tpu.memory_space<vmem>>, vector<1x48x24xbf16>
    %118 = vector.shape_cast %117 : vector<1x48x24xbf16> to vector<48x24xbf16>
    %cst_100 = arith.constant dense<0.000000e+00> : vector<48x128xf32>
    %119 = tpu.matmul %118, %116, %cst_100 {dimension_numbers = #tpu.dot_dimension_numbers<[1], [0], [0], [1], [0, 0, 1, 1], [], []>} : vector<48x24xbf16>, vector<24x128xbf16>, vector<48x128xf32> -> vector<48x128xf32>
    %120 = arith.truncf %119 : vector<48x128xf32> to vector<48x128xbf16>
    %c1_101 = arith.constant 1 : index
    %c0_102 = arith.constant 0 : index
    %c0_103 = arith.constant 0 : index
    %121 = vector.load %arg14[%c1_101, %c0_102, %c0_103] : memref<4x48x24xbf16, #tpu.memory_space<vmem>>, vector<1x48x24xbf16>
    %122 = vector.shape_cast %121 : vector<1x48x24xbf16> to vector<48x24xbf16>
    %cst_104 = arith.constant dense<0.000000e+00> : vector<48x128xf32>
    %123 = tpu.matmul %122, %116, %cst_104 {dimension_numbers = #tpu.dot_dimension_numbers<[1], [0], [0], [1], [0, 0, 1, 1], [], []>} : vector<48x24xbf16>, vector<24x128xbf16>, vector<48x128xf32> -> vector<48x128xf32>
    %124 = arith.truncf %123 : vector<48x128xf32> to vector<48x128xbf16>
    %c2_105 = arith.constant 2 : index
    %c0_106 = arith.constant 0 : index
    %c0_107 = arith.constant 0 : index
    %125 = vector.load %arg14[%c2_105, %c0_106, %c0_107] : memref<4x48x24xbf16, #tpu.memory_space<vmem>>, vector<1x48x24xbf16>
    %126 = vector.shape_cast %125 : vector<1x48x24xbf16> to vector<48x24xbf16>
    %cst_108 = arith.constant dense<0.000000e+00> : vector<48x128xf32>
    %127 = tpu.matmul %126, %116, %cst_108 {dimension_numbers = #tpu.dot_dimension_numbers<[1], [0], [0], [1], [0, 0, 1, 1], [], []>} : vector<48x24xbf16>, vector<24x128xbf16>, vector<48x128xf32> -> vector<48x128xf32>
    %128 = arith.truncf %127 : vector<48x128xf32> to vector<48x128xbf16>
    %c3_109 = arith.constant 3 : index
    %c0_110 = arith.constant 0 : index
    %c0_111 = arith.constant 0 : index
    %129 = vector.load %arg14[%c3_109, %c0_110, %c0_111] : memref<4x48x24xbf16, #tpu.memory_space<vmem>>, vector<1x48x24xbf16>
    %130 = vector.shape_cast %129 : vector<1x48x24xbf16> to vector<48x24xbf16>
    %cst_112 = arith.constant dense<0.000000e+00> : vector<48x128xf32>
    %131 = tpu.matmul %130, %116, %cst_112 {dimension_numbers = #tpu.dot_dimension_numbers<[1], [0], [0], [1], [0, 0, 1, 1], [], []>} : vector<48x24xbf16>, vector<24x128xbf16>, vector<48x128xf32> -> vector<48x128xf32>
    %132 = arith.truncf %131 : vector<48x128xf32> to vector<48x128xbf16>
    %133 = tpu.concatenate %120, %124, %128, %132 in 1 : vector<48x128xbf16>, vector<48x128xbf16>, vector<48x128xbf16>, vector<48x128xbf16> -> vector<48x512xbf16>
    %c0_113 = arith.constant 0 : index
    %c0_114 = arith.constant 0 : index
    %134 = vector.load %arg15[%c0_113, %c0_114] : memref<512x128xbf16, #tpu.memory_space<vmem>>, vector<512x128xbf16>
    %cst_115 = arith.constant dense<0.000000e+00> : vector<48x128xf32>
    %135 = tpu.matmul %133, %134, %cst_115 {dimension_numbers = #tpu.dot_dimension_numbers<[1], [0], [0], [1], [0, 0, 1, 1], [], []>} : vector<48x512xbf16>, vector<512x128xbf16>, vector<48x128xf32> -> vector<48x128xf32>
    %c0_116 = arith.constant 0 : index
    %c0_117 = arith.constant 0 : index
    %136 = vector.load %arg16[%c0_116, %c0_117] : memref<1x128xf32, #tpu.memory_space<vmem>>, vector<1x128xf32>
    %137 = vector.broadcast %136 : vector<1x128xf32> to vector<48x128xf32>
    %138 = arith.addf %135, %137 : vector<48x128xf32>
    %cst_118 = arith.constant 0.000000e+00 : f32
    %139 = vector.broadcast %cst_118 : f32 to vector<48x128xf32>
    %140 = arith.maximumf %138, %139 : vector<48x128xf32>
    %141 = arith.truncf %140 : vector<48x128xf32> to vector<48x128xbf16>
    %c0_119 = arith.constant 0 : index
    %c0_120 = arith.constant 0 : index
    %c0_121 = arith.constant 0 : index
    %142 = vector.load %arg17[%c0_119, %c0_120, %c0_121] : memref<8x112x48xbf16, #tpu.memory_space<vmem>>, vector<1x112x48xbf16>
    %143 = vector.shape_cast %142 : vector<1x112x48xbf16> to vector<112x48xbf16>
    %cst_122 = arith.constant dense<0.000000e+00> : vector<112x128xf32>
    %144 = tpu.matmul %143, %141, %cst_122 {dimension_numbers = #tpu.dot_dimension_numbers<[1], [0], [0], [1], [0, 0, 1, 1], [], []>} : vector<112x48xbf16>, vector<48x128xbf16>, vector<112x128xf32> -> vector<112x128xf32>
    %145 = arith.truncf %144 : vector<112x128xf32> to vector<112x128xbf16>
    %c1_123 = arith.constant 1 : index
    %c0_124 = arith.constant 0 : index
    %c0_125 = arith.constant 0 : index
    %146 = vector.load %arg17[%c1_123, %c0_124, %c0_125] : memref<8x112x48xbf16, #tpu.memory_space<vmem>>, vector<1x112x48xbf16>
    %147 = vector.shape_cast %146 : vector<1x112x48xbf16> to vector<112x48xbf16>
    %cst_126 = arith.constant dense<0.000000e+00> : vector<112x128xf32>
    %148 = tpu.matmul %147, %141, %cst_126 {dimension_numbers = #tpu.dot_dimension_numbers<[1], [0], [0], [1], [0, 0, 1, 1], [], []>} : vector<112x48xbf16>, vector<48x128xbf16>, vector<112x128xf32> -> vector<112x128xf32>
    %149 = arith.truncf %148 : vector<112x128xf32> to vector<112x128xbf16>
    %c2_127 = arith.constant 2 : index
    %c0_128 = arith.constant 0 : index
    %c0_129 = arith.constant 0 : index
    %150 = vector.load %arg17[%c2_127, %c0_128, %c0_129] : memref<8x112x48xbf16, #tpu.memory_space<vmem>>, vector<1x112x48xbf16>
    %151 = vector.shape_cast %150 : vector<1x112x48xbf16> to vector<112x48xbf16>
    %cst_130 = arith.constant dense<0.000000e+00> : vector<112x128xf32>
    %152 = tpu.matmul %151, %141, %cst_130 {dimension_numbers = #tpu.dot_dimension_numbers<[1], [0], [0], [1], [0, 0, 1, 1], [], []>} : vector<112x48xbf16>, vector<48x128xbf16>, vector<112x128xf32> -> vector<112x128xf32>
    %153 = arith.truncf %152 : vector<112x128xf32> to vector<112x128xbf16>
    %c3_131 = arith.constant 3 : index
    %c0_132 = arith.constant 0 : index
    %c0_133 = arith.constant 0 : index
    %154 = vector.load %arg17[%c3_131, %c0_132, %c0_133] : memref<8x112x48xbf16, #tpu.memory_space<vmem>>, vector<1x112x48xbf16>
    %155 = vector.shape_cast %154 : vector<1x112x48xbf16> to vector<112x48xbf16>
    %cst_134 = arith.constant dense<0.000000e+00> : vector<112x128xf32>
    %156 = tpu.matmul %155, %141, %cst_134 {dimension_numbers = #tpu.dot_dimension_numbers<[1], [0], [0], [1], [0, 0, 1, 1], [], []>} : vector<112x48xbf16>, vector<48x128xbf16>, vector<112x128xf32> -> vector<112x128xf32>
    %157 = arith.truncf %156 : vector<112x128xf32> to vector<112x128xbf16>
    %c4_135 = arith.constant 4 : index
    %c0_136 = arith.constant 0 : index
    %c0_137 = arith.constant 0 : index
    %158 = vector.load %arg17[%c4_135, %c0_136, %c0_137] : memref<8x112x48xbf16, #tpu.memory_space<vmem>>, vector<1x112x48xbf16>
    %159 = vector.shape_cast %158 : vector<1x112x48xbf16> to vector<112x48xbf16>
    %cst_138 = arith.constant dense<0.000000e+00> : vector<112x128xf32>
    %160 = tpu.matmul %159, %141, %cst_138 {dimension_numbers = #tpu.dot_dimension_numbers<[1], [0], [0], [1], [0, 0, 1, 1], [], []>} : vector<112x48xbf16>, vector<48x128xbf16>, vector<112x128xf32> -> vector<112x128xf32>
    %161 = arith.truncf %160 : vector<112x128xf32> to vector<112x128xbf16>
    %c5_139 = arith.constant 5 : index
    %c0_140 = arith.constant 0 : index
    %c0_141 = arith.constant 0 : index
    %162 = vector.load %arg17[%c5_139, %c0_140, %c0_141] : memref<8x112x48xbf16, #tpu.memory_space<vmem>>, vector<1x112x48xbf16>
    %163 = vector.shape_cast %162 : vector<1x112x48xbf16> to vector<112x48xbf16>
    %cst_142 = arith.constant dense<0.000000e+00> : vector<112x128xf32>
    %164 = tpu.matmul %163, %141, %cst_142 {dimension_numbers = #tpu.dot_dimension_numbers<[1], [0], [0], [1], [0, 0, 1, 1], [], []>} : vector<112x48xbf16>, vector<48x128xbf16>, vector<112x128xf32> -> vector<112x128xf32>
    %165 = arith.truncf %164 : vector<112x128xf32> to vector<112x128xbf16>
    %c6_143 = arith.constant 6 : index
    %c0_144 = arith.constant 0 : index
    %c0_145 = arith.constant 0 : index
    %166 = vector.load %arg17[%c6_143, %c0_144, %c0_145] : memref<8x112x48xbf16, #tpu.memory_space<vmem>>, vector<1x112x48xbf16>
    %167 = vector.shape_cast %166 : vector<1x112x48xbf16> to vector<112x48xbf16>
    %cst_146 = arith.constant dense<0.000000e+00> : vector<112x128xf32>
    %168 = tpu.matmul %167, %141, %cst_146 {dimension_numbers = #tpu.dot_dimension_numbers<[1], [0], [0], [1], [0, 0, 1, 1], [], []>} : vector<112x48xbf16>, vector<48x128xbf16>, vector<112x128xf32> -> vector<112x128xf32>
    %169 = arith.truncf %168 : vector<112x128xf32> to vector<112x128xbf16>
    %c7_147 = arith.constant 7 : index
    %c0_148 = arith.constant 0 : index
    %c0_149 = arith.constant 0 : index
    %170 = vector.load %arg17[%c7_147, %c0_148, %c0_149] : memref<8x112x48xbf16, #tpu.memory_space<vmem>>, vector<1x112x48xbf16>
    %171 = vector.shape_cast %170 : vector<1x112x48xbf16> to vector<112x48xbf16>
    %cst_150 = arith.constant dense<0.000000e+00> : vector<112x128xf32>
    %172 = tpu.matmul %171, %141, %cst_150 {dimension_numbers = #tpu.dot_dimension_numbers<[1], [0], [0], [1], [0, 0, 1, 1], [], []>} : vector<112x48xbf16>, vector<48x128xbf16>, vector<112x128xf32> -> vector<112x128xf32>
    %173 = arith.truncf %172 : vector<112x128xf32> to vector<112x128xbf16>
    %174 = tpu.concatenate %145, %149, %153, %157, %161, %165, %169, %173 in 1 : vector<112x128xbf16>, vector<112x128xbf16>, vector<112x128xbf16>, vector<112x128xbf16>, vector<112x128xbf16>, vector<112x128xbf16>, vector<112x128xbf16>, vector<112x128xbf16> -> vector<112x1024xbf16>
    %c0_151 = arith.constant 0 : index
    %c0_152 = arith.constant 0 : index
    %175 = vector.load %arg18[%c0_151, %c0_152] : memref<1024x128xbf16, #tpu.memory_space<vmem>>, vector<1024x128xbf16>
    %cst_153 = arith.constant dense<0.000000e+00> : vector<112x128xf32>
    %176 = tpu.matmul %174, %175, %cst_153 {dimension_numbers = #tpu.dot_dimension_numbers<[1], [0], [0], [1], [0, 0, 1, 1], [], []>} : vector<112x1024xbf16>, vector<1024x128xbf16>, vector<112x128xf32> -> vector<112x128xf32>
    %c0_154 = arith.constant 0 : index
    %c0_155 = arith.constant 0 : index
    %177 = vector.load %arg19[%c0_154, %c0_155] : memref<1x128xf32, #tpu.memory_space<vmem>>, vector<1x128xf32>
    %178 = vector.broadcast %177 : vector<1x128xf32> to vector<112x128xf32>
    %179 = arith.addf %176, %178 : vector<112x128xf32>
    %180 = math.tanh %179 : vector<112x128xf32>
    %c0_156 = arith.constant 0 : index
    %c0_157 = arith.constant 0 : index
    %181 = vector.load %arg20[%c0_156, %c0_157] : memref<112x128xf32, #tpu.memory_space<vmem>>, vector<112x128xf32>
    tpu.vector_store %arg20[%c0_156, %c0_157], %180 {strides = array<i32>} : memref<112x128xf32, #tpu.memory_space<vmem>>, vector<112x128xf32>,
    return
  }
  func.func @transform_0(%arg0: i32) -> (i32, i32) {
    %c0_i32 = arith.constant 0 : i32
    %c0_i32_0 = arith.constant 0 : i32
    return %arg0, %c0_i32 : i32, i32
  }
  func.func @transform_1(%arg0: i32) -> (i32, i32, i32) {
    %c0_i32 = arith.constant 0 : i32
    %c0_i32_0 = arith.constant 0 : i32
    %c0_i32_1 = arith.constant 0 : i32
    %c0_i32_2 = arith.constant 0 : i32
    return %c0_i32, %c0_i32_0, %c0_i32_1 : i32, i32, i32
  }
  func.func @transform_2(%arg0: i32) -> (i32, i32) {
    %c0_i32 = arith.constant 0 : i32
    %c0_i32_0 = arith.constant 0 : i32
    %c0_i32_1 = arith.constant 0 : i32
    return %c0_i32, %c0_i32_0 : i32, i32
  }
  func.func @transform_3(%arg0: i32) -> (i32, i32) {
    %c0_i32 = arith.constant 0 : i32
    %c0_i32_0 = arith.constant 0 : i32
    %c0_i32_1 = arith.constant 0 : i32
    return %c0_i32, %c0_i32_0 : i32, i32
  }
  func.func @transform_4(%arg0: i32) -> (i32, i32, i32) {
    %c0_i32 = arith.constant 0 : i32
    %c0_i32_0 = arith.constant 0 : i32
    %c0_i32_1 = arith.constant 0 : i32
    %c0_i32_2 = arith.constant 0 : i32
    return %c0_i32, %c0_i32_0, %c0_i32_1 : i32, i32, i32
  }
  func.func @transform_5(%arg0: i32) -> (i32, i32) {
    %c0_i32 = arith.constant 0 : i32
    %c0_i32_0 = arith.constant 0 : i32
    %c0_i32_1 = arith.constant 0 : i32
    return %c0_i32, %c0_i32_0 : i32, i32
  }
  func.func @transform_6(%arg0: i32) -> (i32, i32) {
    %c0_i32 = arith.constant 0 : i32
    %c0_i32_0 = arith.constant 0 : i32
    %c0_i32_1 = arith.constant 0 : i32
    return %c0_i32, %c0_i32_0 : i32, i32
  }
  func.func @transform_7(%arg0: i32) -> (i32, i32, i32) {
    %c0_i32 = arith.constant 0 : i32
    %c0_i32_0 = arith.constant 0 : i32
    %c0_i32_1 = arith.constant 0 : i32
    %c0_i32_2 = arith.constant 0 : i32
    return %c0_i32, %c0_i32_0, %c0_i32_1 : i32, i32, i32
  }
  func.func @transform_8(%arg0: i32) -> (i32, i32) {
    %c0_i32 = arith.constant 0 : i32
    %c0_i32_0 = arith.constant 0 : i32
    %c0_i32_1 = arith.constant 0 : i32
    return %c0_i32, %c0_i32_0 : i32, i32
  }
  func.func @transform_9(%arg0: i32) -> (i32, i32) {
    %c0_i32 = arith.constant 0 : i32
    %c0_i32_0 = arith.constant 0 : i32
    %c0_i32_1 = arith.constant 0 : i32
    return %c0_i32, %c0_i32_0 : i32, i32
  }
  func.func @transform_10(%arg0: i32) -> (i32, i32, i32) {
    %c0_i32 = arith.constant 0 : i32
    %c0_i32_0 = arith.constant 0 : i32
    %c0_i32_1 = arith.constant 0 : i32
    %c0_i32_2 = arith.constant 0 : i32
    return %c0_i32, %c0_i32_0, %c0_i32_1 : i32, i32, i32
  }
  func.func @transform_11(%arg0: i32) -> (i32, i32) {
    %c0_i32 = arith.constant 0 : i32
    %c0_i32_0 = arith.constant 0 : i32
    %c0_i32_1 = arith.constant 0 : i32
    return %c0_i32, %c0_i32_0 : i32, i32
  }
  func.func @transform_12(%arg0: i32) -> (i32, i32) {
    %c0_i32 = arith.constant 0 : i32
    %c0_i32_0 = arith.constant 0 : i32
    %c0_i32_1 = arith.constant 0 : i32
    return %c0_i32, %c0_i32_0 : i32, i32
  }
  func.func @transform_13(%arg0: i32) -> (i32, i32, i32) {
    %c0_i32 = arith.constant 0 : i32
    %c0_i32_0 = arith.constant 0 : i32
    %c0_i32_1 = arith.constant 0 : i32
    %c0_i32_2 = arith.constant 0 : i32
    return %c0_i32, %c0_i32_0, %c0_i32_1 : i32, i32, i32
  }
  func.func @transform_14(%arg0: i32) -> (i32, i32) {
    %c0_i32 = arith.constant 0 : i32
    %c0_i32_0 = arith.constant 0 : i32
    %c0_i32_1 = arith.constant 0 : i32
    return %c0_i32, %c0_i32_0 : i32, i32
  }
  func.func @transform_15(%arg0: i32) -> (i32, i32) {
    %c0_i32 = arith.constant 0 : i32
    %c0_i32_0 = arith.constant 0 : i32
    %c0_i32_1 = arith.constant 0 : i32
    return %c0_i32, %c0_i32_0 : i32, i32
  }
  func.func @transform_16(%arg0: i32) -> (i32, i32, i32) {
    %c0_i32 = arith.constant 0 : i32
    %c0_i32_0 = arith.constant 0 : i32
    %c0_i32_1 = arith.constant 0 : i32
    %c0_i32_2 = arith.constant 0 : i32
    return %c0_i32, %c0_i32_0, %c0_i32_1 : i32, i32, i32
  }
  func.func @transform_17(%arg0: i32) -> (i32, i32) {
    %c0_i32 = arith.constant 0 : i32
    %c0_i32_0 = arith.constant 0 : i32
    %c0_i32_1 = arith.constant 0 : i32
    return %c0_i32, %c0_i32_0 : i32, i32
  }
  func.func @transform_18(%arg0: i32) -> (i32, i32) {
    %c0_i32 = arith.constant 0 : i32
    %c0_i32_0 = arith.constant 0 : i32
    %c0_i32_1 = arith.constant 0 : i32
    return %c0_i32, %c0_i32_0 : i32, i32
  }
  func.func @transform_19(%arg0: i32) -> (i32, i32) {
    %c0_i32 = arith.constant 0 : i32
    %c0_i32_0 = arith.constant 0 : i32
    return %arg0, %c0_i32 : i32, i32
  }
}

</mosaic_0001>

<llo_original>
// kernel: tile.54
$region0: #{tile.54}
  %s0 = inlined_call_operand.vmem [shape: f32[12,8], index: 0, kind: input, shape index: {}]
  %s1 = inlined_call_operand.vmem [shape: f32[96], index: 1, kind: output, shape index: {}]
  $region1: #{tile.54} parent=0
    #allocation0 [shape = 'u8[4096]{0}', space=vmem, size = 0x1000, scoped, tag = 'scoped mem for output reshape']
    %v2 = vld [vmem:[%s0] sm:$0x1]
    %vm3 = vcmask 64512
    %4 = vst.msk [vmem:[#allocation0] sm:$0x1] %vm3, %v2
    %s5 = scalar_lea.vmem %s0, 11
    %v6 = vld [vmem:[%s5] sm:$0x1]
    %7 = vrot.lane.b32.xlu0 %v6, 88
    %v8 = vpop.permute.xlu0 %7
    %vm9 = vcmask 786112
    %10 = vst.msk [vmem:[#allocation0] sm:$0x1] %vm9, %v8
    %s11 = scalar_lea.vmem %s0, 10
    %v12 = vld [vmem:[%s11] sm:$0x1]
    %13 = vrot.lane.b32.xlu0 %v12, 80
    %v14 = vpop.permute.xlu0 %13
    %vm15 = vcmask 720512
    %16 = vst.msk [vmem:[#allocation0] sm:$0x1] %vm15, %v14
    %s17 = scalar_lea.vmem %s0, 9
    %v18 = vld [vmem:[%s17] sm:$0x1]
    %19 = vrot.lane.b32.xlu0 %v18, 72
    %v20 = vpop.permute.xlu0 %19
    %vm21 = vcmask 654912
    %22 = vst.msk [vmem:[#allocation0] sm:$0x1] %vm21, %v20
    %s23 = scalar_lea.vmem %s0, 8
    %v24 = vld [vmem:[%s23] sm:$0x1]
    %25 = vrot.lane.b32.xlu0 %v24, 64
    %v26 = vpop.permute.xlu0 %25
    %vm27 = vcmask 589312
    %28 = vst.msk [vmem:[#allocation0] sm:$0x1] %vm27, %v26
    %s29 = scalar_lea.vmem %s0, 7
    %v30 = vld [vmem:[%s29] sm:$0x1]
    %31 = vrot.lane.b32.xlu0 %v30, 56
    %v32 = vpop.permute.xlu0 %31
    %vm33 = vcmask 523712
    %34 = vst.msk [vmem:[#allocation0] sm:$0x1] %vm33, %v32
    %s35 = scalar_lea.vmem %s0, 6
    %v36 = vld [vmem:[%s35] sm:$0x1]
    %37 = vrot.lane.b32.xlu0 %v36, 48
    %v38 = vpop.permute.xlu0 %37
    %vm39 = vcmask 458112
    %40 = vst.msk [vmem:[#allocation0] sm:$0x1] %vm39, %v38
    %s41 = scalar_lea.vmem %s0, 5
    %v42 = vld [vmem:[%s41] sm:$0x1]
    %43 = vrot.lane.b32.xlu0 %v42, 40
    %v44 = vpop.permute.xlu0 %43
    %vm45 = vcmask 392512
    %46 = vst.msk [vmem:[#allocation0] sm:$0x1] %vm45, %v44
    %s47 = scalar_lea.vmem %s0, 4
    %v48 = vld [vmem:[%s47] sm:$0x1]
    %49 = vrot.lane.b32.xlu0 %v48, 32
    %v50 = vpop.permute.xlu0 %49
    %vm51 = vcmask 326912
    %52 = vst.msk [vmem:[#allocation0] sm:$0x1] %vm51, %v50
    %s53 = scalar_lea.vmem %s0, 3
    %v54 = vld [vmem:[%s53] sm:$0x1]
    %55 = vrot.lane.b32.xlu0 %v54, 24
    %v56 = vpop.permute.xlu0 %55
    %vm57 = vcmask 261312
    %58 = vst.msk [vmem:[#allocation0] sm:$0x1] %vm57, %v56
    %s59 = scalar_lea.vmem %s0, 2
    %v60 = vld [vmem:[%s59] sm:$0x1]
    %61 = vrot.lane.b32.xlu0 %v60, 16
    %v62 = vpop.permute.xlu0 %61
    %vm63 = vcmask 195712
    %64 = vst.msk [vmem:[#allocation0] sm:$0x1] %vm63, %v62
    %s65 = scalar_lea.vmem %s0, 1
    %v66 = vld [vmem:[%s65] sm:$0x1]
    %67 = vrot.lane.b32.xlu0 %v66, 8
    %v68 = vpop.permute.xlu0 %67
    %vm69 = vcmask 130112
    %70 = vst.msk [vmem:[#allocation0] sm:$0x1] %vm69, %v68
    %s72 = sshll.u32 1, 1
    %s73 = ssub.s32 %s72, 1
    %v75 = vld [vmem:[#allocation0] sm:%s73]
    %s76 = sshll.u32 1, 1
    %s77 = ssub.s32 %s76, 1
    %78 = vst [vmem:[%s1] sm:%s77] %v75

// kernel: tile.53
$region0: #{tile.53}
  #allocation2 [shape = 's32[1]{0}', space=sflag, size = 0x4, scoped, tag = 'scoped memory for tile.53']
  %s0 = inlined_call_operand.hbm [shape: f32[8], index: 0, kind: input, shape index: {}]
  %s1 = inlined_call_operand.vmem [shape: f32[12,8], index: 1, kind: output, shape index: {}]
  $region1: #{tile.53} parent=0
    #allocation0 [shape = 'u8[512]{0}', space=vmem, size = 0x400, scoped, tag = 'operand span for operand 0']
    #allocation1 [shape = 's32[1]{0}', space=sflag, size = 0x4, scoped, tag = 'scoped memory for tile.53']
    %2 = vsyncpa [#allocation1], 0
    // Predicated region
    $region2: #{tile.53} parent=1 // pred_check
      _
    $region3: #{tile.53} parent=1 // pred_check_branch
      %4 = sbr.rel (0) target = $region5
    $region4: #{tile.53} parent=1 // pred_region
      %s6 = ssub.s32 16, 16
      %7 = vsyncadd [#allocation1], %s6
      %s9 = sshll.u32 [#allocation0], 4
      %s10 = int_to_ptr.vmem [resolvable:$true] %s9
      %12 = dma.hbm_to_vmem [thread:$0]  %s0, 16, %s10, [#allocation1]
    $region5: #{tile.53} parent=1 // pred_fallthru
      _
    // Predicated region
    $region6: #{tile.53} parent=1 // pred_check
      _
    $region7: #{tile.53} parent=1 // pred_check_branch
      %14 = sbr.rel (0) target = $region9
    $region8: #{tile.53} parent=1 // pred_region
      %15 = dma.done [#allocation1], 16
    $region9: #{tile.53} parent=1 // pred_fallthru
      _
    %v16 = vld [vmem:[#allocation0] ss:$0 sm:$0xff]
    %17 = vst [vmem:[%s1] sm:$0xff] %v16
    %s18 = scalar_lea.vmem %s1, 8
    %19 = vst [vmem:[%s18] sm:$0xff] %v16
    %20 = vsyncpa [#allocation1], 1

// kernel: tile.58
$region0: #{tile.58}
  #allocation2 [shape = 's32[1]{0}', space=sflag, size = 0x4, scoped, tag = 'scoped memory for tile.58']
  %s0 = inlined_call_operand.hbm [shape: f32[3], index: 0, kind: input, shape index: {}]
  %s1 = inlined_call_operand.vmem [shape: f32[28,3], index: 1, kind: output, shape index: {}]
  $region1: #{tile.58} parent=0
    #allocation0 [shape = 'u8[512]{0}', space=vmem, size = 0x400, scoped, tag = 'operand span for operand 0']
    #allocation1 [shape = 's32[1]{0}', space=sflag, size = 0x4, scoped, tag = 'scoped memory for tile.58']
    %2 = vsyncpa [#allocation1], 0
    // Predicated region
    $region2: #{tile.58} parent=1 // pred_check
      _
    $region3: #{tile.58} parent=1 // pred_check_branch
      %4 = sbr.rel (0) target = $region5
    $region4: #{tile.58} parent=1 // pred_region
      %s6 = ssub.s32 16, 16
      %7 = vsyncadd [#allocation1], %s6
      %s9 = sshll.u32 [#allocation0], 4
      %s10 = int_to_ptr.vmem [resolvable:$true] %s9
      %12 = dma.hbm_to_vmem [thread:$0]  %s0, 16, %s10, [#allocation1]
    $region5: #{tile.58} parent=1 // pred_fallthru
      _
    // Predicated region
    $region6: #{tile.58} parent=1 // pred_check
      _
    $region7: #{tile.58} parent=1 // pred_check_branch
      %14 = sbr.rel (0) target = $region9
    $region8: #{tile.58} parent=1 // pred_region
      %15 = dma.done [#allocation1], 16
    $region9: #{tile.58} parent=1 // pred_fallthru
      _
    %v16 = vld [vmem:[#allocation0] ss:$0 sm:$0xff]
    %17 = vst [vmem:[%s1] sm:$0xff] %v16
    %s18 = scalar_lea.vmem %s1, 8
    %19 = vst [vmem:[%s18] sm:$0xff] %v16
    %s20 = scalar_lea.vmem %s1, 16
    %21 = vst [vmem:[%s20] sm:$0xff] %v16
    %s22 = scalar_lea.vmem %s1, 24
    %23 = vst [vmem:[%s22] sm:$0xff] %v16
    %24 = vsyncpa [#allocation1], 1

// kernel: tile.59
$region0: #{tile.59}
  %s0 = inlined_call_operand.vmem [shape: f32[28,3], index: 0, kind: input, shape index: {}]
  %s1 = inlined_call_operand.vmem [shape: f32[84], index: 1, kind: output, shape index: {}]
  $region1: #{tile.59} parent=0
    #allocation0 [shape = 'u8[4096]{0}', space=vmem, size = 0x1000, scoped, tag = 'scoped mem for output reshape']
    %v2 = vld [vmem:[%s0] sm:$0x1]
    %vm3 = vcmask 23552
    %4 = vst.msk [vmem:[#allocation0] sm:$0x1] %vm3, %v2
    %s5 = scalar_lea.vmem %s0, 27
    %v6 = vld [vmem:[%s5] sm:$0x1]
    %7 = vrot.lane.b32.xlu0 %v6, 81
    %v8 = vpop.permute.xlu0 %7
    %vm9 = vcmask 687752
    %10 = vst.msk [vmem:[#allocation0] sm:$0x1] %vm9, %v8
    %s11 = scalar_lea.vmem %s0, 26
    %v12 = vld [vmem:[%s11] sm:$0x1]
    %13 = vrot.lane.b32.xlu0 %v12, 78
    %v14 = vpop.permute.xlu0 %13
    %vm15 = vcmask 663152
    %16 = vst.msk [vmem:[#allocation0] sm:$0x1] %vm15, %v14
    %s17 = scalar_lea.vmem %s0, 25
    %v18 = vld [vmem:[%s17] sm:$0x1]
    %19 = vrot.lane.b32.xlu0 %v18, 75
    %v20 = vpop.permute.xlu0 %19
    %vm21 = vcmask 638552
    %22 = vst.msk [vmem:[#allocation0] sm:$0x1] %vm21, %v20
    %s23 = scalar_lea.vmem %s0, 24
    %v24 = vld [vmem:[%s23] sm:$0x1]
    %25 = vrot.lane.b32.xlu0 %v24, 72
    %v26 = vpop.permute.xlu0 %25
    %vm27 = vcmask 613952
    %28 = vst.msk [vmem:[#allocation0] sm:$0x1] %vm27, %v26
    %s29 = scalar_lea.vmem %s0, 23
    %v30 = vld [vmem:[%s29] sm:$0x1]
    %31 = vrot.lane.b32.xlu0 %v30, 69
    %v32 = vpop.permute.xlu0 %31
    %vm33 = vcmask 589352
    %34 = vst.msk [vmem:[#allocation0] sm:$0x1] %vm33, %v32
    %s35 = scalar_lea.vmem %s0, 22
    %v36 = vld [vmem:[%s35] sm:$0x1]
    %37 = vrot.lane.b32.xlu0 %v36, 66
    %v38 = vpop.permute.xlu0 %37
    %vm39 = vcmask 564752
    %40 = vst.msk [vmem:[#allocation0] sm:$0x1] %vm39, %v38
    %s41 = scalar_lea.vmem %s0, 21
    %v42 = vld [vmem:[%s41] sm:$0x1]
    %43 = vrot.lane.b32.xlu0 %v42, 63
    %v44 = vpop.permute.xlu0 %43
    %vm45 = vcmask 540152
    %46 = vst.msk [vmem:[#allocation0] sm:$0x1] %vm45, %v44
    %s47 = scalar_lea.vmem %s0, 20
    %v48 = vld [vmem:[%s47] sm:$0x1]
    %49 = vrot.lane.b32.xlu0 %v48, 60
    %v50 = vpop.permute.xlu0 %49
    %vm51 = vcmask 515552
    %52 = vst.msk [vmem:[#allocation0] sm:$0x1] %vm51, %v50
    %s53 = scalar_lea.vmem %s0, 19
    %v54 = vld [vmem:[%s53] sm:$0x1]
    %55 = vrot.lane.b32.xlu0 %v54, 57
    %v56 = vpop.permute.xlu0 %55
    %vm57 = vcmask 490952
    %58 = vst.msk [vmem:[#allocation0] sm:$0x1] %vm57, %v56
    %s59 = scalar_lea.vmem %s0, 18
    %v60 = vld [vmem:[%s59] sm:$0x1]
    %61 = vrot.lane.b32.xlu0 %v60, 54
    %v62 = vpop.permute.xlu0 %61
    %vm63 = vcmask 466352
    %64 = vst.msk [vmem:[#allocation0] sm:$0x1] %vm63, %v62
    %s65 = scalar_lea.vmem %s0, 17
    %v66 = vld [vmem:[%s65] sm:$0x1]
    %67 = vrot.lane.b32.xlu0 %v66, 51
    %v68 = vpop.permute.xlu0 %67
    %vm69 = vcmask 441752
    %70 = vst.msk [vmem:[#allocation0] sm:$0x1] %vm69, %v68
    %s71 = scalar_lea.vmem %s0, 16
    %v72 = vld [vmem:[%s71] sm:$0x1]
    %73 = vrot.lane.b32.xlu0 %v72, 48
    %v74 = vpop.permute.xlu0 %73
    %vm75 = vcmask 417152
    %76 = vst.msk [vmem:[#allocation0] sm:$0x1] %vm75, %v74
    %s77 = scalar_lea.vmem %s0, 15
    %v78 = vld [vmem:[%s77] sm:$0x1]
    %79 = vrot.lane.b32.xlu0 %v78, 45
    %v80 = vpop.permute.xlu0 %79
    %vm81 = vcmask 392552
    %82 = vst.msk [vmem:[#allocation0] sm:$0x1] %vm81, %v80
    %s83 = scalar_lea.vmem %s0, 14
    %v84 = vld [vmem:[%s83] sm:$0x1]
    %85 = vrot.lane.b32.xlu0 %v84, 42
    %v86 = vpop.permute.xlu0 %85
    %vm87 = vcmask 367952
    %88 = vst.msk [vmem:[#allocation0] sm:$0x1] %vm87, %v86
    %s89 = scalar_lea.vmem %s0, 13
    %v90 = vld [vmem:[%s89] sm:$0x1]
    %91 = vrot.lane.b32.xlu0 %v90, 39
    %v92 = vpop.permute.xlu0 %91
    %vm93 = vcmask 343352
    %94 = vst.msk [vmem:[#allocation0] sm:$0x1] %vm93, %v92
    %s95 = scalar_lea.vmem %s0, 12
    %v96 = vld [vmem:[%s95] sm:$0x1]
    %97 = vrot.lane.b32.xlu0 %v96, 36
    %v98 = vpop.permute.xlu0 %97
    %vm99 = vcmask 318752
    %100 = vst.msk [vmem:[#allocation0] sm:$0x1] %vm99, %v98
    %s101 = scalar_lea.vmem %s0, 11
    %v102 = vld [vmem:[%s101] sm:$0x1]
    %103 = vrot.lane.b32.xlu0 %v102, 33
    %v104 = vpop.permute.xlu0 %103
    %vm105 = vcmask 294152
    %106 = vst.msk [vmem:[#allocation0] sm:$0x1] %vm105, %v104
    %s107 = scalar_lea.vmem %s0, 10
    %v108 = vld [vmem:[%s107] sm:$0x1]
    %109 = vrot.lane.b32.xlu0 %v108, 30
    %v110 = vpop.permute.xlu0 %109
    %vm111 = vcmask 269552
    %112 = vst.msk [vmem:[#allocation0] sm:$0x1] %vm111, %v110
    %s113 = scalar_lea.vmem %s0, 9
    %v114 = vld [vmem:[%s113] sm:$0x1]
    %115 = vrot.lane.b32.xlu0 %v114, 27
    %v116 = vpop.permute.xlu0 %115
    %vm117 = vcmask 244952
    %118 = vst.msk [vmem:[#allocation0] sm:$0x1] %vm117, %v116
    %s119 = scalar_lea.vmem %s0, 8
    %v120 = vld [vmem:[%s119] sm:$0x1]
    %121 = vrot.lane.b32.xlu0 %v120, 24
    %v122 = vpop.permute.xlu0 %121
    %vm123 = vcmask 220352
    %124 = vst.msk [vmem:[#allocation0] sm:$0x1] %vm123, %v122
    %s125 = scalar_lea.vmem %s0, 7
    %v126 = vld [vmem:[%s125] sm:$0x1]
    %127 = vrot.lane.b32.xlu0 %v126, 21
    %v128 = vpop.permute.xlu0 %127
    %vm129 = vcmask 195752
    %130 = vst.msk [vmem:[#allocation0] sm:$0x1] %vm129, %v128
    %s131 = scalar_lea.vmem %s0, 6
    %v132 = vld [vmem:[%s131] sm:$0x1]
    %133 = vrot.lane.b32.xlu0 %v132, 18
    %v134 = vpop.permute.xlu0 %133
    %vm135 = vcmask 171152
    %136 = vst.msk [vmem:[#allocation0] sm:$0x1] %vm135, %v134
    %s137 = scalar_lea.vmem %s0, 5
    %v138 = vld [vmem:[%s137] sm:$0x1]
    %139 = vrot.lane.b32.xlu0 %v138, 15
    %v140 = vpop.permute.xlu0 %139
    %vm141 = vcmask 146552
    %142 = vst.msk [vmem:[#allocation0] sm:$0x1] %vm141, %v140
    %s143 = scalar_lea.vmem %s0, 4
    %v144 = vld [vmem:[%s143] sm:$0x1]
    %145 = vrot.lane.b32.xlu0 %v144, 12
    %v146 = vpop.permute.xlu0 %145
    %vm147 = vcmask 121952
    %148 = vst.msk [vmem:[#allocation0] sm:$0x1] %vm147, %v146
    %s149 = scalar_lea.vmem %s0, 3
    %v150 = vld [vmem:[%s149] sm:$0x1]
    %151 = vrot.lane.b32.xlu0 %v150, 9
    %v152 = vpop.permute.xlu0 %151
    %vm153 = vcmask 97352
    %154 = vst.msk [vmem:[#allocation0] sm:$0x1] %vm153, %v152
    %s155 = scalar_lea.vmem %s0, 2
    %v156 = vld [vmem:[%s155] sm:$0x1]
    %157 = vrot.lane.b32.xlu0 %v156, 6
    %v158 = vpop.permute.xlu0 %157
    %vm159 = vcmask 72752
    %160 = vst.msk [vmem:[#allocation0] sm:$0x1] %vm159, %v158
    %s161 = scalar_lea.vmem %s0, 1
    %v162 = vld [vmem:[%s161] sm:$0x1]
    %163 = vrot.lane.b32.xlu0 %v162, 3
    %v164 = vpop.permute.xlu0 %163
    %vm165 = vcmask 48152
    %166 = vst.msk [vmem:[#allocation0] sm:$0x1] %vm165, %v164
    %s168 = sshll.u32 1, 1
    %s169 = ssub.s32 %s168, 1
    %v171 = vld [vmem:[#allocation0] sm:%s169]
    %s172 = sshll.u32 1, 1
    %s173 = ssub.s32 %s172, 1
    %174 = vst [vmem:[%s1] sm:%s173] %v171

// kernel: tile.33
$region0: #{tile.33}
  #allocation2 [shape = 's32[1]{0}', space=sflag, size = 0x4, scoped, tag = 'scoped memory for tile.33']
  %s0 = inlined_call_operand.hbm [shape: f32[8], index: 0, kind: input, shape index: {}]
  %s1 = inlined_call_operand.vmem [shape: f32[14,8], index: 1, kind: output, shape index: {}]
  $region1: #{tile.33} parent=0
    #allocation0 [shape = 'u8[512]{0}', space=vmem, size = 0x400, scoped, tag = 'operand span for operand 0']
    #allocation1 [shape = 's32[1]{0}', space=sflag, size = 0x4, scoped, tag = 'scoped memory for tile.33']
    %2 = vsyncpa [#allocation1], 0
    // Predicated region
    $region2: #{tile.33} parent=1 // pred_check
      _
    $region3: #{tile.33} parent=1 // pred_check_branch
      %4 = sbr.rel (0) target = $region5
    $region4: #{tile.33} parent=1 // pred_region
      %s6 = ssub.s32 16, 16
      %7 = vsyncadd [#allocation1], %s6
      %s9 = sshll.u32 [#allocation0], 4
      %s10 = int_to_ptr.vmem [resolvable:$true] %s9
      %12 = dma.hbm_to_vmem [thread:$0]  %s0, 16, %s10, [#allocation1]
    $region5: #{tile.33} parent=1 // pred_fallthru
      _
    // Predicated region
    $region6: #{tile.33} parent=1 // pred_check
      _
    $region7: #{tile.33} parent=1 // pred_check_branch
      %14 = sbr.rel (0) target = $region9
    $region8: #{tile.33} parent=1 // pred_region
      %15 = dma.done [#allocation1], 16
    $region9: #{tile.33} parent=1 // pred_fallthru
      _
    %v16 = vld [vmem:[#allocation0] ss:$0 sm:$0xff]
    %17 = vst [vmem:[%s1] sm:$0xff] %v16
    %s18 = scalar_lea.vmem %s1, 8
    %19 = vst [vmem:[%s18] sm:$0xff] %v16
    %20 = vsyncpa [#allocation1], 1

// kernel: tile.34
$region0: #{tile.34}
  %s0 = inlined_call_operand.vmem [shape: f32[14,8], index: 0, kind: input, shape index: {}]
  %s1 = inlined_call_operand.vmem [shape: f32[112], index: 1, kind: output, shape index: {}]
  $region1: #{tile.34} parent=0
    #allocation0 [shape = 'u8[4096]{0}', space=vmem, size = 0x1000, scoped, tag = 'scoped mem for output reshape']
    %v2 = vld [vmem:[%s0] sm:$0x1]
    %vm3 = vcmask 64512
    %4 = vst.msk [vmem:[#allocation0] sm:$0x1] %vm3, %v2
    %s5 = scalar_lea.vmem %s0, 13
    %v6 = vld [vmem:[%s5] sm:$0x1]
    %7 = vrot.lane.b32.xlu0 %v6, 104
    %v8 = vpop.permute.xlu0 %7
    %vm9 = vcmask 917312
    %10 = vst.msk [vmem:[#allocation0] sm:$0x1] %vm9, %v8
    %s11 = scalar_lea.vmem %s0, 12
    %v12 = vld [vmem:[%s11] sm:$0x1]
    %13 = vrot.lane.b32.xlu0 %v12, 96
    %v14 = vpop.permute.xlu0 %13
    %vm15 = vcmask 851712
    %16 = vst.msk [vmem:[#allocation0] sm:$0x1] %vm15, %v14
    %s17 = scalar_lea.vmem %s0, 11
    %v18 = vld [vmem:[%s17] sm:$0x1]
    %19 = vrot.lane.b32.xlu0 %v18, 88
    %v20 = vpop.permute.xlu0 %19
    %vm21 = vcmask 786112
    %22 = vst.msk [vmem:[#allocation0] sm:$0x1] %vm21, %v20
    %s23 = scalar_lea.vmem %s0, 10
    %v24 = vld [vmem:[%s23] sm:$0x1]
    %25 = vrot.lane.b32.xlu0 %v24, 80
    %v26 = vpop.permute.xlu0 %25
    %vm27 = vcmask 720512
    %28 = vst.msk [vmem:[#allocation0] sm:$0x1] %vm27, %v26
    %s29 = scalar_lea.vmem %s0, 9
    %v30 = vld [vmem:[%s29] sm:$0x1]
    %31 = vrot.lane.b32.xlu0 %v30, 72
    %v32 = vpop.permute.xlu0 %31
    %vm33 = vcmask 654912
    %34 = vst.msk [vmem:[#allocation0] sm:$0x1] %vm33, %v32
    %s35 = scalar_lea.vmem %s0, 8
    %v36 = vld [vmem:[%s35] sm:$0x1]
    %37 = vrot.lane.b32.xlu0 %v36, 64
    %v38 = vpop.permute.xlu0 %37
    %vm39 = vcmask 589312
    %40 = vst.msk [vmem:[#allocation0] sm:$0x1] %vm39, %v38
    %s41 = scalar_lea.vmem %s0, 7
    %v42 = vld [vmem:[%s41] sm:$0x1]
    %43 = vrot.lane.b32.xlu0 %v42, 56
    %v44 = vpop.permute.xlu0 %43
    %vm45 = vcmask 523712
    %46 = vst.msk [vmem:[#allocation0] sm:$0x1] %vm45, %v44
    %s47 = scalar_lea.vmem %s0, 6
    %v48 = vld [vmem:[%s47] sm:$0x1]
    %49 = vrot.lane.b32.xlu0 %v48, 48
    %v50 = vpop.permute.xlu0 %49
    %vm51 = vcmask 458112
    %52 = vst.msk [vmem:[#allocation0] sm:$0x1] %vm51, %v50
    %s53 = scalar_lea.vmem %s0, 5
    %v54 = vld [vmem:[%s53] sm:$0x1]
    %55 = vrot.lane.b32.xlu0 %v54, 40
    %v56 = vpop.permute.xlu0 %55
    %vm57 = vcmask 392512
    %58 = vst.msk [vmem:[#allocation0] sm:$0x1] %vm57, %v56
    %s59 = scalar_lea.vmem %s0, 4
    %v60 = vld [vmem:[%s59] sm:$0x1]
    %61 = vrot.lane.b32.xlu0 %v60, 32
    %v62 = vpop.permute.xlu0 %61
    %vm63 = vcmask 326912
    %64 = vst.msk [vmem:[#allocation0] sm:$0x1] %vm63, %v62
    %s65 = scalar_lea.vmem %s0, 3
    %v66 = vld [vmem:[%s65] sm:$0x1]
    %67 = vrot.lane.b32.xlu0 %v66, 24
    %v68 = vpop.permute.xlu0 %67
    %vm69 = vcmask 261312
    %70 = vst.msk [vmem:[#allocation0] sm:$0x1] %vm69, %v68
    %s71 = scalar_lea.vmem %s0, 2
    %v72 = vld [vmem:[%s71] sm:$0x1]
    %73 = vrot.lane.b32.xlu0 %v72, 16
    %v74 = vpop.permute.xlu0 %73
    %vm75 = vcmask 195712
    %76 = vst.msk [vmem:[#allocation0] sm:$0x1] %vm75, %v74
    %s77 = scalar_lea.vmem %s0, 1
    %v78 = vld [vmem:[%s77] sm:$0x1]
    %79 = vrot.lane.b32.xlu0 %v78, 8
    %v80 = vpop.permute.xlu0 %79
    %vm81 = vcmask 130112
    %82 = vst.msk [vmem:[#allocation0] sm:$0x1] %vm81, %v80
    %s84 = sshll.u32 1, 1
    %s85 = ssub.s32 %s84, 1
    %v87 = vld [vmem:[#allocation0] sm:%s85]
    %s88 = sshll.u32 1, 1
    %s89 = ssub.s32 %s88, 1
    %90 = vst [vmem:[%s1] sm:%s89] %v87

// kernel: tile.39
$region0: #{tile.39}
  %s0 = inlined_call_operand.vmem [shape: f32[7,16], index: 0, kind: input, shape index: {}]
  %s1 = inlined_call_operand.vmem [shape: f32[112], index: 1, kind: output, shape index: {}]
  $region1: #{tile.39} parent=0
    #allocation0 [shape = 'u8[4096]{0}', space=vmem, size = 0x1000, scoped, tag = 'scoped mem for output reshape']
    %v2 = vld [vmem:[%s0] sm:$0x1]
    %vm3 = vcmask 130048
    %4 = vst.msk [vmem:[#allocation0] sm:$0x1] %vm3, %v2
    %s5 = scalar_lea.vmem %s0, 6
    %v6 = vld [vmem:[%s5] sm:$0x1]
    %7 = vrot.lane.b32.xlu0 %v6, 96
    %v8 = vpop.permute.xlu0 %7
    %vm9 = vcmask 917248
    %10 = vst.msk [vmem:[#allocation0] sm:$0x1] %vm9, %v8
    %s11 = scalar_lea.vmem %s0, 5
    %v12 = vld [vmem:[%s11] sm:$0x1]
    %13 = vrot.lane.b32.xlu0 %v12, 80
    %v14 = vpop.permute.xlu0 %13
    %vm15 = vcmask 786048
    %16 = vst.msk [vmem:[#allocation0] sm:$0x1] %vm15, %v14
    %s17 = scalar_lea.vmem %s0, 4
    %v18 = vld [vmem:[%s17] sm:$0x1]
    %19 = vrot.lane.b32.xlu0 %v18, 64
    %v20 = vpop.permute.xlu0 %19
    %vm21 = vcmask 654848
    %22 = vst.msk [vmem:[#allocation0] sm:$0x1] %vm21, %v20
    %s23 = scalar_lea.vmem %s0, 3
    %v24 = vld [vmem:[%s23] sm:$0x1]
    %25 = vrot.lane.b32.xlu0 %v24, 48
    %v26 = vpop.permute.xlu0 %25
    %vm27 = vcmask 523648
    %28 = vst.msk [vmem:[#allocation0] sm:$0x1] %vm27, %v26
    %s29 = scalar_lea.vmem %s0, 2
    %v30 = vld [vmem:[%s29] sm:$0x1]
    %31 = vrot.lane.b32.xlu0 %v30, 32
    %v32 = vpop.permute.xlu0 %31
    %vm33 = vcmask 392448
    %34 = vst.msk [vmem:[#allocation0] sm:$0x1] %vm33, %v32
    %s35 = scalar_lea.vmem %s0, 1
    %v36 = vld [vmem:[%s35] sm:$0x1]
    %37 = vrot.lane.b32.xlu0 %v36, 16
    %v38 = vpop.permute.xlu0 %37
    %vm39 = vcmask 261248
    %40 = vst.msk [vmem:[#allocation0] sm:$0x1] %vm39, %v38
    %s42 = sshll.u32 1, 1
    %s43 = ssub.s32 %s42, 1
    %v45 = vld [vmem:[#allocation0] sm:%s43]
    %s46 = sshll.u32 1, 1
    %s47 = ssub.s32 %s46, 1
    %48 = vst [vmem:[%s1] sm:%s47] %v45

// kernel: tile.38
$region0: #{tile.38}
  #allocation2 [shape = 's32[1]{0}', space=sflag, size = 0x4, scoped, tag = 'scoped memory for tile.38']
  %s0 = inlined_call_operand.hbm [shape: f32[16], index: 0, kind: input, shape index: {}]
  %s1 = inlined_call_operand.vmem [shape: f32[7,16], index: 1, kind: output, shape index: {}]
  $region1: #{tile.38} parent=0
    #allocation0 [shape = 'u8[512]{0}', space=vmem, size = 0x400, scoped, tag = 'operand span for operand 0']
    #allocation1 [shape = 's32[1]{0}', space=sflag, size = 0x4, scoped, tag = 'scoped memory for tile.38']
    %2 = vsyncpa [#allocation1], 0
    // Predicated region
    $region2: #{tile.38} parent=1 // pred_check
      _
    $region3: #{tile.38} parent=1 // pred_check_branch
      %4 = sbr.rel (0) target = $region5
    $region4: #{tile.38} parent=1 // pred_region
      %s6 = ssub.s32 16, 16
      %7 = vsyncadd [#allocation1], %s6
      %s9 = sshll.u32 [#allocation0], 4
      %s10 = int_to_ptr.vmem [resolvable:$true] %s9
      %12 = dma.hbm_to_vmem [thread:$0]  %s0, 16, %s10, [#allocation1]
    $region5: #{tile.38} parent=1 // pred_fallthru
      _
    // Predicated region
    $region6: #{tile.38} parent=1 // pred_check
      _
    $region7: #{tile.38} parent=1 // pred_check_branch
      %14 = sbr.rel (0) target = $region9
    $region8: #{tile.38} parent=1 // pred_region
      %15 = dma.done [#allocation1], 16
    $region9: #{tile.38} parent=1 // pred_fallthru
      _
    %v16 = vld [vmem:[#allocation0] ss:$0 sm:$0xff]
    %17 = vst [vmem:[%s1] sm:$0xff] %v16
    %18 = vsyncpa [#allocation1], 1

// kernel: tile.48
$region0: #{tile.48}
  #allocation2 [shape = 's32[1]{0}', space=sflag, size = 0x4, scoped, tag = 'scoped memory for tile.48']
  %s0 = inlined_call_operand.hbm [shape: f32[16], index: 0, kind: input, shape index: {}]
  %s1 = inlined_call_operand.vmem [shape: f32[6,16], index: 1, kind: output, shape index: {}]
  $region1: #{tile.48} parent=0
    #allocation0 [shape = 'u8[512]{0}', space=vmem, size = 0x400, scoped, tag = 'operand span for operand 0']
    #allocation1 [shape = 's32[1]{0}', space=sflag, size = 0x4, scoped, tag = 'scoped memory for tile.48']
    %2 = vsyncpa [#allocation1], 0
    // Predicated region
    $region2: #{tile.48} parent=1 // pred_check
      _
    $region3: #{tile.48} parent=1 // pred_check_branch
      %4 = sbr.rel (0) target = $region5
    $region4: #{tile.48} parent=1 // pred_region
      %s6 = ssub.s32 16, 16
      %7 = vsyncadd [#allocation1], %s6
      %s9 = sshll.u32 [#allocation0], 4
      %s10 = int_to_ptr.vmem [resolvable:$true] %s9
      %12 = dma.hbm_to_vmem [thread:$0]  %s0, 16, %s10, [#allocation1]
    $region5: #{tile.48} parent=1 // pred_fallthru
      _
    // Predicated region
    $region6: #{tile.48} parent=1 // pred_check
      _
    $region7: #{tile.48} parent=1 // pred_check_branch
      %14 = sbr.rel (0) target = $region9
    $region8: #{tile.48} parent=1 // pred_region
      %15 = dma.done [#allocation1], 16
    $region9: #{tile.48} parent=1 // pred_fallthru
      _
    %v16 = vld [vmem:[#allocation0] ss:$0 sm:$0xff]
    %17 = vst [vmem:[%s1] sm:$0xff] %v16
    %18 = vsyncpa [#allocation1], 1

// kernel: tile.49
$region0: #{tile.49}
  %s0 = inlined_call_operand.vmem [shape: f32[6,16], index: 0, kind: input, shape index: {}]
  %s1 = inlined_call_operand.vmem [shape: f32[96], index: 1, kind: output, shape index: {}]
  $region1: #{tile.49} parent=0
    #allocation0 [shape = 'u8[4096]{0}', space=vmem, size = 0x1000, scoped, tag = 'scoped mem for output reshape']
    %v2 = vld [vmem:[%s0] sm:$0x1]
    %vm3 = vcmask 130048
    %4 = vst.msk [vmem:[#allocation0] sm:$0x1] %vm3, %v2
    %s5 = scalar_lea.vmem %s0, 5
    %v6 = vld [vmem:[%s5] sm:$0x1]
    %7 = vrot.lane.b32.xlu0 %v6, 80
    %v8 = vpop.permute.xlu0 %7
    %vm9 = vcmask 786048
    %10 = vst.msk [vmem:[#allocation0] sm:$0x1] %vm9, %v8
    %s11 = scalar_lea.vmem %s0, 4
    %v12 = vld [vmem:[%s11] sm:$0x1]
    %13 = vrot.lane.b32.xlu0 %v12, 64
    %v14 = vpop.permute.xlu0 %13
    %vm15 = vcmask 654848
    %16 = vst.msk [vmem:[#allocation0] sm:$0x1] %vm15, %v14
    %s17 = scalar_lea.vmem %s0, 3
    %v18 = vld [vmem:[%s17] sm:$0x1]
    %19 = vrot.lane.b32.xlu0 %v18, 48
    %v20 = vpop.permute.xlu0 %19
    %vm21 = vcmask 523648
    %22 = vst.msk [vmem:[#allocation0] sm:$0x1] %vm21, %v20
    %s23 = scalar_lea.vmem %s0, 2
    %v24 = vld [vmem:[%s23] sm:$0x1]
    %25 = vrot.lane.b32.xlu0 %v24, 32
    %v26 = vpop.permute.xlu0 %25
    %vm27 = vcmask 392448
    %28 = vst.msk [vmem:[#allocation0] sm:$0x1] %vm27, %v26
    %s29 = scalar_lea.vmem %s0, 1
    %v30 = vld [vmem:[%s29] sm:$0x1]
    %31 = vrot.lane.b32.xlu0 %v30, 16
    %v32 = vpop.permute.xlu0 %31
    %vm33 = vcmask 261248
    %34 = vst.msk [vmem:[#allocation0] sm:$0x1] %vm33, %v32
    %s36 = sshll.u32 1, 1
    %s37 = ssub.s32 %s36, 1
    %v39 = vld [vmem:[#allocation0] sm:%s37]
    %s40 = sshll.u32 1, 1
    %s41 = ssub.s32 %s40, 1
    %42 = vst [vmem:[%s1] sm:%s41] %v39

// kernel: tile.44
$region0: #{tile.44}
  %s0 = inlined_call_operand.vmem [shape: f32[3,32], index: 0, kind: input, shape index: {}]
  %s1 = inlined_call_operand.vmem [shape: f32[96], index: 1, kind: output, shape index: {}]
  $region1: #{tile.44} parent=0
    #allocation0 [shape = 'u8[4096]{0}', space=vmem, size = 0x1000, scoped, tag = 'scoped mem for output reshape']
    #allocation1 [shape = 'u8[4096]{0}', space=vmem, size = 0x1000, scoped, tag = 'scoped mem for input reshape']
    %s3 = sshll.u32 1, 4
    %s4 = ssub.s32 %s3, 1
    %v5 = vld [vmem:[%s0] sm:%s4]
    %6 = vst [vmem:[#allocation1] sm:%s4] %v5
    %v7 = vld [vmem:[#allocation1] sm:$0x1]
    %vm8 = vcmask 261120
    %9 = vst.msk [vmem:[#allocation0] sm:$0x1] %vm8, %v7
    %s10 = scalar_lea.vmem [#allocation1], 2
    %v11 = vld [vmem:[%s10] sm:$0x1]
    %12 = vrot.lane.b32.xlu0 %v11, 64
    %v13 = vpop.permute.xlu0 %12
    %vm14 = vcmask 785920
    %15 = vst.msk [vmem:[#allocation0] sm:$0x1] %vm14, %v13
    %s16 = scalar_lea.vmem [#allocation1], 1
    %v17 = vld [vmem:[%s16] sm:$0x1]
    %18 = vrot.lane.b32.xlu0 %v17, 32
    %v19 = vpop.permute.xlu0 %18
    %vm20 = vcmask 523520
    %21 = vst.msk [vmem:[#allocation0] sm:$0x1] %vm20, %v19
    %s23 = sshll.u32 1, 1
    %s24 = ssub.s32 %s23, 1
    %v26 = vld [vmem:[#allocation0] sm:%s24]
    %s27 = sshll.u32 1, 1
    %s28 = ssub.s32 %s27, 1
    %29 = vst [vmem:[%s1] sm:%s28] %v26

// kernel: tile.43
$region0: #{tile.43}
  #allocation2 [shape = 's32[1]{0}', space=sflag, size = 0x4, scoped, tag = 'scoped memory for tile.43']
  %s0 = inlined_call_operand.hbm [shape: f32[32], index: 0, kind: input, shape index: {}]
  %s1 = inlined_call_operand.vmem [shape: f32[3,32], index: 1, kind: output, shape index: {}]
  $region1: #{tile.43} parent=0
    #allocation0 [shape = 'u8[512]{0}', space=vmem, size = 0x400, scoped, tag = 'operand span for operand 0']
    #allocation1 [shape = 's32[1]{0}', space=sflag, size = 0x4, scoped, tag = 'scoped memory for tile.43']
    %2 = vsyncpa [#allocation1], 0
    // Predicated region
    $region2: #{tile.43} parent=1 // pred_check
      _
    $region3: #{tile.43} parent=1 // pred_check_branch
      %4 = sbr.rel (0) target = $region5
    $region4: #{tile.43} parent=1 // pred_region
      %s6 = ssub.s32 16, 16
      %7 = vsyncadd [#allocation1], %s6
      %s9 = sshll.u32 [#allocation0], 4
      %s10 = int_to_ptr.vmem [resolvable:$true] %s9
      %12 = dma.hbm_to_vmem [thread:$0]  %s0, 16, %s10, [#allocation1]
    $region5: #{tile.43} parent=1 // pred_fallthru
      _
    // Predicated region
    $region6: #{tile.43} parent=1 // pred_check
      _
    $region7: #{tile.43} parent=1 // pred_check_branch
      %14 = sbr.rel (0) target = $region9
    $region8: #{tile.43} parent=1 // pred_region
      %15 = dma.done [#allocation1], 16
    $region9: #{tile.43} parent=1 // pred_fallthru
      _
    %v16 = vld [vmem:[#allocation0] ss:$0 sm:$0xff]
    %17 = vst [vmem:[%s1] sm:$0xf] %v16
    %18 = vsyncpa [#allocation1], 1

// kernel: autoencoder8_forward.1
$region0: #{autoencoder8_forward.1}
  #allocation0 [shape = 'u32[]', space=smem, size = 0x4, offset = 0x4, fixed_abs, tag = 'smem constant byte address 0x4 - core index']
  #allocation1 [shape = 'u32[144,128]{1,0:T(1,128)}', space=vmem, size = 0x12000, scoped, tag = 'internal scratch']
  %s0 = inlined_call_operand.vmem [shape: bf16[256,128], index: 0, kind: input, shape index: {}]
  %s1 = inlined_call_operand.vmem [shape: bf16[8,56,128], index: 1, kind: input, shape index: {}]
  %s2 = inlined_call_operand.vmem [shape: bf16[1024,128], index: 2, kind: input, shape index: {}]
  %s3 = inlined_call_operand.vmem [shape: f32[1,128], index: 3, kind: input, shape index: {}]
  %s4 = inlined_call_operand.vmem [shape: bf16[4,28,56], index: 4, kind: input, shape index: {}]
  %s5 = inlined_call_operand.vmem [shape: bf16[512,128], index: 5, kind: input, shape index: {}]
  %s6 = inlined_call_operand.vmem [shape: f32[1,128], index: 6, kind: input, shape index: {}]
  %s7 = inlined_call_operand.vmem [shape: bf16[4,12,28], index: 7, kind: input, shape index: {}]
  %s8 = inlined_call_operand.vmem [shape: bf16[512,128], index: 8, kind: input, shape index: {}]
  %s9 = inlined_call_operand.vmem [shape: f32[1,128], index: 9, kind: input, shape index: {}]
  %s10 = inlined_call_operand.vmem [shape: bf16[4,24,12], index: 10, kind: input, shape index: {}]
  %s11 = inlined_call_operand.vmem [shape: bf16[512,128], index: 11, kind: input, shape index: {}]
  %s12 = inlined_call_operand.vmem [shape: f32[1,128], index: 12, kind: input, shape index: {}]
  %s13 = inlined_call_operand.vmem [shape: bf16[4,48,24], index: 13, kind: input, shape index: {}]
  %s14 = inlined_call_operand.vmem [shape: bf16[512,128], index: 14, kind: input, shape index: {}]
  %s15 = inlined_call_operand.vmem [shape: f32[1,128], index: 15, kind: input, shape index: {}]
  %s16 = inlined_call_operand.vmem [shape: bf16[8,112,48], index: 16, kind: input, shape index: {}]
  %s17 = inlined_call_operand.vmem [shape: bf16[1024,128], index: 17, kind: input, shape index: {}]
  %s18 = inlined_call_operand.vmem [shape: f32[1,128], index: 18, kind: input, shape index: {}]
  %s19 = inlined_call_operand.vmem [shape: f32[224,128], index: 19, kind: output, shape index: {}]
  %s20 = sld [smem:[#allocation0]]
  $region109: #{autoencoder8_forward.1} parent=0
    _
  %s22 = ssub.s32 1, %s20
  %s23 = scalar_select 0, %s22, %s20
  loop: start=0, step=1, limit=4
  $region2: #{autoencoder8_forward.1} parent=0 // loop_pre_header
    _
  $region3: #{autoencoder8_forward.1} parent=0 // loop_header
    %s25 = sphi 0, %s29
    %p26 = scmp.ge.s32.totalorder %s25, 4
    %s35 = sphi 0, %s37
    %s38 = sphi 0, %s35
    %s39 = sphi 0, %s38
    %s55 = sphi 0, %s39
    %s59 = sphi 0, %s59
    %s61 = sphi 0, %s59
    %s62 = sphi 0, %s61
    %s76 = sphi 0, %s62
    %s80 = sphi 0, %s80
    %s82 = sphi 0, %s80
    %s83 = sphi 0, %s82
    %s97 = sphi 0, %s83
    %s101 = sphi 0, %s101
    %s103 = sphi 0, %s101
    %s104 = sphi 0, %s103
    %s118 = sphi 0, %s104
    %s122 = sphi 0, %s122
    %s124 = sphi 0, %s122
    %s125 = sphi 0, %s124
    %s139 = sphi 0, %s125
    %s143 = sphi 0, %s143
    %s145 = sphi 0, %s143
    %s146 = sphi 0, %s145
    %s160 = sphi 0, %s146
    %s164 = sphi 0, %s164
    %s166 = sphi 0, %s164
    %s167 = sphi 0, %s166
    %s181 = sphi 0, %s167
    %s185 = sphi 0, %s185
    %s187 = sphi 0, %s185
    %s188 = sphi 0, %s187
    %s202 = sphi 0, %s188
    %s206 = sphi 0, %s206
    %s208 = sphi 0, %s206
    %s209 = sphi 0, %s208
    %s223 = sphi 0, %s209
    %s227 = sphi 0, %s227
    %s229 = sphi 0, %s227
    %s230 = sphi 0, %s229
    %s244 = sphi 0, %s230
    %s248 = sphi 0, %s248
    %s250 = sphi 0, %s248
    %s251 = sphi 0, %s250
    %s265 = sphi 0, %s251
    %s269 = sphi 0, %s269
    %s271 = sphi 0, %s269
    %s272 = sphi 0, %s271
    %s286 = sphi 0, %s272
    %s290 = sphi 0, %s290
    %s292 = sphi 0, %s290
    %s293 = sphi 0, %s292
    %s307 = sphi 0, %s293
    %s311 = sphi 0, %s311
    %s313 = sphi 0, %s311
    %s314 = sphi 0, %s313
    %s328 = sphi 0, %s314
    %s332 = sphi 0, %s332
    %s334 = sphi 0, %s332
    %s335 = sphi 0, %s334
    %s349 = sphi 0, %s335
    %s353 = sphi 0, %s353
    %s355 = sphi 0, %s353
    %s356 = sphi 0, %s355
    %s370 = sphi 0, %s356
    %s374 = sphi 0, %s374
    %s376 = sphi 0, %s374
    %s377 = sphi 0, %s376
    %s391 = sphi 0, %s377
    %s395 = sphi 0, %s395
    %s397 = sphi 0, %s395
    %s398 = sphi 0, %s397
    %s412 = sphi 0, %s398
    %s416 = sphi 0, %s416
    %s418 = sphi 0, %s416
    %s419 = sphi 0, %s418
    %s433 = sphi 0, %s419
    %s439 = sphi 0, %s441
    %s442 = sphi 0, %s439
    %s443 = sphi 0, %s442
    %s459 = sphi 0, %s443
  $region4: #{autoencoder8_forward.1} parent=0 // loop_header_branch
    %28 = sbr.rel (%p26) target = $region8
  $region5: #{autoencoder8_forward.1} parent=0 // loop_body
    %s30 = ssub.s32 %s25, 1
    %s31 = ssub.s32 %s25, 2
    %s32 = sadd.s32 %s25, 1
    %s33 = ssub.s32 %s25, %s32
    %p34 = scmp.eq.s32.totalorder %s33, 0
    %s36 = sadd.s32 %s35, 1
    %s37 = scalar_select %p34, %s35, %s36
    %p40 = pneg %p34
    %p41 = scmp.eq.s32.totalorder %s25, 1
    %p42 = por %p40, %p41
    %p43 = scmp.ne.s32.totalorder %s35, %s38
    %p44 = scmp.eq.s32.totalorder %s25, 0
    %p45 = por %p43, %p44
    %p46 = scmp.ne.s32.totalorder %s35, %s38
    %p47 = scmp.eq.s32.totalorder %s30, 1
    %p48 = por %p46, %p47
    %p49 = scmp.ne.s32.totalorder %s38, %s39
    %p50 = scmp.eq.s32.totalorder %s30, 0
    %p51 = por %p49, %p50
    %p52 = scmp.ne.s32.totalorder %s38, %s39
    %p53 = scmp.eq.s32.totalorder %s31, 1
    %p54 = por %p52, %p53
    %p56 = scmp.ne.s32.totalorder %s39, %s55
    %p57 = scmp.eq.s32.totalorder %s31, 0
    %p58 = por %p56, %p57
    %s60 = sadd.s32 %s59, 1
    %p63 = scmp.eq.s32.totalorder %s25, 1
    %p64 = scmp.ne.s32.totalorder %s59, %s61
    %p65 = scmp.eq.s32.totalorder %s25, 0
    %p66 = por %p64, %p65
    %p67 = scmp.ne.s32.totalorder %s59, %s61
    %p68 = scmp.eq.s32.totalorder %s30, 1
    %p69 = por %p67, %p68
    %p70 = scmp.ne.s32.totalorder %s61, %s62
    %p71 = scmp.eq.s32.totalorder %s30, 0
    %p72 = por %p70, %p71
    %p73 = scmp.ne.s32.totalorder %s61, %s62
    %p74 = scmp.eq.s32.totalorder %s31, 1
    %p75 = por %p73, %p74
    %p77 = scmp.ne.s32.totalorder %s62, %s76
    %p78 = scmp.eq.s32.totalorder %s31, 0
    %p79 = por %p77, %p78
    %s81 = sadd.s32 %s80, 1
    %p84 = scmp.eq.s32.totalorder %s25, 1
    %p85 = scmp.ne.s32.totalorder %s80, %s82
    %p86 = scmp.eq.s32.totalorder %s25, 0
    %p87 = por %p85, %p86
    %p88 = scmp.ne.s32.totalorder %s80, %s82
    %p89 = scmp.eq.s32.totalorder %s30, 1
    %p90 = por %p88, %p89
    %p91 = scmp.ne.s32.totalorder %s82, %s83
    %p92 = scmp.eq.s32.totalorder %s30, 0
    %p93 = por %p91, %p92
    %p94 = scmp.ne.s32.totalorder %s82, %s83
    %p95 = scmp.eq.s32.totalorder %s31, 1
    %p96 = por %p94, %p95
    %p98 = scmp.ne.s32.totalorder %s83, %s97
    %p99 = scmp.eq.s32.totalorder %s31, 0
    %p100 = por %p98, %p99
    %s102 = sadd.s32 %s101, 1
    %p105 = scmp.eq.s32.totalorder %s25, 1
    %p106 = scmp.ne.s32.totalorder %s101, %s103
    %p107 = scmp.eq.s32.totalorder %s25, 0
    %p108 = por %p106, %p107
    %p109 = scmp.ne.s32.totalorder %s101, %s103
    %p110 = scmp.eq.s32.totalorder %s30, 1
    %p111 = por %p109, %p110
    %p112 = scmp.ne.s32.totalorder %s103, %s104
    %p113 = scmp.eq.s32.totalorder %s30, 0
    %p114 = por %p112, %p113
    %p115 = scmp.ne.s32.totalorder %s103, %s104
    %p116 = scmp.eq.s32.totalorder %s31, 1
    %p117 = por %p115, %p116
    %p119 = scmp.ne.s32.totalorder %s104, %s118
    %p120 = scmp.eq.s32.totalorder %s31, 0
    %p121 = por %p119, %p120
    %s123 = sadd.s32 %s122, 1
    %p126 = scmp.eq.s32.totalorder %s25, 1
    %p127 = scmp.ne.s32.totalorder %s122, %s124
    %p128 = scmp.eq.s32.totalorder %s25, 0
    %p129 = por %p127, %p128
    %p130 = scmp.ne.s32.totalorder %s122, %s124
    %p131 = scmp.eq.s32.totalorder %s30, 1
    %p132 = por %p130, %p131
    %p133 = scmp.ne.s32.totalorder %s124, %s125
    %p134 = scmp.eq.s32.totalorder %s30, 0
    %p135 = por %p133, %p134
    %p136 = scmp.ne.s32.totalorder %s124, %s125
    %p137 = scmp.eq.s32.totalorder %s31, 1
    %p138 = por %p136, %p137
    %p140 = scmp.ne.s32.totalorder %s125, %s139
    %p141 = scmp.eq.s32.totalorder %s31, 0
    %p142 = por %p140, %p141
    %s144 = sadd.s32 %s143, 1
    %p147 = scmp.eq.s32.totalorder %s25, 1
    %p148 = scmp.ne.s32.totalorder %s143, %s145
    %p149 = scmp.eq.s32.totalorder %s25, 0
    %p150 = por %p148, %p149
    %p151 = scmp.ne.s32.totalorder %s143, %s145
    %p152 = scmp.eq.s32.totalorder %s30, 1
    %p153 = por %p151, %p152
    %p154 = scmp.ne.s32.totalorder %s145, %s146
    %p155 = scmp.eq.s32.totalorder %s30, 0
    %p156 = por %p154, %p155
    %p157 = scmp.ne.s32.totalorder %s145, %s146
    %p158 = scmp.eq.s32.totalorder %s31, 1
    %p159 = por %p157, %p158
    %p161 = scmp.ne.s32.totalorder %s146, %s160
    %p162 = scmp.eq.s32.totalorder %s31, 0
    %p163 = por %p161, %p162
    %s165 = sadd.s32 %s164, 1
    %p168 = scmp.eq.s32.totalorder %s25, 1
    %p169 = scmp.ne.s32.totalorder %s164, %s166
    %p170 = scmp.eq.s32.totalorder %s25, 0
    %p171 = por %p169, %p170
    %p172 = scmp.ne.s32.totalorder %s164, %s166
    %p173 = scmp.eq.s32.totalorder %s30, 1
    %p174 = por %p172, %p173
    %p175 = scmp.ne.s32.totalorder %s166, %s167
    %p176 = scmp.eq.s32.totalorder %s30, 0
    %p177 = por %p175, %p176
    %p178 = scmp.ne.s32.totalorder %s166, %s167
    %p179 = scmp.eq.s32.totalorder %s31, 1
    %p180 = por %p178, %p179
    %p182 = scmp.ne.s32.totalorder %s167, %s181
    %p183 = scmp.eq.s32.totalorder %s31, 0
    %p184 = por %p182, %p183
    %s186 = sadd.s32 %s185, 1
    %p189 = scmp.eq.s32.totalorder %s25, 1
    %p190 = scmp.ne.s32.totalorder %s185, %s187
    %p191 = scmp.eq.s32.totalorder %s25, 0
    %p192 = por %p190, %p191
    %p193 = scmp.ne.s32.totalorder %s185, %s187
    %p194 = scmp.eq.s32.totalorder %s30, 1
    %p195 = por %p193, %p194
    %p196 = scmp.ne.s32.totalorder %s187, %s188
    %p197 = scmp.eq.s32.totalorder %s30, 0
    %p198 = por %p196, %p197
    %p199 = scmp.ne.s32.totalorder %s187, %s188
    %p200 = scmp.eq.s32.totalorder %s31, 1
    %p201 = por %p199, %p200
    %p203 = scmp.ne.s32.totalorder %s188, %s202
    %p204 = scmp.eq.s32.totalorder %s31, 0
    %p205 = por %p203, %p204
    %s207 = sadd.s32 %s206, 1
    %p210 = scmp.eq.s32.totalorder %s25, 1
    %p211 = scmp.ne.s32.totalorder %s206, %s208
    %p212 = scmp.eq.s32.totalorder %s25, 0
    %p213 = por %p211, %p212
    %p214 = scmp.ne.s32.totalorder %s206, %s208
    %p215 = scmp.eq.s32.totalorder %s30, 1
    %p216 = por %p214, %p215
    %p217 = scmp.ne.s32.totalorder %s208, %s209
    %p218 = scmp.eq.s32.totalorder %s30, 0
    %p219 = por %p217, %p218
    %p220 = scmp.ne.s32.totalorder %s208, %s209
    %p221 = scmp.eq.s32.totalorder %s31, 1
    %p222 = por %p220, %p221
    %p224 = scmp.ne.s32.totalorder %s209, %s223
    %p225 = scmp.eq.s32.totalorder %s31, 0
    %p226 = por %p224, %p225
    %s228 = sadd.s32 %s227, 1
    %p231 = scmp.eq.s32.totalorder %s25, 1
    %p232 = scmp.ne.s32.totalorder %s227, %s229
    %p233 = scmp.eq.s32.totalorder %s25, 0
    %p234 = por %p232, %p233
    %p235 = scmp.ne.s32.totalorder %s227, %s229
    %p236 = scmp.eq.s32.totalorder %s30, 1
    %p237 = por %p235, %p236
    %p238 = scmp.ne.s32.totalorder %s229, %s230
    %p239 = scmp.eq.s32.totalorder %s30, 0
    %p240 = por %p238, %p239
    %p241 = scmp.ne.s32.totalorder %s229, %s230
    %p242 = scmp.eq.s32.totalorder %s31, 1
    %p243 = por %p241, %p242
    %p245 = scmp.ne.s32.totalorder %s230, %s244
    %p246 = scmp.eq.s32.totalorder %s31, 0
    %p247 = por %p245, %p246
    %s249 = sadd.s32 %s248, 1
    %p252 = scmp.eq.s32.totalorder %s25, 1
    %p253 = scmp.ne.s32.totalorder %s248, %s250
    %p254 = scmp.eq.s32.totalorder %s25, 0
    %p255 = por %p253, %p254
    %p256 = scmp.ne.s32.totalorder %s248, %s250
    %p257 = scmp.eq.s32.totalorder %s30, 1
    %p258 = por %p256, %p257
    %p259 = scmp.ne.s32.totalorder %s250, %s251
    %p260 = scmp.eq.s32.totalorder %s30, 0
    %p261 = por %p259, %p260
    %p262 = scmp.ne.s32.totalorder %s250, %s251
    %p263 = scmp.eq.s32.totalorder %s31, 1
    %p264 = por %p262, %p263
    %p266 = scmp.ne.s32.totalorder %s251, %s265
    %p267 = scmp.eq.s32.totalorder %s31, 0
    %p268 = por %p266, %p267
    %s270 = sadd.s32 %s269, 1
    %p273 = scmp.eq.s32.totalorder %s25, 1
    %p274 = scmp.ne.s32.totalorder %s269, %s271
    %p275 = scmp.eq.s32.totalorder %s25, 0
    %p276 = por %p274, %p275
    %p277 = scmp.ne.s32.totalorder %s269, %s271
    %p278 = scmp.eq.s32.totalorder %s30, 1
    %p279 = por %p277, %p278
    %p280 = scmp.ne.s32.totalorder %s271, %s272
    %p281 = scmp.eq.s32.totalorder %s30, 0
    %p282 = por %p280, %p281
    %p283 = scmp.ne.s32.totalorder %s271, %s272
    %p284 = scmp.eq.s32.totalorder %s31, 1
    %p285 = por %p283, %p284
    %p287 = scmp.ne.s32.totalorder %s272, %s286
    %p288 = scmp.eq.s32.totalorder %s31, 0
    %p289 = por %p287, %p288
    %s291 = sadd.s32 %s290, 1
    %p294 = scmp.eq.s32.totalorder %s25, 1
    %p295 = scmp.ne.s32.totalorder %s290, %s292
    %p296 = scmp.eq.s32.totalorder %s25, 0
    %p297 = por %p295, %p296
    %p298 = scmp.ne.s32.totalorder %s290, %s292
    %p299 = scmp.eq.s32.totalorder %s30, 1
    %p300 = por %p298, %p299
    %p301 = scmp.ne.s32.totalorder %s292, %s293
    %p302 = scmp.eq.s32.totalorder %s30, 0
    %p303 = por %p301, %p302
    %p304 = scmp.ne.s32.totalorder %s292, %s293
    %p305 = scmp.eq.s32.totalorder %s31, 1
    %p306 = por %p304, %p305
    %p308 = scmp.ne.s32.totalorder %s293, %s307
    %p309 = scmp.eq.s32.totalorder %s31, 0
    %p310 = por %p308, %p309
    %s312 = sadd.s32 %s311, 1
    %p315 = scmp.eq.s32.totalorder %s25, 1
    %p316 = scmp.ne.s32.totalorder %s311, %s313
    %p317 = scmp.eq.s32.totalorder %s25, 0
    %p318 = por %p316, %p317
    %p319 = scmp.ne.s32.totalorder %s311, %s313
    %p320 = scmp.eq.s32.totalorder %s30, 1
    %p321 = por %p319, %p320
    %p322 = scmp.ne.s32.totalorder %s313, %s314
    %p323 = scmp.eq.s32.totalorder %s30, 0
    %p324 = por %p322, %p323
    %p325 = scmp.ne.s32.totalorder %s313, %s314
    %p326 = scmp.eq.s32.totalorder %s31, 1
    %p327 = por %p325, %p326
    %p329 = scmp.ne.s32.totalorder %s314, %s328
    %p330 = scmp.eq.s32.totalorder %s31, 0
    %p331 = por %p329, %p330
    %s333 = sadd.s32 %s332, 1
    %p336 = scmp.eq.s32.totalorder %s25, 1
    %p337 = scmp.ne.s32.totalorder %s332, %s334
    %p338 = scmp.eq.s32.totalorder %s25, 0
    %p339 = por %p337, %p338
    %p340 = scmp.ne.s32.totalorder %s332, %s334
    %p341 = scmp.eq.s32.totalorder %s30, 1
    %p342 = por %p340, %p341
    %p343 = scmp.ne.s32.totalorder %s334, %s335
    %p344 = scmp.eq.s32.totalorder %s30, 0
    %p345 = por %p343, %p344
    %p346 = scmp.ne.s32.totalorder %s334, %s335
    %p347 = scmp.eq.s32.totalorder %s31, 1
    %p348 = por %p346, %p347
    %p350 = scmp.ne.s32.totalorder %s335, %s349
    %p351 = scmp.eq.s32.totalorder %s31, 0
    %p352 = por %p350, %p351
    %s354 = sadd.s32 %s353, 1
    %p357 = scmp.eq.s32.totalorder %s25, 1
    %p358 = scmp.ne.s32.totalorder %s353, %s355
    %p359 = scmp.eq.s32.totalorder %s25, 0
    %p360 = por %p358, %p359
    %p361 = scmp.ne.s32.totalorder %s353, %s355
    %p362 = scmp.eq.s32.totalorder %s30, 1
    %p363 = por %p361, %p362
    %p364 = scmp.ne.s32.totalorder %s355, %s356
    %p365 = scmp.eq.s32.totalorder %s30, 0
    %p366 = por %p364, %p365
    %p367 = scmp.ne.s32.totalorder %s355, %s356
    %p368 = scmp.eq.s32.totalorder %s31, 1
    %p369 = por %p367, %p368
    %p371 = scmp.ne.s32.totalorder %s356, %s370
    %p372 = scmp.eq.s32.totalorder %s31, 0
    %p373 = por %p371, %p372
    %s375 = sadd.s32 %s374, 1
    %p378 = scmp.eq.s32.totalorder %s25, 1
    %p379 = scmp.ne.s32.totalorder %s374, %s376
    %p380 = scmp.eq.s32.totalorder %s25, 0
    %p381 = por %p379, %p380
    %p382 = scmp.ne.s32.totalorder %s374, %s376
    %p383 = scmp.eq.s32.totalorder %s30, 1
    %p384 = por %p382, %p383
    %p385 = scmp.ne.s32.totalorder %s376, %s377
    %p386 = scmp.eq.s32.totalorder %s30, 0
    %p387 = por %p385, %p386
    %p388 = scmp.ne.s32.totalorder %s376, %s377
    %p389 = scmp.eq.s32.totalorder %s31, 1
    %p390 = por %p388, %p389
    %p392 = scmp.ne.s32.totalorder %s377, %s391
    %p393 = scmp.eq.s32.totalorder %s31, 0
    %p394 = por %p392, %p393
    %s396 = sadd.s32 %s395, 1
    %p399 = scmp.eq.s32.totalorder %s25, 1
    %p400 = scmp.ne.s32.totalorder %s395, %s397
    %p401 = scmp.eq.s32.totalorder %s25, 0
    %p402 = por %p400, %p401
    %p403 = scmp.ne.s32.totalorder %s395, %s397
    %p404 = scmp.eq.s32.totalorder %s30, 1
    %p405 = por %p403, %p404
    %p406 = scmp.ne.s32.totalorder %s397, %s398
    %p407 = scmp.eq.s32.totalorder %s30, 0
    %p408 = por %p406, %p407
    %p409 = scmp.ne.s32.totalorder %s397, %s398
    %p410 = scmp.eq.s32.totalorder %s31, 1
    %p411 = por %p409, %p410
    %p413 = scmp.ne.s32.totalorder %s398, %s412
    %p414 = scmp.eq.s32.totalorder %s31, 0
    %p415 = por %p413, %p414
    %s417 = sadd.s32 %s416, 1
    %p420 = scmp.eq.s32.totalorder %s25, 1
    %p421 = scmp.ne.s32.totalorder %s416, %s418
    %p422 = scmp.eq.s32.totalorder %s25, 0
    %p423 = por %p421, %p422
    %p424 = scmp.ne.s32.totalorder %s416, %s418
    %p425 = scmp.eq.s32.totalorder %s30, 1
    %p426 = por %p424, %p425
    %p427 = scmp.ne.s32.totalorder %s418, %s419
    %p428 = scmp.eq.s32.totalorder %s30, 0
    %p429 = por %p427, %p428
    %p430 = scmp.ne.s32.totalorder %s418, %s419
    %p431 = scmp.eq.s32.totalorder %s31, 1
    %p432 = por %p430, %p431
    %p434 = scmp.ne.s32.totalorder %s419, %s433
    %p435 = scmp.eq.s32.totalorder %s31, 0
    %p436 = por %p434, %p435
    %s437 = ssub.s32 %s25, %s32
    %p438 = scmp.eq.s32.totalorder %s437, 0
    %s440 = sadd.s32 %s439, 1
    %s441 = scalar_select %p438, %s439, %s440
    %p444 = pneg %p438
    %p445 = scmp.eq.s32.totalorder %s25, 1
    %p446 = por %p444, %p445
    %p447 = scmp.ne.s32.totalorder %s439, %s442
    %p448 = scmp.eq.s32.totalorder %s25, 0
    %p449 = por %p447, %p448
    %p450 = scmp.ne.s32.totalorder %s439, %s442
    %p451 = scmp.eq.s32.totalorder %s30, 1
    %p452 = por %p450, %p451
    %p453 = scmp.ne.s32.totalorder %s442, %s443
    %p454 = scmp.eq.s32.totalorder %s30, 0
    %p455 = por %p453, %p454
    %p456 = scmp.ne.s32.totalorder %s442, %s443
    %p457 = scmp.eq.s32.totalorder %s31, 1
    %p458 = por %p456, %p457
    %p460 = scmp.ne.s32.totalorder %s443, %s459
    %p461 = scmp.eq.s32.totalorder %s31, 0
    %p462 = por %p460, %p461
    %p463 = scmp.le.s32.totalorder 1, %s25
    %p464 = scmp.lt.s32.totalorder %s25, 3
    %p465 = pnand %p463, %p464
    %p466 = pneg %p465
    // Predicated region
    $region9: #{autoencoder8_forward.1} parent=5 // pred_check
      _
    $region10: #{autoencoder8_forward.1} parent=5 // pred_check_branch
      %468 = sbr.rel (%p465) target = $region12
    $region11: #{autoencoder8_forward.1} parent=5 // pred_region
      %s469 = ssub.s32 %s25, 1
      // Predicated region
      $region13: #{autoencoder8_forward.1} parent=11 // pred_check
        %p470 = pneg %p72
      $region14: #{autoencoder8_forward.1} parent=11 // pred_check_branch
        %472 = sbr.rel (%p470) target = $region16
      $region15: #{autoencoder8_forward.1} parent=11 // pred_region
        _
      $region16: #{autoencoder8_forward.1} parent=11 // pred_fallthru
        _
      // Predicated region
      $region17: #{autoencoder8_forward.1} parent=11 // pred_check
        %p473 = pneg %p93
      $region18: #{autoencoder8_forward.1} parent=11 // pred_check_branch
        %475 = sbr.rel (%p473) target = $region20
      $region19: #{autoencoder8_forward.1} parent=11 // pred_region
        _
      $region20: #{autoencoder8_forward.1} parent=11 // pred_fallthru
        _
      // Predicated region
      $region21: #{autoencoder8_forward.1} parent=11 // pred_check
        %p476 = pneg %p114
      $region22: #{autoencoder8_forward.1} parent=11 // pred_check_branch
        %478 = sbr.rel (%p476) target = $region24
      $region23: #{autoencoder8_forward.1} parent=11 // pred_region
        _
      $region24: #{autoencoder8_forward.1} parent=11 // pred_fallthru
        _
      // Predicated region
      $region25: #{autoencoder8_forward.1} parent=11 // pred_check
        %p479 = pneg %p135
      $region26: #{autoencoder8_forward.1} parent=11 // pred_check_branch
        %481 = sbr.rel (%p479) target = $region28
      $region27: #{autoencoder8_forward.1} parent=11 // pred_region
        _
      $region28: #{autoencoder8_forward.1} parent=11 // pred_fallthru
        _
      // Predicated region
      $region29: #{autoencoder8_forward.1} parent=11 // pred_check
        %p482 = pneg %p156
      $region30: #{autoencoder8_forward.1} parent=11 // pred_check_branch
        %484 = sbr.rel (%p482) target = $region32
      $region31: #{autoencoder8_forward.1} parent=11 // pred_region
        _
      $region32: #{autoencoder8_forward.1} parent=11 // pred_fallthru
        _
      // Predicated region
      $region33: #{autoencoder8_forward.1} parent=11 // pred_check
        %p485 = pneg %p177
      $region34: #{autoencoder8_forward.1} parent=11 // pred_check_branch
        %487 = sbr.rel (%p485) target = $region36
      $region35: #{autoencoder8_forward.1} parent=11 // pred_region
        _
      $region36: #{autoencoder8_forward.1} parent=11 // pred_fallthru
        _
      // Predicated region
      $region37: #{autoencoder8_forward.1} parent=11 // pred_check
        %p488 = pneg %p198
      $region38: #{autoencoder8_forward.1} parent=11 // pred_check_branch
        %490 = sbr.rel (%p488) target = $region40
      $region39: #{autoencoder8_forward.1} parent=11 // pred_region
        _
      $region40: #{autoencoder8_forward.1} parent=11 // pred_fallthru
        _
      // Predicated region
      $region41: #{autoencoder8_forward.1} parent=11 // pred_check
        %p491 = pneg %p219
      $region42: #{autoencoder8_forward.1} parent=11 // pred_check_branch
        %493 = sbr.rel (%p491) target = $region44
      $region43: #{autoencoder8_forward.1} parent=11 // pred_region
        _
      $region44: #{autoencoder8_forward.1} parent=11 // pred_fallthru
        _
      // Predicated region
      $region45: #{autoencoder8_forward.1} parent=11 // pred_check
        %p494 = pneg %p240
      $region46: #{autoencoder8_forward.1} parent=11 // pred_check_branch
        %496 = sbr.rel (%p494) target = $region48
      $region47: #{autoencoder8_forward.1} parent=11 // pred_region
        _
      $region48: #{autoencoder8_forward.1} parent=11 // pred_fallthru
        _
      // Predicated region
      $region49: #{autoencoder8_forward.1} parent=11 // pred_check
        %p497 = pneg %p261
      $region50: #{autoencoder8_forward.1} parent=11 // pred_check_branch
        %499 = sbr.rel (%p497) target = $region52
      $region51: #{autoencoder8_forward.1} parent=11 // pred_region
        _
      $region52: #{autoencoder8_forward.1} parent=11 // pred_fallthru
        _
      // Predicated region
      $region53: #{autoencoder8_forward.1} parent=11 // pred_check
        %p500 = pneg %p282
      $region54: #{autoencoder8_forward.1} parent=11 // pred_check_branch
        %502 = sbr.rel (%p500) target = $region56
      $region55: #{autoencoder8_forward.1} parent=11 // pred_region
        _
      $region56: #{autoencoder8_forward.1} parent=11 // pred_fallthru
        _
      // Predicated region
      $region57: #{autoencoder8_forward.1} parent=11 // pred_check
        %p503 = pneg %p303
      $region58: #{autoencoder8_forward.1} parent=11 // pred_check_branch
        %505 = sbr.rel (%p503) target = $region60
      $region59: #{autoencoder8_forward.1} parent=11 // pred_region
        _
      $region60: #{autoencoder8_forward.1} parent=11 // pred_fallthru
        _
      // Predicated region
      $region61: #{autoencoder8_forward.1} parent=11 // pred_check
        %p506 = pneg %p324
      $region62: #{autoencoder8_forward.1} parent=11 // pred_check_branch
        %508 = sbr.rel (%p506) target = $region64
      $region63: #{autoencoder8_forward.1} parent=11 // pred_region
        _
      $region64: #{autoencoder8_forward.1} parent=11 // pred_fallthru
        _
      // Predicated region
      $region65: #{autoencoder8_forward.1} parent=11 // pred_check
        %p509 = pneg %p345
      $region66: #{autoencoder8_forward.1} parent=11 // pred_check_branch
        %511 = sbr.rel (%p509) target = $region68
      $region67: #{autoencoder8_forward.1} parent=11 // pred_region
        _
      $region68: #{autoencoder8_forward.1} parent=11 // pred_fallthru
        _
      // Predicated region
      $region69: #{autoencoder8_forward.1} parent=11 // pred_check
        %p512 = pneg %p366
      $region70: #{autoencoder8_forward.1} parent=11 // pred_check_branch
        %514 = sbr.rel (%p512) target = $region72
      $region71: #{autoencoder8_forward.1} parent=11 // pred_region
        _
      $region72: #{autoencoder8_forward.1} parent=11 // pred_fallthru
        _
      // Predicated region
      $region73: #{autoencoder8_forward.1} parent=11 // pred_check
        %p515 = pneg %p387
      $region74: #{autoencoder8_forward.1} parent=11 // pred_check_branch
        %517 = sbr.rel (%p515) target = $region76
      $region75: #{autoencoder8_forward.1} parent=11 // pred_region
        _
      $region76: #{autoencoder8_forward.1} parent=11 // pred_fallthru
        _
      // Predicated region
      $region77: #{autoencoder8_forward.1} parent=11 // pred_check
        %p518 = pneg %p408
      $region78: #{autoencoder8_forward.1} parent=11 // pred_check_branch
        %520 = sbr.rel (%p518) target = $region80
      $region79: #{autoencoder8_forward.1} parent=11 // pred_region
        _
      $region80: #{autoencoder8_forward.1} parent=11 // pred_fallthru
        _
      // Predicated region
      $region81: #{autoencoder8_forward.1} parent=11 // pred_check
        %p521 = pneg %p429
      $region82: #{autoencoder8_forward.1} parent=11 // pred_check_branch
        %523 = sbr.rel (%p521) target = $region84
      $region83: #{autoencoder8_forward.1} parent=11 // pred_region
        _
      $region84: #{autoencoder8_forward.1} parent=11 // pred_fallthru
        _
    $region12: #{autoencoder8_forward.1} parent=5 // pred_fallthru
      _
    %p524 = scmp.lt.s32.totalorder %s25, 2
    // Predicated region
    $region85: #{autoencoder8_forward.1} parent=5 // pred_check
      %p525 = pneg %p524
    $region86: #{autoencoder8_forward.1} parent=5 // pred_check_branch
      %527 = sbr.rel (%p525) target = $region88
    $region87: #{autoencoder8_forward.1} parent=5 // pred_region
      // Predicated region
      $region89: #{autoencoder8_forward.1} parent=87 // pred_check
        %p528 = pneg %p45
      $region90: #{autoencoder8_forward.1} parent=87 // pred_check_branch
        %530 = sbr.rel (%p528) target = $region92
      $region91: #{autoencoder8_forward.1} parent=87 // pred_region
        %s531 = smul.u32 16, %s25
        %p532 = scmp.lt.s32.totalorder %s531, 31
        %s533 = scalar_select %p532, %s531, 31
        %s534 = smul.addr %s533, 4
        %s535 = scalar_lea.vmem %s0, %s534
        %s536 = smul.u32 16, %s25
      $region92: #{autoencoder8_forward.1} parent=87 // pred_fallthru
        _
    $region88: #{autoencoder8_forward.1} parent=5 // pred_fallthru
      _
    %p537 = scmp.le.s32.totalorder 1, %s25
    %p538 = scmp.lt.s32.totalorder %s25, 3
    %p539 = pnand %p537, %p538
    %p540 = pneg %p539
    // Predicated region
    $region93: #{autoencoder8_forward.1} parent=5 // pred_check
      _
    $region94: #{autoencoder8_forward.1} parent=5 // pred_check_branch
      %542 = sbr.rel (%p539) target = $region96
    $region95: #{autoencoder8_forward.1} parent=5 // pred_region
      %s543 = ssub.s32 %s25, 1
      %s544 = smul.u32 16, %s30
      %p545 = scmp.lt.s32.totalorder %s544, 31
      %s546 = scalar_select %p545, %s544, 31
      %s547 = smul.addr %s546, 4
      %s548 = scalar_lea.vmem %s0, %s547
      %p549 = pneg %p51
      %p550 = pneg %p48
      %p551 = pneg %p72
      %p552 = pneg %p69
      %p553 = pneg %p93
      %p554 = pneg %p90
      %p555 = pneg %p114
      %p556 = pneg %p111
      %p557 = pneg %p135
      %p558 = pneg %p132
      %p559 = pneg %p156
      %p560 = pneg %p153
      %p561 = pneg %p177
      %p562 = pneg %p174
      %p563 = pneg %p198
      %p564 = pneg %p195
      %p565 = pneg %p219
      %p566 = pneg %p216
      %p567 = pneg %p240
      %p568 = pneg %p237
      %p569 = pneg %p261
      %p570 = pneg %p258
      %p571 = pneg %p282
      %p572 = pneg %p279
      %p573 = pneg %p303
      %p574 = pneg %p300
      %p575 = pneg %p324
      %p576 = pneg %p321
      %p577 = pneg %p345
      %p578 = pneg %p342
      %p579 = pneg %p366
      %p580 = pneg %p363
      %p581 = pneg %p387
      %p582 = pneg %p384
      %p583 = pneg %p408
      %p584 = pneg %p405
      %p585 = pneg %p429
      %p586 = pneg %p426
      %p587 = pneg %p455
      %p588 = pneg %p452
      %s589 = smul.u32 14, %s30
      %p590 = scmp.lt.s32.totalorder %s589, 27
      %s591 = scalar_select %p590, %s589, 27
      %s592 = smul.addr %s591, 8
      %s593 = scalar_lea.vmem %s19, %s592
      %s594 = smul.u32 16, %s30
      %p595 = scmp.lt.s32.totalorder %s594, 31
      %s596 = scalar_select %p595, %s594, 31
      %s597 = smul.addr %s596, 4
      %s598 = scalar_lea.vmem %s0, %s597
      %s599 = smul.u32 16, %s30
      %s600 = smul.u32 14, %s30
      %p601 = scmp.lt.s32.totalorder %s600, 27
      %s602 = scalar_select %p601, %s600, 27
      %s603 = smul.addr %s602, 8
      %s604 = scalar_lea.vmem %s19, %s603
      %s605 = smul.u32 14, %s30
      %v607 = vld [vmem:[%s598] sm:$0xf]
      %v608 = vld [vmem:[%s598 + $0x4] sm:$0xf]
      %v609 = vld [vmem:[%s598 + $0x8] sm:$0xf]
      %v610 = vld [vmem:[%s598 + $0xc] sm:$0xf]
      %v611 = vld [vmem:[%s598 + $0x10] sm:$0xf]
      %v612 = vld [vmem:[%s598 + $0x14] sm:$0xf]
      %v613 = vld [vmem:[%s598 + $0x18] sm:$0xf]
      %v614 = vld [vmem:[%s598 + $0x1c] sm:$0xf]
      %v615 = vld [vmem:[%s598 + $0x20] sm:$0xf]
      %v616 = vld [vmem:[%s598 + $0x24] sm:$0xf]
      %v617 = vld [vmem:[%s598 + $0x28] sm:$0xf]
      %v618 = vld [vmem:[%s598 + $0x2c] sm:$0xf]
      %v619 = vld [vmem:[%s598 + $0x30] sm:$0xf]
      %v620 = vld [vmem:[%s598 + $0x34] sm:$0xf]
      %v621 = vld [vmem:[%s598 + $0x38] sm:$0xf]
      %v622 = vld [vmem:[%s598 + $0x3c] sm:$0xf]
      %v623 = vld [vmem:[%s1] sm:$0xf]
      %v624 = vld [vmem:[%s1 + $0x4] sm:$0xf]
      %v625 = vld [vmem:[%s1 + $0x8] sm:$0xf]
      %v626 = vld [vmem:[%s1 + $0xc] sm:$0xf]
      %v627 = vld [vmem:[%s1 + $0x10] sm:$0xf]
      %v628 = vld [vmem:[%s1 + $0x14] sm:$0xf]
      %v629 = vld [vmem:[%s1 + $0x18] sm:$0xf]
      %v637 = vunpack.c.l.b16 %v623
      %v638 = vunpack.c.l.b16 %v624
      %v639 = vunpack.c.l.b16 %v625
      %v640 = vunpack.c.l.b16 %v626
      %v641 = vunpack.c.l.b16 %v627
      %v642 = vunpack.c.l.b16 %v628
      %v643 = vunpack.c.l.b16 %v629
      %v644 = vpack.c.b16 %v638, %v637
      %v645 = vpack.c.b16 %v640, %v639
      %v646 = vpack.c.b16 %v642, %v641
      %v647 = vpack.c.b16 %v643, %v643
      %v668 = vunpack.c.l.b16 %v607
      %v669 = vunpack.c.l.b16 %v608
      %v670 = vunpack.c.l.b16 %v609
      %v671 = vunpack.c.l.b16 %v610
      %v672 = vunpack.c.l.b16 %v611
      %v673 = vunpack.c.l.b16 %v612
      %v674 = vunpack.c.l.b16 %v613
      %v675 = vunpack.c.l.b16 %v614
      %v676 = vunpack.c.l.b16 %v615
      %v677 = vunpack.c.l.b16 %v616
      %v678 = vunpack.c.l.b16 %v617
      %v679 = vunpack.c.l.b16 %v618
      %v680 = vunpack.c.l.b16 %v619
      %v681 = vunpack.c.l.b16 %v620
      %v682 = vunpack.c.l.b16 %v621
      %v683 = vunpack.c.l.b16 %v622
      %v684 = vpack.c.b16 %v669, %v668
      %v685 = vpack.c.b16 %v671, %v670
      %v686 = vpack.c.b16 %v673, %v672
      %v687 = vpack.c.b16 %v675, %v674
      %v688 = vpack.c.b16 %v677, %v676
      %v689 = vpack.c.b16 %v679, %v678
      %v690 = vpack.c.b16 %v681, %v680
      %v691 = vpack.c.b16 %v683, %v682
      %700 = vmatprep.subr.bf16.mxu0 0
      %701 = vmatpush1.bf16.msra.mxu0 %v691
      %702 = vmatprep.subr.bf16.mxu0 0
      %703 = vmatpush1.bf16.msra.mxu0 %v690
      %704 = vmatprep.subr.bf16.mxu0 0
      %705 = vmatpush1.bf16.msra.mxu0 %v689
      %706 = vmatprep.subr.bf16.mxu0 0
      %707 = vmatpush1.bf16.msra.mxu0 %v688
      %708 = vmatprep.subr.bf16.mxu0 0
      %709 = vmatpush1.bf16.msra.mxu0 %v687
      %710 = vmatprep.subr.bf16.mxu0 0
      %711 = vmatpush1.bf16.msra.mxu0 %v686
      %712 = vmatprep.subr.bf16.mxu0 0
      %713 = vmatpush1.bf16.msra.mxu0 %v685
      %714 = vmatprep.subr.bf16.mxu0 0
      %715 = vmatpush1.bf16.msra.mxu0 %v684
      %716 = vmatprep.subr.bf16.mxu0 0
      %717 = vmatpush2.bf16.msra.mxu0 0
      %718 = vmatprep.subr.bf16.mxu0 0
      %719 = vmatpush2.bf16.msra.mxu0 0
      %720 = vmatprep.subr.bf16.mxu0 0
      %721 = vmatpush2.bf16.msra.mxu0 0
      %722 = vmatprep.subr.bf16.mxu0 0
      %723 = vmatpush2.bf16.msra.mxu0 0
      %724 = vmatprep.subr.bf16.mxu0 0
      %725 = vmatpush2.bf16.msra.mxu0 0
      %726 = vmatprep.subr.bf16.mxu0 0
      %727 = vmatpush2.bf16.msra.mxu0 0
      %728 = vmatprep.subr.bf16.mxu0 0
      %729 = vmatpush2.bf16.msra.mxu0 0
      %730 = vmatprep.subr.bf16.mxu0 0
      %731 = vmatpush2.bf16.msra.mxu0 0
      %732 = vmatprep.mubr.bf16.mxu0 0
      %733 = vmatmul.mubr.bf16.gmra.mxu0 %v644
      %v734 = vpop.f32.mrf.mxu0
      %v735 = vadd.f32 0.0, %v734
      %v736 = vpop.f32.mrf.mxu0
      %v737 = vpop.f32.mrf.mxu0
      %v738 = vadd.f32 0.0, %v737
      %v739 = vpop.f32.mrf.mxu0
      %740 = vmatprep.mubr.bf16.mxu0 0
      %741 = vmatmul.mubr.bf16.gmra.mxu0 %v645
      %v742 = vpop.f32.mrf.mxu0
      %v743 = vadd.f32 0.0, %v742
      %v744 = vpop.f32.mrf.mxu0
      %v745 = vpop.f32.mrf.mxu0
      %v746 = vadd.f32 0.0, %v745
      %v747 = vpop.f32.mrf.mxu0
      %748 = vmatprep.mubr.bf16.mxu0 0
      %749 = vmatmul.mubr.bf16.gmra.mxu0 %v646
      %v750 = vpop.f32.mrf.mxu0
      %v751 = vadd.f32 0.0, %v750
      %v752 = vpop.f32.mrf.mxu0
      %v753 = vpop.f32.mrf.mxu0
      %v754 = vadd.f32 0.0, %v753
      %v755 = vpop.f32.mrf.mxu0
      %756 = vmatprep.mubr.bf16.mxu0 0
      %757 = vmatmul.mubr.bf16.gmra.mxu0 %v647
      %v758 = vpop.f32.mrf.mxu0
      %v759 = vadd.f32 0.0, %v758
      %v760 = vpop.f32.mrf.mxu0
      %v761 = vpop.f32.mrf.mxu0
      %v762 = vpop.f32.mrf.mxu0
      %763 = vdwg.mxu0
      %v764 = vpack.c.bf16 %v738, %v735
      %v765 = vpack.c.bf16 %v746, %v743
      %v766 = vpack.c.bf16 %v754, %v751
      %v767 = vpack.c.bf16 %v759, %v759
      %s768 = scalar_lea.vmem %s1, 28
      %v769 = vld [vmem:[%s768] sm:$0xf]
      %v770 = vld [vmem:[%s768 + $0x4] sm:$0xf]
      %v771 = vld [vmem:[%s768 + $0x8] sm:$0xf]
      %v772 = vld [vmem:[%s768 + $0xc] sm:$0xf]
      %v773 = vld [vmem:[%s768 + $0x10] sm:$0xf]
      %v774 = vld [vmem:[%s768 + $0x14] sm:$0xf]
      %v775 = vld [vmem:[%s768 + $0x18] sm:$0xf]
      %v783 = vunpack.c.l.b16 %v769
      %v784 = vunpack.c.l.b16 %v770
      %v785 = vunpack.c.l.b16 %v771
      %v786 = vunpack.c.l.b16 %v772
      %v787 = vunpack.c.l.b16 %v773
      %v788 = vunpack.c.l.b16 %v774
      %v789 = vunpack.c.l.b16 %v775
      %v790 = vpack.c.b16 %v784, %v783
      %v791 = vpack.c.b16 %v786, %v785
      %v792 = vpack.c.b16 %v788, %v787
      %v793 = vpack.c.b16 %v789, %v789
      %798 = vmatprep.subr.bf16.mxu0 0
      %799 = vmatpush1.bf16.msra.mxu0 %v691
      %800 = vmatprep.subr.bf16.mxu0 0
      %801 = vmatpush1.bf16.msra.mxu0 %v690
      %802 = vmatprep.subr.bf16.mxu0 0
      %803 = vmatpush1.bf16.msra.mxu0 %v689
      %804 = vmatprep.subr.bf16.mxu0 0
      %805 = vmatpush1.bf16.msra.mxu0 %v688
      %806 = vmatprep.subr.bf16.mxu0 0
      %807 = vmatpush1.bf16.msra.mxu0 %v687
      %808 = vmatprep.subr.bf16.mxu0 0
      %809 = vmatpush1.bf16.msra.mxu0 %v686
      %810 = vmatprep.subr.bf16.mxu0 0
      %811 = vmatpush1.bf16.msra.mxu0 %v685
      %812 = vmatprep.subr.bf16.mxu0 0
      %813 = vmatpush1.bf16.msra.mxu0 %v684
      %814 = vmatprep.subr.bf16.mxu0 0
      %815 = vmatpush2.bf16.msra.mxu0 0
      %816 = vmatprep.subr.bf16.mxu0 0
      %817 = vmatpush2.bf16.msra.mxu0 0
      %818 = vmatprep.subr.bf16.mxu0 0
      %819 = vmatpush2.bf16.msra.mxu0 0
      %820 = vmatprep.subr.bf16.mxu0 0
      %821 = vmatpush2.bf16.msra.mxu0 0
      %822 = vmatprep.subr.bf16.mxu0 0
      %823 = vmatpush2.bf16.msra.mxu0 0
      %824 = vmatprep.subr.bf16.mxu0 0
      %825 = vmatpush2.bf16.msra.mxu0 0
      %826 = vmatprep.subr.bf16.mxu0 0
      %827 = vmatpush2.bf16.msra.mxu0 0
      %828 = vmatprep.subr.bf16.mxu0 0
      %829 = vmatpush2.bf16.msra.mxu0 0
      %830 = vmatprep.mubr.bf16.mxu0 0
      %831 = vmatmul.mubr.bf16.gmra.mxu0 %v790
      %v832 = vpop.f32.mrf.mxu0
      %v833 = vadd.f32 0.0, %v832
      %v834 = vpop.f32.mrf.mxu0
      %v835 = vpop.f32.mrf.mxu0
      %v836 = vadd.f32 0.0, %v835
      %v837 = vpop.f32.mrf.mxu0
      %838 = vmatprep.mubr.bf16.mxu0 0
      %839 = vmatmul.mubr.bf16.gmra.mxu0 %v791
      %v840 = vpop.f32.mrf.mxu0
      %v841 = vadd.f32 0.0, %v840
      %v842 = vpop.f32.mrf.mxu0
      %v843 = vpop.f32.mrf.mxu0
      %v844 = vadd.f32 0.0, %v843
      %v845 = vpop.f32.mrf.mxu0
      %846 = vmatprep.mubr.bf16.mxu0 0
      %847 = vmatmul.mubr.bf16.gmra.mxu0 %v792
      %v848 = vpop.f32.mrf.mxu0
      %v849 = vadd.f32 0.0, %v848
      %v850 = vpop.f32.mrf.mxu0
      %v851 = vpop.f32.mrf.mxu0
      %v852 = vadd.f32 0.0, %v851
      %v853 = vpop.f32.mrf.mxu0
      %854 = vmatprep.mubr.bf16.mxu0 0
      %855 = vmatmul.mubr.bf16.gmra.mxu0 %v793
      %v856 = vpop.f32.mrf.mxu0
      %v857 = vadd.f32 0.0, %v856
      %v858 = vpop.f32.mrf.mxu0
      %v859 = vpop.f32.mrf.mxu0
      %v860 = vpop.f32.mrf.mxu0
      %861 = vdwg.mxu0
      %v862 = vpack.c.bf16 %v836, %v833
      %v863 = vpack.c.bf16 %v844, %v841
      %v864 = vpack.c.bf16 %v852, %v849
      %v865 = vpack.c.bf16 %v857, %v857
      %s866 = scalar_lea.vmem %s1, 56
      %v867 = vld [vmem:[%s866] sm:$0xf]
      %v868 = vld [vmem:[%s866 + $0x4] sm:$0xf]
      %v869 = vld [vmem:[%s866 + $0x8] sm:$0xf]
      %v870 = vld [vmem:[%s866 + $0xc] sm:$0xf]
      %v871 = vld [vmem:[%s866 + $0x10] sm:$0xf]
      %v872 = vld [vmem:[%s866 + $0x14] sm:$0xf]
      %v873 = vld [vmem:[%s866 + $0x18] sm:$0xf]
      %v881 = vunpack.c.l.b16 %v867
      %v882 = vunpack.c.l.b16 %v868
      %v883 = vunpack.c.l.b16 %v869
      %v884 = vunpack.c.l.b16 %v870
      %v885 = vunpack.c.l.b16 %v871
      %v886 = vunpack.c.l.b16 %v872
      %v887 = vunpack.c.l.b16 %v873
      %v888 = vpack.c.b16 %v882, %v881
      %v889 = vpack.c.b16 %v884, %v883
      %v890 = vpack.c.b16 %v886, %v885
      %v891 = vpack.c.b16 %v887, %v887
      %896 = vmatprep.subr.bf16.mxu0 0
      %897 = vmatpush1.bf16.msra.mxu0 %v691
      %898 = vmatprep.subr.bf16.mxu0 0
      %899 = vmatpush1.bf16.msra.mxu0 %v690
      %900 = vmatprep.subr.bf16.mxu0 0
      %901 = vmatpush1.bf16.msra.mxu0 %v689
      %902 = vmatprep.subr.bf16.mxu0 0
      %903 = vmatpush1.bf16.msra.mxu0 %v688
      %904 = vmatprep.subr.bf16.mxu0 0
      %905 = vmatpush1.bf16.msra.mxu0 %v687
      %906 = vmatprep.subr.bf16.mxu0 0
      %907 = vmatpush1.bf16.msra.mxu0 %v686
      %908 = vmatprep.subr.bf16.mxu0 0
      %909 = vmatpush1.bf16.msra.mxu0 %v685
      %910 = vmatprep.subr.bf16.mxu0 0
      %911 = vmatpush1.bf16.msra.mxu0 %v684
      %912 = vmatprep.subr.bf16.mxu0 0
      %913 = vmatpush2.bf16.msra.mxu0 0
      %914 = vmatprep.subr.bf16.mxu0 0
      %915 = vmatpush2.bf16.msra.mxu0 0
      %916 = vmatprep.subr.bf16.mxu0 0
      %917 = vmatpush2.bf16.msra.mxu0 0
      %918 = vmatprep.subr.bf16.mxu0 0
      %919 = vmatpush2.bf16.msra.mxu0 0
      %920 = vmatprep.subr.bf16.mxu0 0
      %921 = vmatpush2.bf16.msra.mxu0 0
      %922 = vmatprep.subr.bf16.mxu0 0
      %923 = vmatpush2.bf16.msra.mxu0 0
      %924 = vmatprep.subr.bf16.mxu0 0
      %925 = vmatpush2.bf16.msra.mxu0 0
      %926 = vmatprep.subr.bf16.mxu0 0
      %927 = vmatpush2.bf16.msra.mxu0 0
      %928 = vmatprep.mubr.bf16.mxu0 0
      %929 = vmatmul.mubr.bf16.gmra.mxu0 %v888
      %v930 = vpop.f32.mrf.mxu0
      %v931 = vadd.f32 0.0, %v930
      %v932 = vpop.f32.mrf.mxu0
      %v933 = vpop.f32.mrf.mxu0
      %v934 = vadd.f32 0.0, %v933
      %v935 = vpop.f32.mrf.mxu0
      %936 = vmatprep.mubr.bf16.mxu0 0
      %937 = vmatmul.mubr.bf16.gmra.mxu0 %v889
      %v938 = vpop.f32.mrf.mxu0
      %v939 = vadd.f32 0.0, %v938
      %v940 = vpop.f32.mrf.mxu0
      %v941 = vpop.f32.mrf.mxu0
      %v942 = vadd.f32 0.0, %v941
      %v943 = vpop.f32.mrf.mxu0
      %944 = vmatprep.mubr.bf16.mxu0 0
      %945 = vmatmul.mubr.bf16.gmra.mxu0 %v890
      %v946 = vpop.f32.mrf.mxu0
      %v947 = vadd.f32 0.0, %v946
      %v948 = vpop.f32.mrf.mxu0
      %v949 = vpop.f32.mrf.mxu0
      %v950 = vadd.f32 0.0, %v949
      %v951 = vpop.f32.mrf.mxu0
      %952 = vmatprep.mubr.bf16.mxu0 0
      %953 = vmatmul.mubr.bf16.gmra.mxu0 %v891
      %v954 = vpop.f32.mrf.mxu0
      %v955 = vadd.f32 0.0, %v954
      %v956 = vpop.f32.mrf.mxu0
      %v957 = vpop.f32.mrf.mxu0
      %v958 = vpop.f32.mrf.mxu0
      %959 = vdwg.mxu0
      %v960 = vpack.c.bf16 %v934, %v931
      %v961 = vpack.c.bf16 %v942, %v939
      %v962 = vpack.c.bf16 %v950, %v947
      %v963 = vpack.c.bf16 %v955, %v955
      %s964 = scalar_lea.vmem %s1, 84
      %v965 = vld [vmem:[%s964] sm:$0xf]
      %v966 = vld [vmem:[%s964 + $0x4] sm:$0xf]
      %v967 = vld [vmem:[%s964 + $0x8] sm:$0xf]
      %v968 = vld [vmem:[%s964 + $0xc] sm:$0xf]
      %v969 = vld [vmem:[%s964 + $0x10] sm:$0xf]
      %v970 = vld [vmem:[%s964 + $0x14] sm:$0xf]
      %v971 = vld [vmem:[%s964 + $0x18] sm:$0xf]
      %v979 = vunpack.c.l.b16 %v965
      %v980 = vunpack.c.l.b16 %v966
      %v981 = vunpack.c.l.b16 %v967
      %v982 = vunpack.c.l.b16 %v968
      %v983 = vunpack.c.l.b16 %v969
      %v984 = vunpack.c.l.b16 %v970
      %v985 = vunpack.c.l.b16 %v971
      %v986 = vpack.c.b16 %v980, %v979
      %v987 = vpack.c.b16 %v982, %v981
      %v988 = vpack.c.b16 %v984, %v983
      %v989 = vpack.c.b16 %v985, %v985
      %994 = vmatprep.subr.bf16.mxu0 0
      %995 = vmatpush1.bf16.msra.mxu0 %v691
      %996 = vmatprep.subr.bf16.mxu0 0
      %997 = vmatpush1.bf16.msra.mxu0 %v690
      %998 = vmatprep.subr.bf16.mxu0 0
      %999 = vmatpush1.bf16.msra.mxu0 %v689
      %1000 = vmatprep.subr.bf16.mxu0 0
      %1001 = vmatpush1.bf16.msra.mxu0 %v688
      %1002 = vmatprep.subr.bf16.mxu0 0
      %1003 = vmatpush1.bf16.msra.mxu0 %v687
      %1004 = vmatprep.subr.bf16.mxu0 0
      %1005 = vmatpush1.bf16.msra.mxu0 %v686
      %1006 = vmatprep.subr.bf16.mxu0 0
      %1007 = vmatpush1.bf16.msra.mxu0 %v685
      %1008 = vmatprep.subr.bf16.mxu0 0
      %1009 = vmatpush1.bf16.msra.mxu0 %v684
      %1010 = vmatprep.subr.bf16.mxu0 0
      %1011 = vmatpush2.bf16.msra.mxu0 0
      %1012 = vmatprep.subr.bf16.mxu0 0
      %1013 = vmatpush2.bf16.msra.mxu0 0
      %1014 = vmatprep.subr.bf16.mxu0 0
      %1015 = vmatpush2.bf16.msra.mxu0 0
      %1016 = vmatprep.subr.bf16.mxu0 0
      %1017 = vmatpush2.bf16.msra.mxu0 0
      %1018 = vmatprep.subr.bf16.mxu0 0
      %1019 = vmatpush2.bf16.msra.mxu0 0
      %1020 = vmatprep.subr.bf16.mxu0 0
      %1021 = vmatpush2.bf16.msra.mxu0 0
      %1022 = vmatprep.subr.bf16.mxu0 0
      %1023 = vmatpush2.bf16.msra.mxu0 0
      %1024 = vmatprep.subr.bf16.mxu0 0
      %1025 = vmatpush2.bf16.msra.mxu0 0
      %1026 = vmatprep.mubr.bf16.mxu0 0
      %1027 = vmatmul.mubr.bf16.gmra.mxu0 %v986
      %v1028 = vpop.f32.mrf.mxu0
      %v1029 = vadd.f32 0.0, %v1028
      %v1030 = vpop.f32.mrf.mxu0
      %v1031 = vpop.f32.mrf.mxu0
      %v1032 = vadd.f32 0.0, %v1031
      %v1033 = vpop.f32.mrf.mxu0
      %1034 = vmatprep.mubr.bf16.mxu0 0
      %1035 = vmatmul.mubr.bf16.gmra.mxu0 %v987
      %v1036 = vpop.f32.mrf.mxu0
      %v1037 = vadd.f32 0.0, %v1036
      %v1038 = vpop.f32.mrf.mxu0
      %v1039 = vpop.f32.mrf.mxu0
      %v1040 = vadd.f32 0.0, %v1039
      %v1041 = vpop.f32.mrf.mxu0
      %1042 = vmatprep.mubr.bf16.mxu0 0
      %1043 = vmatmul.mubr.bf16.gmra.mxu0 %v988
      %v1044 = vpop.f32.mrf.mxu0
      %v1045 = vadd.f32 0.0, %v1044
      %v1046 = vpop.f32.mrf.mxu0
      %v1047 = vpop.f32.mrf.mxu0
      %v1048 = vadd.f32 0.0, %v1047
      %v1049 = vpop.f32.mrf.mxu0
      %1050 = vmatprep.mubr.bf16.mxu0 0
      %1051 = vmatmul.mubr.bf16.gmra.mxu0 %v989
      %v1052 = vpop.f32.mrf.mxu0
      %v1053 = vadd.f32 0.0, %v1052
      %v1054 = vpop.f32.mrf.mxu0
      %v1055 = vpop.f32.mrf.mxu0
      %v1056 = vpop.f32.mrf.mxu0
      %1057 = vdwg.mxu0
      %v1058 = vpack.c.bf16 %v1032, %v1029
      %v1059 = vpack.c.bf16 %v1040, %v1037
      %v1060 = vpack.c.bf16 %v1048, %v1045
      %v1061 = vpack.c.bf16 %v1053, %v1053
      %s1062 = scalar_lea.vmem %s1, 112
      %v1063 = vld [vmem:[%s1062] sm:$0xf]
      %v1064 = vld [vmem:[%s1062 + $0x4] sm:$0xf]
      %v1065 = vld [vmem:[%s1062 + $0x8] sm:$0xf]
      %v1066 = vld [vmem:[%s1062 + $0xc] sm:$0xf]
      %v1067 = vld [vmem:[%s1062 + $0x10] sm:$0xf]
      %v1068 = vld [vmem:[%s1062 + $0x14] sm:$0xf]
      %v1069 = vld [vmem:[%s1062 + $0x18] sm:$0xf]
      %v1077 = vunpack.c.l.b16 %v1063
      %v1078 = vunpack.c.l.b16 %v1064
      %v1079 = vunpack.c.l.b16 %v1065
      %v1080 = vunpack.c.l.b16 %v1066
      %v1081 = vunpack.c.l.b16 %v1067
      %v1082 = vunpack.c.l.b16 %v1068
      %v1083 = vunpack.c.l.b16 %v1069
      %v1084 = vpack.c.b16 %v1078, %v1077
      %v1085 = vpack.c.b16 %v1080, %v1079
      %v1086 = vpack.c.b16 %v1082, %v1081
      %v1087 = vpack.c.b16 %v1083, %v1083
      %1092 = vmatprep.subr.bf16.mxu0 0
      %1093 = vmatpush1.bf16.msra.mxu0 %v691
      %1094 = vmatprep.subr.bf16.mxu0 0
      %1095 = vmatpush1.bf16.msra.mxu0 %v690
      %1096 = vmatprep.subr.bf16.mxu0 0
      %1097 = vmatpush1.bf16.msra.mxu0 %v689
      %1098 = vmatprep.subr.bf16.mxu0 0
      %1099 = vmatpush1.bf16.msra.mxu0 %v688
      %1100 = vmatprep.subr.bf16.mxu0 0
      %1101 = vmatpush1.bf16.msra.mxu0 %v687
      %1102 = vmatprep.subr.bf16.mxu0 0
      %1103 = vmatpush1.bf16.msra.mxu0 %v686
      %1104 = vmatprep.subr.bf16.mxu0 0
      %1105 = vmatpush1.bf16.msra.mxu0 %v685
      %1106 = vmatprep.subr.bf16.mxu0 0
      %1107 = vmatpush1.bf16.msra.mxu0 %v684
      %1108 = vmatprep.subr.bf16.mxu0 0
      %1109 = vmatpush2.bf16.msra.mxu0 0
      %1110 = vmatprep.subr.bf16.mxu0 0
      %1111 = vmatpush2.bf16.msra.mxu0 0
      %1112 = vmatprep.subr.bf16.mxu0 0
      %1113 = vmatpush2.bf16.msra.mxu0 0
      %1114 = vmatprep.subr.bf16.mxu0 0
      %1115 = vmatpush2.bf16.msra.mxu0 0
      %1116 = vmatprep.subr.bf16.mxu0 0
      %1117 = vmatpush2.bf16.msra.mxu0 0
      %1118 = vmatprep.subr.bf16.mxu0 0
      %1119 = vmatpush2.bf16.msra.mxu0 0
      %1120 = vmatprep.subr.bf16.mxu0 0
      %1121 = vmatpush2.bf16.msra.mxu0 0
      %1122 = vmatprep.subr.bf16.mxu0 0
      %1123 = vmatpush2.bf16.msra.mxu0 0
      %1124 = vmatprep.mubr.bf16.mxu0 0
      %1125 = vmatmul.mubr.bf16.gmra.mxu0 %v1084
      %v1126 = vpop.f32.mrf.mxu0
      %v1127 = vadd.f32 0.0, %v1126
      %v1128 = vpop.f32.mrf.mxu0
      %v1129 = vpop.f32.mrf.mxu0
      %v1130 = vadd.f32 0.0, %v1129
      %v1131 = vpop.f32.mrf.mxu0
      %1132 = vmatprep.mubr.bf16.mxu0 0
      %1133 = vmatmul.mubr.bf16.gmra.mxu0 %v1085
      %v1134 = vpop.f32.mrf.mxu0
      %v1135 = vadd.f32 0.0, %v1134
      %v1136 = vpop.f32.mrf.mxu0
      %v1137 = vpop.f32.mrf.mxu0
      %v1138 = vadd.f32 0.0, %v1137
      %v1139 = vpop.f32.mrf.mxu0
      %1140 = vmatprep.mubr.bf16.mxu0 0
      %1141 = vmatmul.mubr.bf16.gmra.mxu0 %v1086
      %v1142 = vpop.f32.mrf.mxu0
      %v1143 = vadd.f32 0.0, %v1142
      %v1144 = vpop.f32.mrf.mxu0
      %v1145 = vpop.f32.mrf.mxu0
      %v1146 = vadd.f32 0.0, %v1145
      %v1147 = vpop.f32.mrf.mxu0
      %1148 = vmatprep.mubr.bf16.mxu0 0
      %1149 = vmatmul.mubr.bf16.gmra.mxu0 %v1087
      %v1150 = vpop.f32.mrf.mxu0
      %v1151 = vadd.f32 0.0, %v1150
      %v1152 = vpop.f32.mrf.mxu0
      %v1153 = vpop.f32.mrf.mxu0
      %v1154 = vpop.f32.mrf.mxu0
      %1155 = vdwg.mxu0
      %v1156 = vpack.c.bf16 %v1130, %v1127
      %v1157 = vpack.c.bf16 %v1138, %v1135
      %v1158 = vpack.c.bf16 %v1146, %v1143
      %v1159 = vpack.c.bf16 %v1151, %v1151
      %s1160 = scalar_lea.vmem %s1, 140
      %v1161 = vld [vmem:[%s1160] sm:$0xf]
      %v1162 = vld [vmem:[%s1160 + $0x4] sm:$0xf]
      %v1163 = vld [vmem:[%s1160 + $0x8] sm:$0xf]
      %v1164 = vld [vmem:[%s1160 + $0xc] sm:$0xf]
      %v1165 = vld [vmem:[%s1160 + $0x10] sm:$0xf]
      %v1166 = vld [vmem:[%s1160 + $0x14] sm:$0xf]
      %v1167 = vld [vmem:[%s1160 + $0x18] sm:$0xf]
      %v1175 = vunpack.c.l.b16 %v1161
      %v1176 = vunpack.c.l.b16 %v1162
      %v1177 = vunpack.c.l.b16 %v1163
      %v1178 = vunpack.c.l.b16 %v1164
      %v1179 = vunpack.c.l.b16 %v1165
      %v1180 = vunpack.c.l.b16 %v1166
      %v1181 = vunpack.c.l.b16 %v1167
      %v1182 = vpack.c.b16 %v1176, %v1175
      %v1183 = vpack.c.b16 %v1178, %v1177
      %v1184 = vpack.c.b16 %v1180, %v1179
      %v1185 = vpack.c.b16 %v1181, %v1181
      %1190 = vmatprep.subr.bf16.mxu0 0
      %1191 = vmatpush1.bf16.msra.mxu0 %v691
      %1192 = vmatprep.subr.bf16.mxu0 0
      %1193 = vmatpush1.bf16.msra.mxu0 %v690
      %1194 = vmatprep.subr.bf16.mxu0 0
      %1195 = vmatpush1.bf16.msra.mxu0 %v689
      %1196 = vmatprep.subr.bf16.mxu0 0
      %1197 = vmatpush1.bf16.msra.mxu0 %v688
      %1198 = vmatprep.subr.bf16.mxu0 0
      %1199 = vmatpush1.bf16.msra.mxu0 %v687
      %1200 = vmatprep.subr.bf16.mxu0 0
      %1201 = vmatpush1.bf16.msra.mxu0 %v686
      %1202 = vmatprep.subr.bf16.mxu0 0
      %1203 = vmatpush1.bf16.msra.mxu0 %v685
      %1204 = vmatprep.subr.bf16.mxu0 0
      %1205 = vmatpush1.bf16.msra.mxu0 %v684
      %1206 = vmatprep.subr.bf16.mxu0 0
      %1207 = vmatpush2.bf16.msra.mxu0 0
      %1208 = vmatprep.subr.bf16.mxu0 0
      %1209 = vmatpush2.bf16.msra.mxu0 0
      %1210 = vmatprep.subr.bf16.mxu0 0
      %1211 = vmatpush2.bf16.msra.mxu0 0
      %1212 = vmatprep.subr.bf16.mxu0 0
      %1213 = vmatpush2.bf16.msra.mxu0 0
      %1214 = vmatprep.subr.bf16.mxu0 0
      %1215 = vmatpush2.bf16.msra.mxu0 0
      %1216 = vmatprep.subr.bf16.mxu0 0
      %1217 = vmatpush2.bf16.msra.mxu0 0
      %1218 = vmatprep.subr.bf16.mxu0 0
      %1219 = vmatpush2.bf16.msra.mxu0 0
      %1220 = vmatprep.subr.bf16.mxu0 0
      %1221 = vmatpush2.bf16.msra.mxu0 0
      %1222 = vmatprep.mubr.bf16.mxu0 0
      %1223 = vmatmul.mubr.bf16.gmra.mxu0 %v1182
      %v1224 = vpop.f32.mrf.mxu0
      %v1225 = vadd.f32 0.0, %v1224
      %v1226 = vpop.f32.mrf.mxu0
      %v1227 = vpop.f32.mrf.mxu0
      %v1228 = vadd.f32 0.0, %v1227
      %v1229 = vpop.f32.mrf.mxu0
      %1230 = vmatprep.mubr.bf16.mxu0 0
      %1231 = vmatmul.mubr.bf16.gmra.mxu0 %v1183
      %v1232 = vpop.f32.mrf.mxu0
      %v1233 = vadd.f32 0.0, %v1232
      %v1234 = vpop.f32.mrf.mxu0
      %v1235 = vpop.f32.mrf.mxu0
      %v1236 = vadd.f32 0.0, %v1235
      %v1237 = vpop.f32.mrf.mxu0
      %1238 = vmatprep.mubr.bf16.mxu0 0
      %1239 = vmatmul.mubr.bf16.gmra.mxu0 %v1184
      %v1240 = vpop.f32.mrf.mxu0
      %v1241 = vadd.f32 0.0, %v1240
      %v1242 = vpop.f32.mrf.mxu0
      %v1243 = vpop.f32.mrf.mxu0
      %v1244 = vadd.f32 0.0, %v1243
      %v1245 = vpop.f32.mrf.mxu0
      %1246 = vmatprep.mubr.bf16.mxu0 0
      %1247 = vmatmul.mubr.bf16.gmra.mxu0 %v1185
      %v1248 = vpop.f32.mrf.mxu0
      %v1249 = vadd.f32 0.0, %v1248
      %v1250 = vpop.f32.mrf.mxu0
      %v1251 = vpop.f32.mrf.mxu0
      %v1252 = vpop.f32.mrf.mxu0
      %1253 = vdwg.mxu0
      %v1254 = vpack.c.bf16 %v1228, %v1225
      %v1255 = vpack.c.bf16 %v1236, %v1233
      %v1256 = vpack.c.bf16 %v1244, %v1241
      %v1257 = vpack.c.bf16 %v1249, %v1249
      %s1258 = scalar_lea.vmem %s1, 168
      %v1259 = vld [vmem:[%s1258] sm:$0xf]
      %v1260 = vld [vmem:[%s1258 + $0x4] sm:$0xf]
      %v1261 = vld [vmem:[%s1258 + $0x8] sm:$0xf]
      %v1262 = vld [vmem:[%s1258 + $0xc] sm:$0xf]
      %v1263 = vld [vmem:[%s1258 + $0x10] sm:$0xf]
      %v1264 = vld [vmem:[%s1258 + $0x14] sm:$0xf]
      %v1265 = vld [vmem:[%s1258 + $0x18] sm:$0xf]
      %v1273 = vunpack.c.l.b16 %v1259
      %v1274 = vunpack.c.l.b16 %v1260
      %v1275 = vunpack.c.l.b16 %v1261
      %v1276 = vunpack.c.l.b16 %v1262
      %v1277 = vunpack.c.l.b16 %v1263
      %v1278 = vunpack.c.l.b16 %v1264
      %v1279 = vunpack.c.l.b16 %v1265
      %v1280 = vpack.c.b16 %v1274, %v1273
      %v1281 = vpack.c.b16 %v1276, %v1275
      %v1282 = vpack.c.b16 %v1278, %v1277
      %v1283 = vpack.c.b16 %v1279, %v1279
      %1288 = vmatprep.subr.bf16.mxu0 0
      %1289 = vmatpush1.bf16.msra.mxu0 %v691
      %1290 = vmatprep.subr.bf16.mxu0 0
      %1291 = vmatpush1.bf16.msra.mxu0 %v690
      %1292 = vmatprep.subr.bf16.mxu0 0
      %1293 = vmatpush1.bf16.msra.mxu0 %v689
      %1294 = vmatprep.subr.bf16.mxu0 0
      %1295 = vmatpush1.bf16.msra.mxu0 %v688
      %1296 = vmatprep.subr.bf16.mxu0 0
      %1297 = vmatpush1.bf16.msra.mxu0 %v687
      %1298 = vmatprep.subr.bf16.mxu0 0
      %1299 = vmatpush1.bf16.msra.mxu0 %v686
      %1300 = vmatprep.subr.bf16.mxu0 0
      %1301 = vmatpush1.bf16.msra.mxu0 %v685
      %1302 = vmatprep.subr.bf16.mxu0 0
      %1303 = vmatpush1.bf16.msra.mxu0 %v684
      %1304 = vmatprep.subr.bf16.mxu0 0
      %1305 = vmatpush2.bf16.msra.mxu0 0
      %1306 = vmatprep.subr.bf16.mxu0 0
      %1307 = vmatpush2.bf16.msra.mxu0 0
      %1308 = vmatprep.subr.bf16.mxu0 0
      %1309 = vmatpush2.bf16.msra.mxu0 0
      %1310 = vmatprep.subr.bf16.mxu0 0
      %1311 = vmatpush2.bf16.msra.mxu0 0
      %1312 = vmatprep.subr.bf16.mxu0 0
      %1313 = vmatpush2.bf16.msra.mxu0 0
      %1314 = vmatprep.subr.bf16.mxu0 0
      %1315 = vmatpush2.bf16.msra.mxu0 0
      %1316 = vmatprep.subr.bf16.mxu0 0
      %1317 = vmatpush2.bf16.msra.mxu0 0
      %1318 = vmatprep.subr.bf16.mxu0 0
      %1319 = vmatpush2.bf16.msra.mxu0 0
      %1320 = vmatprep.mubr.bf16.mxu0 0
      %1321 = vmatmul.mubr.bf16.gmra.mxu0 %v1280
      %v1322 = vpop.f32.mrf.mxu0
      %v1323 = vadd.f32 0.0, %v1322
      %v1324 = vpop.f32.mrf.mxu0
      %v1325 = vpop.f32.mrf.mxu0
      %v1326 = vadd.f32 0.0, %v1325
      %v1327 = vpop.f32.mrf.mxu0
      %1328 = vmatprep.mubr.bf16.mxu0 0
      %1329 = vmatmul.mubr.bf16.gmra.mxu0 %v1281
      %v1330 = vpop.f32.mrf.mxu0
      %v1331 = vadd.f32 0.0, %v1330
      %v1332 = vpop.f32.mrf.mxu0
      %v1333 = vpop.f32.mrf.mxu0
      %v1334 = vadd.f32 0.0, %v1333
      %v1335 = vpop.f32.mrf.mxu0
      %1336 = vmatprep.mubr.bf16.mxu0 0
      %1337 = vmatmul.mubr.bf16.gmra.mxu0 %v1282
      %v1338 = vpop.f32.mrf.mxu0
      %v1339 = vadd.f32 0.0, %v1338
      %v1340 = vpop.f32.mrf.mxu0
      %v1341 = vpop.f32.mrf.mxu0
      %v1342 = vadd.f32 0.0, %v1341
      %v1343 = vpop.f32.mrf.mxu0
      %1344 = vmatprep.mubr.bf16.mxu0 0
      %1345 = vmatmul.mubr.bf16.gmra.mxu0 %v1283
      %v1346 = vpop.f32.mrf.mxu0
      %v1347 = vadd.f32 0.0, %v1346
      %v1348 = vpop.f32.mrf.mxu0
      %v1349 = vpop.f32.mrf.mxu0
      %v1350 = vpop.f32.mrf.mxu0
      %1351 = vdwg.mxu0
      %v1352 = vpack.c.bf16 %v1326, %v1323
      %v1353 = vpack.c.bf16 %v1334, %v1331
      %v1354 = vpack.c.bf16 %v1342, %v1339
      %v1355 = vpack.c.bf16 %v1347, %v1347
      %s1356 = scalar_lea.vmem %s1, 196
      %v1357 = vld [vmem:[%s1356] sm:$0xf]
      %v1358 = vld [vmem:[%s1356 + $0x4] sm:$0xf]
      %v1359 = vld [vmem:[%s1356 + $0x8] sm:$0xf]
      %v1360 = vld [vmem:[%s1356 + $0xc] sm:$0xf]
      %v1361 = vld [vmem:[%s1356 + $0x10] sm:$0xf]
      %v1362 = vld [vmem:[%s1356 + $0x14] sm:$0xf]
      %v1363 = vld [vmem:[%s1356 + $0x18] sm:$0xf]
      %v1371 = vunpack.c.l.b16 %v1357
      %v1372 = vunpack.c.l.b16 %v1358
      %v1373 = vunpack.c.l.b16 %v1359
      %v1374 = vunpack.c.l.b16 %v1360
      %v1375 = vunpack.c.l.b16 %v1361
      %v1376 = vunpack.c.l.b16 %v1362
      %v1377 = vunpack.c.l.b16 %v1363
      %v1378 = vpack.c.b16 %v1372, %v1371
      %v1379 = vpack.c.b16 %v1374, %v1373
      %v1380 = vpack.c.b16 %v1376, %v1375
      %v1381 = vpack.c.b16 %v1377, %v1377
      %1386 = vmatprep.subr.bf16.mxu0 0
      %1387 = vmatpush1.bf16.msra.mxu0 %v691
      %1388 = vmatprep.subr.bf16.mxu0 0
      %1389 = vmatpush1.bf16.msra.mxu0 %v690
      %1390 = vmatprep.subr.bf16.mxu0 0
      %1391 = vmatpush1.bf16.msra.mxu0 %v689
      %1392 = vmatprep.subr.bf16.mxu0 0
      %1393 = vmatpush1.bf16.msra.mxu0 %v688
      %1394 = vmatprep.subr.bf16.mxu0 0
      %1395 = vmatpush1.bf16.msra.mxu0 %v687
      %1396 = vmatprep.subr.bf16.mxu0 0
      %1397 = vmatpush1.bf16.msra.mxu0 %v686
      %1398 = vmatprep.subr.bf16.mxu0 0
      %1399 = vmatpush1.bf16.msra.mxu0 %v685
      %1400 = vmatprep.subr.bf16.mxu0 0
      %1401 = vmatpush1.bf16.msra.mxu0 %v684
      %1402 = vmatprep.subr.bf16.mxu0 0
      %1403 = vmatpush2.bf16.msra.mxu0 0
      %1404 = vmatprep.subr.bf16.mxu0 0
      %1405 = vmatpush2.bf16.msra.mxu0 0
      %1406 = vmatprep.subr.bf16.mxu0 0
      %1407 = vmatpush2.bf16.msra.mxu0 0
      %1408 = vmatprep.subr.bf16.mxu0 0
      %1409 = vmatpush2.bf16.msra.mxu0 0
      %1410 = vmatprep.subr.bf16.mxu0 0
      %1411 = vmatpush2.bf16.msra.mxu0 0
      %1412 = vmatprep.subr.bf16.mxu0 0
      %1413 = vmatpush2.bf16.msra.mxu0 0
      %1414 = vmatprep.subr.bf16.mxu0 0
      %1415 = vmatpush2.bf16.msra.mxu0 0
      %1416 = vmatprep.subr.bf16.mxu0 0
      %1417 = vmatpush2.bf16.msra.mxu0 0
      %1418 = vmatprep.mubr.bf16.mxu0 0
      %1419 = vmatmul.mubr.bf16.gmra.mxu0 %v1378
      %v1420 = vpop.f32.mrf.mxu0
      %v1421 = vadd.f32 0.0, %v1420
      %v1422 = vpop.f32.mrf.mxu0
      %v1423 = vpop.f32.mrf.mxu0
      %v1424 = vadd.f32 0.0, %v1423
      %v1425 = vpop.f32.mrf.mxu0
      %1426 = vmatprep.mubr.bf16.mxu0 0
      %1427 = vmatmul.mubr.bf16.gmra.mxu0 %v1379
      %v1428 = vpop.f32.mrf.mxu0
      %v1429 = vadd.f32 0.0, %v1428
      %v1430 = vpop.f32.mrf.mxu0
      %v1431 = vpop.f32.mrf.mxu0
      %v1432 = vadd.f32 0.0, %v1431
      %v1433 = vpop.f32.mrf.mxu0
      %1434 = vmatprep.mubr.bf16.mxu0 0
      %1435 = vmatmul.mubr.bf16.gmra.mxu0 %v1380
      %v1436 = vpop.f32.mrf.mxu0
      %v1437 = vadd.f32 0.0, %v1436
      %v1438 = vpop.f32.mrf.mxu0
      %v1439 = vpop.f32.mrf.mxu0
      %v1440 = vadd.f32 0.0, %v1439
      %v1441 = vpop.f32.mrf.mxu0
      %1442 = vmatprep.mubr.bf16.mxu0 0
      %1443 = vmatmul.mubr.bf16.gmra.mxu0 %v1381
      %v1444 = vpop.f32.mrf.mxu0
      %v1445 = vadd.f32 0.0, %v1444
      %v1446 = vpop.f32.mrf.mxu0
      %v1447 = vpop.f32.mrf.mxu0
      %v1448 = vpop.f32.mrf.mxu0
      %1449 = vdwg.mxu0
      %v1450 = vpack.c.bf16 %v1424, %v1421
      %v1451 = vpack.c.bf16 %v1432, %v1429
      %v1452 = vpack.c.bf16 %v1440, %v1437
      %v1453 = vpack.c.bf16 %v1445, %v1445
      %v1454 = vld [vmem:[%s2] sm:$0xf]
      %v1455 = vld [vmem:[%s2 + $0x4] sm:$0xf]
      %v1456 = vld [vmem:[%s2 + $0x8] sm:$0xf]
      %v1457 = vld [vmem:[%s2 + $0xc] sm:$0xf]
      %v1458 = vld [vmem:[%s2 + $0x10] sm:$0xf]
      %v1459 = vld [vmem:[%s2 + $0x14] sm:$0xf]
      %v1460 = vld [vmem:[%s2 + $0x18] sm:$0xf]
      %v1461 = vld [vmem:[%s2 + $0x1c] sm:$0xf]
      %v1462 = vld [vmem:[%s2 + $0x20] sm:$0xf]
      %v1463 = vld [vmem:[%s2 + $0x24] sm:$0xf]
      %v1464 = vld [vmem:[%s2 + $0x28] sm:$0xf]
      %v1465 = vld [vmem:[%s2 + $0x2c] sm:$0xf]
      %v1466 = vld [vmem:[%s2 + $0x30] sm:$0xf]
      %v1467 = vld [vmem:[%s2 + $0x34] sm:$0xf]
      %v1468 = vld [vmem:[%s2 + $0x38] sm:$0xf]
      %v1469 = vld [vmem:[%s2 + $0x3c] sm:$0xf]
      %v1470 = vld [vmem:[%s2 + $0x40] sm:$0xf]
      %v1471 = vld [vmem:[%s2 + $0x44] sm:$0xf]
      %v1472 = vld [vmem:[%s2 + $0x48] sm:$0xf]
      %v1473 = vld [vmem:[%s2 + $0x4c] sm:$0xf]
      %v1474 = vld [vmem:[%s2 + $0x50] sm:$0xf]
      %v1475 = vld [vmem:[%s2 + $0x54] sm:$0xf]
      %v1476 = vld [vmem:[%s2 + $0x58] sm:$0xf]
      %v1477 = vld [vmem:[%s2 + $0x5c] sm:$0xf]
      %v1478 = vld [vmem:[%s2 + $0x60] sm:$0xf]
      %v1479 = vld [vmem:[%s2 + $0x64] sm:$0xf]
      %v1480 = vld [vmem:[%s2 + $0x68] sm:$0xf]
      %v1481 = vld [vmem:[%s2 + $0x6c] sm:$0xf]
      %v1482 = vld [vmem:[%s2 + $0x70] sm:$0xf]
      %v1483 = vld [vmem:[%s2 + $0x74] sm:$0xf]
      %v1484 = vld [vmem:[%s2 + $0x78] sm:$0xf]
      %v1485 = vld [vmem:[%s2 + $0x7c] sm:$0xf]
      %v1486 = vld [vmem:[%s2 + $0x80] sm:$0xf]
      %v1487 = vld [vmem:[%s2 + $0x84] sm:$0xf]
      %v1488 = vld [vmem:[%s2 + $0x88] sm:$0xf]
      %v1489 = vld [vmem:[%s2 + $0x8c] sm:$0xf]
      %v1490 = vld [vmem:[%s2 + $0x90] sm:$0xf]
      %v1491 = vld [vmem:[%s2 + $0x94] sm:$0xf]
      %v1492 = vld [vmem:[%s2 + $0x98] sm:$0xf]
      %v1493 = vld [vmem:[%s2 + $0x9c] sm:$0xf]
      %v1494 = vld [vmem:[%s2 + $0xa0] sm:$0xf]
      %v1495 = vld [vmem:[%s2 + $0xa4] sm:$0xf]
      %v1496 = vld [vmem:[%s2 + $0xa8] sm:$0xf]
      %v1497 = vld [vmem:[%s2 + $0xac] sm:$0xf]
      %v1498 = vld [vmem:[%s2 + $0xb0] sm:$0xf]
      %v1499 = vld [vmem:[%s2 + $0xb4] sm:$0xf]
      %v1500 = vld [vmem:[%s2 + $0xb8] sm:$0xf]
      %v1501 = vld [vmem:[%s2 + $0xbc] sm:$0xf]
      %v1502 = vld [vmem:[%s2 + $0xc0] sm:$0xf]
      %v1503 = vld [vmem:[%s2 + $0xc4] sm:$0xf]
      %v1504 = vld [vmem:[%s2 + $0xc8] sm:$0xf]
      %v1505 = vld [vmem:[%s2 + $0xcc] sm:$0xf]
      %v1506 = vld [vmem:[%s2 + $0xd0] sm:$0xf]
      %v1507 = vld [vmem:[%s2 + $0xd4] sm:$0xf]
      %v1508 = vld [vmem:[%s2 + $0xd8] sm:$0xf]
      %v1509 = vld [vmem:[%s2 + $0xdc] sm:$0xf]
      %v1510 = vld [vmem:[%s2 + $0xe0] sm:$0xf]
      %v1511 = vld [vmem:[%s2 + $0xe4] sm:$0xf]
      %v1512 = vld [vmem:[%s2 + $0xe8] sm:$0xf]
      %v1513 = vld [vmem:[%s2 + $0xec] sm:$0xf]
      %v1514 = vld [vmem:[%s2 + $0xf0] sm:$0xf]
      %v1515 = vld [vmem:[%s2 + $0xf4] sm:$0xf]
      %v1516 = vld [vmem:[%s2 + $0xf8] sm:$0xf]
      %v1517 = vld [vmem:[%s2 + $0xfc] sm:$0xf]
      %v1518 = vld [vmem:[%s2 + $0x100] sm:$0xf]
      %v1519 = vld [vmem:[%s2 + $0x104] sm:$0xf]
      %v1520 = vld [vmem:[%s2 + $0x108] sm:$0xf]
      %v1521 = vld [vmem:[%s2 + $0x10c] sm:$0xf]
      %v1522 = vld [vmem:[%s2 + $0x110] sm:$0xf]
      %v1523 = vld [vmem:[%s2 + $0x114] sm:$0xf]
      %v1524 = vld [vmem:[%s2 + $0x118] sm:$0xf]
      %v1525 = vld [vmem:[%s2 + $0x11c] sm:$0xf]
      %v1526 = vld [vmem:[%s2 + $0x120] sm:$0xf]
      %v1527 = vld [vmem:[%s2 + $0x124] sm:$0xf]
      %v1528 = vld [vmem:[%s2 + $0x128] sm:$0xf]
      %v1529 = vld [vmem:[%s2 + $0x12c] sm:$0xf]
      %v1530 = vld [vmem:[%s2 + $0x130] sm:$0xf]
      %v1531 = vld [vmem:[%s2 + $0x134] sm:$0xf]
      %v1532 = vld [vmem:[%s2 + $0x138] sm:$0xf]
      %v1533 = vld [vmem:[%s2 + $0x13c] sm:$0xf]
      %v1534 = vld [vmem:[%s2 + $0x140] sm:$0xf]
      %v1535 = vld [vmem:[%s2 + $0x144] sm:$0xf]
      %v1536 = vld [vmem:[%s2 + $0x148] sm:$0xf]
      %v1537 = vld [vmem:[%s2 + $0x14c] sm:$0xf]
      %v1538 = vld [vmem:[%s2 + $0x150] sm:$0xf]
      %v1539 = vld [vmem:[%s2 + $0x154] sm:$0xf]
      %v1540 = vld [vmem:[%s2 + $0x158] sm:$0xf]
      %v1541 = vld [vmem:[%s2 + $0x15c] sm:$0xf]
      %v1542 = vld [vmem:[%s2 + $0x160] sm:$0xf]
      %v1543 = vld [vmem:[%s2 + $0x164] sm:$0xf]
      %v1544 = vld [vmem:[%s2 + $0x168] sm:$0xf]
      %v1545 = vld [vmem:[%s2 + $0x16c] sm:$0xf]
      %v1546 = vld [vmem:[%s2 + $0x170] sm:$0xf]
      %v1547 = vld [vmem:[%s2 + $0x174] sm:$0xf]
      %v1548 = vld [vmem:[%s2 + $0x178] sm:$0xf]
      %v1549 = vld [vmem:[%s2 + $0x17c] sm:$0xf]
      %v1550 = vld [vmem:[%s2 + $0x180] sm:$0xf]
      %v1551 = vld [vmem:[%s2 + $0x184] sm:$0xf]
      %v1552 = vld [vmem:[%s2 + $0x188] sm:$0xf]
      %v1553 = vld [vmem:[%s2 + $0x18c] sm:$0xf]
      %v1554 = vld [vmem:[%s2 + $0x190] sm:$0xf]
      %v1555 = vld [vmem:[%s2 + $0x194] sm:$0xf]
      %v1556 = vld [vmem:[%s2 + $0x198] sm:$0xf]
      %v1557 = vld [vmem:[%s2 + $0x19c] sm:$0xf]
      %v1558 = vld [vmem:[%s2 + $0x1a0] sm:$0xf]
      %v1559 = vld [vmem:[%s2 + $0x1a4] sm:$0xf]
      %v1560 = vld [vmem:[%s2 + $0x1a8] sm:$0xf]
      %v1561 = vld [vmem:[%s2 + $0x1ac] sm:$0xf]
      %v1562 = vld [vmem:[%s2 + $0x1b0] sm:$0xf]
      %v1563 = vld [vmem:[%s2 + $0x1b4] sm:$0xf]
      %v1564 = vld [vmem:[%s2 + $0x1b8] sm:$0xf]
      %v1565 = vld [vmem:[%s2 + $0x1bc] sm:$0xf]
      %v1566 = vld [vmem:[%s2 + $0x1c0] sm:$0xf]
      %v1567 = vld [vmem:[%s2 + $0x1c4] sm:$0xf]
      %v1568 = vld [vmem:[%s2 + $0x1c8] sm:$0xf]
      %v1569 = vld [vmem:[%s2 + $0x1cc] sm:$0xf]
      %v1570 = vld [vmem:[%s2 + $0x1d0] sm:$0xf]
      %v1571 = vld [vmem:[%s2 + $0x1d4] sm:$0xf]
      %v1572 = vld [vmem:[%s2 + $0x1d8] sm:$0xf]
      %v1573 = vld [vmem:[%s2 + $0x1dc] sm:$0xf]
      %v1574 = vld [vmem:[%s2 + $0x1e0] sm:$0xf]
      %v1575 = vld [vmem:[%s2 + $0x1e4] sm:$0xf]
      %v1576 = vld [vmem:[%s2 + $0x1e8] sm:$0xf]
      %v1577 = vld [vmem:[%s2 + $0x1ec] sm:$0xf]
      %v1578 = vld [vmem:[%s2 + $0x1f0] sm:$0xf]
      %v1579 = vld [vmem:[%s2 + $0x1f4] sm:$0xf]
      %v1580 = vld [vmem:[%s2 + $0x1f8] sm:$0xf]
      %v1581 = vld [vmem:[%s2 + $0x1fc] sm:$0xf]
      %v1582 = vld [vmem:[%s3] sm:$0x1]
      %v1584 = vlaneseq
      %v1585 = vshrl.u32 %v1584, 7
      %v1586 = vsub.s32 0, %v1585
      %v1587 = vrot.slane %v1582, %v1586
      %v1717 = vunpack.c.l.b16 %v1454
      %v1718 = vunpack.c.l.b16 %v1455
      %v1719 = vunpack.c.l.b16 %v1456
      %v1720 = vunpack.c.l.b16 %v1457
      %v1721 = vunpack.c.l.b16 %v1458
      %v1722 = vunpack.c.l.b16 %v1459
      %v1723 = vunpack.c.l.b16 %v1460
      %v1724 = vunpack.c.l.b16 %v1461
      %v1725 = vunpack.c.l.b16 %v1462
      %v1726 = vunpack.c.l.b16 %v1463
      %v1727 = vunpack.c.l.b16 %v1464
      %v1728 = vunpack.c.l.b16 %v1465
      %v1729 = vunpack.c.l.b16 %v1466
      %v1730 = vunpack.c.l.b16 %v1467
      %v1731 = vunpack.c.l.b16 %v1468
      %v1732 = vunpack.c.l.b16 %v1469
      %v1733 = vunpack.c.l.b16 %v1470
      %v1734 = vunpack.c.l.b16 %v1471
      %v1735 = vunpack.c.l.b16 %v1472
      %v1736 = vunpack.c.l.b16 %v1473
      %v1737 = vunpack.c.l.b16 %v1474
      %v1738 = vunpack.c.l.b16 %v1475
      %v1739 = vunpack.c.l.b16 %v1476
      %v1740 = vunpack.c.l.b16 %v1477
      %v1741 = vunpack.c.l.b16 %v1478
      %v1742 = vunpack.c.l.b16 %v1479
      %v1743 = vunpack.c.l.b16 %v1480
      %v1744 = vunpack.c.l.b16 %v1481
      %v1745 = vunpack.c.l.b16 %v1482
      %v1746 = vunpack.c.l.b16 %v1483
      %v1747 = vunpack.c.l.b16 %v1484
      %v1748 = vunpack.c.l.b16 %v1485
      %v1749 = vunpack.c.l.b16 %v1486
      %v1750 = vunpack.c.l.b16 %v1487
      %v1751 = vunpack.c.l.b16 %v1488
      %v1752 = vunpack.c.l.b16 %v1489
      %v1753 = vunpack.c.l.b16 %v1490
      %v1754 = vunpack.c.l.b16 %v1491
      %v1755 = vunpack.c.l.b16 %v1492
      %v1756 = vunpack.c.l.b16 %v1493
      %v1757 = vunpack.c.l.b16 %v1494
      %v1758 = vunpack.c.l.b16 %v1495
      %v1759 = vunpack.c.l.b16 %v1496
      %v1760 = vunpack.c.l.b16 %v1497
      %v1761 = vunpack.c.l.b16 %v1498
      %v1762 = vunpack.c.l.b16 %v1499
      %v1763 = vunpack.c.l.b16 %v1500
      %v1764 = vunpack.c.l.b16 %v1501
      %v1765 = vunpack.c.l.b16 %v1502
      %v1766 = vunpack.c.l.b16 %v1503
      %v1767 = vunpack.c.l.b16 %v1504
      %v1768 = vunpack.c.l.b16 %v1505
      %v1769 = vunpack.c.l.b16 %v1506
      %v1770 = vunpack.c.l.b16 %v1507
      %v1771 = vunpack.c.l.b16 %v1508
      %v1772 = vunpack.c.l.b16 %v1509
      %v1773 = vunpack.c.l.b16 %v1510
      %v1774 = vunpack.c.l.b16 %v1511
      %v1775 = vunpack.c.l.b16 %v1512
      %v1776 = vunpack.c.l.b16 %v1513
      %v1777 = vunpack.c.l.b16 %v1514
      %v1778 = vunpack.c.l.b16 %v1515
      %v1779 = vunpack.c.l.b16 %v1516
      %v1780 = vunpack.c.l.b16 %v1517
      %v1781 = vunpack.c.l.b16 %v1518
      %v1782 = vunpack.c.l.b16 %v1519
      %v1783 = vunpack.c.l.b16 %v1520
      %v1784 = vunpack.c.l.b16 %v1521
      %v1785 = vunpack.c.l.b16 %v1522
      %v1786 = vunpack.c.l.b16 %v1523
      %v1787 = vunpack.c.l.b16 %v1524
      %v1788 = vunpack.c.l.b16 %v1525
      %v1789 = vunpack.c.l.b16 %v1526
      %v1790 = vunpack.c.l.b16 %v1527
      %v1791 = vunpack.c.l.b16 %v1528
      %v1792 = vunpack.c.l.b16 %v1529
      %v1793 = vunpack.c.l.b16 %v1530
      %v1794 = vunpack.c.l.b16 %v1531
      %v1795 = vunpack.c.l.b16 %v1532
      %v1796 = vunpack.c.l.b16 %v1533
      %v1797 = vunpack.c.l.b16 %v1534
      %v1798 = vunpack.c.l.b16 %v1535
      %v1799 = vunpack.c.l.b16 %v1536
      %v1800 = vunpack.c.l.b16 %v1537
      %v1801 = vunpack.c.l.b16 %v1538
      %v1802 = vunpack.c.l.b16 %v1539
      %v1803 = vunpack.c.l.b16 %v1540
      %v1804 = vunpack.c.l.b16 %v1541
      %v1805 = vunpack.c.l.b16 %v1542
      %v1806 = vunpack.c.l.b16 %v1543
      %v1807 = vunpack.c.l.b16 %v1544
      %v1808 = vunpack.c.l.b16 %v1545
      %v1809 = vunpack.c.l.b16 %v1546
      %v1810 = vunpack.c.l.b16 %v1547
      %v1811 = vunpack.c.l.b16 %v1548
      %v1812 = vunpack.c.l.b16 %v1549
      %v1813 = vunpack.c.l.b16 %v1550
      %v1814 = vunpack.c.l.b16 %v1551
      %v1815 = vunpack.c.l.b16 %v1552
      %v1816 = vunpack.c.l.b16 %v1553
      %v1817 = vunpack.c.l.b16 %v1554
      %v1818 = vunpack.c.l.b16 %v1555
      %v1819 = vunpack.c.l.b16 %v1556
      %v1820 = vunpack.c.l.b16 %v1557
      %v1821 = vunpack.c.l.b16 %v1558
      %v1822 = vunpack.c.l.b16 %v1559
      %v1823 = vunpack.c.l.b16 %v1560
      %v1824 = vunpack.c.l.b16 %v1561
      %v1825 = vunpack.c.l.b16 %v1562
      %v1826 = vunpack.c.l.b16 %v1563
      %v1827 = vunpack.c.l.b16 %v1564
      %v1828 = vunpack.c.l.b16 %v1565
      %v1829 = vunpack.c.l.b16 %v1566
      %v1830 = vunpack.c.l.b16 %v1567
      %v1831 = vunpack.c.l.b16 %v1568
      %v1832 = vunpack.c.l.b16 %v1569
      %v1833 = vunpack.c.l.b16 %v1570
      %v1834 = vunpack.c.l.b16 %v1571
      %v1835 = vunpack.c.l.b16 %v1572
      %v1836 = vunpack.c.l.b16 %v1573
      %v1837 = vunpack.c.l.b16 %v1574
      %v1838 = vunpack.c.l.b16 %v1575
      %v1839 = vunpack.c.l.b16 %v1576
      %v1840 = vunpack.c.l.b16 %v1577
      %v1841 = vunpack.c.l.b16 %v1578
      %v1842 = vunpack.c.l.b16 %v1579
      %v1843 = vunpack.c.l.b16 %v1580
      %v1844 = vunpack.c.l.b16 %v1581
      %v1845 = vpack.c.b16 %v1718, %v1717
      %v1846 = vpack.c.b16 %v1720, %v1719
      %v1847 = vpack.c.b16 %v1722, %v1721
      %v1848 = vpack.c.b16 %v1724, %v1723
      %v1849 = vpack.c.b16 %v1726, %v1725
      %v1850 = vpack.c.b16 %v1728, %v1727
      %v1851 = vpack.c.b16 %v1730, %v1729
      %v1852 = vpack.c.b16 %v1732, %v1731
      %v1853 = vpack.c.b16 %v1734, %v1733
      %v1854 = vpack.c.b16 %v1736, %v1735
      %v1855 = vpack.c.b16 %v1738, %v1737
      %v1856 = vpack.c.b16 %v1740, %v1739
      %v1857 = vpack.c.b16 %v1742, %v1741
      %v1858 = vpack.c.b16 %v1744, %v1743
      %v1859 = vpack.c.b16 %v1746, %v1745
      %v1860 = vpack.c.b16 %v1748, %v1747
      %v1861 = vpack.c.b16 %v1750, %v1749
      %v1862 = vpack.c.b16 %v1752, %v1751
      %v1863 = vpack.c.b16 %v1754, %v1753
      %v1864 = vpack.c.b16 %v1756, %v1755
      %v1865 = vpack.c.b16 %v1758, %v1757
      %v1866 = vpack.c.b16 %v1760, %v1759
      %v1867 = vpack.c.b16 %v1762, %v1761
      %v1868 = vpack.c.b16 %v1764, %v1763
      %v1869 = vpack.c.b16 %v1766, %v1765
      %v1870 = vpack.c.b16 %v1768, %v1767
      %v1871 = vpack.c.b16 %v1770, %v1769
      %v1872 = vpack.c.b16 %v1772, %v1771
      %v1873 = vpack.c.b16 %v1774, %v1773
      %v1874 = vpack.c.b16 %v1776, %v1775
      %v1875 = vpack.c.b16 %v1778, %v1777
      %v1876 = vpack.c.b16 %v1780, %v1779
      %v1877 = vpack.c.b16 %v1782, %v1781
      %v1878 = vpack.c.b16 %v1784, %v1783
      %v1879 = vpack.c.b16 %v1786, %v1785
      %v1880 = vpack.c.b16 %v1788, %v1787
      %v1881 = vpack.c.b16 %v1790, %v1789
      %v1882 = vpack.c.b16 %v1792, %v1791
      %v1883 = vpack.c.b16 %v1794, %v1793
      %v1884 = vpack.c.b16 %v1796, %v1795
      %v1885 = vpack.c.b16 %v1798, %v1797
      %v1886 = vpack.c.b16 %v1800, %v1799
      %v1887 = vpack.c.b16 %v1802, %v1801
      %v1888 = vpack.c.b16 %v1804, %v1803
      %v1889 = vpack.c.b16 %v1806, %v1805
      %v1890 = vpack.c.b16 %v1808, %v1807
      %v1891 = vpack.c.b16 %v1810, %v1809
      %v1892 = vpack.c.b16 %v1812, %v1811
      %v1893 = vpack.c.b16 %v1814, %v1813
      %v1894 = vpack.c.b16 %v1816, %v1815
      %v1895 = vpack.c.b16 %v1818, %v1817
      %v1896 = vpack.c.b16 %v1820, %v1819
      %v1897 = vpack.c.b16 %v1822, %v1821
      %v1898 = vpack.c.b16 %v1824, %v1823
      %v1899 = vpack.c.b16 %v1826, %v1825
      %v1900 = vpack.c.b16 %v1828, %v1827
      %v1901 = vpack.c.b16 %v1830, %v1829
      %v1902 = vpack.c.b16 %v1832, %v1831
      %v1903 = vpack.c.b16 %v1834, %v1833
      %v1904 = vpack.c.b16 %v1836, %v1835
      %v1905 = vpack.c.b16 %v1838, %v1837
      %v1906 = vpack.c.b16 %v1840, %v1839
      %v1907 = vpack.c.b16 %v1842, %v1841
      %v1908 = vpack.c.b16 %v1844, %v1843
      %1973 = vmatprep.subr.bf16.mxu0 0
      %1974 = vmatpush1.bf16.msra.mxu0 %v1852
      %1975 = vmatprep.subr.bf16.mxu0 0
      %1976 = vmatpush1.bf16.msra.mxu0 %v1851
      %1977 = vmatprep.subr.bf16.mxu0 0
      %1978 = vmatpush1.bf16.msra.mxu0 %v1850
      %1979 = vmatprep.subr.bf16.mxu0 0
      %1980 = vmatpush1.bf16.msra.mxu0 %v1849
      %1981 = vmatprep.subr.bf16.mxu0 0
      %1982 = vmatpush1.bf16.msra.mxu0 %v1848
      %1983 = vmatprep.subr.bf16.mxu0 0
      %1984 = vmatpush1.bf16.msra.mxu0 %v1847
      %1985 = vmatprep.subr.bf16.mxu0 0
      %1986 = vmatpush1.bf16.msra.mxu0 %v1846
      %1987 = vmatprep.subr.bf16.mxu0 0
      %1988 = vmatpush1.bf16.msra.mxu0 %v1845
      %1989 = vmatprep.subr.bf16.mxu0 0
      %1990 = vmatpush2.bf16.msra.mxu0 %v1860
      %1991 = vmatprep.subr.bf16.mxu0 0
      %1992 = vmatpush2.bf16.msra.mxu0 %v1859
      %1993 = vmatprep.subr.bf16.mxu0 0
      %1994 = vmatpush2.bf16.msra.mxu0 %v1858
      %1995 = vmatprep.subr.bf16.mxu0 0
      %1996 = vmatpush2.bf16.msra.mxu0 %v1857
      %1997 = vmatprep.subr.bf16.mxu0 0
      %1998 = vmatpush2.bf16.msra.mxu0 %v1856
      %1999 = vmatprep.subr.bf16.mxu0 0
      %2000 = vmatpush2.bf16.msra.mxu0 %v1855
      %2001 = vmatprep.subr.bf16.mxu0 0
      %2002 = vmatpush2.bf16.msra.mxu0 %v1854
      %2003 = vmatprep.subr.bf16.mxu0 0
      %2004 = vmatpush2.bf16.msra.mxu0 %v1853
      %2005 = vmatprep.mubr.bf16.mxu0 %v862
      %2006 = vmatmul.mubr.bf16.gmra.mxu0 %v764
      %v2007 = vpop.f32.mrf.mxu0
      %v2008 = vadd.f32 %v1587, %v2007
      %v2009 = vpop.f32.mrf.mxu0
      %v2010 = vpop.f32.mrf.mxu0
      %v2011 = vadd.f32 %v1587, %v2010
      %v2012 = vpop.f32.mrf.mxu0
      %2013 = vmatprep.mubr.bf16.mxu0 %v863
      %2014 = vmatmul.mubr.bf16.gmra.mxu0 %v765
      %v2015 = vpop.f32.mrf.mxu0
      %v2016 = vadd.f32 %v1587, %v2015
      %v2017 = vpop.f32.mrf.mxu0
      %v2018 = vpop.f32.mrf.mxu0
      %v2019 = vadd.f32 %v1587, %v2018
      %v2020 = vpop.f32.mrf.mxu0
      %2021 = vmatprep.mubr.bf16.mxu0 %v864
      %2022 = vmatmul.mubr.bf16.gmra.mxu0 %v766
      %v2023 = vpop.f32.mrf.mxu0
      %v2024 = vadd.f32 %v1587, %v2023
      %v2025 = vpop.f32.mrf.mxu0
      %v2026 = vpop.f32.mrf.mxu0
      %v2027 = vadd.f32 %v1587, %v2026
      %v2028 = vpop.f32.mrf.mxu0
      %2029 = vmatprep.mubr.bf16.mxu0 %v865
      %2030 = vmatmul.mubr.bf16.gmra.mxu0 %v767
      %v2031 = vpop.f32.mrf.mxu0
      %v2032 = vadd.f32 %v1587, %v2031
      %v2033 = vpop.f32.mrf.mxu0
      %v2034 = vpop.f32.mrf.mxu0
      %v2035 = vpop.f32.mrf.mxu0
      %2036 = vdwg.mxu0
      %2037 = vmatprep.subr.bf16.mxu0 0
      %2038 = vmatpush1.bf16.msra.mxu0 %v1868
      %2039 = vmatprep.subr.bf16.mxu0 0
      %2040 = vmatpush1.bf16.msra.mxu0 %v1867
      %2041 = vmatprep.subr.bf16.mxu0 0
      %2042 = vmatpush1.bf16.msra.mxu0 %v1866
      %2043 = vmatprep.subr.bf16.mxu0 0
      %2044 = vmatpush1.bf16.msra.mxu0 %v1865
      %2045 = vmatprep.subr.bf16.mxu0 0
      %2046 = vmatpush1.bf16.msra.mxu0 %v1864
      %2047 = vmatprep.subr.bf16.mxu0 0
      %2048 = vmatpush1.bf16.msra.mxu0 %v1863
      %2049 = vmatprep.subr.bf16.mxu0 0
      %2050 = vmatpush1.bf16.msra.mxu0 %v1862
      %2051 = vmatprep.subr.bf16.mxu0 0
      %2052 = vmatpush1.bf16.msra.mxu0 %v1861
      %2053 = vmatprep.subr.bf16.mxu0 0
      %2054 = vmatpush2.bf16.msra.mxu0 %v1876
      %2055 = vmatprep.subr.bf16.mxu0 0
      %2056 = vmatpush2.bf16.msra.mxu0 %v1875
      %2057 = vmatprep.subr.bf16.mxu0 0
      %2058 = vmatpush2.bf16.msra.mxu0 %v1874
      %2059 = vmatprep.subr.bf16.mxu0 0
      %2060 = vmatpush2.bf16.msra.mxu0 %v1873
      %2061 = vmatprep.subr.bf16.mxu0 0
      %2062 = vmatpush2.bf16.msra.mxu0 %v1872
      %2063 = vmatprep.subr.bf16.mxu0 0
      %2064 = vmatpush2.bf16.msra.mxu0 %v1871
      %2065 = vmatprep.subr.bf16.mxu0 0
      %2066 = vmatpush2.bf16.msra.mxu0 %v1870
      %2067 = vmatprep.subr.bf16.mxu0 0
      %2068 = vmatpush2.bf16.msra.mxu0 %v1869
      %2069 = vmatprep.mubr.bf16.mxu0 %v1058
      %2070 = vmatmul.mubr.bf16.gmra.mxu0 %v960
      %v2071 = vpop.f32.mrf.mxu0
      %v2072 = vadd.f32 %v2008, %v2071
      %v2073 = vpop.f32.mrf.mxu0
      %v2074 = vpop.f32.mrf.mxu0
      %v2075 = vadd.f32 %v2011, %v2074
      %v2076 = vpop.f32.mrf.mxu0
      %2077 = vmatprep.mubr.bf16.mxu0 %v1059
      %2078 = vmatmul.mubr.bf16.gmra.mxu0 %v961
      %v2079 = vpop.f32.mrf.mxu0
      %v2080 = vadd.f32 %v2016, %v2079
      %v2081 = vpop.f32.mrf.mxu0
      %v2082 = vpop.f32.mrf.mxu0
      %v2083 = vadd.f32 %v2019, %v2082
      %v2084 = vpop.f32.mrf.mxu0
      %2085 = vmatprep.mubr.bf16.mxu0 %v1060
      %2086 = vmatmul.mubr.bf16.gmra.mxu0 %v962
      %v2087 = vpop.f32.mrf.mxu0
      %v2088 = vadd.f32 %v2024, %v2087
      %v2089 = vpop.f32.mrf.mxu0
      %v2090 = vpop.f32.mrf.mxu0
      %v2091 = vadd.f32 %v2027, %v2090
      %v2092 = vpop.f32.mrf.mxu0
      %2093 = vmatprep.mubr.bf16.mxu0 %v1061
      %2094 = vmatmul.mubr.bf16.gmra.mxu0 %v963
      %v2095 = vpop.f32.mrf.mxu0
      %v2096 = vadd.f32 %v2032, %v2095
      %v2097 = vpop.f32.mrf.mxu0
      %v2098 = vpop.f32.mrf.mxu0
      %v2099 = vpop.f32.mrf.mxu0
      %2100 = vdwg.mxu0
      %2101 = vmatprep.subr.bf16.mxu0 0
      %2102 = vmatpush1.bf16.msra.mxu0 %v1884
      %2103 = vmatprep.subr.bf16.mxu0 0
      %2104 = vmatpush1.bf16.msra.mxu0 %v1883
      %2105 = vmatprep.subr.bf16.mxu0 0
      %2106 = vmatpush1.bf16.msra.mxu0 %v1882
      %2107 = vmatprep.subr.bf16.mxu0 0
      %2108 = vmatpush1.bf16.msra.mxu0 %v1881
      %2109 = vmatprep.subr.bf16.mxu0 0
      %2110 = vmatpush1.bf16.msra.mxu0 %v1880
      %2111 = vmatprep.subr.bf16.mxu0 0
      %2112 = vmatpush1.bf16.msra.mxu0 %v1879
      %2113 = vmatprep.subr.bf16.mxu0 0
      %2114 = vmatpush1.bf16.msra.mxu0 %v1878
      %2115 = vmatprep.subr.bf16.mxu0 0
      %2116 = vmatpush1.bf16.msra.mxu0 %v1877
      %2117 = vmatprep.subr.bf16.mxu0 0
      %2118 = vmatpush2.bf16.msra.mxu0 %v1892
      %2119 = vmatprep.subr.bf16.mxu0 0
      %2120 = vmatpush2.bf16.msra.mxu0 %v1891
      %2121 = vmatprep.subr.bf16.mxu0 0
      %2122 = vmatpush2.bf16.msra.mxu0 %v1890
      %2123 = vmatprep.subr.bf16.mxu0 0
      %2124 = vmatpush2.bf16.msra.mxu0 %v1889
      %2125 = vmatprep.subr.bf16.mxu0 0
      %2126 = vmatpush2.bf16.msra.mxu0 %v1888
      %2127 = vmatprep.subr.bf16.mxu0 0
      %2128 = vmatpush2.bf16.msra.mxu0 %v1887
      %2129 = vmatprep.subr.bf16.mxu0 0
      %2130 = vmatpush2.bf16.msra.mxu0 %v1886
      %2131 = vmatprep.subr.bf16.mxu0 0
      %2132 = vmatpush2.bf16.msra.mxu0 %v1885
      %2133 = vmatprep.mubr.bf16.mxu0 %v1254
      %2134 = vmatmul.mubr.bf16.gmra.mxu0 %v1156
      %v2135 = vpop.f32.mrf.mxu0
      %v2136 = vadd.f32 %v2072, %v2135
      %v2137 = vpop.f32.mrf.mxu0
      %v2138 = vpop.f32.mrf.mxu0
      %v2139 = vadd.f32 %v2075, %v2138
      %v2140 = vpop.f32.mrf.mxu0
      %2141 = vmatprep.mubr.bf16.mxu0 %v1255
      %2142 = vmatmul.mubr.bf16.gmra.mxu0 %v1157
      %v2143 = vpop.f32.mrf.mxu0
      %v2144 = vadd.f32 %v2080, %v2143
      %v2145 = vpop.f32.mrf.mxu0
      %v2146 = vpop.f32.mrf.mxu0
      %v2147 = vadd.f32 %v2083, %v2146
      %v2148 = vpop.f32.mrf.mxu0
      %2149 = vmatprep.mubr.bf16.mxu0 %v1256
      %2150 = vmatmul.mubr.bf16.gmra.mxu0 %v1158
      %v2151 = vpop.f32.mrf.mxu0
      %v2152 = vadd.f32 %v2088, %v2151
      %v2153 = vpop.f32.mrf.mxu0
      %v2154 = vpop.f32.mrf.mxu0
      %v2155 = vadd.f32 %v2091, %v2154
      %v2156 = vpop.f32.mrf.mxu0
      %2157 = vmatprep.mubr.bf16.mxu0 %v1257
      %2158 = vmatmul.mubr.bf16.gmra.mxu0 %v1159
      %v2159 = vpop.f32.mrf.mxu0
      %v2160 = vadd.f32 %v2096, %v2159
      %v2161 = vpop.f32.mrf.mxu0
      %v2162 = vpop.f32.mrf.mxu0
      %v2163 = vpop.f32.mrf.mxu0
      %2164 = vdwg.mxu0
      %2165 = vmatprep.subr.bf16.mxu0 0
      %2166 = vmatpush1.bf16.msra.mxu0 %v1900
      %2167 = vmatprep.subr.bf16.mxu0 0
      %2168 = vmatpush1.bf16.msra.mxu0 %v1899
      %2169 = vmatprep.subr.bf16.mxu0 0
      %2170 = vmatpush1.bf16.msra.mxu0 %v1898
      %2171 = vmatprep.subr.bf16.mxu0 0
      %2172 = vmatpush1.bf16.msra.mxu0 %v1897
      %2173 = vmatprep.subr.bf16.mxu0 0
      %2174 = vmatpush1.bf16.msra.mxu0 %v1896
      %2175 = vmatprep.subr.bf16.mxu0 0
      %2176 = vmatpush1.bf16.msra.mxu0 %v1895
      %2177 = vmatprep.subr.bf16.mxu0 0
      %2178 = vmatpush1.bf16.msra.mxu0 %v1894
      %2179 = vmatprep.subr.bf16.mxu0 0
      %2180 = vmatpush1.bf16.msra.mxu0 %v1893
      %2181 = vmatprep.subr.bf16.mxu0 0
      %2182 = vmatpush2.bf16.msra.mxu0 %v1908
      %2183 = vmatprep.subr.bf16.mxu0 0
      %2184 = vmatpush2.bf16.msra.mxu0 %v1907
      %2185 = vmatprep.subr.bf16.mxu0 0
      %2186 = vmatpush2.bf16.msra.mxu0 %v1906
      %2187 = vmatprep.subr.bf16.mxu0 0
      %2188 = vmatpush2.bf16.msra.mxu0 %v1905
      %2189 = vmatprep.subr.bf16.mxu0 0
      %2190 = vmatpush2.bf16.msra.mxu0 %v1904
      %2191 = vmatprep.subr.bf16.mxu0 0
      %2192 = vmatpush2.bf16.msra.mxu0 %v1903
      %2193 = vmatprep.subr.bf16.mxu0 0
      %2194 = vmatpush2.bf16.msra.mxu0 %v1902
      %2195 = vmatprep.subr.bf16.mxu0 0
      %2196 = vmatpush2.bf16.msra.mxu0 %v1901
      %2197 = vmatprep.mubr.bf16.mxu0 %v1450
      %2198 = vmatmul.mubr.bf16.gmra.mxu0 %v1352
      %v2199 = vpop.f32.mrf.mxu0
      %v2200 = vadd.f32 %v2136, %v2199
      %v2201 = vpop.f32.mrf.mxu0
      %v2202 = vpop.f32.mrf.mxu0
      %v2203 = vadd.f32 %v2139, %v2202
      %v2204 = vpop.f32.mrf.mxu0
      %2205 = vmatprep.mubr.bf16.mxu0 %v1451
      %2206 = vmatmul.mubr.bf16.gmra.mxu0 %v1353
      %v2207 = vpop.f32.mrf.mxu0
      %v2208 = vadd.f32 %v2144, %v2207
      %v2209 = vpop.f32.mrf.mxu0
      %v2210 = vpop.f32.mrf.mxu0
      %v2211 = vadd.f32 %v2147, %v2210
      %v2212 = vpop.f32.mrf.mxu0
      %2213 = vmatprep.mubr.bf16.mxu0 %v1452
      %2214 = vmatmul.mubr.bf16.gmra.mxu0 %v1354
      %v2215 = vpop.f32.mrf.mxu0
      %v2216 = vadd.f32 %v2152, %v2215
      %v2217 = vpop.f32.mrf.mxu0
      %v2218 = vpop.f32.mrf.mxu0
      %v2219 = vadd.f32 %v2155, %v2218
      %v2220 = vpop.f32.mrf.mxu0
      %2221 = vmatprep.mubr.bf16.mxu0 %v1453
      %2222 = vmatmul.mubr.bf16.gmra.mxu0 %v1355
      %v2223 = vpop.f32.mrf.mxu0
      %v2224 = vadd.f32 %v2160, %v2223
      %v2225 = vpop.f32.mrf.mxu0
      %v2226 = vpop.f32.mrf.mxu0
      %v2227 = vpop.f32.mrf.mxu0
      %2228 = vdwg.mxu0
      %v2229 = vmax.f32 %v2200, 0.0
      %v2230 = vmax.f32 %v2203, 0.0
      %v2231 = vmax.f32 %v2208, 0.0
      %v2232 = vmax.f32 %v2211, 0.0
      %v2233 = vmax.f32 %v2216, 0.0
      %v2234 = vmax.f32 %v2219, 0.0
      %v2235 = vmax.f32 %v2224, 0.0
      %v2236 = vpack.c.bf16 %v2230, %v2229
      %v2237 = vpack.c.bf16 %v2232, %v2231
      %v2238 = vpack.c.bf16 %v2234, %v2233
      %v2239 = vpack.c.bf16 %v2235, %v2235
      %v2240 = vld [vmem:[%s4] sm:$0xf]
      %v2241 = vld [vmem:[%s4 + $0x4] sm:$0xf]
      %v2242 = vld [vmem:[%s4 + $0x8] sm:$0xf]
      %v2243 = vld [vmem:[%s4 + $0xc] sm:$0x3]
      %v2248 = vunpack.c.l.b16 %v2240
      %v2249 = vunpack.c.l.b16 %v2241
      %v2250 = vunpack.c.l.b16 %v2242
      %v2251 = vunpack.c.l.b16 %v2243
      %v2252 = vpack.c.b16 %v2249, %v2248
      %v2253 = vpack.c.b16 %v2251, %v2250
      %vm2254 = vcmask 457728
      %v2256 = vsel %vm2254, %v2252, 0
      %v2259 = vsel %vm2254, %v2253, 0
      %vm2261 = vcmask 1043456
      %v2263 = vsel %vm2261, %v2239, 0
      %2265 = vmatprep.subr.bf16.mxu0 0
      %2266 = vmatpush1.bf16.msra.mxu0 0
      %2267 = vmatprep.subr.bf16.mxu0 0
      %2268 = vmatpush1.bf16.msra.mxu0 0
      %2269 = vmatprep.subr.bf16.mxu0 0
      %2270 = vmatpush1.bf16.msra.mxu0 0
      %2271 = vmatprep.subr.bf16.mxu0 0
      %2272 = vmatpush1.bf16.msra.mxu0 0
      %2273 = vmatprep.subr.bf16.mxu0 0
      %2274 = vmatpush1.bf16.msra.mxu0 %v2263
      %2275 = vmatprep.subr.bf16.mxu0 0
      %2276 = vmatpush1.bf16.msra.mxu0 %v2238
      %2277 = vmatprep.subr.bf16.mxu0 0
      %2278 = vmatpush1.bf16.msra.mxu0 %v2237
      %2279 = vmatprep.subr.bf16.mxu0 0
      %2280 = vmatpush1.bf16.msra.mxu0 %v2236
      %2281 = vmatprep.subr.bf16.mxu0 0
      %2282 = vmatpush2.bf16.msra.mxu0 0
      %2283 = vmatprep.subr.bf16.mxu0 0
      %2284 = vmatpush2.bf16.msra.mxu0 0
      %2285 = vmatprep.subr.bf16.mxu0 0
      %2286 = vmatpush2.bf16.msra.mxu0 0
      %2287 = vmatprep.subr.bf16.mxu0 0
      %2288 = vmatpush2.bf16.msra.mxu0 0
      %2289 = vmatprep.subr.bf16.mxu0 0
      %2290 = vmatpush2.bf16.msra.mxu0 0
      %2291 = vmatprep.subr.bf16.mxu0 0
      %2292 = vmatpush2.bf16.msra.mxu0 0
      %2293 = vmatprep.subr.bf16.mxu0 0
      %2294 = vmatpush2.bf16.msra.mxu0 0
      %2295 = vmatprep.subr.bf16.mxu0 0
      %2296 = vmatpush2.bf16.msra.mxu0 0
      %2297 = vmatprep.mubr.bf16.mxu0 0
      %2298 = vmatmul.mubr.bf16.gmra.mxu0 %v2256
      %v2299 = vpop.f32.mrf.mxu0
      %v2300 = vadd.f32 0.0, %v2299
      %v2301 = vpop.f32.mrf.mxu0
      %v2302 = vpop.f32.mrf.mxu0
      %v2303 = vadd.f32 0.0, %v2302
      %v2304 = vpop.f32.mrf.mxu0
      %2305 = vmatprep.mubr.bf16.mxu0 0
      %2306 = vmatmul.mubr.bf16.gmra.mxu0 %v2259
      %v2307 = vpop.f32.mrf.mxu0
      %v2308 = vadd.f32 0.0, %v2307
      %v2309 = vpop.f32.mrf.mxu0
      %v2310 = vpop.f32.mrf.mxu0
      %v2311 = vadd.f32 0.0, %v2310
      %v2312 = vpop.f32.mrf.mxu0
      %2313 = vdwg.mxu0
      %v2314 = vpack.c.bf16 %v2303, %v2300
      %v2315 = vpack.c.bf16 %v2311, %v2308
      %s2316 = scalar_lea.vmem %s4, 16
      %v2317 = vld [vmem:[%s2316] sm:$0xf]
      %v2318 = vld [vmem:[%s2316 + $0x4] sm:$0xf]
      %v2319 = vld [vmem:[%s2316 + $0x8] sm:$0xf]
      %v2320 = vld [vmem:[%s2316 + $0xc] sm:$0x3]
      %v2325 = vunpack.c.l.b16 %v2317
      %v2326 = vunpack.c.l.b16 %v2318
      %v2327 = vunpack.c.l.b16 %v2319
      %v2328 = vunpack.c.l.b16 %v2320
      %v2329 = vpack.c.b16 %v2326, %v2325
      %v2330 = vpack.c.b16 %v2328, %v2327
      %v2332 = vsel %vm2254, %v2329, 0
      %v2335 = vsel %vm2254, %v2330, 0
      %2337 = vmatprep.subr.bf16.mxu0 0
      %2338 = vmatpush1.bf16.msra.mxu0 0
      %2339 = vmatprep.subr.bf16.mxu0 0
      %2340 = vmatpush1.bf16.msra.mxu0 0
      %2341 = vmatprep.subr.bf16.mxu0 0
      %2342 = vmatpush1.bf16.msra.mxu0 0
      %2343 = vmatprep.subr.bf16.mxu0 0
      %2344 = vmatpush1.bf16.msra.mxu0 0
      %2345 = vmatprep.subr.bf16.mxu0 0
      %2346 = vmatpush1.bf16.msra.mxu0 %v2263
      %2347 = vmatprep.subr.bf16.mxu0 0
      %2348 = vmatpush1.bf16.msra.mxu0 %v2238
      %2349 = vmatprep.subr.bf16.mxu0 0
      %2350 = vmatpush1.bf16.msra.mxu0 %v2237
      %2351 = vmatprep.subr.bf16.mxu0 0
      %2352 = vmatpush1.bf16.msra.mxu0 %v2236
      %2353 = vmatprep.subr.bf16.mxu0 0
      %2354 = vmatpush2.bf16.msra.mxu0 0
      %2355 = vmatprep.subr.bf16.mxu0 0
      %2356 = vmatpush2.bf16.msra.mxu0 0
      %2357 = vmatprep.subr.bf16.mxu0 0
      %2358 = vmatpush2.bf16.msra.mxu0 0
      %2359 = vmatprep.subr.bf16.mxu0 0
      %2360 = vmatpush2.bf16.msra.mxu0 0
      %2361 = vmatprep.subr.bf16.mxu0 0
      %2362 = vmatpush2.bf16.msra.mxu0 0
      %2363 = vmatprep.subr.bf16.mxu0 0
      %2364 = vmatpush2.bf16.msra.mxu0 0
      %2365 = vmatprep.subr.bf16.mxu0 0
      %2366 = vmatpush2.bf16.msra.mxu0 0
      %2367 = vmatprep.subr.bf16.mxu0 0
      %2368 = vmatpush2.bf16.msra.mxu0 0
      %2369 = vmatprep.mubr.bf16.mxu0 0
      %2370 = vmatmul.mubr.bf16.gmra.mxu0 %v2332
      %v2371 = vpop.f32.mrf.mxu0
      %v2372 = vadd.f32 0.0, %v2371
      %v2373 = vpop.f32.mrf.mxu0
      %v2374 = vpop.f32.mrf.mxu0
      %v2375 = vadd.f32 0.0, %v2374
      %v2376 = vpop.f32.mrf.mxu0
      %2377 = vmatprep.mubr.bf16.mxu0 0
      %2378 = vmatmul.mubr.bf16.gmra.mxu0 %v2335
      %v2379 = vpop.f32.mrf.mxu0
      %v2380 = vadd.f32 0.0, %v2379
      %v2381 = vpop.f32.mrf.mxu0
      %v2382 = vpop.f32.mrf.mxu0
      %v2383 = vadd.f32 0.0, %v2382
      %v2384 = vpop.f32.mrf.mxu0
      %2385 = vdwg.mxu0
      %v2386 = vpack.c.bf16 %v2375, %v2372
      %v2387 = vpack.c.bf16 %v2383, %v2380
      %s2388 = scalar_lea.vmem %s4, 32
      %v2389 = vld [vmem:[%s2388] sm:$0xf]
      %v2390 = vld [vmem:[%s2388 + $0x4] sm:$0xf]
      %v2391 = vld [vmem:[%s2388 + $0x8] sm:$0xf]
      %v2392 = vld [vmem:[%s2388 + $0xc] sm:$0x3]
      %v2397 = vunpack.c.l.b16 %v2389
      %v2398 = vunpack.c.l.b16 %v2390
      %v2399 = vunpack.c.l.b16 %v2391
      %v2400 = vunpack.c.l.b16 %v2392
      %v2401 = vpack.c.b16 %v2398, %v2397
      %v2402 = vpack.c.b16 %v2400, %v2399
      %v2404 = vsel %vm2254, %v2401, 0
      %v2407 = vsel %vm2254, %v2402, 0
      %2409 = vmatprep.subr.bf16.mxu0 0
      %2410 = vmatpush1.bf16.msra.mxu0 0
      %2411 = vmatprep.subr.bf16.mxu0 0
      %2412 = vmatpush1.bf16.msra.mxu0 0
      %2413 = vmatprep.subr.bf16.mxu0 0
      %2414 = vmatpush1.bf16.msra.mxu0 0
      %2415 = vmatprep.subr.bf16.mxu0 0
      %2416 = vmatpush1.bf16.msra.mxu0 0
      %2417 = vmatprep.subr.bf16.mxu0 0
      %2418 = vmatpush1.bf16.msra.mxu0 %v2263
      %2419 = vmatprep.subr.bf16.mxu0 0
      %2420 = vmatpush1.bf16.msra.mxu0 %v2238
      %2421 = vmatprep.subr.bf16.mxu0 0
      %2422 = vmatpush1.bf16.msra.mxu0 %v2237
      %2423 = vmatprep.subr.bf16.mxu0 0
      %2424 = vmatpush1.bf16.msra.mxu0 %v2236
      %2425 = vmatprep.subr.bf16.mxu0 0
      %2426 = vmatpush2.bf16.msra.mxu0 0
      %2427 = vmatprep.subr.bf16.mxu0 0
      %2428 = vmatpush2.bf16.msra.mxu0 0
      %2429 = vmatprep.subr.bf16.mxu0 0
      %2430 = vmatpush2.bf16.msra.mxu0 0
      %2431 = vmatprep.subr.bf16.mxu0 0
      %2432 = vmatpush2.bf16.msra.mxu0 0
      %2433 = vmatprep.subr.bf16.mxu0 0
      %2434 = vmatpush2.bf16.msra.mxu0 0
      %2435 = vmatprep.subr.bf16.mxu0 0
      %2436 = vmatpush2.bf16.msra.mxu0 0
      %2437 = vmatprep.subr.bf16.mxu0 0
      %2438 = vmatpush2.bf16.msra.mxu0 0
      %2439 = vmatprep.subr.bf16.mxu0 0
      %2440 = vmatpush2.bf16.msra.mxu0 0
      %2441 = vmatprep.mubr.bf16.mxu0 0
      %2442 = vmatmul.mubr.bf16.gmra.mxu0 %v2404
      %v2443 = vpop.f32.mrf.mxu0
      %v2444 = vadd.f32 0.0, %v2443
      %v2445 = vpop.f32.mrf.mxu0
      %v2446 = vpop.f32.mrf.mxu0
      %v2447 = vadd.f32 0.0, %v2446
      %v2448 = vpop.f32.mrf.mxu0
      %2449 = vmatprep.mubr.bf16.mxu0 0
      %2450 = vmatmul.mubr.bf16.gmra.mxu0 %v2407
      %v2451 = vpop.f32.mrf.mxu0
      %v2452 = vadd.f32 0.0, %v2451
      %v2453 = vpop.f32.mrf.mxu0
      %v2454 = vpop.f32.mrf.mxu0
      %v2455 = vadd.f32 0.0, %v2454
      %v2456 = vpop.f32.mrf.mxu0
      %2457 = vdwg.mxu0
      %v2458 = vpack.c.bf16 %v2447, %v2444
      %v2459 = vpack.c.bf16 %v2455, %v2452
      %s2460 = scalar_lea.vmem %s4, 48
      %v2461 = vld [vmem:[%s2460] sm:$0xf]
      %v2462 = vld [vmem:[%s2460 + $0x4] sm:$0xf]
      %v2463 = vld [vmem:[%s2460 + $0x8] sm:$0xf]
      %v2464 = vld [vmem:[%s2460 + $0xc] sm:$0x3]
      %v2469 = vunpack.c.l.b16 %v2461
      %v2470 = vunpack.c.l.b16 %v2462
      %v2471 = vunpack.c.l.b16 %v2463
      %v2472 = vunpack.c.l.b16 %v2464
      %v2473 = vpack.c.b16 %v2470, %v2469
      %v2474 = vpack.c.b16 %v2472, %v2471
      %v2476 = vsel %vm2254, %v2473, 0
      %v2479 = vsel %vm2254, %v2474, 0
      %2481 = vmatprep.subr.bf16.mxu0 0
      %2482 = vmatpush1.bf16.msra.mxu0 0
      %2483 = vmatprep.subr.bf16.mxu0 0
      %2484 = vmatpush1.bf16.msra.mxu0 0
      %2485 = vmatprep.subr.bf16.mxu0 0
      %2486 = vmatpush1.bf16.msra.mxu0 0
      %2487 = vmatprep.subr.bf16.mxu0 0
      %2488 = vmatpush1.bf16.msra.mxu0 0
      %2489 = vmatprep.subr.bf16.mxu0 0
      %2490 = vmatpush1.bf16.msra.mxu0 %v2263
      %2491 = vmatprep.subr.bf16.mxu0 0
      %2492 = vmatpush1.bf16.msra.mxu0 %v2238
      %2493 = vmatprep.subr.bf16.mxu0 0
      %2494 = vmatpush1.bf16.msra.mxu0 %v2237
      %2495 = vmatprep.subr.bf16.mxu0 0
      %2496 = vmatpush1.bf16.msra.mxu0 %v2236
      %2497 = vmatprep.subr.bf16.mxu0 0
      %2498 = vmatpush2.bf16.msra.mxu0 0
      %2499 = vmatprep.subr.bf16.mxu0 0
      %2500 = vmatpush2.bf16.msra.mxu0 0
      %2501 = vmatprep.subr.bf16.mxu0 0
      %2502 = vmatpush2.bf16.msra.mxu0 0
      %2503 = vmatprep.subr.bf16.mxu0 0
      %2504 = vmatpush2.bf16.msra.mxu0 0
      %2505 = vmatprep.subr.bf16.mxu0 0
      %2506 = vmatpush2.bf16.msra.mxu0 0
      %2507 = vmatprep.subr.bf16.mxu0 0
      %2508 = vmatpush2.bf16.msra.mxu0 0
      %2509 = vmatprep.subr.bf16.mxu0 0
      %2510 = vmatpush2.bf16.msra.mxu0 0
      %2511 = vmatprep.subr.bf16.mxu0 0
      %2512 = vmatpush2.bf16.msra.mxu0 0
      %2513 = vmatprep.mubr.bf16.mxu0 0
      %2514 = vmatmul.mubr.bf16.gmra.mxu0 %v2476
      %v2515 = vpop.f32.mrf.mxu0
      %v2516 = vadd.f32 0.0, %v2515
      %v2517 = vpop.f32.mrf.mxu0
      %v2518 = vpop.f32.mrf.mxu0
      %v2519 = vadd.f32 0.0, %v2518
      %v2520 = vpop.f32.mrf.mxu0
      %2521 = vmatprep.mubr.bf16.mxu0 0
      %2522 = vmatmul.mubr.bf16.gmra.mxu0 %v2479
      %v2523 = vpop.f32.mrf.mxu0
      %v2524 = vadd.f32 0.0, %v2523
      %v2525 = vpop.f32.mrf.mxu0
      %v2526 = vpop.f32.mrf.mxu0
      %v2527 = vadd.f32 0.0, %v2526
      %v2528 = vpop.f32.mrf.mxu0
      %2529 = vdwg.mxu0
      %v2530 = vpack.c.bf16 %v2519, %v2516
      %v2531 = vpack.c.bf16 %v2527, %v2524
      %v2532 = vld [vmem:[%s5] sm:$0xf]
      %v2533 = vld [vmem:[%s5 + $0x4] sm:$0xf]
      %v2534 = vld [vmem:[%s5 + $0x8] sm:$0xf]
      %v2535 = vld [vmem:[%s5 + $0xc] sm:$0xf]
      %v2536 = vld [vmem:[%s5 + $0x10] sm:$0xf]
      %v2537 = vld [vmem:[%s5 + $0x14] sm:$0xf]
      %v2538 = vld [vmem:[%s5 + $0x18] sm:$0xf]
      %v2539 = vld [vmem:[%s5 + $0x1c] sm:$0xf]
      %v2540 = vld [vmem:[%s5 + $0x20] sm:$0xf]
      %v2541 = vld [vmem:[%s5 + $0x24] sm:$0xf]
      %v2542 = vld [vmem:[%s5 + $0x28] sm:$0xf]
      %v2543 = vld [vmem:[%s5 + $0x2c] sm:$0xf]
      %v2544 = vld [vmem:[%s5 + $0x30] sm:$0xf]
      %v2545 = vld [vmem:[%s5 + $0x34] sm:$0xf]
      %v2546 = vld [vmem:[%s5 + $0x38] sm:$0xf]
      %v2547 = vld [vmem:[%s5 + $0x3c] sm:$0xf]
      %v2548 = vld [vmem:[%s5 + $0x40] sm:$0xf]
      %v2549 = vld [vmem:[%s5 + $0x44] sm:$0xf]
      %v2550 = vld [vmem:[%s5 + $0x48] sm:$0xf]
      %v2551 = vld [vmem:[%s5 + $0x4c] sm:$0xf]
      %v2552 = vld [vmem:[%s5 + $0x50] sm:$0xf]
      %v2553 = vld [vmem:[%s5 + $0x54] sm:$0xf]
      %v2554 = vld [vmem:[%s5 + $0x58] sm:$0xf]
      %v2555 = vld [vmem:[%s5 + $0x5c] sm:$0xf]
      %v2556 = vld [vmem:[%s5 + $0x60] sm:$0xf]
      %v2557 = vld [vmem:[%s5 + $0x64] sm:$0xf]
      %v2558 = vld [vmem:[%s5 + $0x68] sm:$0xf]
      %v2559 = vld [vmem:[%s5 + $0x6c] sm:$0xf]
      %v2560 = vld [vmem:[%s5 + $0x70] sm:$0xf]
      %v2561 = vld [vmem:[%s5 + $0x74] sm:$0xf]
      %v2562 = vld [vmem:[%s5 + $0x78] sm:$0xf]
      %v2563 = vld [vmem:[%s5 + $0x7c] sm:$0xf]
      %v2564 = vld [vmem:[%s5 + $0x80] sm:$0xf]
      %v2565 = vld [vmem:[%s5 + $0x84] sm:$0xf]
      %v2566 = vld [vmem:[%s5 + $0x88] sm:$0xf]
      %v2567 = vld [vmem:[%s5 + $0x8c] sm:$0xf]
      %v2568 = vld [vmem:[%s5 + $0x90] sm:$0xf]
      %v2569 = vld [vmem:[%s5 + $0x94] sm:$0xf]
      %v2570 = vld [vmem:[%s5 + $0x98] sm:$0xf]
      %v2571 = vld [vmem:[%s5 + $0x9c] sm:$0xf]
      %v2572 = vld [vmem:[%s5 + $0xa0] sm:$0xf]
      %v2573 = vld [vmem:[%s5 + $0xa4] sm:$0xf]
      %v2574 = vld [vmem:[%s5 + $0xa8] sm:$0xf]
      %v2575 = vld [vmem:[%s5 + $0xac] sm:$0xf]
      %v2576 = vld [vmem:[%s5 + $0xb0] sm:$0xf]
      %v2577 = vld [vmem:[%s5 + $0xb4] sm:$0xf]
      %v2578 = vld [vmem:[%s5 + $0xb8] sm:$0xf]
      %v2579 = vld [vmem:[%s5 + $0xbc] sm:$0xf]
      %v2580 = vld [vmem:[%s5 + $0xc0] sm:$0xf]
      %v2581 = vld [vmem:[%s5 + $0xc4] sm:$0xf]
      %v2582 = vld [vmem:[%s5 + $0xc8] sm:$0xf]
      %v2583 = vld [vmem:[%s5 + $0xcc] sm:$0xf]
      %v2584 = vld [vmem:[%s5 + $0xd0] sm:$0xf]
      %v2585 = vld [vmem:[%s5 + $0xd4] sm:$0xf]
      %v2586 = vld [vmem:[%s5 + $0xd8] sm:$0xf]
      %v2587 = vld [vmem:[%s5 + $0xdc] sm:$0xf]
      %v2588 = vld [vmem:[%s5 + $0xe0] sm:$0xf]
      %v2589 = vld [vmem:[%s5 + $0xe4] sm:$0xf]
      %v2590 = vld [vmem:[%s5 + $0xe8] sm:$0xf]
      %v2591 = vld [vmem:[%s5 + $0xec] sm:$0xf]
      %v2592 = vld [vmem:[%s5 + $0xf0] sm:$0xf]
      %v2593 = vld [vmem:[%s5 + $0xf4] sm:$0xf]
      %v2594 = vld [vmem:[%s5 + $0xf8] sm:$0xf]
      %v2595 = vld [vmem:[%s5 + $0xfc] sm:$0xf]
      %v2596 = vld [vmem:[%s6] sm:$0x1]
      %v2598 = vlaneseq
      %v2599 = vshrl.u32 %v2598, 7
      %v2600 = vsub.s32 0, %v2599
      %v2601 = vrot.slane %v2596, %v2600
      %v2667 = vunpack.c.l.b16 %v2532
      %v2668 = vunpack.c.l.b16 %v2533
      %v2669 = vunpack.c.l.b16 %v2534
      %v2670 = vunpack.c.l.b16 %v2535
      %v2671 = vunpack.c.l.b16 %v2536
      %v2672 = vunpack.c.l.b16 %v2537
      %v2673 = vunpack.c.l.b16 %v2538
      %v2674 = vunpack.c.l.b16 %v2539
      %v2675 = vunpack.c.l.b16 %v2540
      %v2676 = vunpack.c.l.b16 %v2541
      %v2677 = vunpack.c.l.b16 %v2542
      %v2678 = vunpack.c.l.b16 %v2543
      %v2679 = vunpack.c.l.b16 %v2544
      %v2680 = vunpack.c.l.b16 %v2545
      %v2681 = vunpack.c.l.b16 %v2546
      %v2682 = vunpack.c.l.b16 %v2547
      %v2683 = vunpack.c.l.b16 %v2548
      %v2684 = vunpack.c.l.b16 %v2549
      %v2685 = vunpack.c.l.b16 %v2550
      %v2686 = vunpack.c.l.b16 %v2551
      %v2687 = vunpack.c.l.b16 %v2552
      %v2688 = vunpack.c.l.b16 %v2553
      %v2689 = vunpack.c.l.b16 %v2554
      %v2690 = vunpack.c.l.b16 %v2555
      %v2691 = vunpack.c.l.b16 %v2556
      %v2692 = vunpack.c.l.b16 %v2557
      %v2693 = vunpack.c.l.b16 %v2558
      %v2694 = vunpack.c.l.b16 %v2559
      %v2695 = vunpack.c.l.b16 %v2560
      %v2696 = vunpack.c.l.b16 %v2561
      %v2697 = vunpack.c.l.b16 %v2562
      %v2698 = vunpack.c.l.b16 %v2563
      %v2699 = vunpack.c.l.b16 %v2564
      %v2700 = vunpack.c.l.b16 %v2565
      %v2701 = vunpack.c.l.b16 %v2566
      %v2702 = vunpack.c.l.b16 %v2567
      %v2703 = vunpack.c.l.b16 %v2568
      %v2704 = vunpack.c.l.b16 %v2569
      %v2705 = vunpack.c.l.b16 %v2570
      %v2706 = vunpack.c.l.b16 %v2571
      %v2707 = vunpack.c.l.b16 %v2572
      %v2708 = vunpack.c.l.b16 %v2573
      %v2709 = vunpack.c.l.b16 %v2574
      %v2710 = vunpack.c.l.b16 %v2575
      %v2711 = vunpack.c.l.b16 %v2576
      %v2712 = vunpack.c.l.b16 %v2577
      %v2713 = vunpack.c.l.b16 %v2578
      %v2714 = vunpack.c.l.b16 %v2579
      %v2715 = vunpack.c.l.b16 %v2580
      %v2716 = vunpack.c.l.b16 %v2581
      %v2717 = vunpack.c.l.b16 %v2582
      %v2718 = vunpack.c.l.b16 %v2583
      %v2719 = vunpack.c.l.b16 %v2584
      %v2720 = vunpack.c.l.b16 %v2585
      %v2721 = vunpack.c.l.b16 %v2586
      %v2722 = vunpack.c.l.b16 %v2587
      %v2723 = vunpack.c.l.b16 %v2588
      %v2724 = vunpack.c.l.b16 %v2589
      %v2725 = vunpack.c.l.b16 %v2590
      %v2726 = vunpack.c.l.b16 %v2591
      %v2727 = vunpack.c.l.b16 %v2592
      %v2728 = vunpack.c.l.b16 %v2593
      %v2729 = vunpack.c.l.b16 %v2594
      %v2730 = vunpack.c.l.b16 %v2595
      %v2731 = vpack.c.b16 %v2668, %v2667
      %v2732 = vpack.c.b16 %v2670, %v2669
      %v2733 = vpack.c.b16 %v2672, %v2671
      %v2734 = vpack.c.b16 %v2674, %v2673
      %v2735 = vpack.c.b16 %v2676, %v2675
      %v2736 = vpack.c.b16 %v2678, %v2677
      %v2737 = vpack.c.b16 %v2680, %v2679
      %v2738 = vpack.c.b16 %v2682, %v2681
      %v2739 = vpack.c.b16 %v2684, %v2683
      %v2740 = vpack.c.b16 %v2686, %v2685
      %v2741 = vpack.c.b16 %v2688, %v2687
      %v2742 = vpack.c.b16 %v2690, %v2689
      %v2743 = vpack.c.b16 %v2692, %v2691
      %v2744 = vpack.c.b16 %v2694, %v2693
      %v2745 = vpack.c.b16 %v2696, %v2695
      %v2746 = vpack.c.b16 %v2698, %v2697
      %v2747 = vpack.c.b16 %v2700, %v2699
      %v2748 = vpack.c.b16 %v2702, %v2701
      %v2749 = vpack.c.b16 %v2704, %v2703
      %v2750 = vpack.c.b16 %v2706, %v2705
      %v2751 = vpack.c.b16 %v2708, %v2707
      %v2752 = vpack.c.b16 %v2710, %v2709
      %v2753 = vpack.c.b16 %v2712, %v2711
      %v2754 = vpack.c.b16 %v2714, %v2713
      %v2755 = vpack.c.b16 %v2716, %v2715
      %v2756 = vpack.c.b16 %v2718, %v2717
      %v2757 = vpack.c.b16 %v2720, %v2719
      %v2758 = vpack.c.b16 %v2722, %v2721
      %v2759 = vpack.c.b16 %v2724, %v2723
      %v2760 = vpack.c.b16 %v2726, %v2725
      %v2761 = vpack.c.b16 %v2728, %v2727
      %v2762 = vpack.c.b16 %v2730, %v2729
      %2795 = vmatprep.subr.bf16.mxu0 0
      %2796 = vmatpush1.bf16.msra.mxu0 %v2738
      %2797 = vmatprep.subr.bf16.mxu0 0
      %2798 = vmatpush1.bf16.msra.mxu0 %v2737
      %2799 = vmatprep.subr.bf16.mxu0 0
      %2800 = vmatpush1.bf16.msra.mxu0 %v2736
      %2801 = vmatprep.subr.bf16.mxu0 0
      %2802 = vmatpush1.bf16.msra.mxu0 %v2735
      %2803 = vmatprep.subr.bf16.mxu0 0
      %2804 = vmatpush1.bf16.msra.mxu0 %v2734
      %2805 = vmatprep.subr.bf16.mxu0 0
      %2806 = vmatpush1.bf16.msra.mxu0 %v2733
      %2807 = vmatprep.subr.bf16.mxu0 0
      %2808 = vmatpush1.bf16.msra.mxu0 %v2732
      %2809 = vmatprep.subr.bf16.mxu0 0
      %2810 = vmatpush1.bf16.msra.mxu0 %v2731
      %2811 = vmatprep.subr.bf16.mxu0 0
      %2812 = vmatpush2.bf16.msra.mxu0 %v2746
      %2813 = vmatprep.subr.bf16.mxu0 0
      %2814 = vmatpush2.bf16.msra.mxu0 %v2745
      %2815 = vmatprep.subr.bf16.mxu0 0
      %2816 = vmatpush2.bf16.msra.mxu0 %v2744
      %2817 = vmatprep.subr.bf16.mxu0 0
      %2818 = vmatpush2.bf16.msra.mxu0 %v2743
      %2819 = vmatprep.subr.bf16.mxu0 0
      %2820 = vmatpush2.bf16.msra.mxu0 %v2742
      %2821 = vmatprep.subr.bf16.mxu0 0
      %2822 = vmatpush2.bf16.msra.mxu0 %v2741
      %2823 = vmatprep.subr.bf16.mxu0 0
      %2824 = vmatpush2.bf16.msra.mxu0 %v2740
      %2825 = vmatprep.subr.bf16.mxu0 0
      %2826 = vmatpush2.bf16.msra.mxu0 %v2739
      %2827 = vmatprep.mubr.bf16.mxu0 %v2386
      %2828 = vmatmul.mubr.bf16.gmra.mxu0 %v2314
      %v2829 = vpop.f32.mrf.mxu0
      %v2830 = vadd.f32 %v2601, %v2829
      %v2831 = vpop.f32.mrf.mxu0
      %v2832 = vpop.f32.mrf.mxu0
      %v2833 = vadd.f32 %v2601, %v2832
      %v2834 = vpop.f32.mrf.mxu0
      %2835 = vmatprep.mubr.bf16.mxu0 %v2387
      %2836 = vmatmul.mubr.bf16.gmra.mxu0 %v2315
      %v2837 = vpop.f32.mrf.mxu0
      %v2838 = vadd.f32 %v2601, %v2837
      %v2839 = vpop.f32.mrf.mxu0
      %v2840 = vpop.f32.mrf.mxu0
      %v2841 = vadd.f32 %v2601, %v2840
      %v2842 = vpop.f32.mrf.mxu0
      %2843 = vdwg.mxu0
      %2844 = vmatprep.subr.bf16.mxu0 0
      %2845 = vmatpush1.bf16.msra.mxu0 %v2754
      %2846 = vmatprep.subr.bf16.mxu0 0
      %2847 = vmatpush1.bf16.msra.mxu0 %v2753
      %2848 = vmatprep.subr.bf16.mxu0 0
      %2849 = vmatpush1.bf16.msra.mxu0 %v2752
      %2850 = vmatprep.subr.bf16.mxu0 0
      %2851 = vmatpush1.bf16.msra.mxu0 %v2751
      %2852 = vmatprep.subr.bf16.mxu0 0
      %2853 = vmatpush1.bf16.msra.mxu0 %v2750
      %2854 = vmatprep.subr.bf16.mxu0 0
      %2855 = vmatpush1.bf16.msra.mxu0 %v2749
      %2856 = vmatprep.subr.bf16.mxu0 0
      %2857 = vmatpush1.bf16.msra.mxu0 %v2748
      %2858 = vmatprep.subr.bf16.mxu0 0
      %2859 = vmatpush1.bf16.msra.mxu0 %v2747
      %2860 = vmatprep.subr.bf16.mxu0 0
      %2861 = vmatpush2.bf16.msra.mxu0 %v2762
      %2862 = vmatprep.subr.bf16.mxu0 0
      %2863 = vmatpush2.bf16.msra.mxu0 %v2761
      %2864 = vmatprep.subr.bf16.mxu0 0
      %2865 = vmatpush2.bf16.msra.mxu0 %v2760
      %2866 = vmatprep.subr.bf16.mxu0 0
      %2867 = vmatpush2.bf16.msra.mxu0 %v2759
      %2868 = vmatprep.subr.bf16.mxu0 0
      %2869 = vmatpush2.bf16.msra.mxu0 %v2758
      %2870 = vmatprep.subr.bf16.mxu0 0
      %2871 = vmatpush2.bf16.msra.mxu0 %v2757
      %2872 = vmatprep.subr.bf16.mxu0 0
      %2873 = vmatpush2.bf16.msra.mxu0 %v2756
      %2874 = vmatprep.subr.bf16.mxu0 0
      %2875 = vmatpush2.bf16.msra.mxu0 %v2755
      %2876 = vmatprep.mubr.bf16.mxu0 %v2530
      %2877 = vmatmul.mubr.bf16.gmra.mxu0 %v2458
      %v2878 = vpop.f32.mrf.mxu0
      %v2879 = vadd.f32 %v2830, %v2878
      %v2880 = vpop.f32.mrf.mxu0
      %v2881 = vpop.f32.mrf.mxu0
      %v2882 = vadd.f32 %v2833, %v2881
      %v2883 = vpop.f32.mrf.mxu0
      %2884 = vmatprep.mubr.bf16.mxu0 %v2531
      %2885 = vmatmul.mubr.bf16.gmra.mxu0 %v2459
      %v2886 = vpop.f32.mrf.mxu0
      %v2887 = vadd.f32 %v2838, %v2886
      %v2888 = vpop.f32.mrf.mxu0
      %v2889 = vpop.f32.mrf.mxu0
      %v2890 = vadd.f32 %v2841, %v2889
      %v2891 = vpop.f32.mrf.mxu0
      %2892 = vdwg.mxu0
      %v2893 = vmax.f32 %v2879, 0.0
      %v2894 = vmax.f32 %v2882, 0.0
      %v2895 = vmax.f32 %v2887, 0.0
      %v2896 = vmax.f32 %v2890, 0.0
      %v2897 = vpack.c.bf16 %v2894, %v2893
      %v2898 = vpack.c.bf16 %v2896, %v2895
      %v2899 = vld [vmem:[%s7] sm:$0xf]
      %v2900 = vld [vmem:[%s7 + $0x4] sm:$0x3]
      %v2903 = vunpack.c.l.b16 %v2899
      %v2904 = vunpack.c.l.b16 %v2900
      %v2905 = vpack.c.b16 %v2904, %v2903
      %vm2906 = vcmask 228352
      %v2908 = vsel %vm2906, %v2905, 0
      %vm2910 = vcmask 1045504
      %v2912 = vsel %vm2910, %v2898, 0
      %2914 = vmatprep.subr.bf16.mxu0 0
      %2915 = vmatpush1.bf16.msra.mxu0 0
      %2916 = vmatprep.subr.bf16.mxu0 0
      %2917 = vmatpush1.bf16.msra.mxu0 0
      %2918 = vmatprep.subr.bf16.mxu0 0
      %2919 = vmatpush1.bf16.msra.mxu0 0
      %2920 = vmatprep.subr.bf16.mxu0 0
      %2921 = vmatpush1.bf16.msra.mxu0 0
      %2922 = vmatprep.subr.bf16.mxu0 0
      %2923 = vmatpush1.bf16.msra.mxu0 0
      %2924 = vmatprep.subr.bf16.mxu0 0
      %2925 = vmatpush1.bf16.msra.mxu0 0
      %2926 = vmatprep.subr.bf16.mxu0 0
      %2927 = vmatpush1.bf16.msra.mxu0 %v2912
      %2928 = vmatprep.subr.bf16.mxu0 0
      %2929 = vmatpush1.bf16.msra.mxu0 %v2897
      %2930 = vmatprep.subr.bf16.mxu0 0
      %2931 = vmatpush2.bf16.msra.mxu0 0
      %2932 = vmatprep.subr.bf16.mxu0 0
      %2933 = vmatpush2.bf16.msra.mxu0 0
      %2934 = vmatprep.subr.bf16.mxu0 0
      %2935 = vmatpush2.bf16.msra.mxu0 0
      %2936 = vmatprep.subr.bf16.mxu0 0
      %2937 = vmatpush2.bf16.msra.mxu0 0
      %2938 = vmatprep.subr.bf16.mxu0 0
      %2939 = vmatpush2.bf16.msra.mxu0 0
      %2940 = vmatprep.subr.bf16.mxu0 0
      %2941 = vmatpush2.bf16.msra.mxu0 0
      %2942 = vmatprep.subr.bf16.mxu0 0
      %2943 = vmatpush2.bf16.msra.mxu0 0
      %2944 = vmatprep.subr.bf16.mxu0 0
      %2945 = vmatpush2.bf16.msra.mxu0 0
      %2946 = vmatprep.mubr.bf16.mxu0 0
      %2947 = vmatmul.mubr.bf16.gmra.mxu0 %v2908
      %v2948 = vpop.f32.mrf.mxu0
      %v2949 = vadd.f32 0.0, %v2948
      %v2950 = vpop.f32.mrf.mxu0
      %v2951 = vpop.f32.mrf.mxu0
      %v2952 = vadd.f32 0.0, %v2951
      %v2953 = vpop.f32.mrf.mxu0
      %2954 = vdwg.mxu0
      %v2955 = vpack.c.bf16 %v2952, %v2949
      %s2956 = scalar_lea.vmem %s7, 8
      %v2957 = vld [vmem:[%s2956] sm:$0xf]
      %v2958 = vld [vmem:[%s2956 + $0x4] sm:$0x3]
      %v2961 = vunpack.c.l.b16 %v2957
      %v2962 = vunpack.c.l.b16 %v2958
      %v2963 = vpack.c.b16 %v2962, %v2961
      %v2965 = vsel %vm2906, %v2963, 0
      %2967 = vmatprep.subr.bf16.mxu0 0
      %2968 = vmatpush1.bf16.msra.mxu0 0
      %2969 = vmatprep.subr.bf16.mxu0 0
      %2970 = vmatpush1.bf16.msra.mxu0 0
      %2971 = vmatprep.subr.bf16.mxu0 0
      %2972 = vmatpush1.bf16.msra.mxu0 0
      %2973 = vmatprep.subr.bf16.mxu0 0
      %2974 = vmatpush1.bf16.msra.mxu0 0
      %2975 = vmatprep.subr.bf16.mxu0 0
      %2976 = vmatpush1.bf16.msra.mxu0 0
      %2977 = vmatprep.subr.bf16.mxu0 0
      %2978 = vmatpush1.bf16.msra.mxu0 0
      %2979 = vmatprep.subr.bf16.mxu0 0
      %2980 = vmatpush1.bf16.msra.mxu0 %v2912
      %2981 = vmatprep.subr.bf16.mxu0 0
      %2982 = vmatpush1.bf16.msra.mxu0 %v2897
      %2983 = vmatprep.subr.bf16.mxu0 0
      %2984 = vmatpush2.bf16.msra.mxu0 0
      %2985 = vmatprep.subr.bf16.mxu0 0
      %2986 = vmatpush2.bf16.msra.mxu0 0
      %2987 = vmatprep.subr.bf16.mxu0 0
      %2988 = vmatpush2.bf16.msra.mxu0 0
      %2989 = vmatprep.subr.bf16.mxu0 0
      %2990 = vmatpush2.bf16.msra.mxu0 0
      %2991 = vmatprep.subr.bf16.mxu0 0
      %2992 = vmatpush2.bf16.msra.mxu0 0
      %2993 = vmatprep.subr.bf16.mxu0 0
      %2994 = vmatpush2.bf16.msra.mxu0 0
      %2995 = vmatprep.subr.bf16.mxu0 0
      %2996 = vmatpush2.bf16.msra.mxu0 0
      %2997 = vmatprep.subr.bf16.mxu0 0
      %2998 = vmatpush2.bf16.msra.mxu0 0
      %2999 = vmatprep.mubr.bf16.mxu0 0
      %3000 = vmatmul.mubr.bf16.gmra.mxu0 %v2965
      %v3001 = vpop.f32.mrf.mxu0
      %v3002 = vadd.f32 0.0, %v3001
      %v3003 = vpop.f32.mrf.mxu0
      %v3004 = vpop.f32.mrf.mxu0
      %v3005 = vadd.f32 0.0, %v3004
      %v3006 = vpop.f32.mrf.mxu0
      %3007 = vdwg.mxu0
      %v3008 = vpack.c.bf16 %v3005, %v3002
      %s3009 = scalar_lea.vmem %s7, 16
      %v3010 = vld [vmem:[%s3009] sm:$0xf]
      %v3011 = vld [vmem:[%s3009 + $0x4] sm:$0x3]
      %v3014 = vunpack.c.l.b16 %v3010
      %v3015 = vunpack.c.l.b16 %v3011
      %v3016 = vpack.c.b16 %v3015, %v3014
      %v3018 = vsel %vm2906, %v3016, 0
      %3020 = vmatprep.subr.bf16.mxu0 0
      %3021 = vmatpush1.bf16.msra.mxu0 0
      %3022 = vmatprep.subr.bf16.mxu0 0
      %3023 = vmatpush1.bf16.msra.mxu0 0
      %3024 = vmatprep.subr.bf16.mxu0 0
      %3025 = vmatpush1.bf16.msra.mxu0 0
      %3026 = vmatprep.subr.bf16.mxu0 0
      %3027 = vmatpush1.bf16.msra.mxu0 0
      %3028 = vmatprep.subr.bf16.mxu0 0
      %3029 = vmatpush1.bf16.msra.mxu0 0
      %3030 = vmatprep.subr.bf16.mxu0 0
      %3031 = vmatpush1.bf16.msra.mxu0 0
      %3032 = vmatprep.subr.bf16.mxu0 0
      %3033 = vmatpush1.bf16.msra.mxu0 %v2912
      %3034 = vmatprep.subr.bf16.mxu0 0
      %3035 = vmatpush1.bf16.msra.mxu0 %v2897
      %3036 = vmatprep.subr.bf16.mxu0 0
      %3037 = vmatpush2.bf16.msra.mxu0 0
      %3038 = vmatprep.subr.bf16.mxu0 0
      %3039 = vmatpush2.bf16.msra.mxu0 0
      %3040 = vmatprep.subr.bf16.mxu0 0
      %3041 = vmatpush2.bf16.msra.mxu0 0
      %3042 = vmatprep.subr.bf16.mxu0 0
      %3043 = vmatpush2.bf16.msra.mxu0 0
      %3044 = vmatprep.subr.bf16.mxu0 0
      %3045 = vmatpush2.bf16.msra.mxu0 0
      %3046 = vmatprep.subr.bf16.mxu0 0
      %3047 = vmatpush2.bf16.msra.mxu0 0
      %3048 = vmatprep.subr.bf16.mxu0 0
      %3049 = vmatpush2.bf16.msra.mxu0 0
      %3050 = vmatprep.subr.bf16.mxu0 0
      %3051 = vmatpush2.bf16.msra.mxu0 0
      %3052 = vmatprep.mubr.bf16.mxu0 0
      %3053 = vmatmul.mubr.bf16.gmra.mxu0 %v3018
      %v3054 = vpop.f32.mrf.mxu0
      %v3055 = vadd.f32 0.0, %v3054
      %v3056 = vpop.f32.mrf.mxu0
      %v3057 = vpop.f32.mrf.mxu0
      %v3058 = vadd.f32 0.0, %v3057
      %v3059 = vpop.f32.mrf.mxu0
      %3060 = vdwg.mxu0
      %v3061 = vpack.c.bf16 %v3058, %v3055
      %s3062 = scalar_lea.vmem %s7, 24
      %v3063 = vld [vmem:[%s3062] sm:$0xf]
      %v3064 = vld [vmem:[%s3062 + $0x4] sm:$0x3]
      %v3067 = vunpack.c.l.b16 %v3063
      %v3068 = vunpack.c.l.b16 %v3064
      %v3069 = vpack.c.b16 %v3068, %v3067
      %v3071 = vsel %vm2906, %v3069, 0
      %3073 = vmatprep.subr.bf16.mxu0 0
      %3074 = vmatpush1.bf16.msra.mxu0 0
      %3075 = vmatprep.subr.bf16.mxu0 0
      %3076 = vmatpush1.bf16.msra.mxu0 0
      %3077 = vmatprep.subr.bf16.mxu0 0
      %3078 = vmatpush1.bf16.msra.mxu0 0
      %3079 = vmatprep.subr.bf16.mxu0 0
      %3080 = vmatpush1.bf16.msra.mxu0 0
      %3081 = vmatprep.subr.bf16.mxu0 0
      %3082 = vmatpush1.bf16.msra.mxu0 0
      %3083 = vmatprep.subr.bf16.mxu0 0
      %3084 = vmatpush1.bf16.msra.mxu0 0
      %3085 = vmatprep.subr.bf16.mxu0 0
      %3086 = vmatpush1.bf16.msra.mxu0 %v2912
      %3087 = vmatprep.subr.bf16.mxu0 0
      %3088 = vmatpush1.bf16.msra.mxu0 %v2897
      %3089 = vmatprep.subr.bf16.mxu0 0
      %3090 = vmatpush2.bf16.msra.mxu0 0
      %3091 = vmatprep.subr.bf16.mxu0 0
      %3092 = vmatpush2.bf16.msra.mxu0 0
      %3093 = vmatprep.subr.bf16.mxu0 0
      %3094 = vmatpush2.bf16.msra.mxu0 0
      %3095 = vmatprep.subr.bf16.mxu0 0
      %3096 = vmatpush2.bf16.msra.mxu0 0
      %3097 = vmatprep.subr.bf16.mxu0 0
      %3098 = vmatpush2.bf16.msra.mxu0 0
      %3099 = vmatprep.subr.bf16.mxu0 0
      %3100 = vmatpush2.bf16.msra.mxu0 0
      %3101 = vmatprep.subr.bf16.mxu0 0
      %3102 = vmatpush2.bf16.msra.mxu0 0
      %3103 = vmatprep.subr.bf16.mxu0 0
      %3104 = vmatpush2.bf16.msra.mxu0 0
      %3105 = vmatprep.mubr.bf16.mxu0 0
      %3106 = vmatmul.mubr.bf16.gmra.mxu0 %v3071
      %v3107 = vpop.f32.mrf.mxu0
      %v3108 = vadd.f32 0.0, %v3107
      %v3109 = vpop.f32.mrf.mxu0
      %v3110 = vpop.f32.mrf.mxu0
      %v3111 = vadd.f32 0.0, %v3110
      %v3112 = vpop.f32.mrf.mxu0
      %3113 = vdwg.mxu0
      %v3114 = vpack.c.bf16 %v3111, %v3108
      %v3115 = vld [vmem:[%s8] sm:$0xf]
      %v3116 = vld [vmem:[%s8 + $0x4] sm:$0xf]
      %v3117 = vld [vmem:[%s8 + $0x8] sm:$0xf]
      %v3118 = vld [vmem:[%s8 + $0xc] sm:$0xf]
      %v3119 = vld [vmem:[%s8 + $0x10] sm:$0xf]
      %v3120 = vld [vmem:[%s8 + $0x14] sm:$0xf]
      %v3121 = vld [vmem:[%s8 + $0x18] sm:$0xf]
      %v3122 = vld [vmem:[%s8 + $0x1c] sm:$0xf]
      %v3123 = vld [vmem:[%s8 + $0x20] sm:$0xf]
      %v3124 = vld [vmem:[%s8 + $0x24] sm:$0xf]
      %v3125 = vld [vmem:[%s8 + $0x28] sm:$0xf]
      %v3126 = vld [vmem:[%s8 + $0x2c] sm:$0xf]
      %v3127 = vld [vmem:[%s8 + $0x30] sm:$0xf]
      %v3128 = vld [vmem:[%s8 + $0x34] sm:$0xf]
      %v3129 = vld [vmem:[%s8 + $0x38] sm:$0xf]
      %v3130 = vld [vmem:[%s8 + $0x3c] sm:$0xf]
      %v3131 = vld [vmem:[%s8 + $0x40] sm:$0xf]
      %v3132 = vld [vmem:[%s8 + $0x44] sm:$0xf]
      %v3133 = vld [vmem:[%s8 + $0x48] sm:$0xf]
      %v3134 = vld [vmem:[%s8 + $0x4c] sm:$0xf]
      %v3135 = vld [vmem:[%s8 + $0x50] sm:$0xf]
      %v3136 = vld [vmem:[%s8 + $0x54] sm:$0xf]
      %v3137 = vld [vmem:[%s8 + $0x58] sm:$0xf]
      %v3138 = vld [vmem:[%s8 + $0x5c] sm:$0xf]
      %v3139 = vld [vmem:[%s8 + $0x60] sm:$0xf]
      %v3140 = vld [vmem:[%s8 + $0x64] sm:$0xf]
      %v3141 = vld [vmem:[%s8 + $0x68] sm:$0xf]
      %v3142 = vld [vmem:[%s8 + $0x6c] sm:$0xf]
      %v3143 = vld [vmem:[%s8 + $0x70] sm:$0xf]
      %v3144 = vld [vmem:[%s8 + $0x74] sm:$0xf]
      %v3145 = vld [vmem:[%s8 + $0x78] sm:$0xf]
      %v3146 = vld [vmem:[%s8 + $0x7c] sm:$0xf]
      %v3147 = vld [vmem:[%s8 + $0x80] sm:$0xf]
      %v3148 = vld [vmem:[%s8 + $0x84] sm:$0xf]
      %v3149 = vld [vmem:[%s8 + $0x88] sm:$0xf]
      %v3150 = vld [vmem:[%s8 + $0x8c] sm:$0xf]
      %v3151 = vld [vmem:[%s8 + $0x90] sm:$0xf]
      %v3152 = vld [vmem:[%s8 + $0x94] sm:$0xf]
      %v3153 = vld [vmem:[%s8 + $0x98] sm:$0xf]
      %v3154 = vld [vmem:[%s8 + $0x9c] sm:$0xf]
      %v3155 = vld [vmem:[%s8 + $0xa0] sm:$0xf]
      %v3156 = vld [vmem:[%s8 + $0xa4] sm:$0xf]
      %v3157 = vld [vmem:[%s8 + $0xa8] sm:$0xf]
      %v3158 = vld [vmem:[%s8 + $0xac] sm:$0xf]
      %v3159 = vld [vmem:[%s8 + $0xb0] sm:$0xf]
      %v3160 = vld [vmem:[%s8 + $0xb4] sm:$0xf]
      %v3161 = vld [vmem:[%s8 + $0xb8] sm:$0xf]
      %v3162 = vld [vmem:[%s8 + $0xbc] sm:$0xf]
      %v3163 = vld [vmem:[%s8 + $0xc0] sm:$0xf]
      %v3164 = vld [vmem:[%s8 + $0xc4] sm:$0xf]
      %v3165 = vld [vmem:[%s8 + $0xc8] sm:$0xf]
      %v3166 = vld [vmem:[%s8 + $0xcc] sm:$0xf]
      %v3167 = vld [vmem:[%s8 + $0xd0] sm:$0xf]
      %v3168 = vld [vmem:[%s8 + $0xd4] sm:$0xf]
      %v3169 = vld [vmem:[%s8 + $0xd8] sm:$0xf]
      %v3170 = vld [vmem:[%s8 + $0xdc] sm:$0xf]
      %v3171 = vld [vmem:[%s8 + $0xe0] sm:$0xf]
      %v3172 = vld [vmem:[%s8 + $0xe4] sm:$0xf]
      %v3173 = vld [vmem:[%s8 + $0xe8] sm:$0xf]
      %v3174 = vld [vmem:[%s8 + $0xec] sm:$0xf]
      %v3175 = vld [vmem:[%s8 + $0xf0] sm:$0xf]
      %v3176 = vld [vmem:[%s8 + $0xf4] sm:$0xf]
      %v3177 = vld [vmem:[%s8 + $0xf8] sm:$0xf]
      %v3178 = vld [vmem:[%s8 + $0xfc] sm:$0xf]
      %v3179 = vld [vmem:[%s9] sm:$0x1]
      %v3181 = vlaneseq
      %v3182 = vshrl.u32 %v3181, 7
      %v3183 = vsub.s32 0, %v3182
      %v3184 = vrot.slane %v3179, %v3183
      %v3250 = vunpack.c.l.b16 %v3115
      %v3251 = vunpack.c.l.b16 %v3116
      %v3252 = vunpack.c.l.b16 %v3117
      %v3253 = vunpack.c.l.b16 %v3118
      %v3254 = vunpack.c.l.b16 %v3119
      %v3255 = vunpack.c.l.b16 %v3120
      %v3256 = vunpack.c.l.b16 %v3121
      %v3257 = vunpack.c.l.b16 %v3122
      %v3258 = vunpack.c.l.b16 %v3123
      %v3259 = vunpack.c.l.b16 %v3124
      %v3260 = vunpack.c.l.b16 %v3125
      %v3261 = vunpack.c.l.b16 %v3126
      %v3262 = vunpack.c.l.b16 %v3127
      %v3263 = vunpack.c.l.b16 %v3128
      %v3264 = vunpack.c.l.b16 %v3129
      %v3265 = vunpack.c.l.b16 %v3130
      %v3266 = vunpack.c.l.b16 %v3131
      %v3267 = vunpack.c.l.b16 %v3132
      %v3268 = vunpack.c.l.b16 %v3133
      %v3269 = vunpack.c.l.b16 %v3134
      %v3270 = vunpack.c.l.b16 %v3135
      %v3271 = vunpack.c.l.b16 %v3136
      %v3272 = vunpack.c.l.b16 %v3137
      %v3273 = vunpack.c.l.b16 %v3138
      %v3274 = vunpack.c.l.b16 %v3139
      %v3275 = vunpack.c.l.b16 %v3140
      %v3276 = vunpack.c.l.b16 %v3141
      %v3277 = vunpack.c.l.b16 %v3142
      %v3278 = vunpack.c.l.b16 %v3143
      %v3279 = vunpack.c.l.b16 %v3144
      %v3280 = vunpack.c.l.b16 %v3145
      %v3281 = vunpack.c.l.b16 %v3146
      %v3282 = vunpack.c.l.b16 %v3147
      %v3283 = vunpack.c.l.b16 %v3148
      %v3284 = vunpack.c.l.b16 %v3149
      %v3285 = vunpack.c.l.b16 %v3150
      %v3286 = vunpack.c.l.b16 %v3151
      %v3287 = vunpack.c.l.b16 %v3152
      %v3288 = vunpack.c.l.b16 %v3153
      %v3289 = vunpack.c.l.b16 %v3154
      %v3290 = vunpack.c.l.b16 %v3155
      %v3291 = vunpack.c.l.b16 %v3156
      %v3292 = vunpack.c.l.b16 %v3157
      %v3293 = vunpack.c.l.b16 %v3158
      %v3294 = vunpack.c.l.b16 %v3159
      %v3295 = vunpack.c.l.b16 %v3160
      %v3296 = vunpack.c.l.b16 %v3161
      %v3297 = vunpack.c.l.b16 %v3162
      %v3298 = vunpack.c.l.b16 %v3163
      %v3299 = vunpack.c.l.b16 %v3164
      %v3300 = vunpack.c.l.b16 %v3165
      %v3301 = vunpack.c.l.b16 %v3166
      %v3302 = vunpack.c.l.b16 %v3167
      %v3303 = vunpack.c.l.b16 %v3168
      %v3304 = vunpack.c.l.b16 %v3169
      %v3305 = vunpack.c.l.b16 %v3170
      %v3306 = vunpack.c.l.b16 %v3171
      %v3307 = vunpack.c.l.b16 %v3172
      %v3308 = vunpack.c.l.b16 %v3173
      %v3309 = vunpack.c.l.b16 %v3174
      %v3310 = vunpack.c.l.b16 %v3175
      %v3311 = vunpack.c.l.b16 %v3176
      %v3312 = vunpack.c.l.b16 %v3177
      %v3313 = vunpack.c.l.b16 %v3178
      %v3314 = vpack.c.b16 %v3251, %v3250
      %v3315 = vpack.c.b16 %v3253, %v3252
      %v3316 = vpack.c.b16 %v3255, %v3254
      %v3317 = vpack.c.b16 %v3257, %v3256
      %v3318 = vpack.c.b16 %v3259, %v3258
      %v3319 = vpack.c.b16 %v3261, %v3260
      %v3320 = vpack.c.b16 %v3263, %v3262
      %v3321 = vpack.c.b16 %v3265, %v3264
      %v3322 = vpack.c.b16 %v3267, %v3266
      %v3323 = vpack.c.b16 %v3269, %v3268
      %v3324 = vpack.c.b16 %v3271, %v3270
      %v3325 = vpack.c.b16 %v3273, %v3272
      %v3326 = vpack.c.b16 %v3275, %v3274
      %v3327 = vpack.c.b16 %v3277, %v3276
      %v3328 = vpack.c.b16 %v3279, %v3278
      %v3329 = vpack.c.b16 %v3281, %v3280
      %v3330 = vpack.c.b16 %v3283, %v3282
      %v3331 = vpack.c.b16 %v3285, %v3284
      %v3332 = vpack.c.b16 %v3287, %v3286
      %v3333 = vpack.c.b16 %v3289, %v3288
      %v3334 = vpack.c.b16 %v3291, %v3290
      %v3335 = vpack.c.b16 %v3293, %v3292
      %v3336 = vpack.c.b16 %v3295, %v3294
      %v3337 = vpack.c.b16 %v3297, %v3296
      %v3338 = vpack.c.b16 %v3299, %v3298
      %v3339 = vpack.c.b16 %v3301, %v3300
      %v3340 = vpack.c.b16 %v3303, %v3302
      %v3341 = vpack.c.b16 %v3305, %v3304
      %v3342 = vpack.c.b16 %v3307, %v3306
      %v3343 = vpack.c.b16 %v3309, %v3308
      %v3344 = vpack.c.b16 %v3311, %v3310
      %v3345 = vpack.c.b16 %v3313, %v3312
      %3378 = vmatprep.subr.bf16.mxu0 0
      %3379 = vmatpush1.bf16.msra.mxu0 %v3321
      %3380 = vmatprep.subr.bf16.mxu0 0
      %3381 = vmatpush1.bf16.msra.mxu0 %v3320
      %3382 = vmatprep.subr.bf16.mxu0 0
      %3383 = vmatpush1.bf16.msra.mxu0 %v3319
      %3384 = vmatprep.subr.bf16.mxu0 0
      %3385 = vmatpush1.bf16.msra.mxu0 %v3318
      %3386 = vmatprep.subr.bf16.mxu0 0
      %3387 = vmatpush1.bf16.msra.mxu0 %v3317
      %3388 = vmatprep.subr.bf16.mxu0 0
      %3389 = vmatpush1.bf16.msra.mxu0 %v3316
      %3390 = vmatprep.subr.bf16.mxu0 0
      %3391 = vmatpush1.bf16.msra.mxu0 %v3315
      %3392 = vmatprep.subr.bf16.mxu0 0
      %3393 = vmatpush1.bf16.msra.mxu0 %v3314
      %3394 = vmatprep.subr.bf16.mxu0 0
      %3395 = vmatpush2.bf16.msra.mxu0 %v3329
      %3396 = vmatprep.subr.bf16.mxu0 0
      %3397 = vmatpush2.bf16.msra.mxu0 %v3328
      %3398 = vmatprep.subr.bf16.mxu0 0
      %3399 = vmatpush2.bf16.msra.mxu0 %v3327
      %3400 = vmatprep.subr.bf16.mxu0 0
      %3401 = vmatpush2.bf16.msra.mxu0 %v3326
      %3402 = vmatprep.subr.bf16.mxu0 0
      %3403 = vmatpush2.bf16.msra.mxu0 %v3325
      %3404 = vmatprep.subr.bf16.mxu0 0
      %3405 = vmatpush2.bf16.msra.mxu0 %v3324
      %3406 = vmatprep.subr.bf16.mxu0 0
      %3407 = vmatpush2.bf16.msra.mxu0 %v3323
      %3408 = vmatprep.subr.bf16.mxu0 0
      %3409 = vmatpush2.bf16.msra.mxu0 %v3322
      %3410 = vmatprep.mubr.bf16.mxu0 %v3008
      %3411 = vmatmul.mubr.bf16.gmra.mxu0 %v2955
      %v3412 = vpop.f32.mrf.mxu0
      %v3413 = vadd.f32 %v3184, %v3412
      %v3414 = vpop.f32.mrf.mxu0
      %v3415 = vpop.f32.mrf.mxu0
      %v3416 = vadd.f32 %v3184, %v3415
      %v3417 = vpop.f32.mrf.mxu0
      %3418 = vdwg.mxu0
      %3419 = vmatprep.subr.bf16.mxu0 0
      %3420 = vmatpush1.bf16.msra.mxu0 %v3337
      %3421 = vmatprep.subr.bf16.mxu0 0
      %3422 = vmatpush1.bf16.msra.mxu0 %v3336
      %3423 = vmatprep.subr.bf16.mxu0 0
      %3424 = vmatpush1.bf16.msra.mxu0 %v3335
      %3425 = vmatprep.subr.bf16.mxu0 0
      %3426 = vmatpush1.bf16.msra.mxu0 %v3334
      %3427 = vmatprep.subr.bf16.mxu0 0
      %3428 = vmatpush1.bf16.msra.mxu0 %v3333
      %3429 = vmatprep.subr.bf16.mxu0 0
      %3430 = vmatpush1.bf16.msra.mxu0 %v3332
      %3431 = vmatprep.subr.bf16.mxu0 0
      %3432 = vmatpush1.bf16.msra.mxu0 %v3331
      %3433 = vmatprep.subr.bf16.mxu0 0
      %3434 = vmatpush1.bf16.msra.mxu0 %v3330
      %3435 = vmatprep.subr.bf16.mxu0 0
      %3436 = vmatpush2.bf16.msra.mxu0 %v3345
      %3437 = vmatprep.subr.bf16.mxu0 0
      %3438 = vmatpush2.bf16.msra.mxu0 %v3344
      %3439 = vmatprep.subr.bf16.mxu0 0
      %3440 = vmatpush2.bf16.msra.mxu0 %v3343
      %3441 = vmatprep.subr.bf16.mxu0 0
      %3442 = vmatpush2.bf16.msra.mxu0 %v3342
      %3443 = vmatprep.subr.bf16.mxu0 0
      %3444 = vmatpush2.bf16.msra.mxu0 %v3341
      %3445 = vmatprep.subr.bf16.mxu0 0
      %3446 = vmatpush2.bf16.msra.mxu0 %v3340
      %3447 = vmatprep.subr.bf16.mxu0 0
      %3448 = vmatpush2.bf16.msra.mxu0 %v3339
      %3449 = vmatprep.subr.bf16.mxu0 0
      %3450 = vmatpush2.bf16.msra.mxu0 %v3338
      %3451 = vmatprep.mubr.bf16.mxu0 %v3114
      %3452 = vmatmul.mubr.bf16.gmra.mxu0 %v3061
      %v3453 = vpop.f32.mrf.mxu0
      %v3454 = vadd.f32 %v3413, %v3453
      %v3455 = vpop.f32.mrf.mxu0
      %v3456 = vpop.f32.mrf.mxu0
      %v3457 = vadd.f32 %v3416, %v3456
      %v3458 = vpop.f32.mrf.mxu0
      %3459 = vdwg.mxu0
      %v3460 = vmax.f32 %v3454, 0.0
      %v3461 = vmax.f32 %v3457, 0.0
      %v3462 = vpack.c.bf16 %v3461, %v3460
      %v3463 = vld [vmem:[%s10] sm:$0xf]
      %v3464 = vld [vmem:[%s10 + $0x4] sm:$0xf]
      %v3465 = vld [vmem:[%s10 + $0x8] sm:$0xf]
      %v3469 = vunpack.c.l.b16 %v3463
      %v3470 = vunpack.c.l.b16 %v3464
      %v3471 = vunpack.c.l.b16 %v3465
      %v3472 = vpack.c.b16 %v3470, %v3469
      %v3473 = vpack.c.b16 %v3471, %v3471
      %vm3474 = vcmask 97280
      %v3476 = vsel %vm3474, %v3472, 0
      %v3479 = vsel %vm3474, %v3473, 0
      %v3482 = vsel %vm2910, %v3462, 0
      %3484 = vmatprep.subr.bf16.mxu0 0
      %3485 = vmatpush1.bf16.msra.mxu0 0
      %3486 = vmatprep.subr.bf16.mxu0 0
      %3487 = vmatpush1.bf16.msra.mxu0 0
      %3488 = vmatprep.subr.bf16.mxu0 0
      %3489 = vmatpush1.bf16.msra.mxu0 0
      %3490 = vmatprep.subr.bf16.mxu0 0
      %3491 = vmatpush1.bf16.msra.mxu0 0
      %3492 = vmatprep.subr.bf16.mxu0 0
      %3493 = vmatpush1.bf16.msra.mxu0 0
      %3494 = vmatprep.subr.bf16.mxu0 0
      %3495 = vmatpush1.bf16.msra.mxu0 0
      %3496 = vmatprep.subr.bf16.mxu0 0
      %3497 = vmatpush1.bf16.msra.mxu0 0
      %3498 = vmatprep.subr.bf16.mxu0 0
      %3499 = vmatpush1.bf16.msra.mxu0 %v3482
      %3500 = vmatprep.subr.bf16.mxu0 0
      %3501 = vmatpush2.bf16.msra.mxu0 0
      %3502 = vmatprep.subr.bf16.mxu0 0
      %3503 = vmatpush2.bf16.msra.mxu0 0
      %3504 = vmatprep.subr.bf16.mxu0 0
      %3505 = vmatpush2.bf16.msra.mxu0 0
      %3506 = vmatprep.subr.bf16.mxu0 0
      %3507 = vmatpush2.bf16.msra.mxu0 0
      %3508 = vmatprep.subr.bf16.mxu0 0
      %3509 = vmatpush2.bf16.msra.mxu0 0
      %3510 = vmatprep.subr.bf16.mxu0 0
      %3511 = vmatpush2.bf16.msra.mxu0 0
      %3512 = vmatprep.subr.bf16.mxu0 0
      %3513 = vmatpush2.bf16.msra.mxu0 0
      %3514 = vmatprep.subr.bf16.mxu0 0
      %3515 = vmatpush2.bf16.msra.mxu0 0
      %3516 = vmatprep.mubr.bf16.mxu0 0
      %3517 = vmatmul.mubr.bf16.gmra.mxu0 %v3476
      %v3518 = vpop.f32.mrf.mxu0
      %v3519 = vadd.f32 0.0, %v3518
      %v3520 = vpop.f32.mrf.mxu0
      %v3521 = vpop.f32.mrf.mxu0
      %v3522 = vadd.f32 0.0, %v3521
      %v3523 = vpop.f32.mrf.mxu0
      %3524 = vmatprep.mubr.bf16.mxu0 0
      %3525 = vmatmul.mubr.bf16.gmra.mxu0 %v3479
      %v3526 = vpop.f32.mrf.mxu0
      %v3527 = vadd.f32 0.0, %v3526
      %v3528 = vpop.f32.mrf.mxu0
      %v3529 = vpop.f32.mrf.mxu0
      %v3530 = vpop.f32.mrf.mxu0
      %3531 = vdwg.mxu0
      %v3532 = vpack.c.bf16 %v3522, %v3519
      %v3533 = vpack.c.bf16 %v3527, %v3527
      %s3534 = scalar_lea.vmem %s10, 12
      %v3535 = vld [vmem:[%s3534] sm:$0xf]
      %v3536 = vld [vmem:[%s3534 + $0x4] sm:$0xf]
      %v3537 = vld [vmem:[%s3534 + $0x8] sm:$0xf]
      %v3541 = vunpack.c.l.b16 %v3535
      %v3542 = vunpack.c.l.b16 %v3536
      %v3543 = vunpack.c.l.b16 %v3537
      %v3544 = vpack.c.b16 %v3542, %v3541
      %v3545 = vpack.c.b16 %v3543, %v3543
      %v3547 = vsel %vm3474, %v3544, 0
      %v3550 = vsel %vm3474, %v3545, 0
      %3552 = vmatprep.subr.bf16.mxu0 0
      %3553 = vmatpush1.bf16.msra.mxu0 0
      %3554 = vmatprep.subr.bf16.mxu0 0
      %3555 = vmatpush1.bf16.msra.mxu0 0
      %3556 = vmatprep.subr.bf16.mxu0 0
      %3557 = vmatpush1.bf16.msra.mxu0 0
      %3558 = vmatprep.subr.bf16.mxu0 0
      %3559 = vmatpush1.bf16.msra.mxu0 0
      %3560 = vmatprep.subr.bf16.mxu0 0
      %3561 = vmatpush1.bf16.msra.mxu0 0
      %3562 = vmatprep.subr.bf16.mxu0 0
      %3563 = vmatpush1.bf16.msra.mxu0 0
      %3564 = vmatprep.subr.bf16.mxu0 0
      %3565 = vmatpush1.bf16.msra.mxu0 0
      %3566 = vmatprep.subr.bf16.mxu0 0
      %3567 = vmatpush1.bf16.msra.mxu0 %v3482
      %3568 = vmatprep.subr.bf16.mxu0 0
      %3569 = vmatpush2.bf16.msra.mxu0 0
      %3570 = vmatprep.subr.bf16.mxu0 0
      %3571 = vmatpush2.bf16.msra.mxu0 0
      %3572 = vmatprep.subr.bf16.mxu0 0
      %3573 = vmatpush2.bf16.msra.mxu0 0
      %3574 = vmatprep.subr.bf16.mxu0 0
      %3575 = vmatpush2.bf16.msra.mxu0 0
      %3576 = vmatprep.subr.bf16.mxu0 0
      %3577 = vmatpush2.bf16.msra.mxu0 0
      %3578 = vmatprep.subr.bf16.mxu0 0
      %3579 = vmatpush2.bf16.msra.mxu0 0
      %3580 = vmatprep.subr.bf16.mxu0 0
      %3581 = vmatpush2.bf16.msra.mxu0 0
      %3582 = vmatprep.subr.bf16.mxu0 0
      %3583 = vmatpush2.bf16.msra.mxu0 0
      %3584 = vmatprep.mubr.bf16.mxu0 0
      %3585 = vmatmul.mubr.bf16.gmra.mxu0 %v3547
      %v3586 = vpop.f32.mrf.mxu0
      %v3587 = vadd.f32 0.0, %v3586
      %v3588 = vpop.f32.mrf.mxu0
      %v3589 = vpop.f32.mrf.mxu0
      %v3590 = vadd.f32 0.0, %v3589
      %v3591 = vpop.f32.mrf.mxu0
      %3592 = vmatprep.mubr.bf16.mxu0 0
      %3593 = vmatmul.mubr.bf16.gmra.mxu0 %v3550
      %v3594 = vpop.f32.mrf.mxu0
      %v3595 = vadd.f32 0.0, %v3594
      %v3596 = vpop.f32.mrf.mxu0
      %v3597 = vpop.f32.mrf.mxu0
      %v3598 = vpop.f32.mrf.mxu0
      %3599 = vdwg.mxu0
      %v3600 = vpack.c.bf16 %v3590, %v3587
      %v3601 = vpack.c.bf16 %v3595, %v3595
      %s3602 = scalar_lea.vmem %s10, 24
      %v3603 = vld [vmem:[%s3602] sm:$0xf]
      %v3604 = vld [vmem:[%s3602 + $0x4] sm:$0xf]
      %v3605 = vld [vmem:[%s3602 + $0x8] sm:$0xf]
      %v3609 = vunpack.c.l.b16 %v3603
      %v3610 = vunpack.c.l.b16 %v3604
      %v3611 = vunpack.c.l.b16 %v3605
      %v3612 = vpack.c.b16 %v3610, %v3609
      %v3613 = vpack.c.b16 %v3611, %v3611
      %v3615 = vsel %vm3474, %v3612, 0
      %v3618 = vsel %vm3474, %v3613, 0
      %3620 = vmatprep.subr.bf16.mxu0 0
      %3621 = vmatpush1.bf16.msra.mxu0 0
      %3622 = vmatprep.subr.bf16.mxu0 0
      %3623 = vmatpush1.bf16.msra.mxu0 0
      %3624 = vmatprep.subr.bf16.mxu0 0
      %3625 = vmatpush1.bf16.msra.mxu0 0
      %3626 = vmatprep.subr.bf16.mxu0 0
      %3627 = vmatpush1.bf16.msra.mxu0 0
      %3628 = vmatprep.subr.bf16.mxu0 0
      %3629 = vmatpush1.bf16.msra.mxu0 0
      %3630 = vmatprep.subr.bf16.mxu0 0
      %3631 = vmatpush1.bf16.msra.mxu0 0
      %3632 = vmatprep.subr.bf16.mxu0 0
      %3633 = vmatpush1.bf16.msra.mxu0 0
      %3634 = vmatprep.subr.bf16.mxu0 0
      %3635 = vmatpush1.bf16.msra.mxu0 %v3482
      %3636 = vmatprep.subr.bf16.mxu0 0
      %3637 = vmatpush2.bf16.msra.mxu0 0
      %3638 = vmatprep.subr.bf16.mxu0 0
      %3639 = vmatpush2.bf16.msra.mxu0 0
      %3640 = vmatprep.subr.bf16.mxu0 0
      %3641 = vmatpush2.bf16.msra.mxu0 0
      %3642 = vmatprep.subr.bf16.mxu0 0
      %3643 = vmatpush2.bf16.msra.mxu0 0
      %3644 = vmatprep.subr.bf16.mxu0 0
      %3645 = vmatpush2.bf16.msra.mxu0 0
      %3646 = vmatprep.subr.bf16.mxu0 0
      %3647 = vmatpush2.bf16.msra.mxu0 0
      %3648 = vmatprep.subr.bf16.mxu0 0
      %3649 = vmatpush2.bf16.msra.mxu0 0
      %3650 = vmatprep.subr.bf16.mxu0 0
      %3651 = vmatpush2.bf16.msra.mxu0 0
      %3652 = vmatprep.mubr.bf16.mxu0 0
      %3653 = vmatmul.mubr.bf16.gmra.mxu0 %v3615
      %v3654 = vpop.f32.mrf.mxu0
      %v3655 = vadd.f32 0.0, %v3654
      %v3656 = vpop.f32.mrf.mxu0
      %v3657 = vpop.f32.mrf.mxu0
      %v3658 = vadd.f32 0.0, %v3657
      %v3659 = vpop.f32.mrf.mxu0
      %3660 = vmatprep.mubr.bf16.mxu0 0
      %3661 = vmatmul.mubr.bf16.gmra.mxu0 %v3618
      %v3662 = vpop.f32.mrf.mxu0
      %v3663 = vadd.f32 0.0, %v3662
      %v3664 = vpop.f32.mrf.mxu0
      %v3665 = vpop.f32.mrf.mxu0
      %v3666 = vpop.f32.mrf.mxu0
      %3667 = vdwg.mxu0
      %v3668 = vpack.c.bf16 %v3658, %v3655
      %v3669 = vpack.c.bf16 %v3663, %v3663
      %s3670 = scalar_lea.vmem %s10, 36
      %v3671 = vld [vmem:[%s3670] sm:$0xf]
      %v3672 = vld [vmem:[%s3670 + $0x4] sm:$0xf]
      %v3673 = vld [vmem:[%s3670 + $0x8] sm:$0xf]
      %v3677 = vunpack.c.l.b16 %v3671
      %v3678 = vunpack.c.l.b16 %v3672
      %v3679 = vunpack.c.l.b16 %v3673
      %v3680 = vpack.c.b16 %v3678, %v3677
      %v3681 = vpack.c.b16 %v3679, %v3679
      %v3683 = vsel %vm3474, %v3680, 0
      %v3686 = vsel %vm3474, %v3681, 0
      %3688 = vmatprep.subr.bf16.mxu0 0
      %3689 = vmatpush1.bf16.msra.mxu0 0
      %3690 = vmatprep.subr.bf16.mxu0 0
      %3691 = vmatpush1.bf16.msra.mxu0 0
      %3692 = vmatprep.subr.bf16.mxu0 0
      %3693 = vmatpush1.bf16.msra.mxu0 0
      %3694 = vmatprep.subr.bf16.mxu0 0
      %3695 = vmatpush1.bf16.msra.mxu0 0
      %3696 = vmatprep.subr.bf16.mxu0 0
      %3697 = vmatpush1.bf16.msra.mxu0 0
      %3698 = vmatprep.subr.bf16.mxu0 0
      %3699 = vmatpush1.bf16.msra.mxu0 0
      %3700 = vmatprep.subr.bf16.mxu0 0
      %3701 = vmatpush1.bf16.msra.mxu0 0
      %3702 = vmatprep.subr.bf16.mxu0 0
      %3703 = vmatpush1.bf16.msra.mxu0 %v3482
      %3704 = vmatprep.subr.bf16.mxu0 0
      %3705 = vmatpush2.bf16.msra.mxu0 0
      %3706 = vmatprep.subr.bf16.mxu0 0
      %3707 = vmatpush2.bf16.msra.mxu0 0
      %3708 = vmatprep.subr.bf16.mxu0 0
      %3709 = vmatpush2.bf16.msra.mxu0 0
      %3710 = vmatprep.subr.bf16.mxu0 0
      %3711 = vmatpush2.bf16.msra.mxu0 0
      %3712 = vmatprep.subr.bf16.mxu0 0
      %3713 = vmatpush2.bf16.msra.mxu0 0
      %3714 = vmatprep.subr.bf16.mxu0 0
      %3715 = vmatpush2.bf16.msra.mxu0 0
      %3716 = vmatprep.subr.bf16.mxu0 0
      %3717 = vmatpush2.bf16.msra.mxu0 0
      %3718 = vmatprep.subr.bf16.mxu0 0
      %3719 = vmatpush2.bf16.msra.mxu0 0
      %3720 = vmatprep.mubr.bf16.mxu0 0
      %3721 = vmatmul.mubr.bf16.gmra.mxu0 %v3683
      %v3722 = vpop.f32.mrf.mxu0
      %v3723 = vadd.f32 0.0, %v3722
      %v3724 = vpop.f32.mrf.mxu0
      %v3725 = vpop.f32.mrf.mxu0
      %v3726 = vadd.f32 0.0, %v3725
      %v3727 = vpop.f32.mrf.mxu0
      %3728 = vmatprep.mubr.bf16.mxu0 0
      %3729 = vmatmul.mubr.bf16.gmra.mxu0 %v3686
      %v3730 = vpop.f32.mrf.mxu0
      %v3731 = vadd.f32 0.0, %v3730
      %v3732 = vpop.f32.mrf.mxu0
      %v3733 = vpop.f32.mrf.mxu0
      %v3734 = vpop.f32.mrf.mxu0
      %3735 = vdwg.mxu0
      %v3736 = vpack.c.bf16 %v3726, %v3723
      %v3737 = vpack.c.bf16 %v3731, %v3731
      %v3738 = vld [vmem:[%s11] sm:$0xf]
      %v3739 = vld [vmem:[%s11 + $0x4] sm:$0xf]
      %v3740 = vld [vmem:[%s11 + $0x8] sm:$0xf]
      %v3741 = vld [vmem:[%s11 + $0xc] sm:$0xf]
      %v3742 = vld [vmem:[%s11 + $0x10] sm:$0xf]
      %v3743 = vld [vmem:[%s11 + $0x14] sm:$0xf]
      %v3744 = vld [vmem:[%s11 + $0x18] sm:$0xf]
      %v3745 = vld [vmem:[%s11 + $0x1c] sm:$0xf]
      %v3746 = vld [vmem:[%s11 + $0x20] sm:$0xf]
      %v3747 = vld [vmem:[%s11 + $0x24] sm:$0xf]
      %v3748 = vld [vmem:[%s11 + $0x28] sm:$0xf]
      %v3749 = vld [vmem:[%s11 + $0x2c] sm:$0xf]
      %v3750 = vld [vmem:[%s11 + $0x30] sm:$0xf]
      %v3751 = vld [vmem:[%s11 + $0x34] sm:$0xf]
      %v3752 = vld [vmem:[%s11 + $0x38] sm:$0xf]
      %v3753 = vld [vmem:[%s11 + $0x3c] sm:$0xf]
      %v3754 = vld [vmem:[%s11 + $0x40] sm:$0xf]
      %v3755 = vld [vmem:[%s11 + $0x44] sm:$0xf]
      %v3756 = vld [vmem:[%s11 + $0x48] sm:$0xf]
      %v3757 = vld [vmem:[%s11 + $0x4c] sm:$0xf]
      %v3758 = vld [vmem:[%s11 + $0x50] sm:$0xf]
      %v3759 = vld [vmem:[%s11 + $0x54] sm:$0xf]
      %v3760 = vld [vmem:[%s11 + $0x58] sm:$0xf]
      %v3761 = vld [vmem:[%s11 + $0x5c] sm:$0xf]
      %v3762 = vld [vmem:[%s11 + $0x60] sm:$0xf]
      %v3763 = vld [vmem:[%s11 + $0x64] sm:$0xf]
      %v3764 = vld [vmem:[%s11 + $0x68] sm:$0xf]
      %v3765 = vld [vmem:[%s11 + $0x6c] sm:$0xf]
      %v3766 = vld [vmem:[%s11 + $0x70] sm:$0xf]
      %v3767 = vld [vmem:[%s11 + $0x74] sm:$0xf]
      %v3768 = vld [vmem:[%s11 + $0x78] sm:$0xf]
      %v3769 = vld [vmem:[%s11 + $0x7c] sm:$0xf]
      %v3770 = vld [vmem:[%s11 + $0x80] sm:$0xf]
      %v3771 = vld [vmem:[%s11 + $0x84] sm:$0xf]
      %v3772 = vld [vmem:[%s11 + $0x88] sm:$0xf]
      %v3773 = vld [vmem:[%s11 + $0x8c] sm:$0xf]
      %v3774 = vld [vmem:[%s11 + $0x90] sm:$0xf]
      %v3775 = vld [vmem:[%s11 + $0x94] sm:$0xf]
      %v3776 = vld [vmem:[%s11 + $0x98] sm:$0xf]
      %v3777 = vld [vmem:[%s11 + $0x9c] sm:$0xf]
      %v3778 = vld [vmem:[%s11 + $0xa0] sm:$0xf]
      %v3779 = vld [vmem:[%s11 + $0xa4] sm:$0xf]
      %v3780 = vld [vmem:[%s11 + $0xa8] sm:$0xf]
      %v3781 = vld [vmem:[%s11 + $0xac] sm:$0xf]
      %v3782 = vld [vmem:[%s11 + $0xb0] sm:$0xf]
      %v3783 = vld [vmem:[%s11 + $0xb4] sm:$0xf]
      %v3784 = vld [vmem:[%s11 + $0xb8] sm:$0xf]
      %v3785 = vld [vmem:[%s11 + $0xbc] sm:$0xf]
      %v3786 = vld [vmem:[%s11 + $0xc0] sm:$0xf]
      %v3787 = vld [vmem:[%s11 + $0xc4] sm:$0xf]
      %v3788 = vld [vmem:[%s11 + $0xc8] sm:$0xf]
      %v3789 = vld [vmem:[%s11 + $0xcc] sm:$0xf]
      %v3790 = vld [vmem:[%s11 + $0xd0] sm:$0xf]
      %v3791 = vld [vmem:[%s11 + $0xd4] sm:$0xf]
      %v3792 = vld [vmem:[%s11 + $0xd8] sm:$0xf]
      %v3793 = vld [vmem:[%s11 + $0xdc] sm:$0xf]
      %v3794 = vld [vmem:[%s11 + $0xe0] sm:$0xf]
      %v3795 = vld [vmem:[%s11 + $0xe4] sm:$0xf]
      %v3796 = vld [vmem:[%s11 + $0xe8] sm:$0xf]
      %v3797 = vld [vmem:[%s11 + $0xec] sm:$0xf]
      %v3798 = vld [vmem:[%s11 + $0xf0] sm:$0xf]
      %v3799 = vld [vmem:[%s11 + $0xf4] sm:$0xf]
      %v3800 = vld [vmem:[%s11 + $0xf8] sm:$0xf]
      %v3801 = vld [vmem:[%s11 + $0xfc] sm:$0xf]
      %v3802 = vld [vmem:[%s12] sm:$0x1]
      %v3804 = vlaneseq
      %v3805 = vshrl.u32 %v3804, 7
      %v3806 = vsub.s32 0, %v3805
      %v3807 = vrot.slane %v3802, %v3806
      %v3873 = vunpack.c.l.b16 %v3738
      %v3874 = vunpack.c.l.b16 %v3739
      %v3875 = vunpack.c.l.b16 %v3740
      %v3876 = vunpack.c.l.b16 %v3741
      %v3877 = vunpack.c.l.b16 %v3742
      %v3878 = vunpack.c.l.b16 %v3743
      %v3879 = vunpack.c.l.b16 %v3744
      %v3880 = vunpack.c.l.b16 %v3745
      %v3881 = vunpack.c.l.b16 %v3746
      %v3882 = vunpack.c.l.b16 %v3747
      %v3883 = vunpack.c.l.b16 %v3748
      %v3884 = vunpack.c.l.b16 %v3749
      %v3885 = vunpack.c.l.b16 %v3750
      %v3886 = vunpack.c.l.b16 %v3751
      %v3887 = vunpack.c.l.b16 %v3752
      %v3888 = vunpack.c.l.b16 %v3753
      %v3889 = vunpack.c.l.b16 %v3754
      %v3890 = vunpack.c.l.b16 %v3755
      %v3891 = vunpack.c.l.b16 %v3756
      %v3892 = vunpack.c.l.b16 %v3757
      %v3893 = vunpack.c.l.b16 %v3758
      %v3894 = vunpack.c.l.b16 %v3759
      %v3895 = vunpack.c.l.b16 %v3760
      %v3896 = vunpack.c.l.b16 %v3761
      %v3897 = vunpack.c.l.b16 %v3762
      %v3898 = vunpack.c.l.b16 %v3763
      %v3899 = vunpack.c.l.b16 %v3764
      %v3900 = vunpack.c.l.b16 %v3765
      %v3901 = vunpack.c.l.b16 %v3766
      %v3902 = vunpack.c.l.b16 %v3767
      %v3903 = vunpack.c.l.b16 %v3768
      %v3904 = vunpack.c.l.b16 %v3769
      %v3905 = vunpack.c.l.b16 %v3770
      %v3906 = vunpack.c.l.b16 %v3771
      %v3907 = vunpack.c.l.b16 %v3772
      %v3908 = vunpack.c.l.b16 %v3773
      %v3909 = vunpack.c.l.b16 %v3774
      %v3910 = vunpack.c.l.b16 %v3775
      %v3911 = vunpack.c.l.b16 %v3776
      %v3912 = vunpack.c.l.b16 %v3777
      %v3913 = vunpack.c.l.b16 %v3778
      %v3914 = vunpack.c.l.b16 %v3779
      %v3915 = vunpack.c.l.b16 %v3780
      %v3916 = vunpack.c.l.b16 %v3781
      %v3917 = vunpack.c.l.b16 %v3782
      %v3918 = vunpack.c.l.b16 %v3783
      %v3919 = vunpack.c.l.b16 %v3784
      %v3920 = vunpack.c.l.b16 %v3785
      %v3921 = vunpack.c.l.b16 %v3786
      %v3922 = vunpack.c.l.b16 %v3787
      %v3923 = vunpack.c.l.b16 %v3788
      %v3924 = vunpack.c.l.b16 %v3789
      %v3925 = vunpack.c.l.b16 %v3790
      %v3926 = vunpack.c.l.b16 %v3791
      %v3927 = vunpack.c.l.b16 %v3792
      %v3928 = vunpack.c.l.b16 %v3793
      %v3929 = vunpack.c.l.b16 %v3794
      %v3930 = vunpack.c.l.b16 %v3795
      %v3931 = vunpack.c.l.b16 %v3796
      %v3932 = vunpack.c.l.b16 %v3797
      %v3933 = vunpack.c.l.b16 %v3798
      %v3934 = vunpack.c.l.b16 %v3799
      %v3935 = vunpack.c.l.b16 %v3800
      %v3936 = vunpack.c.l.b16 %v3801
      %v3937 = vpack.c.b16 %v3874, %v3873
      %v3938 = vpack.c.b16 %v3876, %v3875
      %v3939 = vpack.c.b16 %v3878, %v3877
      %v3940 = vpack.c.b16 %v3880, %v3879
      %v3941 = vpack.c.b16 %v3882, %v3881
      %v3942 = vpack.c.b16 %v3884, %v3883
      %v3943 = vpack.c.b16 %v3886, %v3885
      %v3944 = vpack.c.b16 %v3888, %v3887
      %v3945 = vpack.c.b16 %v3890, %v3889
      %v3946 = vpack.c.b16 %v3892, %v3891
      %v3947 = vpack.c.b16 %v3894, %v3893
      %v3948 = vpack.c.b16 %v3896, %v3895
      %v3949 = vpack.c.b16 %v3898, %v3897
      %v3950 = vpack.c.b16 %v3900, %v3899
      %v3951 = vpack.c.b16 %v3902, %v3901
      %v3952 = vpack.c.b16 %v3904, %v3903
      %v3953 = vpack.c.b16 %v3906, %v3905
      %v3954 = vpack.c.b16 %v3908, %v3907
      %v3955 = vpack.c.b16 %v3910, %v3909
      %v3956 = vpack.c.b16 %v3912, %v3911
      %v3957 = vpack.c.b16 %v3914, %v3913
      %v3958 = vpack.c.b16 %v3916, %v3915
      %v3959 = vpack.c.b16 %v3918, %v3917
      %v3960 = vpack.c.b16 %v3920, %v3919
      %v3961 = vpack.c.b16 %v3922, %v3921
      %v3962 = vpack.c.b16 %v3924, %v3923
      %v3963 = vpack.c.b16 %v3926, %v3925
      %v3964 = vpack.c.b16 %v3928, %v3927
      %v3965 = vpack.c.b16 %v3930, %v3929
      %v3966 = vpack.c.b16 %v3932, %v3931
      %v3967 = vpack.c.b16 %v3934, %v3933
      %v3968 = vpack.c.b16 %v3936, %v3935
      %4001 = vmatprep.subr.bf16.mxu0 0
      %4002 = vmatpush1.bf16.msra.mxu0 %v3944
      %4003 = vmatprep.subr.bf16.mxu0 0
      %4004 = vmatpush1.bf16.msra.mxu0 %v3943
      %4005 = vmatprep.subr.bf16.mxu0 0
      %4006 = vmatpush1.bf16.msra.mxu0 %v3942
      %4007 = vmatprep.subr.bf16.mxu0 0
      %4008 = vmatpush1.bf16.msra.mxu0 %v3941
      %4009 = vmatprep.subr.bf16.mxu0 0
      %4010 = vmatpush1.bf16.msra.mxu0 %v3940
      %4011 = vmatprep.subr.bf16.mxu0 0
      %4012 = vmatpush1.bf16.msra.mxu0 %v3939
      %4013 = vmatprep.subr.bf16.mxu0 0
      %4014 = vmatpush1.bf16.msra.mxu0 %v3938
      %4015 = vmatprep.subr.bf16.mxu0 0
      %4016 = vmatpush1.bf16.msra.mxu0 %v3937
      %4017 = vmatprep.subr.bf16.mxu0 0
      %4018 = vmatpush2.bf16.msra.mxu0 %v3952
      %4019 = vmatprep.subr.bf16.mxu0 0
      %4020 = vmatpush2.bf16.msra.mxu0 %v3951
      %4021 = vmatprep.subr.bf16.mxu0 0
      %4022 = vmatpush2.bf16.msra.mxu0 %v3950
      %4023 = vmatprep.subr.bf16.mxu0 0
      %4024 = vmatpush2.bf16.msra.mxu0 %v3949
      %4025 = vmatprep.subr.bf16.mxu0 0
      %4026 = vmatpush2.bf16.msra.mxu0 %v3948
      %4027 = vmatprep.subr.bf16.mxu0 0
      %4028 = vmatpush2.bf16.msra.mxu0 %v3947
      %4029 = vmatprep.subr.bf16.mxu0 0
      %4030 = vmatpush2.bf16.msra.mxu0 %v3946
      %4031 = vmatprep.subr.bf16.mxu0 0
      %4032 = vmatpush2.bf16.msra.mxu0 %v3945
      %4033 = vmatprep.mubr.bf16.mxu0 %v3600
      %4034 = vmatmul.mubr.bf16.gmra.mxu0 %v3532
      %v4035 = vpop.f32.mrf.mxu0
      %v4036 = vadd.f32 %v3807, %v4035
      %v4037 = vpop.f32.mrf.mxu0
      %v4038 = vpop.f32.mrf.mxu0
      %v4039 = vadd.f32 %v3807, %v4038
      %v4040 = vpop.f32.mrf.mxu0
      %4041 = vmatprep.mubr.bf16.mxu0 %v3601
      %4042 = vmatmul.mubr.bf16.gmra.mxu0 %v3533
      %v4043 = vpop.f32.mrf.mxu0
      %v4044 = vadd.f32 %v3807, %v4043
      %v4045 = vpop.f32.mrf.mxu0
      %v4046 = vpop.f32.mrf.mxu0
      %v4047 = vpop.f32.mrf.mxu0
      %4048 = vdwg.mxu0
      %4049 = vmatprep.subr.bf16.mxu0 0
      %4050 = vmatpush1.bf16.msra.mxu0 %v3960
      %4051 = vmatprep.subr.bf16.mxu0 0
      %4052 = vmatpush1.bf16.msra.mxu0 %v3959
      %4053 = vmatprep.subr.bf16.mxu0 0
      %4054 = vmatpush1.bf16.msra.mxu0 %v3958
      %4055 = vmatprep.subr.bf16.mxu0 0
      %4056 = vmatpush1.bf16.msra.mxu0 %v3957
      %4057 = vmatprep.subr.bf16.mxu0 0
      %4058 = vmatpush1.bf16.msra.mxu0 %v3956
      %4059 = vmatprep.subr.bf16.mxu0 0
      %4060 = vmatpush1.bf16.msra.mxu0 %v3955
      %4061 = vmatprep.subr.bf16.mxu0 0
      %4062 = vmatpush1.bf16.msra.mxu0 %v3954
      %4063 = vmatprep.subr.bf16.mxu0 0
      %4064 = vmatpush1.bf16.msra.mxu0 %v3953
      %4065 = vmatprep.subr.bf16.mxu0 0
      %4066 = vmatpush2.bf16.msra.mxu0 %v3968
      %4067 = vmatprep.subr.bf16.mxu0 0
      %4068 = vmatpush2.bf16.msra.mxu0 %v3967
      %4069 = vmatprep.subr.bf16.mxu0 0
      %4070 = vmatpush2.bf16.msra.mxu0 %v3966
      %4071 = vmatprep.subr.bf16.mxu0 0
      %4072 = vmatpush2.bf16.msra.mxu0 %v3965
      %4073 = vmatprep.subr.bf16.mxu0 0
      %4074 = vmatpush2.bf16.msra.mxu0 %v3964
      %4075 = vmatprep.subr.bf16.mxu0 0
      %4076 = vmatpush2.bf16.msra.mxu0 %v3963
      %4077 = vmatprep.subr.bf16.mxu0 0
      %4078 = vmatpush2.bf16.msra.mxu0 %v3962
      %4079 = vmatprep.subr.bf16.mxu0 0
      %4080 = vmatpush2.bf16.msra.mxu0 %v3961
      %4081 = vmatprep.mubr.bf16.mxu0 %v3736
      %4082 = vmatmul.mubr.bf16.gmra.mxu0 %v3668
      %v4083 = vpop.f32.mrf.mxu0
      %v4084 = vadd.f32 %v4036, %v4083
      %v4085 = vpop.f32.mrf.mxu0
      %v4086 = vpop.f32.mrf.mxu0
      %v4087 = vadd.f32 %v4039, %v4086
      %v4088 = vpop.f32.mrf.mxu0
      %4089 = vmatprep.mubr.bf16.mxu0 %v3737
      %4090 = vmatmul.mubr.bf16.gmra.mxu0 %v3669
      %v4091 = vpop.f32.mrf.mxu0
      %v4092 = vadd.f32 %v4044, %v4091
      %v4093 = vpop.f32.mrf.mxu0
      %v4094 = vpop.f32.mrf.mxu0
      %v4095 = vpop.f32.mrf.mxu0
      %4096 = vdwg.mxu0
      %v4097 = vmax.f32 %v4084, 0.0
      %v4098 = vmax.f32 %v4087, 0.0
      %v4099 = vmax.f32 %v4092, 0.0
      %v4100 = vpack.c.bf16 %v4098, %v4097
      %v4101 = vpack.c.bf16 %v4099, %v4099
      %v4102 = vld [vmem:[%s13] sm:$0xf]
      %v4103 = vld [vmem:[%s13 + $0x4] sm:$0xf]
      %v4104 = vld [vmem:[%s13 + $0x8] sm:$0xf]
      %v4105 = vld [vmem:[%s13 + $0xc] sm:$0xf]
      %v4106 = vld [vmem:[%s13 + $0x10] sm:$0xf]
      %v4107 = vld [vmem:[%s13 + $0x14] sm:$0xf]
      %v4114 = vunpack.c.l.b16 %v4102
      %v4115 = vunpack.c.l.b16 %v4103
      %v4116 = vunpack.c.l.b16 %v4104
      %v4117 = vunpack.c.l.b16 %v4105
      %v4118 = vunpack.c.l.b16 %v4106
      %v4119 = vunpack.c.l.b16 %v4107
      %v4120 = vpack.c.b16 %v4115, %v4114
      %v4121 = vpack.c.b16 %v4117, %v4116
      %v4122 = vpack.c.b16 %v4119, %v4118
      %vm4123 = vcmask 195584
      %v4125 = vsel %vm4123, %v4120, 0
      %v4128 = vsel %vm4123, %v4121, 0
      %v4131 = vsel %vm4123, %v4122, 0
      %v4134 = vsel %vm2261, %v4101, 0
      %4136 = vmatprep.subr.bf16.mxu0 0
      %4137 = vmatpush1.bf16.msra.mxu0 0
      %4138 = vmatprep.subr.bf16.mxu0 0
      %4139 = vmatpush1.bf16.msra.mxu0 0
      %4140 = vmatprep.subr.bf16.mxu0 0
      %4141 = vmatpush1.bf16.msra.mxu0 0
      %4142 = vmatprep.subr.bf16.mxu0 0
      %4143 = vmatpush1.bf16.msra.mxu0 0
      %4144 = vmatprep.subr.bf16.mxu0 0
      %4145 = vmatpush1.bf16.msra.mxu0 0
      %4146 = vmatprep.subr.bf16.mxu0 0
      %4147 = vmatpush1.bf16.msra.mxu0 0
      %4148 = vmatprep.subr.bf16.mxu0 0
      %4149 = vmatpush1.bf16.msra.mxu0 %v4134
      %4150 = vmatprep.subr.bf16.mxu0 0
      %4151 = vmatpush1.bf16.msra.mxu0 %v4100
      %4152 = vmatprep.subr.bf16.mxu0 0
      %4153 = vmatpush2.bf16.msra.mxu0 0
      %4154 = vmatprep.subr.bf16.mxu0 0
      %4155 = vmatpush2.bf16.msra.mxu0 0
      %4156 = vmatprep.subr.bf16.mxu0 0
      %4157 = vmatpush2.bf16.msra.mxu0 0
      %4158 = vmatprep.subr.bf16.mxu0 0
      %4159 = vmatpush2.bf16.msra.mxu0 0
      %4160 = vmatprep.subr.bf16.mxu0 0
      %4161 = vmatpush2.bf16.msra.mxu0 0
      %4162 = vmatprep.subr.bf16.mxu0 0
      %4163 = vmatpush2.bf16.msra.mxu0 0
      %4164 = vmatprep.subr.bf16.mxu0 0
      %4165 = vmatpush2.bf16.msra.mxu0 0
      %4166 = vmatprep.subr.bf16.mxu0 0
      %4167 = vmatpush2.bf16.msra.mxu0 0
      %4168 = vmatprep.mubr.bf16.mxu0 0
      %4169 = vmatmul.mubr.bf16.gmra.mxu0 %v4125
      %v4170 = vpop.f32.mrf.mxu0
      %v4171 = vadd.f32 0.0, %v4170
      %v4172 = vpop.f32.mrf.mxu0
      %v4173 = vpop.f32.mrf.mxu0
      %v4174 = vadd.f32 0.0, %v4173
      %v4175 = vpop.f32.mrf.mxu0
      %4176 = vmatprep.mubr.bf16.mxu0 0
      %4177 = vmatmul.mubr.bf16.gmra.mxu0 %v4128
      %v4178 = vpop.f32.mrf.mxu0
      %v4179 = vadd.f32 0.0, %v4178
      %v4180 = vpop.f32.mrf.mxu0
      %v4181 = vpop.f32.mrf.mxu0
      %v4182 = vadd.f32 0.0, %v4181
      %v4183 = vpop.f32.mrf.mxu0
      %4184 = vmatprep.mubr.bf16.mxu0 0
      %4185 = vmatmul.mubr.bf16.gmra.mxu0 %v4131
      %v4186 = vpop.f32.mrf.mxu0
      %v4187 = vadd.f32 0.0, %v4186
      %v4188 = vpop.f32.mrf.mxu0
      %v4189 = vpop.f32.mrf.mxu0
      %v4190 = vadd.f32 0.0, %v4189
      %v4191 = vpop.f32.mrf.mxu0
      %4192 = vdwg.mxu0
      %v4193 = vpack.c.bf16 %v4174, %v4171
      %v4194 = vpack.c.bf16 %v4182, %v4179
      %v4195 = vpack.c.bf16 %v4190, %v4187
      %s4196 = scalar_lea.vmem %s13, 24
      %v4197 = vld [vmem:[%s4196] sm:$0xf]
      %v4198 = vld [vmem:[%s4196 + $0x4] sm:$0xf]
      %v4199 = vld [vmem:[%s4196 + $0x8] sm:$0xf]
      %v4200 = vld [vmem:[%s4196 + $0xc] sm:$0xf]
      %v4201 = vld [vmem:[%s4196 + $0x10] sm:$0xf]
      %v4202 = vld [vmem:[%s4196 + $0x14] sm:$0xf]
      %v4209 = vunpack.c.l.b16 %v4197
      %v4210 = vunpack.c.l.b16 %v4198
      %v4211 = vunpack.c.l.b16 %v4199
      %v4212 = vunpack.c.l.b16 %v4200
      %v4213 = vunpack.c.l.b16 %v4201
      %v4214 = vunpack.c.l.b16 %v4202
      %v4215 = vpack.c.b16 %v4210, %v4209
      %v4216 = vpack.c.b16 %v4212, %v4211
      %v4217 = vpack.c.b16 %v4214, %v4213
      %v4219 = vsel %vm4123, %v4215, 0
      %v4222 = vsel %vm4123, %v4216, 0
      %v4225 = vsel %vm4123, %v4217, 0
      %4227 = vmatprep.subr.bf16.mxu0 0
      %4228 = vmatpush1.bf16.msra.mxu0 0
      %4229 = vmatprep.subr.bf16.mxu0 0
      %4230 = vmatpush1.bf16.msra.mxu0 0
      %4231 = vmatprep.subr.bf16.mxu0 0
      %4232 = vmatpush1.bf16.msra.mxu0 0
      %4233 = vmatprep.subr.bf16.mxu0 0
      %4234 = vmatpush1.bf16.msra.mxu0 0
      %4235 = vmatprep.subr.bf16.mxu0 0
      %4236 = vmatpush1.bf16.msra.mxu0 0
      %4237 = vmatprep.subr.bf16.mxu0 0
      %4238 = vmatpush1.bf16.msra.mxu0 0
      %4239 = vmatprep.subr.bf16.mxu0 0
      %4240 = vmatpush1.bf16.msra.mxu0 %v4134
      %4241 = vmatprep.subr.bf16.mxu0 0
      %4242 = vmatpush1.bf16.msra.mxu0 %v4100
      %4243 = vmatprep.subr.bf16.mxu0 0
      %4244 = vmatpush2.bf16.msra.mxu0 0
      %4245 = vmatprep.subr.bf16.mxu0 0
      %4246 = vmatpush2.bf16.msra.mxu0 0
      %4247 = vmatprep.subr.bf16.mxu0 0
      %4248 = vmatpush2.bf16.msra.mxu0 0
      %4249 = vmatprep.subr.bf16.mxu0 0
      %4250 = vmatpush2.bf16.msra.mxu0 0
      %4251 = vmatprep.subr.bf16.mxu0 0
      %4252 = vmatpush2.bf16.msra.mxu0 0
      %4253 = vmatprep.subr.bf16.mxu0 0
      %4254 = vmatpush2.bf16.msra.mxu0 0
      %4255 = vmatprep.subr.bf16.mxu0 0
      %4256 = vmatpush2.bf16.msra.mxu0 0
      %4257 = vmatprep.subr.bf16.mxu0 0
      %4258 = vmatpush2.bf16.msra.mxu0 0
      %4259 = vmatprep.mubr.bf16.mxu0 0
      %4260 = vmatmul.mubr.bf16.gmra.mxu0 %v4219
      %v4261 = vpop.f32.mrf.mxu0
      %v4262 = vadd.f32 0.0, %v4261
      %v4263 = vpop.f32.mrf.mxu0
      %v4264 = vpop.f32.mrf.mxu0
      %v4265 = vadd.f32 0.0, %v4264
      %v4266 = vpop.f32.mrf.mxu0
      %4267 = vmatprep.mubr.bf16.mxu0 0
      %4268 = vmatmul.mubr.bf16.gmra.mxu0 %v4222
      %v4269 = vpop.f32.mrf.mxu0
      %v4270 = vadd.f32 0.0, %v4269
      %v4271 = vpop.f32.mrf.mxu0
      %v4272 = vpop.f32.mrf.mxu0
      %v4273 = vadd.f32 0.0, %v4272
      %v4274 = vpop.f32.mrf.mxu0
      %4275 = vmatprep.mubr.bf16.mxu0 0
      %4276 = vmatmul.mubr.bf16.gmra.mxu0 %v4225
      %v4277 = vpop.f32.mrf.mxu0
      %v4278 = vadd.f32 0.0, %v4277
      %v4279 = vpop.f32.mrf.mxu0
      %v4280 = vpop.f32.mrf.mxu0
      %v4281 = vadd.f32 0.0, %v4280
      %v4282 = vpop.f32.mrf.mxu0
      %4283 = vdwg.mxu0
      %v4284 = vpack.c.bf16 %v4265, %v4262
      %v4285 = vpack.c.bf16 %v4273, %v4270
      %v4286 = vpack.c.bf16 %v4281, %v4278
      %s4287 = scalar_lea.vmem %s13, 48
      %v4288 = vld [vmem:[%s4287] sm:$0xf]
      %v4289 = vld [vmem:[%s4287 + $0x4] sm:$0xf]
      %v4290 = vld [vmem:[%s4287 + $0x8] sm:$0xf]
      %v4291 = vld [vmem:[%s4287 + $0xc] sm:$0xf]
      %v4292 = vld [vmem:[%s4287 + $0x10] sm:$0xf]
      %v4293 = vld [vmem:[%s4287 + $0x14] sm:$0xf]
      %v4300 = vunpack.c.l.b16 %v4288
      %v4301 = vunpack.c.l.b16 %v4289
      %v4302 = vunpack.c.l.b16 %v4290
      %v4303 = vunpack.c.l.b16 %v4291
      %v4304 = vunpack.c.l.b16 %v4292
      %v4305 = vunpack.c.l.b16 %v4293
      %v4306 = vpack.c.b16 %v4301, %v4300
      %v4307 = vpack.c.b16 %v4303, %v4302
      %v4308 = vpack.c.b16 %v4305, %v4304
      %v4310 = vsel %vm4123, %v4306, 0
      %v4313 = vsel %vm4123, %v4307, 0
      %v4316 = vsel %vm4123, %v4308, 0
      %4318 = vmatprep.subr.bf16.mxu0 0
      %4319 = vmatpush1.bf16.msra.mxu0 0
      %4320 = vmatprep.subr.bf16.mxu0 0
      %4321 = vmatpush1.bf16.msra.mxu0 0
      %4322 = vmatprep.subr.bf16.mxu0 0
      %4323 = vmatpush1.bf16.msra.mxu0 0
      %4324 = vmatprep.subr.bf16.mxu0 0
      %4325 = vmatpush1.bf16.msra.mxu0 0
      %4326 = vmatprep.subr.bf16.mxu0 0
      %4327 = vmatpush1.bf16.msra.mxu0 0
      %4328 = vmatprep.subr.bf16.mxu0 0
      %4329 = vmatpush1.bf16.msra.mxu0 0
      %4330 = vmatprep.subr.bf16.mxu0 0
      %4331 = vmatpush1.bf16.msra.mxu0 %v4134
      %4332 = vmatprep.subr.bf16.mxu0 0
      %4333 = vmatpush1.bf16.msra.mxu0 %v4100
      %4334 = vmatprep.subr.bf16.mxu0 0
      %4335 = vmatpush2.bf16.msra.mxu0 0
      %4336 = vmatprep.subr.bf16.mxu0 0
      %4337 = vmatpush2.bf16.msra.mxu0 0
      %4338 = vmatprep.subr.bf16.mxu0 0
      %4339 = vmatpush2.bf16.msra.mxu0 0
      %4340 = vmatprep.subr.bf16.mxu0 0
      %4341 = vmatpush2.bf16.msra.mxu0 0
      %4342 = vmatprep.subr.bf16.mxu0 0
      %4343 = vmatpush2.bf16.msra.mxu0 0
      %4344 = vmatprep.subr.bf16.mxu0 0
      %4345 = vmatpush2.bf16.msra.mxu0 0
      %4346 = vmatprep.subr.bf16.mxu0 0
      %4347 = vmatpush2.bf16.msra.mxu0 0
      %4348 = vmatprep.subr.bf16.mxu0 0
      %4349 = vmatpush2.bf16.msra.mxu0 0
      %4350 = vmatprep.mubr.bf16.mxu0 0
      %4351 = vmatmul.mubr.bf16.gmra.mxu0 %v4310
      %v4352 = vpop.f32.mrf.mxu0
      %v4353 = vadd.f32 0.0, %v4352
      %v4354 = vpop.f32.mrf.mxu0
      %v4355 = vpop.f32.mrf.mxu0
      %v4356 = vadd.f32 0.0, %v4355
      %v4357 = vpop.f32.mrf.mxu0
      %4358 = vmatprep.mubr.bf16.mxu0 0
      %4359 = vmatmul.mubr.bf16.gmra.mxu0 %v4313
      %v4360 = vpop.f32.mrf.mxu0
      %v4361 = vadd.f32 0.0, %v4360
      %v4362 = vpop.f32.mrf.mxu0
      %v4363 = vpop.f32.mrf.mxu0
      %v4364 = vadd.f32 0.0, %v4363
      %v4365 = vpop.f32.mrf.mxu0
      %4366 = vmatprep.mubr.bf16.mxu0 0
      %4367 = vmatmul.mubr.bf16.gmra.mxu0 %v4316
      %v4368 = vpop.f32.mrf.mxu0
      %v4369 = vadd.f32 0.0, %v4368
      %v4370 = vpop.f32.mrf.mxu0
      %v4371 = vpop.f32.mrf.mxu0
      %v4372 = vadd.f32 0.0, %v4371
      %v4373 = vpop.f32.mrf.mxu0
      %4374 = vdwg.mxu0
      %v4375 = vpack.c.bf16 %v4356, %v4353
      %v4376 = vpack.c.bf16 %v4364, %v4361
      %v4377 = vpack.c.bf16 %v4372, %v4369
      %s4378 = scalar_lea.vmem %s13, 72
      %v4379 = vld [vmem:[%s4378] sm:$0xf]
      %v4380 = vld [vmem:[%s4378 + $0x4] sm:$0xf]
      %v4381 = vld [vmem:[%s4378 + $0x8] sm:$0xf]
      %v4382 = vld [vmem:[%s4378 + $0xc] sm:$0xf]
      %v4383 = vld [vmem:[%s4378 + $0x10] sm:$0xf]
      %v4384 = vld [vmem:[%s4378 + $0x14] sm:$0xf]
      %v4391 = vunpack.c.l.b16 %v4379
      %v4392 = vunpack.c.l.b16 %v4380
      %v4393 = vunpack.c.l.b16 %v4381
      %v4394 = vunpack.c.l.b16 %v4382
      %v4395 = vunpack.c.l.b16 %v4383
      %v4396 = vunpack.c.l.b16 %v4384
      %v4397 = vpack.c.b16 %v4392, %v4391
      %v4398 = vpack.c.b16 %v4394, %v4393
      %v4399 = vpack.c.b16 %v4396, %v4395
      %v4401 = vsel %vm4123, %v4397, 0
      %v4404 = vsel %vm4123, %v4398, 0
      %v4407 = vsel %vm4123, %v4399, 0
      %4409 = vmatprep.subr.bf16.mxu0 0
      %4410 = vmatpush1.bf16.msra.mxu0 0
      %4411 = vmatprep.subr.bf16.mxu0 0
      %4412 = vmatpush1.bf16.msra.mxu0 0
      %4413 = vmatprep.subr.bf16.mxu0 0
      %4414 = vmatpush1.bf16.msra.mxu0 0
      %4415 = vmatprep.subr.bf16.mxu0 0
      %4416 = vmatpush1.bf16.msra.mxu0 0
      %4417 = vmatprep.subr.bf16.mxu0 0
      %4418 = vmatpush1.bf16.msra.mxu0 0
      %4419 = vmatprep.subr.bf16.mxu0 0
      %4420 = vmatpush1.bf16.msra.mxu0 0
      %4421 = vmatprep.subr.bf16.mxu0 0
      %4422 = vmatpush1.bf16.msra.mxu0 %v4134
      %4423 = vmatprep.subr.bf16.mxu0 0
      %4424 = vmatpush1.bf16.msra.mxu0 %v4100
      %4425 = vmatprep.subr.bf16.mxu0 0
      %4426 = vmatpush2.bf16.msra.mxu0 0
      %4427 = vmatprep.subr.bf16.mxu0 0
      %4428 = vmatpush2.bf16.msra.mxu0 0
      %4429 = vmatprep.subr.bf16.mxu0 0
      %4430 = vmatpush2.bf16.msra.mxu0 0
      %4431 = vmatprep.subr.bf16.mxu0 0
      %4432 = vmatpush2.bf16.msra.mxu0 0
      %4433 = vmatprep.subr.bf16.mxu0 0
      %4434 = vmatpush2.bf16.msra.mxu0 0
      %4435 = vmatprep.subr.bf16.mxu0 0
      %4436 = vmatpush2.bf16.msra.mxu0 0
      %4437 = vmatprep.subr.bf16.mxu0 0
      %4438 = vmatpush2.bf16.msra.mxu0 0
      %4439 = vmatprep.subr.bf16.mxu0 0
      %4440 = vmatpush2.bf16.msra.mxu0 0
      %4441 = vmatprep.mubr.bf16.mxu0 0
      %4442 = vmatmul.mubr.bf16.gmra.mxu0 %v4401
      %v4443 = vpop.f32.mrf.mxu0
      %v4444 = vadd.f32 0.0, %v4443
      %v4445 = vpop.f32.mrf.mxu0
      %v4446 = vpop.f32.mrf.mxu0
      %v4447 = vadd.f32 0.0, %v4446
      %v4448 = vpop.f32.mrf.mxu0
      %4449 = vmatprep.mubr.bf16.mxu0 0
      %4450 = vmatmul.mubr.bf16.gmra.mxu0 %v4404
      %v4451 = vpop.f32.mrf.mxu0
      %v4452 = vadd.f32 0.0, %v4451
      %v4453 = vpop.f32.mrf.mxu0
      %v4454 = vpop.f32.mrf.mxu0
      %v4455 = vadd.f32 0.0, %v4454
      %v4456 = vpop.f32.mrf.mxu0
      %4457 = vmatprep.mubr.bf16.mxu0 0
      %4458 = vmatmul.mubr.bf16.gmra.mxu0 %v4407
      %v4459 = vpop.f32.mrf.mxu0
      %v4460 = vadd.f32 0.0, %v4459
      %v4461 = vpop.f32.mrf.mxu0
      %v4462 = vpop.f32.mrf.mxu0
      %v4463 = vadd.f32 0.0, %v4462
      %v4464 = vpop.f32.mrf.mxu0
      %4465 = vdwg.mxu0
      %v4466 = vpack.c.bf16 %v4447, %v4444
      %v4467 = vpack.c.bf16 %v4455, %v4452
      %v4468 = vpack.c.bf16 %v4463, %v4460
      %v4469 = vld [vmem:[%s14] sm:$0xf]
      %v4470 = vld [vmem:[%s14 + $0x4] sm:$0xf]
      %v4471 = vld [vmem:[%s14 + $0x8] sm:$0xf]
      %v4472 = vld [vmem:[%s14 + $0xc] sm:$0xf]
      %v4473 = vld [vmem:[%s14 + $0x10] sm:$0xf]
      %v4474 = vld [vmem:[%s14 + $0x14] sm:$0xf]
      %v4475 = vld [vmem:[%s14 + $0x18] sm:$0xf]
      %v4476 = vld [vmem:[%s14 + $0x1c] sm:$0xf]
      %v4477 = vld [vmem:[%s14 + $0x20] sm:$0xf]
      %v4478 = vld [vmem:[%s14 + $0x24] sm:$0xf]
      %v4479 = vld [vmem:[%s14 + $0x28] sm:$0xf]
      %v4480 = vld [vmem:[%s14 + $0x2c] sm:$0xf]
      %v4481 = vld [vmem:[%s14 + $0x30] sm:$0xf]
      %v4482 = vld [vmem:[%s14 + $0x34] sm:$0xf]
      %v4483 = vld [vmem:[%s14 + $0x38] sm:$0xf]
      %v4484 = vld [vmem:[%s14 + $0x3c] sm:$0xf]
      %v4485 = vld [vmem:[%s14 + $0x40] sm:$0xf]
      %v4486 = vld [vmem:[%s14 + $0x44] sm:$0xf]
      %v4487 = vld [vmem:[%s14 + $0x48] sm:$0xf]
      %v4488 = vld [vmem:[%s14 + $0x4c] sm:$0xf]
      %v4489 = vld [vmem:[%s14 + $0x50] sm:$0xf]
      %v4490 = vld [vmem:[%s14 + $0x54] sm:$0xf]
      %v4491 = vld [vmem:[%s14 + $0x58] sm:$0xf]
      %v4492 = vld [vmem:[%s14 + $0x5c] sm:$0xf]
      %v4493 = vld [vmem:[%s14 + $0x60] sm:$0xf]
      %v4494 = vld [vmem:[%s14 + $0x64] sm:$0xf]
      %v4495 = vld [vmem:[%s14 + $0x68] sm:$0xf]
      %v4496 = vld [vmem:[%s14 + $0x6c] sm:$0xf]
      %v4497 = vld [vmem:[%s14 + $0x70] sm:$0xf]
      %v4498 = vld [vmem:[%s14 + $0x74] sm:$0xf]
      %v4499 = vld [vmem:[%s14 + $0x78] sm:$0xf]
      %v4500 = vld [vmem:[%s14 + $0x7c] sm:$0xf]
      %v4501 = vld [vmem:[%s14 + $0x80] sm:$0xf]
      %v4502 = vld [vmem:[%s14 + $0x84] sm:$0xf]
      %v4503 = vld [vmem:[%s14 + $0x88] sm:$0xf]
      %v4504 = vld [vmem:[%s14 + $0x8c] sm:$0xf]
      %v4505 = vld [vmem:[%s14 + $0x90] sm:$0xf]
      %v4506 = vld [vmem:[%s14 + $0x94] sm:$0xf]
      %v4507 = vld [vmem:[%s14 + $0x98] sm:$0xf]
      %v4508 = vld [vmem:[%s14 + $0x9c] sm:$0xf]
      %v4509 = vld [vmem:[%s14 + $0xa0] sm:$0xf]
      %v4510 = vld [vmem:[%s14 + $0xa4] sm:$0xf]
      %v4511 = vld [vmem:[%s14 + $0xa8] sm:$0xf]
      %v4512 = vld [vmem:[%s14 + $0xac] sm:$0xf]
      %v4513 = vld [vmem:[%s14 + $0xb0] sm:$0xf]
      %v4514 = vld [vmem:[%s14 + $0xb4] sm:$0xf]
      %v4515 = vld [vmem:[%s14 + $0xb8] sm:$0xf]
      %v4516 = vld [vmem:[%s14 + $0xbc] sm:$0xf]
      %v4517 = vld [vmem:[%s14 + $0xc0] sm:$0xf]
      %v4518 = vld [vmem:[%s14 + $0xc4] sm:$0xf]
      %v4519 = vld [vmem:[%s14 + $0xc8] sm:$0xf]
      %v4520 = vld [vmem:[%s14 + $0xcc] sm:$0xf]
      %v4521 = vld [vmem:[%s14 + $0xd0] sm:$0xf]
      %v4522 = vld [vmem:[%s14 + $0xd4] sm:$0xf]
      %v4523 = vld [vmem:[%s14 + $0xd8] sm:$0xf]
      %v4524 = vld [vmem:[%s14 + $0xdc] sm:$0xf]
      %v4525 = vld [vmem:[%s14 + $0xe0] sm:$0xf]
      %v4526 = vld [vmem:[%s14 + $0xe4] sm:$0xf]
      %v4527 = vld [vmem:[%s14 + $0xe8] sm:$0xf]
      %v4528 = vld [vmem:[%s14 + $0xec] sm:$0xf]
      %v4529 = vld [vmem:[%s14 + $0xf0] sm:$0xf]
      %v4530 = vld [vmem:[%s14 + $0xf4] sm:$0xf]
      %v4531 = vld [vmem:[%s14 + $0xf8] sm:$0xf]
      %v4532 = vld [vmem:[%s14 + $0xfc] sm:$0xf]
      %v4533 = vld [vmem:[%s15] sm:$0x1]
      %v4535 = vlaneseq
      %v4536 = vshrl.u32 %v4535, 7
      %v4537 = vsub.s32 0, %v4536
      %v4538 = vrot.slane %v4533, %v4537
      %v4604 = vunpack.c.l.b16 %v4469
      %v4605 = vunpack.c.l.b16 %v4470
      %v4606 = vunpack.c.l.b16 %v4471
      %v4607 = vunpack.c.l.b16 %v4472
      %v4608 = vunpack.c.l.b16 %v4473
      %v4609 = vunpack.c.l.b16 %v4474
      %v4610 = vunpack.c.l.b16 %v4475
      %v4611 = vunpack.c.l.b16 %v4476
      %v4612 = vunpack.c.l.b16 %v4477
      %v4613 = vunpack.c.l.b16 %v4478
      %v4614 = vunpack.c.l.b16 %v4479
      %v4615 = vunpack.c.l.b16 %v4480
      %v4616 = vunpack.c.l.b16 %v4481
      %v4617 = vunpack.c.l.b16 %v4482
      %v4618 = vunpack.c.l.b16 %v4483
      %v4619 = vunpack.c.l.b16 %v4484
      %v4620 = vunpack.c.l.b16 %v4485
      %v4621 = vunpack.c.l.b16 %v4486
      %v4622 = vunpack.c.l.b16 %v4487
      %v4623 = vunpack.c.l.b16 %v4488
      %v4624 = vunpack.c.l.b16 %v4489
      %v4625 = vunpack.c.l.b16 %v4490
      %v4626 = vunpack.c.l.b16 %v4491
      %v4627 = vunpack.c.l.b16 %v4492
      %v4628 = vunpack.c.l.b16 %v4493
      %v4629 = vunpack.c.l.b16 %v4494
      %v4630 = vunpack.c.l.b16 %v4495
      %v4631 = vunpack.c.l.b16 %v4496
      %v4632 = vunpack.c.l.b16 %v4497
      %v4633 = vunpack.c.l.b16 %v4498
      %v4634 = vunpack.c.l.b16 %v4499
      %v4635 = vunpack.c.l.b16 %v4500
      %v4636 = vunpack.c.l.b16 %v4501
      %v4637 = vunpack.c.l.b16 %v4502
      %v4638 = vunpack.c.l.b16 %v4503
      %v4639 = vunpack.c.l.b16 %v4504
      %v4640 = vunpack.c.l.b16 %v4505
      %v4641 = vunpack.c.l.b16 %v4506
      %v4642 = vunpack.c.l.b16 %v4507
      %v4643 = vunpack.c.l.b16 %v4508
      %v4644 = vunpack.c.l.b16 %v4509
      %v4645 = vunpack.c.l.b16 %v4510
      %v4646 = vunpack.c.l.b16 %v4511
      %v4647 = vunpack.c.l.b16 %v4512
      %v4648 = vunpack.c.l.b16 %v4513
      %v4649 = vunpack.c.l.b16 %v4514
      %v4650 = vunpack.c.l.b16 %v4515
      %v4651 = vunpack.c.l.b16 %v4516
      %v4652 = vunpack.c.l.b16 %v4517
      %v4653 = vunpack.c.l.b16 %v4518
      %v4654 = vunpack.c.l.b16 %v4519
      %v4655 = vunpack.c.l.b16 %v4520
      %v4656 = vunpack.c.l.b16 %v4521
      %v4657 = vunpack.c.l.b16 %v4522
      %v4658 = vunpack.c.l.b16 %v4523
      %v4659 = vunpack.c.l.b16 %v4524
      %v4660 = vunpack.c.l.b16 %v4525
      %v4661 = vunpack.c.l.b16 %v4526
      %v4662 = vunpack.c.l.b16 %v4527
      %v4663 = vunpack.c.l.b16 %v4528
      %v4664 = vunpack.c.l.b16 %v4529
      %v4665 = vunpack.c.l.b16 %v4530
      %v4666 = vunpack.c.l.b16 %v4531
      %v4667 = vunpack.c.l.b16 %v4532
      %v4668 = vpack.c.b16 %v4605, %v4604
      %v4669 = vpack.c.b16 %v4607, %v4606
      %v4670 = vpack.c.b16 %v4609, %v4608
      %v4671 = vpack.c.b16 %v4611, %v4610
      %v4672 = vpack.c.b16 %v4613, %v4612
      %v4673 = vpack.c.b16 %v4615, %v4614
      %v4674 = vpack.c.b16 %v4617, %v4616
      %v4675 = vpack.c.b16 %v4619, %v4618
      %v4676 = vpack.c.b16 %v4621, %v4620
      %v4677 = vpack.c.b16 %v4623, %v4622
      %v4678 = vpack.c.b16 %v4625, %v4624
      %v4679 = vpack.c.b16 %v4627, %v4626
      %v4680 = vpack.c.b16 %v4629, %v4628
      %v4681 = vpack.c.b16 %v4631, %v4630
      %v4682 = vpack.c.b16 %v4633, %v4632
      %v4683 = vpack.c.b16 %v4635, %v4634
      %v4684 = vpack.c.b16 %v4637, %v4636
      %v4685 = vpack.c.b16 %v4639, %v4638
      %v4686 = vpack.c.b16 %v4641, %v4640
      %v4687 = vpack.c.b16 %v4643, %v4642
      %v4688 = vpack.c.b16 %v4645, %v4644
      %v4689 = vpack.c.b16 %v4647, %v4646
      %v4690 = vpack.c.b16 %v4649, %v4648
      %v4691 = vpack.c.b16 %v4651, %v4650
      %v4692 = vpack.c.b16 %v4653, %v4652
      %v4693 = vpack.c.b16 %v4655, %v4654
      %v4694 = vpack.c.b16 %v4657, %v4656
      %v4695 = vpack.c.b16 %v4659, %v4658
      %v4696 = vpack.c.b16 %v4661, %v4660
      %v4697 = vpack.c.b16 %v4663, %v4662
      %v4698 = vpack.c.b16 %v4665, %v4664
      %v4699 = vpack.c.b16 %v4667, %v4666
      %4732 = vmatprep.subr.bf16.mxu0 0
      %4733 = vmatpush1.bf16.msra.mxu0 %v4675
      %4734 = vmatprep.subr.bf16.mxu0 0
      %4735 = vmatpush1.bf16.msra.mxu0 %v4674
      %4736 = vmatprep.subr.bf16.mxu0 0
      %4737 = vmatpush1.bf16.msra.mxu0 %v4673
      %4738 = vmatprep.subr.bf16.mxu0 0
      %4739 = vmatpush1.bf16.msra.mxu0 %v4672
      %4740 = vmatprep.subr.bf16.mxu0 0
      %4741 = vmatpush1.bf16.msra.mxu0 %v4671
      %4742 = vmatprep.subr.bf16.mxu0 0
      %4743 = vmatpush1.bf16.msra.mxu0 %v4670
      %4744 = vmatprep.subr.bf16.mxu0 0
      %4745 = vmatpush1.bf16.msra.mxu0 %v4669
      %4746 = vmatprep.subr.bf16.mxu0 0
      %4747 = vmatpush1.bf16.msra.mxu0 %v4668
      %4748 = vmatprep.subr.bf16.mxu0 0
      %4749 = vmatpush2.bf16.msra.mxu0 %v4683
      %4750 = vmatprep.subr.bf16.mxu0 0
      %4751 = vmatpush2.bf16.msra.mxu0 %v4682
      %4752 = vmatprep.subr.bf16.mxu0 0
      %4753 = vmatpush2.bf16.msra.mxu0 %v4681
      %4754 = vmatprep.subr.bf16.mxu0 0
      %4755 = vmatpush2.bf16.msra.mxu0 %v4680
      %4756 = vmatprep.subr.bf16.mxu0 0
      %4757 = vmatpush2.bf16.msra.mxu0 %v4679
      %4758 = vmatprep.subr.bf16.mxu0 0
      %4759 = vmatpush2.bf16.msra.mxu0 %v4678
      %4760 = vmatprep.subr.bf16.mxu0 0
      %4761 = vmatpush2.bf16.msra.mxu0 %v4677
      %4762 = vmatprep.subr.bf16.mxu0 0
      %4763 = vmatpush2.bf16.msra.mxu0 %v4676
      %4764 = vmatprep.mubr.bf16.mxu0 %v4284
      %4765 = vmatmul.mubr.bf16.gmra.mxu0 %v4193
      %v4766 = vpop.f32.mrf.mxu0
      %v4767 = vadd.f32 %v4538, %v4766
      %v4768 = vpop.f32.mrf.mxu0
      %v4769 = vpop.f32.mrf.mxu0
      %v4770 = vadd.f32 %v4538, %v4769
      %v4771 = vpop.f32.mrf.mxu0
      %4772 = vmatprep.mubr.bf16.mxu0 %v4285
      %4773 = vmatmul.mubr.bf16.gmra.mxu0 %v4194
      %v4774 = vpop.f32.mrf.mxu0
      %v4775 = vadd.f32 %v4538, %v4774
      %v4776 = vpop.f32.mrf.mxu0
      %v4777 = vpop.f32.mrf.mxu0
      %v4778 = vadd.f32 %v4538, %v4777
      %v4779 = vpop.f32.mrf.mxu0
      %4780 = vmatprep.mubr.bf16.mxu0 %v4286
      %4781 = vmatmul.mubr.bf16.gmra.mxu0 %v4195
      %v4782 = vpop.f32.mrf.mxu0
      %v4783 = vadd.f32 %v4538, %v4782
      %v4784 = vpop.f32.mrf.mxu0
      %v4785 = vpop.f32.mrf.mxu0
      %v4786 = vadd.f32 %v4538, %v4785
      %v4787 = vpop.f32.mrf.mxu0
      %4788 = vdwg.mxu0
      %4789 = vmatprep.subr.bf16.mxu0 0
      %4790 = vmatpush1.bf16.msra.mxu0 %v4691
      %4791 = vmatprep.subr.bf16.mxu0 0
      %4792 = vmatpush1.bf16.msra.mxu0 %v4690
      %4793 = vmatprep.subr.bf16.mxu0 0
      %4794 = vmatpush1.bf16.msra.mxu0 %v4689
      %4795 = vmatprep.subr.bf16.mxu0 0
      %4796 = vmatpush1.bf16.msra.mxu0 %v4688
      %4797 = vmatprep.subr.bf16.mxu0 0
      %4798 = vmatpush1.bf16.msra.mxu0 %v4687
      %4799 = vmatprep.subr.bf16.mxu0 0
      %4800 = vmatpush1.bf16.msra.mxu0 %v4686
      %4801 = vmatprep.subr.bf16.mxu0 0
      %4802 = vmatpush1.bf16.msra.mxu0 %v4685
      %4803 = vmatprep.subr.bf16.mxu0 0
      %4804 = vmatpush1.bf16.msra.mxu0 %v4684
      %4805 = vmatprep.subr.bf16.mxu0 0
      %4806 = vmatpush2.bf16.msra.mxu0 %v4699
      %4807 = vmatprep.subr.bf16.mxu0 0
      %4808 = vmatpush2.bf16.msra.mxu0 %v4698
      %4809 = vmatprep.subr.bf16.mxu0 0
      %4810 = vmatpush2.bf16.msra.mxu0 %v4697
      %4811 = vmatprep.subr.bf16.mxu0 0
      %4812 = vmatpush2.bf16.msra.mxu0 %v4696
      %4813 = vmatprep.subr.bf16.mxu0 0
      %4814 = vmatpush2.bf16.msra.mxu0 %v4695
      %4815 = vmatprep.subr.bf16.mxu0 0
      %4816 = vmatpush2.bf16.msra.mxu0 %v4694
      %4817 = vmatprep.subr.bf16.mxu0 0
      %4818 = vmatpush2.bf16.msra.mxu0 %v4693
      %4819 = vmatprep.subr.bf16.mxu0 0
      %4820 = vmatpush2.bf16.msra.mxu0 %v4692
      %4821 = vmatprep.mubr.bf16.mxu0 %v4466
      %4822 = vmatmul.mubr.bf16.gmra.mxu0 %v4375
      %v4823 = vpop.f32.mrf.mxu0
      %v4824 = vadd.f32 %v4767, %v4823
      %v4825 = vpop.f32.mrf.mxu0
      %v4826 = vpop.f32.mrf.mxu0
      %v4827 = vadd.f32 %v4770, %v4826
      %v4828 = vpop.f32.mrf.mxu0
      %4829 = vmatprep.mubr.bf16.mxu0 %v4467
      %4830 = vmatmul.mubr.bf16.gmra.mxu0 %v4376
      %v4831 = vpop.f32.mrf.mxu0
      %v4832 = vadd.f32 %v4775, %v4831
      %v4833 = vpop.f32.mrf.mxu0
      %v4834 = vpop.f32.mrf.mxu0
      %v4835 = vadd.f32 %v4778, %v4834
      %v4836 = vpop.f32.mrf.mxu0
      %4837 = vmatprep.mubr.bf16.mxu0 %v4468
      %4838 = vmatmul.mubr.bf16.gmra.mxu0 %v4377
      %v4839 = vpop.f32.mrf.mxu0
      %v4840 = vadd.f32 %v4783, %v4839
      %v4841 = vpop.f32.mrf.mxu0
      %v4842 = vpop.f32.mrf.mxu0
      %v4843 = vadd.f32 %v4786, %v4842
      %v4844 = vpop.f32.mrf.mxu0
      %4845 = vdwg.mxu0
      %v4846 = vmax.f32 %v4824, 0.0
      %v4847 = vmax.f32 %v4827, 0.0
      %v4848 = vmax.f32 %v4832, 0.0
      %v4849 = vmax.f32 %v4835, 0.0
      %v4850 = vmax.f32 %v4840, 0.0
      %v4851 = vmax.f32 %v4843, 0.0
      %v4852 = vpack.c.bf16 %v4847, %v4846
      %v4853 = vpack.c.bf16 %v4849, %v4848
      %v4854 = vpack.c.bf16 %v4851, %v4850
      %v4855 = vld [vmem:[%s16] sm:$0xf]
      %v4856 = vld [vmem:[%s16 + $0x4] sm:$0xf]
      %v4857 = vld [vmem:[%s16 + $0x8] sm:$0xf]
      %v4858 = vld [vmem:[%s16 + $0xc] sm:$0xf]
      %v4859 = vld [vmem:[%s16 + $0x10] sm:$0xf]
      %v4860 = vld [vmem:[%s16 + $0x14] sm:$0xf]
      %v4861 = vld [vmem:[%s16 + $0x18] sm:$0xf]
      %v4862 = vld [vmem:[%s16 + $0x1c] sm:$0xf]
      %v4863 = vld [vmem:[%s16 + $0x20] sm:$0xf]
      %v4864 = vld [vmem:[%s16 + $0x24] sm:$0xf]
      %v4865 = vld [vmem:[%s16 + $0x28] sm:$0xf]
      %v4866 = vld [vmem:[%s16 + $0x2c] sm:$0xf]
      %v4867 = vld [vmem:[%s16 + $0x30] sm:$0xf]
      %v4868 = vld [vmem:[%s16 + $0x34] sm:$0xf]
      %v4883 = vunpack.c.l.b16 %v4855
      %v4884 = vunpack.c.l.b16 %v4856
      %v4885 = vunpack.c.l.b16 %v4857
      %v4886 = vunpack.c.l.b16 %v4858
      %v4887 = vunpack.c.l.b16 %v4859
      %v4888 = vunpack.c.l.b16 %v4860
      %v4889 = vunpack.c.l.b16 %v4861
      %v4890 = vunpack.c.l.b16 %v4862
      %v4891 = vunpack.c.l.b16 %v4863
      %v4892 = vunpack.c.l.b16 %v4864
      %v4893 = vunpack.c.l.b16 %v4865
      %v4894 = vunpack.c.l.b16 %v4866
      %v4895 = vunpack.c.l.b16 %v4867
      %v4896 = vunpack.c.l.b16 %v4868
      %v4897 = vpack.c.b16 %v4884, %v4883
      %v4898 = vpack.c.b16 %v4886, %v4885
      %v4899 = vpack.c.b16 %v4888, %v4887
      %v4900 = vpack.c.b16 %v4890, %v4889
      %v4901 = vpack.c.b16 %v4892, %v4891
      %v4902 = vpack.c.b16 %v4894, %v4893
      %v4903 = vpack.c.b16 %v4896, %v4895
      %vm4904 = vcmask 392192
      %v4906 = vsel %vm4904, %v4897, 0
      %v4909 = vsel %vm4904, %v4898, 0
      %v4912 = vsel %vm4904, %v4899, 0
      %v4915 = vsel %vm4904, %v4900, 0
      %v4918 = vsel %vm4904, %v4901, 0
      %v4921 = vsel %vm4904, %v4902, 0
      %v4924 = vsel %vm4904, %v4903, 0
      %4926 = vmatprep.subr.bf16.mxu0 0
      %4927 = vmatpush1.bf16.msra.mxu0 0
      %4928 = vmatprep.subr.bf16.mxu0 0
      %4929 = vmatpush1.bf16.msra.mxu0 0
      %4930 = vmatprep.subr.bf16.mxu0 0
      %4931 = vmatpush1.bf16.msra.mxu0 0
      %4932 = vmatprep.subr.bf16.mxu0 0
      %4933 = vmatpush1.bf16.msra.mxu0 0
      %4934 = vmatprep.subr.bf16.mxu0 0
      %4935 = vmatpush1.bf16.msra.mxu0 0
      %4936 = vmatprep.subr.bf16.mxu0 0
      %4937 = vmatpush1.bf16.msra.mxu0 %v4854
      %4938 = vmatprep.subr.bf16.mxu0 0
      %4939 = vmatpush1.bf16.msra.mxu0 %v4853
      %4940 = vmatprep.subr.bf16.mxu0 0
      %4941 = vmatpush1.bf16.msra.mxu0 %v4852
      %4942 = vmatprep.subr.bf16.mxu0 0
      %4943 = vmatpush2.bf16.msra.mxu0 0
      %4944 = vmatprep.subr.bf16.mxu0 0
      %4945 = vmatpush2.bf16.msra.mxu0 0
      %4946 = vmatprep.subr.bf16.mxu0 0
      %4947 = vmatpush2.bf16.msra.mxu0 0
      %4948 = vmatprep.subr.bf16.mxu0 0
      %4949 = vmatpush2.bf16.msra.mxu0 0
      %4950 = vmatprep.subr.bf16.mxu0 0
      %4951 = vmatpush2.bf16.msra.mxu0 0
      %4952 = vmatprep.subr.bf16.mxu0 0
      %4953 = vmatpush2.bf16.msra.mxu0 0
      %4954 = vmatprep.subr.bf16.mxu0 0
      %4955 = vmatpush2.bf16.msra.mxu0 0
      %4956 = vmatprep.subr.bf16.mxu0 0
      %4957 = vmatpush2.bf16.msra.mxu0 0
      %4958 = vmatprep.mubr.bf16.mxu0 0
      %4959 = vmatmul.mubr.bf16.gmra.mxu0 %v4906
      %v4960 = vpop.f32.mrf.mxu0
      %v4961 = vadd.f32 0.0, %v4960
      %v4962 = vpop.f32.mrf.mxu0
      %v4963 = vpop.f32.mrf.mxu0
      %v4964 = vadd.f32 0.0, %v4963
      %v4965 = vpop.f32.mrf.mxu0
      %4966 = vmatprep.mubr.bf16.mxu0 0
      %4967 = vmatmul.mubr.bf16.gmra.mxu0 %v4909
      %v4968 = vpop.f32.mrf.mxu0
      %v4969 = vadd.f32 0.0, %v4968
      %v4970 = vpop.f32.mrf.mxu0
      %v4971 = vpop.f32.mrf.mxu0
      %v4972 = vadd.f32 0.0, %v4971
      %v4973 = vpop.f32.mrf.mxu0
      %4974 = vmatprep.mubr.bf16.mxu0 0
      %4975 = vmatmul.mubr.bf16.gmra.mxu0 %v4912
      %v4976 = vpop.f32.mrf.mxu0
      %v4977 = vadd.f32 0.0, %v4976
      %v4978 = vpop.f32.mrf.mxu0
      %v4979 = vpop.f32.mrf.mxu0
      %v4980 = vadd.f32 0.0, %v4979
      %v4981 = vpop.f32.mrf.mxu0
      %4982 = vmatprep.mubr.bf16.mxu0 0
      %4983 = vmatmul.mubr.bf16.gmra.mxu0 %v4915
      %v4984 = vpop.f32.mrf.mxu0
      %v4985 = vadd.f32 0.0, %v4984
      %v4986 = vpop.f32.mrf.mxu0
      %v4987 = vpop.f32.mrf.mxu0
      %v4988 = vadd.f32 0.0, %v4987
      %v4989 = vpop.f32.mrf.mxu0
      %4990 = vmatprep.mubr.bf16.mxu0 0
      %4991 = vmatmul.mubr.bf16.gmra.mxu0 %v4918
      %v4992 = vpop.f32.mrf.mxu0
      %v4993 = vadd.f32 0.0, %v4992
      %v4994 = vpop.f32.mrf.mxu0
      %v4995 = vpop.f32.mrf.mxu0
      %v4996 = vadd.f32 0.0, %v4995
      %v4997 = vpop.f32.mrf.mxu0
      %4998 = vmatprep.mubr.bf16.mxu0 0
      %4999 = vmatmul.mubr.bf16.gmra.mxu0 %v4921
      %v5000 = vpop.f32.mrf.mxu0
      %v5001 = vadd.f32 0.0, %v5000
      %v5002 = vpop.f32.mrf.mxu0
      %v5003 = vpop.f32.mrf.mxu0
      %v5004 = vadd.f32 0.0, %v5003
      %v5005 = vpop.f32.mrf.mxu0
      %5006 = vmatprep.mubr.bf16.mxu0 0
      %5007 = vmatmul.mubr.bf16.gmra.mxu0 %v4924
      %v5008 = vpop.f32.mrf.mxu0
      %v5009 = vadd.f32 0.0, %v5008
      %v5010 = vpop.f32.mrf.mxu0
      %v5011 = vpop.f32.mrf.mxu0
      %v5012 = vadd.f32 0.0, %v5011
      %v5013 = vpop.f32.mrf.mxu0
      %5014 = vdwg.mxu0
      %v5015 = vpack.c.bf16 %v4964, %v4961
      %v5016 = vpack.c.bf16 %v4972, %v4969
      %v5017 = vpack.c.bf16 %v4980, %v4977
      %v5018 = vpack.c.bf16 %v4988, %v4985
      %v5019 = vpack.c.bf16 %v4996, %v4993
      %v5020 = vpack.c.bf16 %v5004, %v5001
      %v5021 = vpack.c.bf16 %v5012, %v5009
      %s5022 = scalar_lea.vmem %s16, 56
      %v5023 = vld [vmem:[%s5022] sm:$0xf]
      %v5024 = vld [vmem:[%s5022 + $0x4] sm:$0xf]
      %v5025 = vld [vmem:[%s5022 + $0x8] sm:$0xf]
      %v5026 = vld [vmem:[%s5022 + $0xc] sm:$0xf]
      %v5027 = vld [vmem:[%s5022 + $0x10] sm:$0xf]
      %v5028 = vld [vmem:[%s5022 + $0x14] sm:$0xf]
      %v5029 = vld [vmem:[%s5022 + $0x18] sm:$0xf]
      %v5030 = vld [vmem:[%s5022 + $0x1c] sm:$0xf]
      %v5031 = vld [vmem:[%s5022 + $0x20] sm:$0xf]
      %v5032 = vld [vmem:[%s5022 + $0x24] sm:$0xf]
      %v5033 = vld [vmem:[%s5022 + $0x28] sm:$0xf]
      %v5034 = vld [vmem:[%s5022 + $0x2c] sm:$0xf]
      %v5035 = vld [vmem:[%s5022 + $0x30] sm:$0xf]
      %v5036 = vld [vmem:[%s5022 + $0x34] sm:$0xf]
      %v5051 = vunpack.c.l.b16 %v5023
      %v5052 = vunpack.c.l.b16 %v5024
      %v5053 = vunpack.c.l.b16 %v5025
      %v5054 = vunpack.c.l.b16 %v5026
      %v5055 = vunpack.c.l.b16 %v5027
      %v5056 = vunpack.c.l.b16 %v5028
      %v5057 = vunpack.c.l.b16 %v5029
      %v5058 = vunpack.c.l.b16 %v5030
      %v5059 = vunpack.c.l.b16 %v5031
      %v5060 = vunpack.c.l.b16 %v5032
      %v5061 = vunpack.c.l.b16 %v5033
      %v5062 = vunpack.c.l.b16 %v5034
      %v5063 = vunpack.c.l.b16 %v5035
      %v5064 = vunpack.c.l.b16 %v5036
      %v5065 = vpack.c.b16 %v5052, %v5051
      %v5066 = vpack.c.b16 %v5054, %v5053
      %v5067 = vpack.c.b16 %v5056, %v5055
      %v5068 = vpack.c.b16 %v5058, %v5057
      %v5069 = vpack.c.b16 %v5060, %v5059
      %v5070 = vpack.c.b16 %v5062, %v5061
      %v5071 = vpack.c.b16 %v5064, %v5063
      %v5073 = vsel %vm4904, %v5065, 0
      %v5076 = vsel %vm4904, %v5066, 0
      %v5079 = vsel %vm4904, %v5067, 0
      %v5082 = vsel %vm4904, %v5068, 0
      %v5085 = vsel %vm4904, %v5069, 0
      %v5088 = vsel %vm4904, %v5070, 0
      %v5091 = vsel %vm4904, %v5071, 0
      %5093 = vmatprep.subr.bf16.mxu0 0
      %5094 = vmatpush1.bf16.msra.mxu0 0
      %5095 = vmatprep.subr.bf16.mxu0 0
      %5096 = vmatpush1.bf16.msra.mxu0 0
      %5097 = vmatprep.subr.bf16.mxu0 0
      %5098 = vmatpush1.bf16.msra.mxu0 0
      %5099 = vmatprep.subr.bf16.mxu0 0
      %5100 = vmatpush1.bf16.msra.mxu0 0
      %5101 = vmatprep.subr.bf16.mxu0 0
      %5102 = vmatpush1.bf16.msra.mxu0 0
      %5103 = vmatprep.subr.bf16.mxu0 0
      %5104 = vmatpush1.bf16.msra.mxu0 %v4854
      %5105 = vmatprep.subr.bf16.mxu0 0
      %5106 = vmatpush1.bf16.msra.mxu0 %v4853
      %5107 = vmatprep.subr.bf16.mxu0 0
      %5108 = vmatpush1.bf16.msra.mxu0 %v4852
      %5109 = vmatprep.subr.bf16.mxu0 0
      %5110 = vmatpush2.bf16.msra.mxu0 0
      %5111 = vmatprep.subr.bf16.mxu0 0
      %5112 = vmatpush2.bf16.msra.mxu0 0
      %5113 = vmatprep.subr.bf16.mxu0 0
      %5114 = vmatpush2.bf16.msra.mxu0 0
      %5115 = vmatprep.subr.bf16.mxu0 0
      %5116 = vmatpush2.bf16.msra.mxu0 0
      %5117 = vmatprep.subr.bf16.mxu0 0
      %5118 = vmatpush2.bf16.msra.mxu0 0
      %5119 = vmatprep.subr.bf16.mxu0 0
      %5120 = vmatpush2.bf16.msra.mxu0 0
      %5121 = vmatprep.subr.bf16.mxu0 0
      %5122 = vmatpush2.bf16.msra.mxu0 0
      %5123 = vmatprep.subr.bf16.mxu0 0
      %5124 = vmatpush2.bf16.msra.mxu0 0
      %5125 = vmatprep.mubr.bf16.mxu0 0
      %5126 = vmatmul.mubr.bf16.gmra.mxu0 %v5073
      %v5127 = vpop.f32.mrf.mxu0
      %v5128 = vadd.f32 0.0, %v5127
      %v5129 = vpop.f32.mrf.mxu0
      %v5130 = vpop.f32.mrf.mxu0
      %v5131 = vadd.f32 0.0, %v5130
      %v5132 = vpop.f32.mrf.mxu0
      %5133 = vmatprep.mubr.bf16.mxu0 0
      %5134 = vmatmul.mubr.bf16.gmra.mxu0 %v5076
      %v5135 = vpop.f32.mrf.mxu0
      %v5136 = vadd.f32 0.0, %v5135
      %v5137 = vpop.f32.mrf.mxu0
      %v5138 = vpop.f32.mrf.mxu0
      %v5139 = vadd.f32 0.0, %v5138
      %v5140 = vpop.f32.mrf.mxu0
      %5141 = vmatprep.mubr.bf16.mxu0 0
      %5142 = vmatmul.mubr.bf16.gmra.mxu0 %v5079
      %v5143 = vpop.f32.mrf.mxu0
      %v5144 = vadd.f32 0.0, %v5143
      %v5145 = vpop.f32.mrf.mxu0
      %v5146 = vpop.f32.mrf.mxu0
      %v5147 = vadd.f32 0.0, %v5146
      %v5148 = vpop.f32.mrf.mxu0
      %5149 = vmatprep.mubr.bf16.mxu0 0
      %5150 = vmatmul.mubr.bf16.gmra.mxu0 %v5082
      %v5151 = vpop.f32.mrf.mxu0
      %v5152 = vadd.f32 0.0, %v5151
      %v5153 = vpop.f32.mrf.mxu0
      %v5154 = vpop.f32.mrf.mxu0
      %v5155 = vadd.f32 0.0, %v5154
      %v5156 = vpop.f32.mrf.mxu0
      %5157 = vmatprep.mubr.bf16.mxu0 0
      %5158 = vmatmul.mubr.bf16.gmra.mxu0 %v5085
      %v5159 = vpop.f32.mrf.mxu0
      %v5160 = vadd.f32 0.0, %v5159
      %v5161 = vpop.f32.mrf.mxu0
      %v5162 = vpop.f32.mrf.mxu0
      %v5163 = vadd.f32 0.0, %v5162
      %v5164 = vpop.f32.mrf.mxu0
      %5165 = vmatprep.mubr.bf16.mxu0 0
      %5166 = vmatmul.mubr.bf16.gmra.mxu0 %v5088
      %v5167 = vpop.f32.mrf.mxu0
      %v5168 = vadd.f32 0.0, %v5167
      %v5169 = vpop.f32.mrf.mxu0
      %v5170 = vpop.f32.mrf.mxu0
      %v5171 = vadd.f32 0.0, %v5170
      %v5172 = vpop.f32.mrf.mxu0
      %5173 = vmatprep.mubr.bf16.mxu0 0
      %5174 = vmatmul.mubr.bf16.gmra.mxu0 %v5091
      %v5175 = vpop.f32.mrf.mxu0
      %v5176 = vadd.f32 0.0, %v5175
      %v5177 = vpop.f32.mrf.mxu0
      %v5178 = vpop.f32.mrf.mxu0
      %v5179 = vadd.f32 0.0, %v5178
      %v5180 = vpop.f32.mrf.mxu0
      %5181 = vdwg.mxu0
      %v5182 = vpack.c.bf16 %v5131, %v5128
      %v5183 = vpack.c.bf16 %v5139, %v5136
      %v5184 = vpack.c.bf16 %v5147, %v5144
      %v5185 = vpack.c.bf16 %v5155, %v5152
      %v5186 = vpack.c.bf16 %v5163, %v5160
      %v5187 = vpack.c.bf16 %v5171, %v5168
      %v5188 = vpack.c.bf16 %v5179, %v5176
      %s5189 = scalar_lea.vmem %s16, 112
      %v5190 = vld [vmem:[%s5189] sm:$0xf]
      %v5191 = vld [vmem:[%s5189 + $0x4] sm:$0xf]
      %v5192 = vld [vmem:[%s5189 + $0x8] sm:$0xf]
      %v5193 = vld [vmem:[%s5189 + $0xc] sm:$0xf]
      %v5194 = vld [vmem:[%s5189 + $0x10] sm:$0xf]
      %v5195 = vld [vmem:[%s5189 + $0x14] sm:$0xf]
      %v5196 = vld [vmem:[%s5189 + $0x18] sm:$0xf]
      %v5197 = vld [vmem:[%s5189 + $0x1c] sm:$0xf]
      %v5198 = vld [vmem:[%s5189 + $0x20] sm:$0xf]
      %v5199 = vld [vmem:[%s5189 + $0x24] sm:$0xf]
      %v5200 = vld [vmem:[%s5189 + $0x28] sm:$0xf]
      %v5201 = vld [vmem:[%s5189 + $0x2c] sm:$0xf]
      %v5202 = vld [vmem:[%s5189 + $0x30] sm:$0xf]
      %v5203 = vld [vmem:[%s5189 + $0x34] sm:$0xf]
      %v5218 = vunpack.c.l.b16 %v5190
      %v5219 = vunpack.c.l.b16 %v5191
      %v5220 = vunpack.c.l.b16 %v5192
      %v5221 = vunpack.c.l.b16 %v5193
      %v5222 = vunpack.c.l.b16 %v5194
      %v5223 = vunpack.c.l.b16 %v5195
      %v5224 = vunpack.c.l.b16 %v5196
      %v5225 = vunpack.c.l.b16 %v5197
      %v5226 = vunpack.c.l.b16 %v5198
      %v5227 = vunpack.c.l.b16 %v5199
      %v5228 = vunpack.c.l.b16 %v5200
      %v5229 = vunpack.c.l.b16 %v5201
      %v5230 = vunpack.c.l.b16 %v5202
      %v5231 = vunpack.c.l.b16 %v5203
      %v5232 = vpack.c.b16 %v5219, %v5218
      %v5233 = vpack.c.b16 %v5221, %v5220
      %v5234 = vpack.c.b16 %v5223, %v5222
      %v5235 = vpack.c.b16 %v5225, %v5224
      %v5236 = vpack.c.b16 %v5227, %v5226
      %v5237 = vpack.c.b16 %v5229, %v5228
      %v5238 = vpack.c.b16 %v5231, %v5230
      %v5240 = vsel %vm4904, %v5232, 0
      %v5243 = vsel %vm4904, %v5233, 0
      %v5246 = vsel %vm4904, %v5234, 0
      %v5249 = vsel %vm4904, %v5235, 0
      %v5252 = vsel %vm4904, %v5236, 0
      %v5255 = vsel %vm4904, %v5237, 0
      %v5258 = vsel %vm4904, %v5238, 0
      %5260 = vmatprep.subr.bf16.mxu0 0
      %5261 = vmatpush1.bf16.msra.mxu0 0
      %5262 = vmatprep.subr.bf16.mxu0 0
      %5263 = vmatpush1.bf16.msra.mxu0 0
      %5264 = vmatprep.subr.bf16.mxu0 0
      %5265 = vmatpush1.bf16.msra.mxu0 0
      %5266 = vmatprep.subr.bf16.mxu0 0
      %5267 = vmatpush1.bf16.msra.mxu0 0
      %5268 = vmatprep.subr.bf16.mxu0 0
      %5269 = vmatpush1.bf16.msra.mxu0 0
      %5270 = vmatprep.subr.bf16.mxu0 0
      %5271 = vmatpush1.bf16.msra.mxu0 %v4854
      %5272 = vmatprep.subr.bf16.mxu0 0
      %5273 = vmatpush1.bf16.msra.mxu0 %v4853
      %5274 = vmatprep.subr.bf16.mxu0 0
      %5275 = vmatpush1.bf16.msra.mxu0 %v4852
      %5276 = vmatprep.subr.bf16.mxu0 0
      %5277 = vmatpush2.bf16.msra.mxu0 0
      %5278 = vmatprep.subr.bf16.mxu0 0
      %5279 = vmatpush2.bf16.msra.mxu0 0
      %5280 = vmatprep.subr.bf16.mxu0 0
      %5281 = vmatpush2.bf16.msra.mxu0 0
      %5282 = vmatprep.subr.bf16.mxu0 0
      %5283 = vmatpush2.bf16.msra.mxu0 0
      %5284 = vmatprep.subr.bf16.mxu0 0
      %5285 = vmatpush2.bf16.msra.mxu0 0
      %5286 = vmatprep.subr.bf16.mxu0 0
      %5287 = vmatpush2.bf16.msra.mxu0 0
      %5288 = vmatprep.subr.bf16.mxu0 0
      %5289 = vmatpush2.bf16.msra.mxu0 0
      %5290 = vmatprep.subr.bf16.mxu0 0
      %5291 = vmatpush2.bf16.msra.mxu0 0
      %5292 = vmatprep.mubr.bf16.mxu0 0
      %5293 = vmatmul.mubr.bf16.gmra.mxu0 %v5240
      %v5294 = vpop.f32.mrf.mxu0
      %v5295 = vadd.f32 0.0, %v5294
      %v5296 = vpop.f32.mrf.mxu0
      %v5297 = vpop.f32.mrf.mxu0
      %v5298 = vadd.f32 0.0, %v5297
      %v5299 = vpop.f32.mrf.mxu0
      %5300 = vmatprep.mubr.bf16.mxu0 0
      %5301 = vmatmul.mubr.bf16.gmra.mxu0 %v5243
      %v5302 = vpop.f32.mrf.mxu0
      %v5303 = vadd.f32 0.0, %v5302
      %v5304 = vpop.f32.mrf.mxu0
      %v5305 = vpop.f32.mrf.mxu0
      %v5306 = vadd.f32 0.0, %v5305
      %v5307 = vpop.f32.mrf.mxu0
      %5308 = vmatprep.mubr.bf16.mxu0 0
      %5309 = vmatmul.mubr.bf16.gmra.mxu0 %v5246
      %v5310 = vpop.f32.mrf.mxu0
      %v5311 = vadd.f32 0.0, %v5310
      %v5312 = vpop.f32.mrf.mxu0
      %v5313 = vpop.f32.mrf.mxu0
      %v5314 = vadd.f32 0.0, %v5313
      %v5315 = vpop.f32.mrf.mxu0
      %5316 = vmatprep.mubr.bf16.mxu0 0
      %5317 = vmatmul.mubr.bf16.gmra.mxu0 %v5249
      %v5318 = vpop.f32.mrf.mxu0
      %v5319 = vadd.f32 0.0, %v5318
      %v5320 = vpop.f32.mrf.mxu0
      %v5321 = vpop.f32.mrf.mxu0
      %v5322 = vadd.f32 0.0, %v5321
      %v5323 = vpop.f32.mrf.mxu0
      %5324 = vmatprep.mubr.bf16.mxu0 0
      %5325 = vmatmul.mubr.bf16.gmra.mxu0 %v5252
      %v5326 = vpop.f32.mrf.mxu0
      %v5327 = vadd.f32 0.0, %v5326
      %v5328 = vpop.f32.mrf.mxu0
      %v5329 = vpop.f32.mrf.mxu0
      %v5330 = vadd.f32 0.0, %v5329
      %v5331 = vpop.f32.mrf.mxu0
      %5332 = vmatprep.mubr.bf16.mxu0 0
      %5333 = vmatmul.mubr.bf16.gmra.mxu0 %v5255
      %v5334 = vpop.f32.mrf.mxu0
      %v5335 = vadd.f32 0.0, %v5334
      %v5336 = vpop.f32.mrf.mxu0
      %v5337 = vpop.f32.mrf.mxu0
      %v5338 = vadd.f32 0.0, %v5337
      %v5339 = vpop.f32.mrf.mxu0
      %5340 = vmatprep.mubr.bf16.mxu0 0
      %5341 = vmatmul.mubr.bf16.gmra.mxu0 %v5258
      %v5342 = vpop.f32.mrf.mxu0
      %v5343 = vadd.f32 0.0, %v5342
      %v5344 = vpop.f32.mrf.mxu0
      %v5345 = vpop.f32.mrf.mxu0
      %v5346 = vadd.f32 0.0, %v5345
      %v5347 = vpop.f32.mrf.mxu0
      %5348 = vdwg.mxu0
      %v5349 = vpack.c.bf16 %v5298, %v5295
      %v5350 = vpack.c.bf16 %v5306, %v5303
      %v5351 = vpack.c.bf16 %v5314, %v5311
      %v5352 = vpack.c.bf16 %v5322, %v5319
      %v5353 = vpack.c.bf16 %v5330, %v5327
      %v5354 = vpack.c.bf16 %v5338, %v5335
      %v5355 = vpack.c.bf16 %v5346, %v5343
      %s5356 = scalar_lea.vmem %s16, 168
      %v5357 = vld [vmem:[%s5356] sm:$0xf]
      %v5358 = vld [vmem:[%s5356 + $0x4] sm:$0xf]
      %v5359 = vld [vmem:[%s5356 + $0x8] sm:$0xf]
      %v5360 = vld [vmem:[%s5356 + $0xc] sm:$0xf]
      %v5361 = vld [vmem:[%s5356 + $0x10] sm:$0xf]
      %v5362 = vld [vmem:[%s5356 + $0x14] sm:$0xf]
      %v5363 = vld [vmem:[%s5356 + $0x18] sm:$0xf]
      %v5364 = vld [vmem:[%s5356 + $0x1c] sm:$0xf]
      %v5365 = vld [vmem:[%s5356 + $0x20] sm:$0xf]
      %v5366 = vld [vmem:[%s5356 + $0x24] sm:$0xf]
      %v5367 = vld [vmem:[%s5356 + $0x28] sm:$0xf]
      %v5368 = vld [vmem:[%s5356 + $0x2c] sm:$0xf]
      %v5369 = vld [vmem:[%s5356 + $0x30] sm:$0xf]
      %v5370 = vld [vmem:[%s5356 + $0x34] sm:$0xf]
      %v5385 = vunpack.c.l.b16 %v5357
      %v5386 = vunpack.c.l.b16 %v5358
      %v5387 = vunpack.c.l.b16 %v5359
      %v5388 = vunpack.c.l.b16 %v5360
      %v5389 = vunpack.c.l.b16 %v5361
      %v5390 = vunpack.c.l.b16 %v5362
      %v5391 = vunpack.c.l.b16 %v5363
      %v5392 = vunpack.c.l.b16 %v5364
      %v5393 = vunpack.c.l.b16 %v5365
      %v5394 = vunpack.c.l.b16 %v5366
      %v5395 = vunpack.c.l.b16 %v5367
      %v5396 = vunpack.c.l.b16 %v5368
      %v5397 = vunpack.c.l.b16 %v5369
      %v5398 = vunpack.c.l.b16 %v5370
      %v5399 = vpack.c.b16 %v5386, %v5385
      %v5400 = vpack.c.b16 %v5388, %v5387
      %v5401 = vpack.c.b16 %v5390, %v5389
      %v5402 = vpack.c.b16 %v5392, %v5391
      %v5403 = vpack.c.b16 %v5394, %v5393
      %v5404 = vpack.c.b16 %v5396, %v5395
      %v5405 = vpack.c.b16 %v5398, %v5397
      %v5407 = vsel %vm4904, %v5399, 0
      %v5410 = vsel %vm4904, %v5400, 0
      %v5413 = vsel %vm4904, %v5401, 0
      %v5416 = vsel %vm4904, %v5402, 0
      %v5419 = vsel %vm4904, %v5403, 0
      %v5422 = vsel %vm4904, %v5404, 0
      %v5425 = vsel %vm4904, %v5405, 0
      %5427 = vmatprep.subr.bf16.mxu0 0
      %5428 = vmatpush1.bf16.msra.mxu0 0
      %5429 = vmatprep.subr.bf16.mxu0 0
      %5430 = vmatpush1.bf16.msra.mxu0 0
      %5431 = vmatprep.subr.bf16.mxu0 0
      %5432 = vmatpush1.bf16.msra.mxu0 0
      %5433 = vmatprep.subr.bf16.mxu0 0
      %5434 = vmatpush1.bf16.msra.mxu0 0
      %5435 = vmatprep.subr.bf16.mxu0 0
      %5436 = vmatpush1.bf16.msra.mxu0 0
      %5437 = vmatprep.subr.bf16.mxu0 0
      %5438 = vmatpush1.bf16.msra.mxu0 %v4854
      %5439 = vmatprep.subr.bf16.mxu0 0
      %5440 = vmatpush1.bf16.msra.mxu0 %v4853
      %5441 = vmatprep.subr.bf16.mxu0 0
      %5442 = vmatpush1.bf16.msra.mxu0 %v4852
      %5443 = vmatprep.subr.bf16.mxu0 0
      %5444 = vmatpush2.bf16.msra.mxu0 0
      %5445 = vmatprep.subr.bf16.mxu0 0
      %5446 = vmatpush2.bf16.msra.mxu0 0
      %5447 = vmatprep.subr.bf16.mxu0 0
      %5448 = vmatpush2.bf16.msra.mxu0 0
      %5449 = vmatprep.subr.bf16.mxu0 0
      %5450 = vmatpush2.bf16.msra.mxu0 0
      %5451 = vmatprep.subr.bf16.mxu0 0
      %5452 = vmatpush2.bf16.msra.mxu0 0
      %5453 = vmatprep.subr.bf16.mxu0 0
      %5454 = vmatpush2.bf16.msra.mxu0 0
      %5455 = vmatprep.subr.bf16.mxu0 0
      %5456 = vmatpush2.bf16.msra.mxu0 0
      %5457 = vmatprep.subr.bf16.mxu0 0
      %5458 = vmatpush2.bf16.msra.mxu0 0
      %5459 = vmatprep.mubr.bf16.mxu0 0
      %5460 = vmatmul.mubr.bf16.gmra.mxu0 %v5407
      %v5461 = vpop.f32.mrf.mxu0
      %v5462 = vadd.f32 0.0, %v5461
      %v5463 = vpop.f32.mrf.mxu0
      %v5464 = vpop.f32.mrf.mxu0
      %v5465 = vadd.f32 0.0, %v5464
      %v5466 = vpop.f32.mrf.mxu0
      %5467 = vmatprep.mubr.bf16.mxu0 0
      %5468 = vmatmul.mubr.bf16.gmra.mxu0 %v5410
      %v5469 = vpop.f32.mrf.mxu0
      %v5470 = vadd.f32 0.0, %v5469
      %v5471 = vpop.f32.mrf.mxu0
      %v5472 = vpop.f32.mrf.mxu0
      %v5473 = vadd.f32 0.0, %v5472
      %v5474 = vpop.f32.mrf.mxu0
      %5475 = vmatprep.mubr.bf16.mxu0 0
      %5476 = vmatmul.mubr.bf16.gmra.mxu0 %v5413
      %v5477 = vpop.f32.mrf.mxu0
      %v5478 = vadd.f32 0.0, %v5477
      %v5479 = vpop.f32.mrf.mxu0
      %v5480 = vpop.f32.mrf.mxu0
      %v5481 = vadd.f32 0.0, %v5480
      %v5482 = vpop.f32.mrf.mxu0
      %5483 = vmatprep.mubr.bf16.mxu0 0
      %5484 = vmatmul.mubr.bf16.gmra.mxu0 %v5416
      %v5485 = vpop.f32.mrf.mxu0
      %v5486 = vadd.f32 0.0, %v5485
      %v5487 = vpop.f32.mrf.mxu0
      %v5488 = vpop.f32.mrf.mxu0
      %v5489 = vadd.f32 0.0, %v5488
      %v5490 = vpop.f32.mrf.mxu0
      %5491 = vmatprep.mubr.bf16.mxu0 0
      %5492 = vmatmul.mubr.bf16.gmra.mxu0 %v5419
      %v5493 = vpop.f32.mrf.mxu0
      %v5494 = vadd.f32 0.0, %v5493
      %v5495 = vpop.f32.mrf.mxu0
      %v5496 = vpop.f32.mrf.mxu0
      %v5497 = vadd.f32 0.0, %v5496
      %v5498 = vpop.f32.mrf.mxu0
      %5499 = vmatprep.mubr.bf16.mxu0 0
      %5500 = vmatmul.mubr.bf16.gmra.mxu0 %v5422
      %v5501 = vpop.f32.mrf.mxu0
      %v5502 = vadd.f32 0.0, %v5501
      %v5503 = vpop.f32.mrf.mxu0
      %v5504 = vpop.f32.mrf.mxu0
      %v5505 = vadd.f32 0.0, %v5504
      %v5506 = vpop.f32.mrf.mxu0
      %5507 = vmatprep.mubr.bf16.mxu0 0
      %5508 = vmatmul.mubr.bf16.gmra.mxu0 %v5425
      %v5509 = vpop.f32.mrf.mxu0
      %v5510 = vadd.f32 0.0, %v5509
      %v5511 = vpop.f32.mrf.mxu0
      %v5512 = vpop.f32.mrf.mxu0
      %v5513 = vadd.f32 0.0, %v5512
      %v5514 = vpop.f32.mrf.mxu0
      %5515 = vdwg.mxu0
      %v5516 = vpack.c.bf16 %v5465, %v5462
      %v5517 = vpack.c.bf16 %v5473, %v5470
      %v5518 = vpack.c.bf16 %v5481, %v5478
      %v5519 = vpack.c.bf16 %v5489, %v5486
      %v5520 = vpack.c.bf16 %v5497, %v5494
      %v5521 = vpack.c.bf16 %v5505, %v5502
      %v5522 = vpack.c.bf16 %v5513, %v5510
      %s5523 = scalar_lea.vmem %s16, 224
      %v5524 = vld [vmem:[%s5523] sm:$0xf]
      %v5525 = vld [vmem:[%s5523 + $0x4] sm:$0xf]
      %v5526 = vld [vmem:[%s5523 + $0x8] sm:$0xf]
      %v5527 = vld [vmem:[%s5523 + $0xc] sm:$0xf]
      %v5528 = vld [vmem:[%s5523 + $0x10] sm:$0xf]
      %v5529 = vld [vmem:[%s5523 + $0x14] sm:$0xf]
      %v5530 = vld [vmem:[%s5523 + $0x18] sm:$0xf]
      %v5531 = vld [vmem:[%s5523 + $0x1c] sm:$0xf]
      %v5532 = vld [vmem:[%s5523 + $0x20] sm:$0xf]
      %v5533 = vld [vmem:[%s5523 + $0x24] sm:$0xf]
      %v5534 = vld [vmem:[%s5523 + $0x28] sm:$0xf]
      %v5535 = vld [vmem:[%s5523 + $0x2c] sm:$0xf]
      %v5536 = vld [vmem:[%s5523 + $0x30] sm:$0xf]
      %v5537 = vld [vmem:[%s5523 + $0x34] sm:$0xf]
      %v5552 = vunpack.c.l.b16 %v5524
      %v5553 = vunpack.c.l.b16 %v5525
      %v5554 = vunpack.c.l.b16 %v5526
      %v5555 = vunpack.c.l.b16 %v5527
      %v5556 = vunpack.c.l.b16 %v5528
      %v5557 = vunpack.c.l.b16 %v5529
      %v5558 = vunpack.c.l.b16 %v5530
      %v5559 = vunpack.c.l.b16 %v5531
      %v5560 = vunpack.c.l.b16 %v5532
      %v5561 = vunpack.c.l.b16 %v5533
      %v5562 = vunpack.c.l.b16 %v5534
      %v5563 = vunpack.c.l.b16 %v5535
      %v5564 = vunpack.c.l.b16 %v5536
      %v5565 = vunpack.c.l.b16 %v5537
      %v5566 = vpack.c.b16 %v5553, %v5552
      %v5567 = vpack.c.b16 %v5555, %v5554
      %v5568 = vpack.c.b16 %v5557, %v5556
      %v5569 = vpack.c.b16 %v5559, %v5558
      %v5570 = vpack.c.b16 %v5561, %v5560
      %v5571 = vpack.c.b16 %v5563, %v5562
      %v5572 = vpack.c.b16 %v5565, %v5564
      %v5574 = vsel %vm4904, %v5566, 0
      %v5577 = vsel %vm4904, %v5567, 0
      %v5580 = vsel %vm4904, %v5568, 0
      %v5583 = vsel %vm4904, %v5569, 0
      %v5586 = vsel %vm4904, %v5570, 0
      %v5589 = vsel %vm4904, %v5571, 0
      %v5592 = vsel %vm4904, %v5572, 0
      %5594 = vmatprep.subr.bf16.mxu0 0
      %5595 = vmatpush1.bf16.msra.mxu0 0
      %5596 = vmatprep.subr.bf16.mxu0 0
      %5597 = vmatpush1.bf16.msra.mxu0 0
      %5598 = vmatprep.subr.bf16.mxu0 0
      %5599 = vmatpush1.bf16.msra.mxu0 0
      %5600 = vmatprep.subr.bf16.mxu0 0
      %5601 = vmatpush1.bf16.msra.mxu0 0
      %5602 = vmatprep.subr.bf16.mxu0 0
      %5603 = vmatpush1.bf16.msra.mxu0 0
      %5604 = vmatprep.subr.bf16.mxu0 0
      %5605 = vmatpush1.bf16.msra.mxu0 %v4854
      %5606 = vmatprep.subr.bf16.mxu0 0
      %5607 = vmatpush1.bf16.msra.mxu0 %v4853
      %5608 = vmatprep.subr.bf16.mxu0 0
      %5609 = vmatpush1.bf16.msra.mxu0 %v4852
      %5610 = vmatprep.subr.bf16.mxu0 0
      %5611 = vmatpush2.bf16.msra.mxu0 0
      %5612 = vmatprep.subr.bf16.mxu0 0
      %5613 = vmatpush2.bf16.msra.mxu0 0
      %5614 = vmatprep.subr.bf16.mxu0 0
      %5615 = vmatpush2.bf16.msra.mxu0 0
      %5616 = vmatprep.subr.bf16.mxu0 0
      %5617 = vmatpush2.bf16.msra.mxu0 0
      %5618 = vmatprep.subr.bf16.mxu0 0
      %5619 = vmatpush2.bf16.msra.mxu0 0
      %5620 = vmatprep.subr.bf16.mxu0 0
      %5621 = vmatpush2.bf16.msra.mxu0 0
      %5622 = vmatprep.subr.bf16.mxu0 0
      %5623 = vmatpush2.bf16.msra.mxu0 0
      %5624 = vmatprep.subr.bf16.mxu0 0
      %5625 = vmatpush2.bf16.msra.mxu0 0
      %5626 = vmatprep.mubr.bf16.mxu0 0
      %5627 = vmatmul.mubr.bf16.gmra.mxu0 %v5574
      %v5628 = vpop.f32.mrf.mxu0
      %v5629 = vadd.f32 0.0, %v5628
      %v5630 = vpop.f32.mrf.mxu0
      %v5631 = vpop.f32.mrf.mxu0
      %v5632 = vadd.f32 0.0, %v5631
      %v5633 = vpop.f32.mrf.mxu0
      %5634 = vmatprep.mubr.bf16.mxu0 0
      %5635 = vmatmul.mubr.bf16.gmra.mxu0 %v5577
      %v5636 = vpop.f32.mrf.mxu0
      %v5637 = vadd.f32 0.0, %v5636
      %v5638 = vpop.f32.mrf.mxu0
      %v5639 = vpop.f32.mrf.mxu0
      %v5640 = vadd.f32 0.0, %v5639
      %v5641 = vpop.f32.mrf.mxu0
      %5642 = vmatprep.mubr.bf16.mxu0 0
      %5643 = vmatmul.mubr.bf16.gmra.mxu0 %v5580
      %v5644 = vpop.f32.mrf.mxu0
      %v5645 = vadd.f32 0.0, %v5644
      %v5646 = vpop.f32.mrf.mxu0
      %v5647 = vpop.f32.mrf.mxu0
      %v5648 = vadd.f32 0.0, %v5647
      %v5649 = vpop.f32.mrf.mxu0
      %5650 = vmatprep.mubr.bf16.mxu0 0
      %5651 = vmatmul.mubr.bf16.gmra.mxu0 %v5583
      %v5652 = vpop.f32.mrf.mxu0
      %v5653 = vadd.f32 0.0, %v5652
      %v5654 = vpop.f32.mrf.mxu0
      %v5655 = vpop.f32.mrf.mxu0
      %v5656 = vadd.f32 0.0, %v5655
      %v5657 = vpop.f32.mrf.mxu0
      %5658 = vmatprep.mubr.bf16.mxu0 0
      %5659 = vmatmul.mubr.bf16.gmra.mxu0 %v5586
      %v5660 = vpop.f32.mrf.mxu0
      %v5661 = vadd.f32 0.0, %v5660
      %v5662 = vpop.f32.mrf.mxu0
      %v5663 = vpop.f32.mrf.mxu0
      %v5664 = vadd.f32 0.0, %v5663
      %v5665 = vpop.f32.mrf.mxu0
      %5666 = vmatprep.mubr.bf16.mxu0 0
      %5667 = vmatmul.mubr.bf16.gmra.mxu0 %v5589
      %v5668 = vpop.f32.mrf.mxu0
      %v5669 = vadd.f32 0.0, %v5668
      %v5670 = vpop.f32.mrf.mxu0
      %v5671 = vpop.f32.mrf.mxu0
      %v5672 = vadd.f32 0.0, %v5671
      %v5673 = vpop.f32.mrf.mxu0
      %5674 = vmatprep.mubr.bf16.mxu0 0
      %5675 = vmatmul.mubr.bf16.gmra.mxu0 %v5592
      %v5676 = vpop.f32.mrf.mxu0
      %v5677 = vadd.f32 0.0, %v5676
      %v5678 = vpop.f32.mrf.mxu0
      %v5679 = vpop.f32.mrf.mxu0
      %v5680 = vadd.f32 0.0, %v5679
      %v5681 = vpop.f32.mrf.mxu0
      %5682 = vdwg.mxu0
      %v5683 = vpack.c.bf16 %v5632, %v5629
      %v5684 = vpack.c.bf16 %v5640, %v5637
      %v5685 = vpack.c.bf16 %v5648, %v5645
      %v5686 = vpack.c.bf16 %v5656, %v5653
      %v5687 = vpack.c.bf16 %v5664, %v5661
      %v5688 = vpack.c.bf16 %v5672, %v5669
      %v5689 = vpack.c.bf16 %v5680, %v5677
      %s5690 = scalar_lea.vmem %s16, 280
      %v5691 = vld [vmem:[%s5690] sm:$0xf]
      %v5692 = vld [vmem:[%s5690 + $0x4] sm:$0xf]
      %v5693 = vld [vmem:[%s5690 + $0x8] sm:$0xf]
      %v5694 = vld [vmem:[%s5690 + $0xc] sm:$0xf]
      %v5695 = vld [vmem:[%s5690 + $0x10] sm:$0xf]
      %v5696 = vld [vmem:[%s5690 + $0x14] sm:$0xf]
      %v5697 = vld [vmem:[%s5690 + $0x18] sm:$0xf]
      %v5698 = vld [vmem:[%s5690 + $0x1c] sm:$0xf]
      %v5699 = vld [vmem:[%s5690 + $0x20] sm:$0xf]
      %v5700 = vld [vmem:[%s5690 + $0x24] sm:$0xf]
      %v5701 = vld [vmem:[%s5690 + $0x28] sm:$0xf]
      %v5702 = vld [vmem:[%s5690 + $0x2c] sm:$0xf]
      %v5703 = vld [vmem:[%s5690 + $0x30] sm:$0xf]
      %v5704 = vld [vmem:[%s5690 + $0x34] sm:$0xf]
      %v5719 = vunpack.c.l.b16 %v5691
      %v5720 = vunpack.c.l.b16 %v5692
      %v5721 = vunpack.c.l.b16 %v5693
      %v5722 = vunpack.c.l.b16 %v5694
      %v5723 = vunpack.c.l.b16 %v5695
      %v5724 = vunpack.c.l.b16 %v5696
      %v5725 = vunpack.c.l.b16 %v5697
      %v5726 = vunpack.c.l.b16 %v5698
      %v5727 = vunpack.c.l.b16 %v5699
      %v5728 = vunpack.c.l.b16 %v5700
      %v5729 = vunpack.c.l.b16 %v5701
      %v5730 = vunpack.c.l.b16 %v5702
      %v5731 = vunpack.c.l.b16 %v5703
      %v5732 = vunpack.c.l.b16 %v5704
      %v5733 = vpack.c.b16 %v5720, %v5719
      %v5734 = vpack.c.b16 %v5722, %v5721
      %v5735 = vpack.c.b16 %v5724, %v5723
      %v5736 = vpack.c.b16 %v5726, %v5725
      %v5737 = vpack.c.b16 %v5728, %v5727
      %v5738 = vpack.c.b16 %v5730, %v5729
      %v5739 = vpack.c.b16 %v5732, %v5731
      %v5741 = vsel %vm4904, %v5733, 0
      %v5744 = vsel %vm4904, %v5734, 0
      %v5747 = vsel %vm4904, %v5735, 0
      %v5750 = vsel %vm4904, %v5736, 0
      %v5753 = vsel %vm4904, %v5737, 0
      %v5756 = vsel %vm4904, %v5738, 0
      %v5759 = vsel %vm4904, %v5739, 0
      %5761 = vmatprep.subr.bf16.mxu0 0
      %5762 = vmatpush1.bf16.msra.mxu0 0
      %5763 = vmatprep.subr.bf16.mxu0 0
      %5764 = vmatpush1.bf16.msra.mxu0 0
      %5765 = vmatprep.subr.bf16.mxu0 0
      %5766 = vmatpush1.bf16.msra.mxu0 0
      %5767 = vmatprep.subr.bf16.mxu0 0
      %5768 = vmatpush1.bf16.msra.mxu0 0
      %5769 = vmatprep.subr.bf16.mxu0 0
      %5770 = vmatpush1.bf16.msra.mxu0 0
      %5771 = vmatprep.subr.bf16.mxu0 0
      %5772 = vmatpush1.bf16.msra.mxu0 %v4854
      %5773 = vmatprep.subr.bf16.mxu0 0
      %5774 = vmatpush1.bf16.msra.mxu0 %v4853
      %5775 = vmatprep.subr.bf16.mxu0 0
      %5776 = vmatpush1.bf16.msra.mxu0 %v4852
      %5777 = vmatprep.subr.bf16.mxu0 0
      %5778 = vmatpush2.bf16.msra.mxu0 0
      %5779 = vmatprep.subr.bf16.mxu0 0
      %5780 = vmatpush2.bf16.msra.mxu0 0
      %5781 = vmatprep.subr.bf16.mxu0 0
      %5782 = vmatpush2.bf16.msra.mxu0 0
      %5783 = vmatprep.subr.bf16.mxu0 0
      %5784 = vmatpush2.bf16.msra.mxu0 0
      %5785 = vmatprep.subr.bf16.mxu0 0
      %5786 = vmatpush2.bf16.msra.mxu0 0
      %5787 = vmatprep.subr.bf16.mxu0 0
      %5788 = vmatpush2.bf16.msra.mxu0 0
      %5789 = vmatprep.subr.bf16.mxu0 0
      %5790 = vmatpush2.bf16.msra.mxu0 0
      %5791 = vmatprep.subr.bf16.mxu0 0
      %5792 = vmatpush2.bf16.msra.mxu0 0
      %5793 = vmatprep.mubr.bf16.mxu0 0
      %5794 = vmatmul.mubr.bf16.gmra.mxu0 %v5741
      %v5795 = vpop.f32.mrf.mxu0
      %v5796 = vadd.f32 0.0, %v5795
      %v5797 = vpop.f32.mrf.mxu0
      %v5798 = vpop.f32.mrf.mxu0
      %v5799 = vadd.f32 0.0, %v5798
      %v5800 = vpop.f32.mrf.mxu0
      %5801 = vmatprep.mubr.bf16.mxu0 0
      %5802 = vmatmul.mubr.bf16.gmra.mxu0 %v5744
      %v5803 = vpop.f32.mrf.mxu0
      %v5804 = vadd.f32 0.0, %v5803
      %v5805 = vpop.f32.mrf.mxu0
      %v5806 = vpop.f32.mrf.mxu0
      %v5807 = vadd.f32 0.0, %v5806
      %v5808 = vpop.f32.mrf.mxu0
      %5809 = vmatprep.mubr.bf16.mxu0 0
      %5810 = vmatmul.mubr.bf16.gmra.mxu0 %v5747
      %v5811 = vpop.f32.mrf.mxu0
      %v5812 = vadd.f32 0.0, %v5811
      %v5813 = vpop.f32.mrf.mxu0
      %v5814 = vpop.f32.mrf.mxu0
      %v5815 = vadd.f32 0.0, %v5814
      %v5816 = vpop.f32.mrf.mxu0
      %5817 = vmatprep.mubr.bf16.mxu0 0
      %5818 = vmatmul.mubr.bf16.gmra.mxu0 %v5750
      %v5819 = vpop.f32.mrf.mxu0
      %v5820 = vadd.f32 0.0, %v5819
      %v5821 = vpop.f32.mrf.mxu0
      %v5822 = vpop.f32.mrf.mxu0
      %v5823 = vadd.f32 0.0, %v5822
      %v5824 = vpop.f32.mrf.mxu0
      %5825 = vmatprep.mubr.bf16.mxu0 0
      %5826 = vmatmul.mubr.bf16.gmra.mxu0 %v5753
      %v5827 = vpop.f32.mrf.mxu0
      %v5828 = vadd.f32 0.0, %v5827
      %v5829 = vpop.f32.mrf.mxu0
      %v5830 = vpop.f32.mrf.mxu0
      %v5831 = vadd.f32 0.0, %v5830
      %v5832 = vpop.f32.mrf.mxu0
      %5833 = vmatprep.mubr.bf16.mxu0 0
      %5834 = vmatmul.mubr.bf16.gmra.mxu0 %v5756
      %v5835 = vpop.f32.mrf.mxu0
      %v5836 = vadd.f32 0.0, %v5835
      %v5837 = vpop.f32.mrf.mxu0
      %v5838 = vpop.f32.mrf.mxu0
      %v5839 = vadd.f32 0.0, %v5838
      %v5840 = vpop.f32.mrf.mxu0
      %5841 = vmatprep.mubr.bf16.mxu0 0
      %5842 = vmatmul.mubr.bf16.gmra.mxu0 %v5759
      %v5843 = vpop.f32.mrf.mxu0
      %v5844 = vadd.f32 0.0, %v5843
      %v5845 = vpop.f32.mrf.mxu0
      %v5846 = vpop.f32.mrf.mxu0
      %v5847 = vadd.f32 0.0, %v5846
      %v5848 = vpop.f32.mrf.mxu0
      %5849 = vdwg.mxu0
      %v5850 = vpack.c.bf16 %v5799, %v5796
      %v5851 = vpack.c.bf16 %v5807, %v5804
      %v5852 = vpack.c.bf16 %v5815, %v5812
      %v5853 = vpack.c.bf16 %v5823, %v5820
      %v5854 = vpack.c.bf16 %v5831, %v5828
      %v5855 = vpack.c.bf16 %v5839, %v5836
      %v5856 = vpack.c.bf16 %v5847, %v5844
      %s5857 = scalar_lea.vmem %s16, 336
      %v5858 = vld [vmem:[%s5857] sm:$0xf]
      %v5859 = vld [vmem:[%s5857 + $0x4] sm:$0xf]
      %v5860 = vld [vmem:[%s5857 + $0x8] sm:$0xf]
      %v5861 = vld [vmem:[%s5857 + $0xc] sm:$0xf]
      %v5862 = vld [vmem:[%s5857 + $0x10] sm:$0xf]
      %v5863 = vld [vmem:[%s5857 + $0x14] sm:$0xf]
      %v5864 = vld [vmem:[%s5857 + $0x18] sm:$0xf]
      %v5865 = vld [vmem:[%s5857 + $0x1c] sm:$0xf]
      %v5866 = vld [vmem:[%s5857 + $0x20] sm:$0xf]
      %v5867 = vld [vmem:[%s5857 + $0x24] sm:$0xf]
      %v5868 = vld [vmem:[%s5857 + $0x28] sm:$0xf]
      %v5869 = vld [vmem:[%s5857 + $0x2c] sm:$0xf]
      %v5870 = vld [vmem:[%s5857 + $0x30] sm:$0xf]
      %v5871 = vld [vmem:[%s5857 + $0x34] sm:$0xf]
      %v5886 = vunpack.c.l.b16 %v5858
      %v5887 = vunpack.c.l.b16 %v5859
      %v5888 = vunpack.c.l.b16 %v5860
      %v5889 = vunpack.c.l.b16 %v5861
      %v5890 = vunpack.c.l.b16 %v5862
      %v5891 = vunpack.c.l.b16 %v5863
      %v5892 = vunpack.c.l.b16 %v5864
      %v5893 = vunpack.c.l.b16 %v5865
      %v5894 = vunpack.c.l.b16 %v5866
      %v5895 = vunpack.c.l.b16 %v5867
      %v5896 = vunpack.c.l.b16 %v5868
      %v5897 = vunpack.c.l.b16 %v5869
      %v5898 = vunpack.c.l.b16 %v5870
      %v5899 = vunpack.c.l.b16 %v5871
      %v5900 = vpack.c.b16 %v5887, %v5886
      %v5901 = vpack.c.b16 %v5889, %v5888
      %v5902 = vpack.c.b16 %v5891, %v5890
      %v5903 = vpack.c.b16 %v5893, %v5892
      %v5904 = vpack.c.b16 %v5895, %v5894
      %v5905 = vpack.c.b16 %v5897, %v5896
      %v5906 = vpack.c.b16 %v5899, %v5898
      %v5908 = vsel %vm4904, %v5900, 0
      %v5911 = vsel %vm4904, %v5901, 0
      %v5914 = vsel %vm4904, %v5902, 0
      %v5917 = vsel %vm4904, %v5903, 0
      %v5920 = vsel %vm4904, %v5904, 0
      %v5923 = vsel %vm4904, %v5905, 0
      %v5926 = vsel %vm4904, %v5906, 0
      %5928 = vmatprep.subr.bf16.mxu0 0
      %5929 = vmatpush1.bf16.msra.mxu0 0
      %5930 = vmatprep.subr.bf16.mxu0 0
      %5931 = vmatpush1.bf16.msra.mxu0 0
      %5932 = vmatprep.subr.bf16.mxu0 0
      %5933 = vmatpush1.bf16.msra.mxu0 0
      %5934 = vmatprep.subr.bf16.mxu0 0
      %5935 = vmatpush1.bf16.msra.mxu0 0
      %5936 = vmatprep.subr.bf16.mxu0 0
      %5937 = vmatpush1.bf16.msra.mxu0 0
      %5938 = vmatprep.subr.bf16.mxu0 0
      %5939 = vmatpush1.bf16.msra.mxu0 %v4854
      %5940 = vmatprep.subr.bf16.mxu0 0
      %5941 = vmatpush1.bf16.msra.mxu0 %v4853
      %5942 = vmatprep.subr.bf16.mxu0 0
      %5943 = vmatpush1.bf16.msra.mxu0 %v4852
      %5944 = vmatprep.subr.bf16.mxu0 0
      %5945 = vmatpush2.bf16.msra.mxu0 0
      %5946 = vmatprep.subr.bf16.mxu0 0
      %5947 = vmatpush2.bf16.msra.mxu0 0
      %5948 = vmatprep.subr.bf16.mxu0 0
      %5949 = vmatpush2.bf16.msra.mxu0 0
      %5950 = vmatprep.subr.bf16.mxu0 0
      %5951 = vmatpush2.bf16.msra.mxu0 0
      %5952 = vmatprep.subr.bf16.mxu0 0
      %5953 = vmatpush2.bf16.msra.mxu0 0
      %5954 = vmatprep.subr.bf16.mxu0 0
      %5955 = vmatpush2.bf16.msra.mxu0 0
      %5956 = vmatprep.subr.bf16.mxu0 0
      %5957 = vmatpush2.bf16.msra.mxu0 0
      %5958 = vmatprep.subr.bf16.mxu0 0
      %5959 = vmatpush2.bf16.msra.mxu0 0
      %5960 = vmatprep.mubr.bf16.mxu0 0
      %5961 = vmatmul.mubr.bf16.gmra.mxu0 %v5908
      %v5962 = vpop.f32.mrf.mxu0
      %v5963 = vadd.f32 0.0, %v5962
      %v5964 = vpop.f32.mrf.mxu0
      %v5965 = vpop.f32.mrf.mxu0
      %v5966 = vadd.f32 0.0, %v5965
      %v5967 = vpop.f32.mrf.mxu0
      %5968 = vmatprep.mubr.bf16.mxu0 0
      %5969 = vmatmul.mubr.bf16.gmra.mxu0 %v5911
      %v5970 = vpop.f32.mrf.mxu0
      %v5971 = vadd.f32 0.0, %v5970
      %v5972 = vpop.f32.mrf.mxu0
      %v5973 = vpop.f32.mrf.mxu0
      %v5974 = vadd.f32 0.0, %v5973
      %v5975 = vpop.f32.mrf.mxu0
      %5976 = vmatprep.mubr.bf16.mxu0 0
      %5977 = vmatmul.mubr.bf16.gmra.mxu0 %v5914
      %v5978 = vpop.f32.mrf.mxu0
      %v5979 = vadd.f32 0.0, %v5978
      %v5980 = vpop.f32.mrf.mxu0
      %v5981 = vpop.f32.mrf.mxu0
      %v5982 = vadd.f32 0.0, %v5981
      %v5983 = vpop.f32.mrf.mxu0
      %5984 = vmatprep.mubr.bf16.mxu0 0
      %5985 = vmatmul.mubr.bf16.gmra.mxu0 %v5917
      %v5986 = vpop.f32.mrf.mxu0
      %v5987 = vadd.f32 0.0, %v5986
      %v5988 = vpop.f32.mrf.mxu0
      %v5989 = vpop.f32.mrf.mxu0
      %v5990 = vadd.f32 0.0, %v5989
      %v5991 = vpop.f32.mrf.mxu0
      %5992 = vmatprep.mubr.bf16.mxu0 0
      %5993 = vmatmul.mubr.bf16.gmra.mxu0 %v5920
      %v5994 = vpop.f32.mrf.mxu0
      %v5995 = vadd.f32 0.0, %v5994
      %v5996 = vpop.f32.mrf.mxu0
      %v5997 = vpop.f32.mrf.mxu0
      %v5998 = vadd.f32 0.0, %v5997
      %v5999 = vpop.f32.mrf.mxu0
      %6000 = vmatprep.mubr.bf16.mxu0 0
      %6001 = vmatmul.mubr.bf16.gmra.mxu0 %v5923
      %v6002 = vpop.f32.mrf.mxu0
      %v6003 = vadd.f32 0.0, %v6002
      %v6004 = vpop.f32.mrf.mxu0
      %v6005 = vpop.f32.mrf.mxu0
      %v6006 = vadd.f32 0.0, %v6005
      %v6007 = vpop.f32.mrf.mxu0
      %6008 = vmatprep.mubr.bf16.mxu0 0
      %6009 = vmatmul.mubr.bf16.gmra.mxu0 %v5926
      %v6010 = vpop.f32.mrf.mxu0
      %v6011 = vadd.f32 0.0, %v6010
      %v6012 = vpop.f32.mrf.mxu0
      %v6013 = vpop.f32.mrf.mxu0
      %v6014 = vadd.f32 0.0, %v6013
      %v6015 = vpop.f32.mrf.mxu0
      %6016 = vdwg.mxu0
      %v6017 = vpack.c.bf16 %v5966, %v5963
      %v6018 = vpack.c.bf16 %v5974, %v5971
      %v6019 = vpack.c.bf16 %v5982, %v5979
      %v6020 = vpack.c.bf16 %v5990, %v5987
      %v6021 = vpack.c.bf16 %v5998, %v5995
      %v6022 = vpack.c.bf16 %v6006, %v6003
      %v6023 = vpack.c.bf16 %v6014, %v6011
      %s6024 = scalar_lea.vmem %s16, 392
      %v6025 = vld [vmem:[%s6024] sm:$0xf]
      %v6026 = vld [vmem:[%s6024 + $0x4] sm:$0xf]
      %v6027 = vld [vmem:[%s6024 + $0x8] sm:$0xf]
      %v6028 = vld [vmem:[%s6024 + $0xc] sm:$0xf]
      %v6029 = vld [vmem:[%s6024 + $0x10] sm:$0xf]
      %v6030 = vld [vmem:[%s6024 + $0x14] sm:$0xf]
      %v6031 = vld [vmem:[%s6024 + $0x18] sm:$0xf]
      %v6032 = vld [vmem:[%s6024 + $0x1c] sm:$0xf]
      %v6033 = vld [vmem:[%s6024 + $0x20] sm:$0xf]
      %v6034 = vld [vmem:[%s6024 + $0x24] sm:$0xf]
      %v6035 = vld [vmem:[%s6024 + $0x28] sm:$0xf]
      %v6036 = vld [vmem:[%s6024 + $0x2c] sm:$0xf]
      %v6037 = vld [vmem:[%s6024 + $0x30] sm:$0xf]
      %v6038 = vld [vmem:[%s6024 + $0x34] sm:$0xf]
      %v6053 = vunpack.c.l.b16 %v6025
      %v6054 = vunpack.c.l.b16 %v6026
      %v6055 = vunpack.c.l.b16 %v6027
      %v6056 = vunpack.c.l.b16 %v6028
      %v6057 = vunpack.c.l.b16 %v6029
      %v6058 = vunpack.c.l.b16 %v6030
      %v6059 = vunpack.c.l.b16 %v6031
      %v6060 = vunpack.c.l.b16 %v6032
      %v6061 = vunpack.c.l.b16 %v6033
      %v6062 = vunpack.c.l.b16 %v6034
      %v6063 = vunpack.c.l.b16 %v6035
      %v6064 = vunpack.c.l.b16 %v6036
      %v6065 = vunpack.c.l.b16 %v6037
      %v6066 = vunpack.c.l.b16 %v6038
      %v6067 = vpack.c.b16 %v6054, %v6053
      %v6068 = vpack.c.b16 %v6056, %v6055
      %v6069 = vpack.c.b16 %v6058, %v6057
      %v6070 = vpack.c.b16 %v6060, %v6059
      %v6071 = vpack.c.b16 %v6062, %v6061
      %v6072 = vpack.c.b16 %v6064, %v6063
      %v6073 = vpack.c.b16 %v6066, %v6065
      %v6075 = vsel %vm4904, %v6067, 0
      %v6078 = vsel %vm4904, %v6068, 0
      %v6081 = vsel %vm4904, %v6069, 0
      %v6084 = vsel %vm4904, %v6070, 0
      %v6087 = vsel %vm4904, %v6071, 0
      %v6090 = vsel %vm4904, %v6072, 0
      %v6093 = vsel %vm4904, %v6073, 0
      %6095 = vmatprep.subr.bf16.mxu0 0
      %6096 = vmatpush1.bf16.msra.mxu0 0
      %6097 = vmatprep.subr.bf16.mxu0 0
      %6098 = vmatpush1.bf16.msra.mxu0 0
      %6099 = vmatprep.subr.bf16.mxu0 0
      %6100 = vmatpush1.bf16.msra.mxu0 0
      %6101 = vmatprep.subr.bf16.mxu0 0
      %6102 = vmatpush1.bf16.msra.mxu0 0
      %6103 = vmatprep.subr.bf16.mxu0 0
      %6104 = vmatpush1.bf16.msra.mxu0 0
      %6105 = vmatprep.subr.bf16.mxu0 0
      %6106 = vmatpush1.bf16.msra.mxu0 %v4854
      %6107 = vmatprep.subr.bf16.mxu0 0
      %6108 = vmatpush1.bf16.msra.mxu0 %v4853
      %6109 = vmatprep.subr.bf16.mxu0 0
      %6110 = vmatpush1.bf16.msra.mxu0 %v4852
      %6111 = vmatprep.subr.bf16.mxu0 0
      %6112 = vmatpush2.bf16.msra.mxu0 0
      %6113 = vmatprep.subr.bf16.mxu0 0
      %6114 = vmatpush2.bf16.msra.mxu0 0
      %6115 = vmatprep.subr.bf16.mxu0 0
      %6116 = vmatpush2.bf16.msra.mxu0 0
      %6117 = vmatprep.subr.bf16.mxu0 0
      %6118 = vmatpush2.bf16.msra.mxu0 0
      %6119 = vmatprep.subr.bf16.mxu0 0
      %6120 = vmatpush2.bf16.msra.mxu0 0
      %6121 = vmatprep.subr.bf16.mxu0 0
      %6122 = vmatpush2.bf16.msra.mxu0 0
      %6123 = vmatprep.subr.bf16.mxu0 0
      %6124 = vmatpush2.bf16.msra.mxu0 0
      %6125 = vmatprep.subr.bf16.mxu0 0
      %6126 = vmatpush2.bf16.msra.mxu0 0
      %6127 = vmatprep.mubr.bf16.mxu0 0
      %6128 = vmatmul.mubr.bf16.gmra.mxu0 %v6075
      %v6129 = vpop.f32.mrf.mxu0
      %v6130 = vadd.f32 0.0, %v6129
      %v6131 = vpop.f32.mrf.mxu0
      %v6132 = vpop.f32.mrf.mxu0
      %v6133 = vadd.f32 0.0, %v6132
      %v6134 = vpop.f32.mrf.mxu0
      %6135 = vmatprep.mubr.bf16.mxu0 0
      %6136 = vmatmul.mubr.bf16.gmra.mxu0 %v6078
      %v6137 = vpop.f32.mrf.mxu0
      %v6138 = vadd.f32 0.0, %v6137
      %v6139 = vpop.f32.mrf.mxu0
      %v6140 = vpop.f32.mrf.mxu0
      %v6141 = vadd.f32 0.0, %v6140
      %v6142 = vpop.f32.mrf.mxu0
      %6143 = vmatprep.mubr.bf16.mxu0 0
      %6144 = vmatmul.mubr.bf16.gmra.mxu0 %v6081
      %v6145 = vpop.f32.mrf.mxu0
      %v6146 = vadd.f32 0.0, %v6145
      %v6147 = vpop.f32.mrf.mxu0
      %v6148 = vpop.f32.mrf.mxu0
      %v6149 = vadd.f32 0.0, %v6148
      %v6150 = vpop.f32.mrf.mxu0
      %6151 = vmatprep.mubr.bf16.mxu0 0
      %6152 = vmatmul.mubr.bf16.gmra.mxu0 %v6084
      %v6153 = vpop.f32.mrf.mxu0
      %v6154 = vadd.f32 0.0, %v6153
      %v6155 = vpop.f32.mrf.mxu0
      %v6156 = vpop.f32.mrf.mxu0
      %v6157 = vadd.f32 0.0, %v6156
      %v6158 = vpop.f32.mrf.mxu0
      %6159 = vmatprep.mubr.bf16.mxu0 0
      %6160 = vmatmul.mubr.bf16.gmra.mxu0 %v6087
      %v6161 = vpop.f32.mrf.mxu0
      %v6162 = vadd.f32 0.0, %v6161
      %v6163 = vpop.f32.mrf.mxu0
      %v6164 = vpop.f32.mrf.mxu0
      %v6165 = vadd.f32 0.0, %v6164
      %v6166 = vpop.f32.mrf.mxu0
      %6167 = vmatprep.mubr.bf16.mxu0 0
      %6168 = vmatmul.mubr.bf16.gmra.mxu0 %v6090
      %v6169 = vpop.f32.mrf.mxu0
      %v6170 = vadd.f32 0.0, %v6169
      %v6171 = vpop.f32.mrf.mxu0
      %v6172 = vpop.f32.mrf.mxu0
      %v6173 = vadd.f32 0.0, %v6172
      %v6174 = vpop.f32.mrf.mxu0
      %6175 = vmatprep.mubr.bf16.mxu0 0
      %6176 = vmatmul.mubr.bf16.gmra.mxu0 %v6093
      %v6177 = vpop.f32.mrf.mxu0
      %v6178 = vadd.f32 0.0, %v6177
      %v6179 = vpop.f32.mrf.mxu0
      %v6180 = vpop.f32.mrf.mxu0
      %v6181 = vadd.f32 0.0, %v6180
      %v6182 = vpop.f32.mrf.mxu0
      %6183 = vdwg.mxu0
      %v6184 = vpack.c.bf16 %v6133, %v6130
      %v6185 = vpack.c.bf16 %v6141, %v6138
      %v6186 = vpack.c.bf16 %v6149, %v6146
      %v6187 = vpack.c.bf16 %v6157, %v6154
      %v6188 = vpack.c.bf16 %v6165, %v6162
      %v6189 = vpack.c.bf16 %v6173, %v6170
      %v6190 = vpack.c.bf16 %v6181, %v6178
      %v6191 = vld [vmem:[%s17] sm:$0xf]
      %v6192 = vld [vmem:[%s17 + $0x4] sm:$0xf]
      %v6193 = vld [vmem:[%s17 + $0x8] sm:$0xf]
      %v6194 = vld [vmem:[%s17 + $0xc] sm:$0xf]
      %v6195 = vld [vmem:[%s17 + $0x10] sm:$0xf]
      %v6196 = vld [vmem:[%s17 + $0x14] sm:$0xf]
      %v6197 = vld [vmem:[%s17 + $0x18] sm:$0xf]
      %v6198 = vld [vmem:[%s17 + $0x1c] sm:$0xf]
      %v6199 = vld [vmem:[%s17 + $0x20] sm:$0xf]
      %v6200 = vld [vmem:[%s17 + $0x24] sm:$0xf]
      %v6201 = vld [vmem:[%s17 + $0x28] sm:$0xf]
      %v6202 = vld [vmem:[%s17 + $0x2c] sm:$0xf]
      %v6203 = vld [vmem:[%s17 + $0x30] sm:$0xf]
      %v6204 = vld [vmem:[%s17 + $0x34] sm:$0xf]
      %v6205 = vld [vmem:[%s17 + $0x38] sm:$0xf]
      %v6206 = vld [vmem:[%s17 + $0x3c] sm:$0xf]
      %v6207 = vld [vmem:[%s17 + $0x40] sm:$0xf]
      %v6208 = vld [vmem:[%s17 + $0x44] sm:$0xf]
      %v6209 = vld [vmem:[%s17 + $0x48] sm:$0xf]
      %v6210 = vld [vmem:[%s17 + $0x4c] sm:$0xf]
      %v6211 = vld [vmem:[%s17 + $0x50] sm:$0xf]
      %v6212 = vld [vmem:[%s17 + $0x54] sm:$0xf]
      %v6213 = vld [vmem:[%s17 + $0x58] sm:$0xf]
      %v6214 = vld [vmem:[%s17 + $0x5c] sm:$0xf]
      %v6215 = vld [vmem:[%s17 + $0x60] sm:$0xf]
      %v6216 = vld [vmem:[%s17 + $0x64] sm:$0xf]
      %v6217 = vld [vmem:[%s17 + $0x68] sm:$0xf]
      %v6218 = vld [vmem:[%s17 + $0x6c] sm:$0xf]
      %v6219 = vld [vmem:[%s17 + $0x70] sm:$0xf]
      %v6220 = vld [vmem:[%s17 + $0x74] sm:$0xf]
      %v6221 = vld [vmem:[%s17 + $0x78] sm:$0xf]
      %v6222 = vld [vmem:[%s17 + $0x7c] sm:$0xf]
      %v6223 = vld [vmem:[%s17 + $0x80] sm:$0xf]
      %v6224 = vld [vmem:[%s17 + $0x84] sm:$0xf]
      %v6225 = vld [vmem:[%s17 + $0x88] sm:$0xf]
      %v6226 = vld [vmem:[%s17 + $0x8c] sm:$0xf]
      %v6227 = vld [vmem:[%s17 + $0x90] sm:$0xf]
      %v6228 = vld [vmem:[%s17 + $0x94] sm:$0xf]
      %v6229 = vld [vmem:[%s17 + $0x98] sm:$0xf]
      %v6230 = vld [vmem:[%s17 + $0x9c] sm:$0xf]
      %v6231 = vld [vmem:[%s17 + $0xa0] sm:$0xf]
      %v6232 = vld [vmem:[%s17 + $0xa4] sm:$0xf]
      %v6233 = vld [vmem:[%s17 + $0xa8] sm:$0xf]
      %v6234 = vld [vmem:[%s17 + $0xac] sm:$0xf]
      %v6235 = vld [vmem:[%s17 + $0xb0] sm:$0xf]
      %v6236 = vld [vmem:[%s17 + $0xb4] sm:$0xf]
      %v6237 = vld [vmem:[%s17 + $0xb8] sm:$0xf]
      %v6238 = vld [vmem:[%s17 + $0xbc] sm:$0xf]
      %v6239 = vld [vmem:[%s17 + $0xc0] sm:$0xf]
      %v6240 = vld [vmem:[%s17 + $0xc4] sm:$0xf]
      %v6241 = vld [vmem:[%s17 + $0xc8] sm:$0xf]
      %v6242 = vld [vmem:[%s17 + $0xcc] sm:$0xf]
      %v6243 = vld [vmem:[%s17 + $0xd0] sm:$0xf]
      %v6244 = vld [vmem:[%s17 + $0xd4] sm:$0xf]
      %v6245 = vld [vmem:[%s17 + $0xd8] sm:$0xf]
      %v6246 = vld [vmem:[%s17 + $0xdc] sm:$0xf]
      %v6247 = vld [vmem:[%s17 + $0xe0] sm:$0xf]
      %v6248 = vld [vmem:[%s17 + $0xe4] sm:$0xf]
      %v6249 = vld [vmem:[%s17 + $0xe8] sm:$0xf]
      %v6250 = vld [vmem:[%s17 + $0xec] sm:$0xf]
      %v6251 = vld [vmem:[%s17 + $0xf0] sm:$0xf]
      %v6252 = vld [vmem:[%s17 + $0xf4] sm:$0xf]
      %v6253 = vld [vmem:[%s17 + $0xf8] sm:$0xf]
      %v6254 = vld [vmem:[%s17 + $0xfc] sm:$0xf]
      %v6255 = vld [vmem:[%s17 + $0x100] sm:$0xf]
      %v6256 = vld [vmem:[%s17 + $0x104] sm:$0xf]
      %v6257 = vld [vmem:[%s17 + $0x108] sm:$0xf]
      %v6258 = vld [vmem:[%s17 + $0x10c] sm:$0xf]
      %v6259 = vld [vmem:[%s17 + $0x110] sm:$0xf]
      %v6260 = vld [vmem:[%s17 + $0x114] sm:$0xf]
      %v6261 = vld [vmem:[%s17 + $0x118] sm:$0xf]
      %v6262 = vld [vmem:[%s17 + $0x11c] sm:$0xf]
      %v6263 = vld [vmem:[%s17 + $0x120] sm:$0xf]
      %v6264 = vld [vmem:[%s17 + $0x124] sm:$0xf]
      %v6265 = vld [vmem:[%s17 + $0x128] sm:$0xf]
      %v6266 = vld [vmem:[%s17 + $0x12c] sm:$0xf]
      %v6267 = vld [vmem:[%s17 + $0x130] sm:$0xf]
      %v6268 = vld [vmem:[%s17 + $0x134] sm:$0xf]
      %v6269 = vld [vmem:[%s17 + $0x138] sm:$0xf]
      %v6270 = vld [vmem:[%s17 + $0x13c] sm:$0xf]
      %v6271 = vld [vmem:[%s17 + $0x140] sm:$0xf]
      %v6272 = vld [vmem:[%s17 + $0x144] sm:$0xf]
      %v6273 = vld [vmem:[%s17 + $0x148] sm:$0xf]
      %v6274 = vld [vmem:[%s17 + $0x14c] sm:$0xf]
      %v6275 = vld [vmem:[%s17 + $0x150] sm:$0xf]
      %v6276 = vld [vmem:[%s17 + $0x154] sm:$0xf]
      %v6277 = vld [vmem:[%s17 + $0x158] sm:$0xf]
      %v6278 = vld [vmem:[%s17 + $0x15c] sm:$0xf]
      %v6279 = vld [vmem:[%s17 + $0x160] sm:$0xf]
      %v6280 = vld [vmem:[%s17 + $0x164] sm:$0xf]
      %v6281 = vld [vmem:[%s17 + $0x168] sm:$0xf]
      %v6282 = vld [vmem:[%s17 + $0x16c] sm:$0xf]
      %v6283 = vld [vmem:[%s17 + $0x170] sm:$0xf]
      %v6284 = vld [vmem:[%s17 + $0x174] sm:$0xf]
      %v6285 = vld [vmem:[%s17 + $0x178] sm:$0xf]
      %v6286 = vld [vmem:[%s17 + $0x17c] sm:$0xf]
      %v6287 = vld [vmem:[%s17 + $0x180] sm:$0xf]
      %v6288 = vld [vmem:[%s17 + $0x184] sm:$0xf]
      %v6289 = vld [vmem:[%s17 + $0x188] sm:$0xf]
      %v6290 = vld [vmem:[%s17 + $0x18c] sm:$0xf]
      %v6291 = vld [vmem:[%s17 + $0x190] sm:$0xf]
      %v6292 = vld [vmem:[%s17 + $0x194] sm:$0xf]
      %v6293 = vld [vmem:[%s17 + $0x198] sm:$0xf]
      %v6294 = vld [vmem:[%s17 + $0x19c] sm:$0xf]
      %v6295 = vld [vmem:[%s17 + $0x1a0] sm:$0xf]
      %v6296 = vld [vmem:[%s17 + $0x1a4] sm:$0xf]
      %v6297 = vld [vmem:[%s17 + $0x1a8] sm:$0xf]
      %v6298 = vld [vmem:[%s17 + $0x1ac] sm:$0xf]
      %v6299 = vld [vmem:[%s17 + $0x1b0] sm:$0xf]
      %v6300 = vld [vmem:[%s17 + $0x1b4] sm:$0xf]
      %v6301 = vld [vmem:[%s17 + $0x1b8] sm:$0xf]
      %v6302 = vld [vmem:[%s17 + $0x1bc] sm:$0xf]
      %v6303 = vld [vmem:[%s17 + $0x1c0] sm:$0xf]
      %v6304 = vld [vmem:[%s17 + $0x1c4] sm:$0xf]
      %v6305 = vld [vmem:[%s17 + $0x1c8] sm:$0xf]
      %v6306 = vld [vmem:[%s17 + $0x1cc] sm:$0xf]
      %v6307 = vld [vmem:[%s17 + $0x1d0] sm:$0xf]
      %v6308 = vld [vmem:[%s17 + $0x1d4] sm:$0xf]
      %v6309 = vld [vmem:[%s17 + $0x1d8] sm:$0xf]
      %v6310 = vld [vmem:[%s17 + $0x1dc] sm:$0xf]
      %v6311 = vld [vmem:[%s17 + $0x1e0] sm:$0xf]
      %v6312 = vld [vmem:[%s17 + $0x1e4] sm:$0xf]
      %v6313 = vld [vmem:[%s17 + $0x1e8] sm:$0xf]
      %v6314 = vld [vmem:[%s17 + $0x1ec] sm:$0xf]
      %v6315 = vld [vmem:[%s17 + $0x1f0] sm:$0xf]
      %v6316 = vld [vmem:[%s17 + $0x1f4] sm:$0xf]
      %v6317 = vld [vmem:[%s17 + $0x1f8] sm:$0xf]
      %v6318 = vld [vmem:[%s17 + $0x1fc] sm:$0xf]
      %v6319 = vld [vmem:[%s18] sm:$0x1]
      %v6321 = vlaneseq
      %v6322 = vshrl.u32 %v6321, 7
      %v6323 = vsub.s32 0, %v6322
      %v6324 = vrot.slane %v6319, %v6323
      %v6454 = vunpack.c.l.b16 %v6191
      %v6455 = vunpack.c.l.b16 %v6192
      %v6456 = vunpack.c.l.b16 %v6193
      %v6457 = vunpack.c.l.b16 %v6194
      %v6458 = vunpack.c.l.b16 %v6195
      %v6459 = vunpack.c.l.b16 %v6196
      %v6460 = vunpack.c.l.b16 %v6197
      %v6461 = vunpack.c.l.b16 %v6198
      %v6462 = vunpack.c.l.b16 %v6199
      %v6463 = vunpack.c.l.b16 %v6200
      %v6464 = vunpack.c.l.b16 %v6201
      %v6465 = vunpack.c.l.b16 %v6202
      %v6466 = vunpack.c.l.b16 %v6203
      %v6467 = vunpack.c.l.b16 %v6204
      %v6468 = vunpack.c.l.b16 %v6205
      %v6469 = vunpack.c.l.b16 %v6206
      %v6470 = vunpack.c.l.b16 %v6207
      %v6471 = vunpack.c.l.b16 %v6208
      %v6472 = vunpack.c.l.b16 %v6209
      %v6473 = vunpack.c.l.b16 %v6210
      %v6474 = vunpack.c.l.b16 %v6211
      %v6475 = vunpack.c.l.b16 %v6212
      %v6476 = vunpack.c.l.b16 %v6213
      %v6477 = vunpack.c.l.b16 %v6214
      %v6478 = vunpack.c.l.b16 %v6215
      %v6479 = vunpack.c.l.b16 %v6216
      %v6480 = vunpack.c.l.b16 %v6217
      %v6481 = vunpack.c.l.b16 %v6218
      %v6482 = vunpack.c.l.b16 %v6219
      %v6483 = vunpack.c.l.b16 %v6220
      %v6484 = vunpack.c.l.b16 %v6221
      %v6485 = vunpack.c.l.b16 %v6222
      %v6486 = vunpack.c.l.b16 %v6223
      %v6487 = vunpack.c.l.b16 %v6224
      %v6488 = vunpack.c.l.b16 %v6225
      %v6489 = vunpack.c.l.b16 %v6226
      %v6490 = vunpack.c.l.b16 %v6227
      %v6491 = vunpack.c.l.b16 %v6228
      %v6492 = vunpack.c.l.b16 %v6229
      %v6493 = vunpack.c.l.b16 %v6230
      %v6494 = vunpack.c.l.b16 %v6231
      %v6495 = vunpack.c.l.b16 %v6232
      %v6496 = vunpack.c.l.b16 %v6233
      %v6497 = vunpack.c.l.b16 %v6234
      %v6498 = vunpack.c.l.b16 %v6235
      %v6499 = vunpack.c.l.b16 %v6236
      %v6500 = vunpack.c.l.b16 %v6237
      %v6501 = vunpack.c.l.b16 %v6238
      %v6502 = vunpack.c.l.b16 %v6239
      %v6503 = vunpack.c.l.b16 %v6240
      %v6504 = vunpack.c.l.b16 %v6241
      %v6505 = vunpack.c.l.b16 %v6242
      %v6506 = vunpack.c.l.b16 %v6243
      %v6507 = vunpack.c.l.b16 %v6244
      %v6508 = vunpack.c.l.b16 %v6245
      %v6509 = vunpack.c.l.b16 %v6246
      %v6510 = vunpack.c.l.b16 %v6247
      %v6511 = vunpack.c.l.b16 %v6248
      %v6512 = vunpack.c.l.b16 %v6249
      %v6513 = vunpack.c.l.b16 %v6250
      %v6514 = vunpack.c.l.b16 %v6251
      %v6515 = vunpack.c.l.b16 %v6252
      %v6516 = vunpack.c.l.b16 %v6253
      %v6517 = vunpack.c.l.b16 %v6254
      %v6518 = vunpack.c.l.b16 %v6255
      %v6519 = vunpack.c.l.b16 %v6256
      %v6520 = vunpack.c.l.b16 %v6257
      %v6521 = vunpack.c.l.b16 %v6258
      %v6522 = vunpack.c.l.b16 %v6259
      %v6523 = vunpack.c.l.b16 %v6260
      %v6524 = vunpack.c.l.b16 %v6261
      %v6525 = vunpack.c.l.b16 %v6262
      %v6526 = vunpack.c.l.b16 %v6263
      %v6527 = vunpack.c.l.b16 %v6264
      %v6528 = vunpack.c.l.b16 %v6265
      %v6529 = vunpack.c.l.b16 %v6266
      %v6530 = vunpack.c.l.b16 %v6267
      %v6531 = vunpack.c.l.b16 %v6268
      %v6532 = vunpack.c.l.b16 %v6269
      %v6533 = vunpack.c.l.b16 %v6270
      %v6534 = vunpack.c.l.b16 %v6271
      %v6535 = vunpack.c.l.b16 %v6272
      %v6536 = vunpack.c.l.b16 %v6273
      %v6537 = vunpack.c.l.b16 %v6274
      %v6538 = vunpack.c.l.b16 %v6275
      %v6539 = vunpack.c.l.b16 %v6276
      %v6540 = vunpack.c.l.b16 %v6277
      %v6541 = vunpack.c.l.b16 %v6278
      %v6542 = vunpack.c.l.b16 %v6279
      %v6543 = vunpack.c.l.b16 %v6280
      %v6544 = vunpack.c.l.b16 %v6281
      %v6545 = vunpack.c.l.b16 %v6282
      %v6546 = vunpack.c.l.b16 %v6283
      %v6547 = vunpack.c.l.b16 %v6284
      %v6548 = vunpack.c.l.b16 %v6285
      %v6549 = vunpack.c.l.b16 %v6286
      %v6550 = vunpack.c.l.b16 %v6287
      %v6551 = vunpack.c.l.b16 %v6288
      %v6552 = vunpack.c.l.b16 %v6289
      %v6553 = vunpack.c.l.b16 %v6290
      %v6554 = vunpack.c.l.b16 %v6291
      %v6555 = vunpack.c.l.b16 %v6292
      %v6556 = vunpack.c.l.b16 %v6293
      %v6557 = vunpack.c.l.b16 %v6294
      %v6558 = vunpack.c.l.b16 %v6295
      %v6559 = vunpack.c.l.b16 %v6296
      %v6560 = vunpack.c.l.b16 %v6297
      %v6561 = vunpack.c.l.b16 %v6298
      %v6562 = vunpack.c.l.b16 %v6299
      %v6563 = vunpack.c.l.b16 %v6300
      %v6564 = vunpack.c.l.b16 %v6301
      %v6565 = vunpack.c.l.b16 %v6302
      %v6566 = vunpack.c.l.b16 %v6303
      %v6567 = vunpack.c.l.b16 %v6304
      %v6568 = vunpack.c.l.b16 %v6305
      %v6569 = vunpack.c.l.b16 %v6306
      %v6570 = vunpack.c.l.b16 %v6307
      %v6571 = vunpack.c.l.b16 %v6308
      %v6572 = vunpack.c.l.b16 %v6309
      %v6573 = vunpack.c.l.b16 %v6310
      %v6574 = vunpack.c.l.b16 %v6311
      %v6575 = vunpack.c.l.b16 %v6312
      %v6576 = vunpack.c.l.b16 %v6313
      %v6577 = vunpack.c.l.b16 %v6314
      %v6578 = vunpack.c.l.b16 %v6315
      %v6579 = vunpack.c.l.b16 %v6316
      %v6580 = vunpack.c.l.b16 %v6317
      %v6581 = vunpack.c.l.b16 %v6318
      %v6582 = vpack.c.b16 %v6455, %v6454
      %v6583 = vpack.c.b16 %v6457, %v6456
      %v6584 = vpack.c.b16 %v6459, %v6458
      %v6585 = vpack.c.b16 %v6461, %v6460
      %v6586 = vpack.c.b16 %v6463, %v6462
      %v6587 = vpack.c.b16 %v6465, %v6464
      %v6588 = vpack.c.b16 %v6467, %v6466
      %v6589 = vpack.c.b16 %v6469, %v6468
      %v6590 = vpack.c.b16 %v6471, %v6470
      %v6591 = vpack.c.b16 %v6473, %v6472
      %v6592 = vpack.c.b16 %v6475, %v6474
      %v6593 = vpack.c.b16 %v6477, %v6476
      %v6594 = vpack.c.b16 %v6479, %v6478
      %v6595 = vpack.c.b16 %v6481, %v6480
      %v6596 = vpack.c.b16 %v6483, %v6482
      %v6597 = vpack.c.b16 %v6485, %v6484
      %v6598 = vpack.c.b16 %v6487, %v6486
      %v6599 = vpack.c.b16 %v6489, %v6488
      %v6600 = vpack.c.b16 %v6491, %v6490
      %v6601 = vpack.c.b16 %v6493, %v6492
      %v6602 = vpack.c.b16 %v6495, %v6494
      %v6603 = vpack.c.b16 %v6497, %v6496
      %v6604 = vpack.c.b16 %v6499, %v6498
      %v6605 = vpack.c.b16 %v6501, %v6500
      %v6606 = vpack.c.b16 %v6503, %v6502
      %v6607 = vpack.c.b16 %v6505, %v6504
      %v6608 = vpack.c.b16 %v6507, %v6506
      %v6609 = vpack.c.b16 %v6509, %v6508
      %v6610 = vpack.c.b16 %v6511, %v6510
      %v6611 = vpack.c.b16 %v6513, %v6512
      %v6612 = vpack.c.b16 %v6515, %v6514
      %v6613 = vpack.c.b16 %v6517, %v6516
      %v6614 = vpack.c.b16 %v6519, %v6518
      %v6615 = vpack.c.b16 %v6521, %v6520
      %v6616 = vpack.c.b16 %v6523, %v6522
      %v6617 = vpack.c.b16 %v6525, %v6524
      %v6618 = vpack.c.b16 %v6527, %v6526
      %v6619 = vpack.c.b16 %v6529, %v6528
      %v6620 = vpack.c.b16 %v6531, %v6530
      %v6621 = vpack.c.b16 %v6533, %v6532
      %v6622 = vpack.c.b16 %v6535, %v6534
      %v6623 = vpack.c.b16 %v6537, %v6536
      %v6624 = vpack.c.b16 %v6539, %v6538
      %v6625 = vpack.c.b16 %v6541, %v6540
      %v6626 = vpack.c.b16 %v6543, %v6542
      %v6627 = vpack.c.b16 %v6545, %v6544
      %v6628 = vpack.c.b16 %v6547, %v6546
      %v6629 = vpack.c.b16 %v6549, %v6548
      %v6630 = vpack.c.b16 %v6551, %v6550
      %v6631 = vpack.c.b16 %v6553, %v6552
      %v6632 = vpack.c.b16 %v6555, %v6554
      %v6633 = vpack.c.b16 %v6557, %v6556
      %v6634 = vpack.c.b16 %v6559, %v6558
      %v6635 = vpack.c.b16 %v6561, %v6560
      %v6636 = vpack.c.b16 %v6563, %v6562
      %v6637 = vpack.c.b16 %v6565, %v6564
      %v6638 = vpack.c.b16 %v6567, %v6566
      %v6639 = vpack.c.b16 %v6569, %v6568
      %v6640 = vpack.c.b16 %v6571, %v6570
      %v6641 = vpack.c.b16 %v6573, %v6572
      %v6642 = vpack.c.b16 %v6575, %v6574
      %v6643 = vpack.c.b16 %v6577, %v6576
      %v6644 = vpack.c.b16 %v6579, %v6578
      %v6645 = vpack.c.b16 %v6581, %v6580
      %6710 = vmatprep.subr.bf16.mxu0 0
      %6711 = vmatpush1.bf16.msra.mxu0 %v6589
      %6712 = vmatprep.subr.bf16.mxu0 0
      %6713 = vmatpush1.bf16.msra.mxu0 %v6588
      %6714 = vmatprep.subr.bf16.mxu0 0
      %6715 = vmatpush1.bf16.msra.mxu0 %v6587
      %6716 = vmatprep.subr.bf16.mxu0 0
      %6717 = vmatpush1.bf16.msra.mxu0 %v6586
      %6718 = vmatprep.subr.bf16.mxu0 0
      %6719 = vmatpush1.bf16.msra.mxu0 %v6585
      %6720 = vmatprep.subr.bf16.mxu0 0
      %6721 = vmatpush1.bf16.msra.mxu0 %v6584
      %6722 = vmatprep.subr.bf16.mxu0 0
      %6723 = vmatpush1.bf16.msra.mxu0 %v6583
      %6724 = vmatprep.subr.bf16.mxu0 0
      %6725 = vmatpush1.bf16.msra.mxu0 %v6582
      %6726 = vmatprep.subr.bf16.mxu0 0
      %6727 = vmatpush2.bf16.msra.mxu0 %v6597
      %6728 = vmatprep.subr.bf16.mxu0 0
      %6729 = vmatpush2.bf16.msra.mxu0 %v6596
      %6730 = vmatprep.subr.bf16.mxu0 0
      %6731 = vmatpush2.bf16.msra.mxu0 %v6595
      %6732 = vmatprep.subr.bf16.mxu0 0
      %6733 = vmatpush2.bf16.msra.mxu0 %v6594
      %6734 = vmatprep.subr.bf16.mxu0 0
      %6735 = vmatpush2.bf16.msra.mxu0 %v6593
      %6736 = vmatprep.subr.bf16.mxu0 0
      %6737 = vmatpush2.bf16.msra.mxu0 %v6592
      %6738 = vmatprep.subr.bf16.mxu0 0
      %6739 = vmatpush2.bf16.msra.mxu0 %v6591
      %6740 = vmatprep.subr.bf16.mxu0 0
      %6741 = vmatpush2.bf16.msra.mxu0 %v6590
      %6742 = vmatprep.mubr.bf16.mxu0 %v5182
      %6743 = vmatmul.mubr.bf16.gmra.mxu0 %v5015
      %v6744 = vpop.f32.mrf.mxu0
      %v6745 = vadd.f32 %v6324, %v6744
      %v6746 = vpop.f32.mrf.mxu0
      %v6747 = vpop.f32.mrf.mxu0
      %v6748 = vadd.f32 %v6324, %v6747
      %v6749 = vpop.f32.mrf.mxu0
      %6750 = vmatprep.mubr.bf16.mxu0 %v5183
      %6751 = vmatmul.mubr.bf16.gmra.mxu0 %v5016
      %v6752 = vpop.f32.mrf.mxu0
      %v6753 = vadd.f32 %v6324, %v6752
      %v6754 = vpop.f32.mrf.mxu0
      %v6755 = vpop.f32.mrf.mxu0
      %v6756 = vadd.f32 %v6324, %v6755
      %v6757 = vpop.f32.mrf.mxu0
      %6758 = vmatprep.mubr.bf16.mxu0 %v5184
      %6759 = vmatmul.mubr.bf16.gmra.mxu0 %v5017
      %v6760 = vpop.f32.mrf.mxu0
      %v6761 = vadd.f32 %v6324, %v6760
      %v6762 = vpop.f32.mrf.mxu0
      %v6763 = vpop.f32.mrf.mxu0
      %v6764 = vadd.f32 %v6324, %v6763
      %v6765 = vpop.f32.mrf.mxu0
      %6766 = vmatprep.mubr.bf16.mxu0 %v5185
      %6767 = vmatmul.mubr.bf16.gmra.mxu0 %v5018
      %v6768 = vpop.f32.mrf.mxu0
      %v6769 = vadd.f32 %v6324, %v6768
      %v6770 = vpop.f32.mrf.mxu0
      %v6771 = vpop.f32.mrf.mxu0
      %v6772 = vadd.f32 %v6324, %v6771
      %v6773 = vpop.f32.mrf.mxu0
      %6774 = vmatprep.mubr.bf16.mxu0 %v5186
      %6775 = vmatmul.mubr.bf16.gmra.mxu0 %v5019
      %v6776 = vpop.f32.mrf.mxu0
      %v6777 = vadd.f32 %v6324, %v6776
      %v6778 = vpop.f32.mrf.mxu0
      %v6779 = vpop.f32.mrf.mxu0
      %v6780 = vadd.f32 %v6324, %v6779
      %v6781 = vpop.f32.mrf.mxu0
      %6782 = vmatprep.mubr.bf16.mxu0 %v5187
      %6783 = vmatmul.mubr.bf16.gmra.mxu0 %v5020
      %v6784 = vpop.f32.mrf.mxu0
      %v6785 = vadd.f32 %v6324, %v6784
      %v6786 = vpop.f32.mrf.mxu0
      %v6787 = vpop.f32.mrf.mxu0
      %v6788 = vadd.f32 %v6324, %v6787
      %v6789 = vpop.f32.mrf.mxu0
      %6790 = vmatprep.mubr.bf16.mxu0 %v5188
      %6791 = vmatmul.mubr.bf16.gmra.mxu0 %v5021
      %v6792 = vpop.f32.mrf.mxu0
      %v6793 = vadd.f32 %v6324, %v6792
      %v6794 = vpop.f32.mrf.mxu0
      %v6795 = vpop.f32.mrf.mxu0
      %v6796 = vadd.f32 %v6324, %v6795
      %v6797 = vpop.f32.mrf.mxu0
      %6798 = vdwg.mxu0
      %6799 = vmatprep.subr.bf16.mxu0 0
      %6800 = vmatpush1.bf16.msra.mxu0 %v6605
      %6801 = vmatprep.subr.bf16.mxu0 0
      %6802 = vmatpush1.bf16.msra.mxu0 %v6604
      %6803 = vmatprep.subr.bf16.mxu0 0
      %6804 = vmatpush1.bf16.msra.mxu0 %v6603
      %6805 = vmatprep.subr.bf16.mxu0 0
      %6806 = vmatpush1.bf16.msra.mxu0 %v6602
      %6807 = vmatprep.subr.bf16.mxu0 0
      %6808 = vmatpush1.bf16.msra.mxu0 %v6601
      %6809 = vmatprep.subr.bf16.mxu0 0
      %6810 = vmatpush1.bf16.msra.mxu0 %v6600
      %6811 = vmatprep.subr.bf16.mxu0 0
      %6812 = vmatpush1.bf16.msra.mxu0 %v6599
      %6813 = vmatprep.subr.bf16.mxu0 0
      %6814 = vmatpush1.bf16.msra.mxu0 %v6598
      %6815 = vmatprep.subr.bf16.mxu0 0
      %6816 = vmatpush2.bf16.msra.mxu0 %v6613
      %6817 = vmatprep.subr.bf16.mxu0 0
      %6818 = vmatpush2.bf16.msra.mxu0 %v6612
      %6819 = vmatprep.subr.bf16.mxu0 0
      %6820 = vmatpush2.bf16.msra.mxu0 %v6611
      %6821 = vmatprep.subr.bf16.mxu0 0
      %6822 = vmatpush2.bf16.msra.mxu0 %v6610
      %6823 = vmatprep.subr.bf16.mxu0 0
      %6824 = vmatpush2.bf16.msra.mxu0 %v6609
      %6825 = vmatprep.subr.bf16.mxu0 0
      %6826 = vmatpush2.bf16.msra.mxu0 %v6608
      %6827 = vmatprep.subr.bf16.mxu0 0
      %6828 = vmatpush2.bf16.msra.mxu0 %v6607
      %6829 = vmatprep.subr.bf16.mxu0 0
      %6830 = vmatpush2.bf16.msra.mxu0 %v6606
      %6831 = vmatprep.mubr.bf16.mxu0 %v5516
      %6832 = vmatmul.mubr.bf16.gmra.mxu0 %v5349
      %v6833 = vpop.f32.mrf.mxu0
      %v6834 = vadd.f32 %v6745, %v6833
      %v6835 = vpop.f32.mrf.mxu0
      %v6836 = vpop.f32.mrf.mxu0
      %v6837 = vadd.f32 %v6748, %v6836
      %v6838 = vpop.f32.mrf.mxu0
      %6839 = vmatprep.mubr.bf16.mxu0 %v5517
      %6840 = vmatmul.mubr.bf16.gmra.mxu0 %v5350
      %v6841 = vpop.f32.mrf.mxu0
      %v6842 = vadd.f32 %v6753, %v6841
      %v6843 = vpop.f32.mrf.mxu0
      %v6844 = vpop.f32.mrf.mxu0
      %v6845 = vadd.f32 %v6756, %v6844
      %v6846 = vpop.f32.mrf.mxu0
      %6847 = vmatprep.mubr.bf16.mxu0 %v5518
      %6848 = vmatmul.mubr.bf16.gmra.mxu0 %v5351
      %v6849 = vpop.f32.mrf.mxu0
      %v6850 = vadd.f32 %v6761, %v6849
      %v6851 = vpop.f32.mrf.mxu0
      %v6852 = vpop.f32.mrf.mxu0
      %v6853 = vadd.f32 %v6764, %v6852
      %v6854 = vpop.f32.mrf.mxu0
      %6855 = vmatprep.mubr.bf16.mxu0 %v5519
      %6856 = vmatmul.mubr.bf16.gmra.mxu0 %v5352
      %v6857 = vpop.f32.mrf.mxu0
      %v6858 = vadd.f32 %v6769, %v6857
      %v6859 = vpop.f32.mrf.mxu0
      %v6860 = vpop.f32.mrf.mxu0
      %v6861 = vadd.f32 %v6772, %v6860
      %v6862 = vpop.f32.mrf.mxu0
      %6863 = vmatprep.mubr.bf16.mxu0 %v5520
      %6864 = vmatmul.mubr.bf16.gmra.mxu0 %v5353
      %v6865 = vpop.f32.mrf.mxu0
      %v6866 = vadd.f32 %v6777, %v6865
      %v6867 = vpop.f32.mrf.mxu0
      %v6868 = vpop.f32.mrf.mxu0
      %v6869 = vadd.f32 %v6780, %v6868
      %v6870 = vpop.f32.mrf.mxu0
      %6871 = vmatprep.mubr.bf16.mxu0 %v5521
      %6872 = vmatmul.mubr.bf16.gmra.mxu0 %v5354
      %v6873 = vpop.f32.mrf.mxu0
      %v6874 = vadd.f32 %v6785, %v6873
      %v6875 = vpop.f32.mrf.mxu0
      %v6876 = vpop.f32.mrf.mxu0
      %v6877 = vadd.f32 %v6788, %v6876
      %v6878 = vpop.f32.mrf.mxu0
      %6879 = vmatprep.mubr.bf16.mxu0 %v5522
      %6880 = vmatmul.mubr.bf16.gmra.mxu0 %v5355
      %v6881 = vpop.f32.mrf.mxu0
      %v6882 = vadd.f32 %v6793, %v6881
      %v6883 = vpop.f32.mrf.mxu0
      %v6884 = vpop.f32.mrf.mxu0
      %v6885 = vadd.f32 %v6796, %v6884
      %v6886 = vpop.f32.mrf.mxu0
      %6887 = vdwg.mxu0
      %6888 = vmatprep.subr.bf16.mxu0 0
      %6889 = vmatpush1.bf16.msra.mxu0 %v6621
      %6890 = vmatprep.subr.bf16.mxu0 0
      %6891 = vmatpush1.bf16.msra.mxu0 %v6620
      %6892 = vmatprep.subr.bf16.mxu0 0
      %6893 = vmatpush1.bf16.msra.mxu0 %v6619
      %6894 = vmatprep.subr.bf16.mxu0 0
      %6895 = vmatpush1.bf16.msra.mxu0 %v6618
      %6896 = vmatprep.subr.bf16.mxu0 0
      %6897 = vmatpush1.bf16.msra.mxu0 %v6617
      %6898 = vmatprep.subr.bf16.mxu0 0
      %6899 = vmatpush1.bf16.msra.mxu0 %v6616
      %6900 = vmatprep.subr.bf16.mxu0 0
      %6901 = vmatpush1.bf16.msra.mxu0 %v6615
      %6902 = vmatprep.subr.bf16.mxu0 0
      %6903 = vmatpush1.bf16.msra.mxu0 %v6614
      %6904 = vmatprep.subr.bf16.mxu0 0
      %6905 = vmatpush2.bf16.msra.mxu0 %v6629
      %6906 = vmatprep.subr.bf16.mxu0 0
      %6907 = vmatpush2.bf16.msra.mxu0 %v6628
      %6908 = vmatprep.subr.bf16.mxu0 0
      %6909 = vmatpush2.bf16.msra.mxu0 %v6627
      %6910 = vmatprep.subr.bf16.mxu0 0
      %6911 = vmatpush2.bf16.msra.mxu0 %v6626
      %6912 = vmatprep.subr.bf16.mxu0 0
      %6913 = vmatpush2.bf16.msra.mxu0 %v6625
      %6914 = vmatprep.subr.bf16.mxu0 0
      %6915 = vmatpush2.bf16.msra.mxu0 %v6624
      %6916 = vmatprep.subr.bf16.mxu0 0
      %6917 = vmatpush2.bf16.msra.mxu0 %v6623
      %6918 = vmatprep.subr.bf16.mxu0 0
      %6919 = vmatpush2.bf16.msra.mxu0 %v6622
      %6920 = vmatprep.mubr.bf16.mxu0 %v5850
      %6921 = vmatmul.mubr.bf16.gmra.mxu0 %v5683
      %v6922 = vpop.f32.mrf.mxu0
      %v6923 = vadd.f32 %v6834, %v6922
      %v6924 = vpop.f32.mrf.mxu0
      %v6925 = vpop.f32.mrf.mxu0
      %v6926 = vadd.f32 %v6837, %v6925
      %v6927 = vpop.f32.mrf.mxu0
      %6928 = vmatprep.mubr.bf16.mxu0 %v5851
      %6929 = vmatmul.mubr.bf16.gmra.mxu0 %v5684
      %v6930 = vpop.f32.mrf.mxu0
      %v6931 = vadd.f32 %v6842, %v6930
      %v6932 = vpop.f32.mrf.mxu0
      %v6933 = vpop.f32.mrf.mxu0
      %v6934 = vadd.f32 %v6845, %v6933
      %v6935 = vpop.f32.mrf.mxu0
      %6936 = vmatprep.mubr.bf16.mxu0 %v5852
      %6937 = vmatmul.mubr.bf16.gmra.mxu0 %v5685
      %v6938 = vpop.f32.mrf.mxu0
      %v6939 = vadd.f32 %v6850, %v6938
      %v6940 = vpop.f32.mrf.mxu0
      %v6941 = vpop.f32.mrf.mxu0
      %v6942 = vadd.f32 %v6853, %v6941
      %v6943 = vpop.f32.mrf.mxu0
      %6944 = vmatprep.mubr.bf16.mxu0 %v5853
      %6945 = vmatmul.mubr.bf16.gmra.mxu0 %v5686
      %v6946 = vpop.f32.mrf.mxu0
      %v6947 = vadd.f32 %v6858, %v6946
      %v6948 = vpop.f32.mrf.mxu0
      %v6949 = vpop.f32.mrf.mxu0
      %v6950 = vadd.f32 %v6861, %v6949
      %v6951 = vpop.f32.mrf.mxu0
      %6952 = vmatprep.mubr.bf16.mxu0 %v5854
      %6953 = vmatmul.mubr.bf16.gmra.mxu0 %v5687
      %v6954 = vpop.f32.mrf.mxu0
      %v6955 = vadd.f32 %v6866, %v6954
      %v6956 = vpop.f32.mrf.mxu0
      %v6957 = vpop.f32.mrf.mxu0
      %v6958 = vadd.f32 %v6869, %v6957
      %v6959 = vpop.f32.mrf.mxu0
      %6960 = vmatprep.mubr.bf16.mxu0 %v5855
      %6961 = vmatmul.mubr.bf16.gmra.mxu0 %v5688
      %v6962 = vpop.f32.mrf.mxu0
      %v6963 = vadd.f32 %v6874, %v6962
      %v6964 = vpop.f32.mrf.mxu0
      %v6965 = vpop.f32.mrf.mxu0
      %v6966 = vadd.f32 %v6877, %v6965
      %v6967 = vpop.f32.mrf.mxu0
      %6968 = vmatprep.mubr.bf16.mxu0 %v5856
      %6969 = vmatmul.mubr.bf16.gmra.mxu0 %v5689
      %v6970 = vpop.f32.mrf.mxu0
      %v6971 = vadd.f32 %v6882, %v6970
      %v6972 = vpop.f32.mrf.mxu0
      %v6973 = vpop.f32.mrf.mxu0
      %v6974 = vadd.f32 %v6885, %v6973
      %v6975 = vpop.f32.mrf.mxu0
      %6976 = vdwg.mxu0
      %6977 = vmatprep.subr.bf16.mxu0 0
      %6978 = vmatpush1.bf16.msra.mxu0 %v6637
      %6979 = vmatprep.subr.bf16.mxu0 0
      %6980 = vmatpush1.bf16.msra.mxu0 %v6636
      %6981 = vmatprep.subr.bf16.mxu0 0
      %6982 = vmatpush1.bf16.msra.mxu0 %v6635
      %6983 = vmatprep.subr.bf16.mxu0 0
      %6984 = vmatpush1.bf16.msra.mxu0 %v6634
      %6985 = vmatprep.subr.bf16.mxu0 0
      %6986 = vmatpush1.bf16.msra.mxu0 %v6633
      %6987 = vmatprep.subr.bf16.mxu0 0
      %6988 = vmatpush1.bf16.msra.mxu0 %v6632
      %6989 = vmatprep.subr.bf16.mxu0 0
      %6990 = vmatpush1.bf16.msra.mxu0 %v6631
      %6991 = vmatprep.subr.bf16.mxu0 0
      %6992 = vmatpush1.bf16.msra.mxu0 %v6630
      %6993 = vmatprep.subr.bf16.mxu0 0
      %6994 = vmatpush2.bf16.msra.mxu0 %v6645
      %6995 = vmatprep.subr.bf16.mxu0 0
      %6996 = vmatpush2.bf16.msra.mxu0 %v6644
      %6997 = vmatprep.subr.bf16.mxu0 0
      %6998 = vmatpush2.bf16.msra.mxu0 %v6643
      %6999 = vmatprep.subr.bf16.mxu0 0
      %7000 = vmatpush2.bf16.msra.mxu0 %v6642
      %7001 = vmatprep.subr.bf16.mxu0 0
      %7002 = vmatpush2.bf16.msra.mxu0 %v6641
      %7003 = vmatprep.subr.bf16.mxu0 0
      %7004 = vmatpush2.bf16.msra.mxu0 %v6640
      %7005 = vmatprep.subr.bf16.mxu0 0
      %7006 = vmatpush2.bf16.msra.mxu0 %v6639
      %7007 = vmatprep.subr.bf16.mxu0 0
      %7008 = vmatpush2.bf16.msra.mxu0 %v6638
      %7009 = vmatprep.mubr.bf16.mxu0 %v6184
      %7010 = vmatmul.mubr.bf16.gmra.mxu0 %v6017
      %v7011 = vpop.f32.mrf.mxu0
      %v7012 = vadd.f32 %v6923, %v7011
      %v7013 = vpop.f32.mrf.mxu0
      %v7014 = vpop.f32.mrf.mxu0
      %v7015 = vadd.f32 %v6926, %v7014
      %v7016 = vpop.f32.mrf.mxu0
      %7017 = vmatprep.mubr.bf16.mxu0 %v6185
      %7018 = vmatmul.mubr.bf16.gmra.mxu0 %v6018
      %v7019 = vpop.f32.mrf.mxu0
      %v7020 = vadd.f32 %v6931, %v7019
      %v7021 = vpop.f32.mrf.mxu0
      %v7022 = vpop.f32.mrf.mxu0
      %v7023 = vadd.f32 %v6934, %v7022
      %v7024 = vpop.f32.mrf.mxu0
      %7025 = vmatprep.mubr.bf16.mxu0 %v6186
      %7026 = vmatmul.mubr.bf16.gmra.mxu0 %v6019
      %v7027 = vpop.f32.mrf.mxu0
      %v7028 = vadd.f32 %v6939, %v7027
      %v7029 = vpop.f32.mrf.mxu0
      %v7030 = vpop.f32.mrf.mxu0
      %v7031 = vadd.f32 %v6942, %v7030
      %v7032 = vpop.f32.mrf.mxu0
      %7033 = vmatprep.mubr.bf16.mxu0 %v6187
      %7034 = vmatmul.mubr.bf16.gmra.mxu0 %v6020
      %v7035 = vpop.f32.mrf.mxu0
      %v7036 = vadd.f32 %v6947, %v7035
      %v7037 = vpop.f32.mrf.mxu0
      %v7038 = vpop.f32.mrf.mxu0
      %v7039 = vadd.f32 %v6950, %v7038
      %v7040 = vpop.f32.mrf.mxu0
      %7041 = vmatprep.mubr.bf16.mxu0 %v6188
      %7042 = vmatmul.mubr.bf16.gmra.mxu0 %v6021
      %v7043 = vpop.f32.mrf.mxu0
      %v7044 = vadd.f32 %v6955, %v7043
      %v7045 = vpop.f32.mrf.mxu0
      %v7046 = vpop.f32.mrf.mxu0
      %v7047 = vadd.f32 %v6958, %v7046
      %v7048 = vpop.f32.mrf.mxu0
      %7049 = vmatprep.mubr.bf16.mxu0 %v6189
      %7050 = vmatmul.mubr.bf16.gmra.mxu0 %v6022
      %v7051 = vpop.f32.mrf.mxu0
      %v7052 = vadd.f32 %v6963, %v7051
      %v7053 = vpop.f32.mrf.mxu0
      %v7054 = vpop.f32.mrf.mxu0
      %v7055 = vadd.f32 %v6966, %v7054
      %v7056 = vpop.f32.mrf.mxu0
      %7057 = vmatprep.mubr.bf16.mxu0 %v6190
      %7058 = vmatmul.mubr.bf16.gmra.mxu0 %v6023
      %v7059 = vpop.f32.mrf.mxu0
      %v7060 = vadd.f32 %v6971, %v7059
      %v7061 = vpop.f32.mrf.mxu0
      %v7062 = vpop.f32.mrf.mxu0
      %v7063 = vadd.f32 %v6974, %v7062
      %v7064 = vpop.f32.mrf.mxu0
      %7065 = vdwg.mxu0
      %v7066 = vtanh.pop %v7012
      %v7067 = vtanh.pop %v7015
      %v7068 = vtanh.pop %v7020
      %v7069 = vtanh.pop %v7023
      %v7070 = vtanh.pop %v7028
      %v7071 = vtanh.pop %v7031
      %v7072 = vtanh.pop %v7036
      %v7073 = vtanh.pop %v7039
      %v7074 = vtanh.pop %v7044
      %v7075 = vtanh.pop %v7047
      %v7076 = vtanh.pop %v7052
      %v7077 = vtanh.pop %v7055
      %v7078 = vtanh.pop %v7060
      %v7079 = vtanh.pop %v7063
      %7080 = vst [vmem:[%s604] sm:$0xff] %v7066
      %7081 = vst [vmem:[%s604 + $0x8] sm:$0xff] %v7067
      %7082 = vst [vmem:[%s604 + $0x10] sm:$0xff] %v7068
      %7083 = vst [vmem:[%s604 + $0x18] sm:$0xff] %v7069
      %7084 = vst [vmem:[%s604 + $0x20] sm:$0xff] %v7070
      %7085 = vst [vmem:[%s604 + $0x28] sm:$0xff] %v7071
      %7086 = vst [vmem:[%s604 + $0x30] sm:$0xff] %v7072
      %7087 = vst [vmem:[%s604 + $0x38] sm:$0xff] %v7073
      %7088 = vst [vmem:[%s604 + $0x40] sm:$0xff] %v7074
      %7089 = vst [vmem:[%s604 + $0x48] sm:$0xff] %v7075
      %7090 = vst [vmem:[%s604 + $0x50] sm:$0xff] %v7076
      %7091 = vst [vmem:[%s604 + $0x58] sm:$0xff] %v7077
      %7092 = vst [vmem:[%s604 + $0x60] sm:$0xff] %v7078
      %7093 = vst [vmem:[%s604 + $0x68] sm:$0xff] %v7079
      %s7094 = smul.u32 14, %s30
      %p7095 = scmp.lt.s32.totalorder %s7094, 27
      %s7096 = scalar_select %p7095, %s7094, 27
      %s7097 = smul.addr %s7096, 8
      %s7098 = scalar_lea.vmem %s19, %s7097
      // Predicated region
      $region97: #{autoencoder8_forward.1} parent=95 // pred_check
        %p7099 = pneg %p452
      $region98: #{autoencoder8_forward.1} parent=95 // pred_check_branch
        %7101 = sbr.rel (%p7099) target = $region100
      $region99: #{autoencoder8_forward.1} parent=95 // pred_region
        %s7102 = smul.u32 14, %s30
      $region100: #{autoencoder8_forward.1} parent=95 // pred_fallthru
        _
    $region96: #{autoencoder8_forward.1} parent=5 // pred_fallthru
      _
    %p7103 = scmp.le.s32.totalorder 2, %s25
    // Predicated region
    $region101: #{autoencoder8_forward.1} parent=5 // pred_check
      %p7104 = pneg %p7103
    $region102: #{autoencoder8_forward.1} parent=5 // pred_check_branch
      %7106 = sbr.rel (%p7104) target = $region104
    $region103: #{autoencoder8_forward.1} parent=5 // pred_region
      %s7107 = ssub.s32 %s25, 2
      // Predicated region
      $region105: #{autoencoder8_forward.1} parent=103 // pred_check
        %p7108 = pneg %p458
      $region106: #{autoencoder8_forward.1} parent=103 // pred_check_branch
        %7110 = sbr.rel (%p7108) target = $region108
      $region107: #{autoencoder8_forward.1} parent=103 // pred_region
        %s7111 = smul.u32 14, %s31
        %p7112 = scmp.lt.s32.totalorder %s7111, 27
        %s7113 = scalar_select %p7112, %s7111, 27
        %s7114 = smul.addr %s7113, 8
        %s7115 = scalar_lea.vmem %s19, %s7114
      $region108: #{autoencoder8_forward.1} parent=103 // pred_fallthru
        _
    $region104: #{autoencoder8_forward.1} parent=5 // pred_fallthru
      _
  $region6: #{autoencoder8_forward.1} parent=0 // loop_footer
    %s29 = sadd.s32 1, %s25
  $region7: #{autoencoder8_forward.1} parent=0 // loop_footer_branch
    %24 = sbr.rel target = $region3
  $region8: #{autoencoder8_forward.1} parent=0 // loop_exit
    _

</llo_original>
